<compile_context>
chip_gen: v6e
topology: v6e:2x2x1
jax: 0.10.0
libtpu: 0.0.40
codegen_flags: <defaults>
</compile_context>

<pallas_src>
import functools

import jax
import jax.numpy as jnp
from jax.experimental import pallas as pl
from jax.experimental.pallas import tpu as pltpu

NF = 64            # nf
DC = NF // 4       # distilled channels = 16
UPSCALE = 4
IN_NC = 3
OUT_NC = 3
NUM_MODULES = 12

_BF16 = jnp.bfloat16
_F32 = jnp.float32
_ACT = "relu"


@functools.lru_cache(maxsize=None)
def _vmem_limit():
    """Generation-aware scoped VMEM request (v5e/v6e: 128 MiB, v7x: 64 MiB)."""
    try:
        cap = int(pltpu.get_tpu_info().vmem_capacity_bytes)
        return int(min(cap * 3 // 4, 100 * 1024 * 1024))
    except Exception:
        return 64 * 1024 * 1024


def _mosaic_params(*sem):
    return pltpu.CompilerParams(dimension_semantics=sem,
                                vmem_limit_bytes=_vmem_limit())


def _row_tiles(H, W, stride, budget_rows=2048):
    """Pick a row-tile TH that divides H.  Only tile when the image is large
    and W is 8-aligned (keeps every BlockSpec (8,128)-legal)."""
    if H * W <= budget_rows or W % 8 != 0:
        return H, 1
    cap = max(1, budget_rows // W)
    for th in range(min(cap, H), 0, -1):
        if H % th == 0 and (stride == 1 or th % 2 == 0):
            return th, H // th
    return H, 1


def _pick_rows(hw, cap=2048):
    """Row tile for the 1x1 kernels: largest divisor of hw <= cap, 16-aligned."""
    if hw <= cap:
        return hw
    for step in (16, 8):
        t = cap - (cap % step)
        while t >= step:
            if hw % t == 0:
                return t
            t -= step
    return hw


# ---------------------------------------------------------------------------
# Pallas kernels
# ---------------------------------------------------------------------------
def _conv3x3_kernel(TH, W, Cin, Cout, act, stride, halo, x_ref, *rest):
    """Direct 3x3 'same' conv over one row-tile, halo handled in-kernel.

    x_ref : (1, TH*W, Cin) bf16  -- row-tile, rows flattened (no padding).
    halo  : top/bot refs (1, W, Cin) (only when the image is row-tiled).
    w_ref : (9*Cin, Cout) bf16   -- tap-stacked weights (kh, kw, cin) major.
    b_ref : (1, Cout) f32
    o_ref : (1, TH*W, Cout) bf16 (stride 1)  or (1, (TH//2)*W, Cout) (stride 2).
    """
    if halo:
        top_ref, bot_ref, w_ref, b_ref, o_ref = rest
    else:
        w_ref, b_ref, o_ref = rest

    M = TH * W
    cur = x_ref[0]                                          # (M, Cin) bf16
    if halo:
        i = pl.program_id(1)
        nt = pl.num_programs(1)
        tmask = (i > 0).astype(cur.dtype)
        bmask = (i < nt - 1).astype(cur.dtype)
        top = top_ref[0] * tmask                            # (W, Cin)
        bot = bot_ref[0] * bmask
    else:
        top = jnp.zeros((W, Cin), cur.dtype)
        bot = jnp.zeros((W, Cin), cur.dtype)
    zrow = jnp.zeros((1, Cin), cur.dtype)
    # ext rows: [zero | top halo row | TH tile rows | bottom halo row | zero]
    ext = jnp.concatenate([zrow, top, cur, bot, zrow], axis=0)  # (M+2W+2, Cin)

    # Column-boundary masks (zero operand rows whose shifted column wraps).
    col = jax.lax.broadcasted_iota(jnp.int32, (M, 1), 0) % W
    mask_l = (col != 0).astype(cur.dtype)                   # kw = 0 reads x-1
    mask_r = (col != W - 1).astype(cur.dtype)               # kw = 2 reads x+1

    parts = []
    for kh in range(3):
        base = kh * W
        parts.append(ext[base + 0: base + 0 + M] * mask_l)
        parts.append(ext[base + 1: base + 1 + M])
        parts.append(ext[base + 2: base + 2 + M] * mask_r)
    a = jnp.concatenate(parts, axis=-1)                     # (M, 9*Cin) bf16

    acc = jnp.dot(a, w_ref[...], preferred_element_type=jnp.float32)
    acc = acc + b_ref[...]
    if act == "relu":
        acc = jnp.maximum(acc, 0.0)

    if stride == 2:
        # keep only even stride-1 output rows (chunks of W flattened rows);
        # column decimation happens in the wrapper.
        chunks = [acc[(2 * r) * W:(2 * r) * W + W] for r in range(TH // 2)]
        acc = chunks[0] if len(chunks) == 1 else jnp.concatenate(chunks, axis=0)

    o_ref[0] = acc.astype(o_ref.dtype)


@functools.lru_cache(maxsize=None)
def _build_conv3x3(N, H, W, Cin, Cout, TH, nt, act, stride):
    halo = nt > 1
    M_in = TH * W
    M_out = (TH // stride) * W
    kernel = functools.partial(_conv3x3_kernel, TH, W, Cin, Cout, act, stride,
                               halo)
    in_specs = [pl.BlockSpec((1, M_in, Cin), lambda n, i: (n, i, 0))]
    if halo:
        in_specs += [
            pl.BlockSpec((1, W, Cin),
                         lambda n, i: (n, jnp.maximum(i * TH - 1, 0), 0)),
            pl.BlockSpec((1, W, Cin),
                         lambda n, i: (n, jnp.minimum((i + 1) * TH, H - 1), 0)),
        ]
    in_specs += [
        pl.BlockSpec((9 * Cin, Cout), lambda n, i: (0, 0)),
        pl.BlockSpec((1, Cout), lambda n, i: (0, 0)),
    ]
    return pl.pallas_call(
        kernel,
        out_shape=jax.ShapeDtypeStruct((N, (H // stride) * W, Cout), _BF16),
        grid=(N, nt),
        in_specs=in_specs,
        out_specs=pl.BlockSpec((1, M_out, Cout), lambda n, i: (n, i, 0)),
        compiler_params=_mosaic_params("parallel", "parallel"),
    )


def _cca_kernel(inv_hw, x_ref, w1_ref, b1_ref, w2_ref, b2_ref, y_ref,
                s1_ref, s2_ref):
    """CCALayer attention vector with a tiled (HW) reduction: contrast + mean
    stats accumulated in f32 scratch; 1x1 64->4 ReLU, 1x1 4->64 sigmoid."""
    j = pl.program_id(1)

    @pl.when(j == 0)
    def _():
        s1_ref[...] = jnp.zeros_like(s1_ref)
        s2_ref[...] = jnp.zeros_like(s2_ref)

    v = x_ref[0].astype(jnp.float32)                        # (TM, C)
    s1_ref[...] += jnp.sum(v, axis=0, keepdims=True)
    s2_ref[...] += jnp.sum(v * v, axis=0, keepdims=True)

    @pl.when(j == pl.num_programs(1) - 1)
    def _():
        mean = s1_ref[...] * inv_hw
        var = jnp.maximum(s2_ref[...] * inv_hw - mean * mean, 0.0)
        z = jnp.sqrt(var) + mean                            # contrast + avgpool
        h = jnp.dot(z.astype(_BF16), w1_ref[...],
                    preferred_element_type=jnp.float32) + b1_ref[...]
        h = jnp.maximum(h, 0.0)
        s = jnp.dot(h.astype(_BF16), w2_ref[...],
                    preferred_element_type=jnp.float32) + b2_ref[...]
        y_ref[0] = jax.nn.sigmoid(s)


@functools.lru_cache(maxsize=None)
def _build_cca(N, HW, TM, C):
    CR = C // 16
    kernel = functools.partial(_cca_kernel, 1.0 / float(HW))
    return pl.pallas_call(
        kernel,
        out_shape=jax.ShapeDtypeStruct((N, 1, C), _F32),
        grid=(N, HW // TM),
        in_specs=[
            pl.BlockSpec((1, TM, C), lambda n, j: (n, j, 0)),
            pl.BlockSpec((C, CR), lambda n, j: (0, 0)),
            pl.BlockSpec((1, CR), lambda n, j: (0, 0)),
            pl.BlockSpec((CR, C), lambda n, j: (0, 0)),
            pl.BlockSpec((1, C), lambda n, j: (0, 0)),
        ],
        out_specs=pl.BlockSpec((1, 1, C), lambda n, j: (n, 0, 0)),
        scratch_shapes=[pltpu.VMEM((1, C), _F32), pltpu.VMEM((1, C), _F32)],
        compiler_params=_mosaic_params("parallel", "arbitrary"),
    )


def _c5_kernel(out_ref, y_ref, w_ref, b_ref, res_ref, o_ref):
    """Fused: CCA channel scale, c5 1x1 conv, module residual add."""
    scaled = (out_ref[0].astype(jnp.float32) * y_ref[0]).astype(_BF16)
    t = jnp.dot(scaled, w_ref[...], preferred_element_type=jnp.float32)
    t = t + b_ref[...] + res_ref[0].astype(jnp.float32)
    o_ref[0] = t.astype(o_ref.dtype)


@functools.lru_cache(maxsize=None)
def _build_c5(N, HW, TM, C):
    return pl.pallas_call(
        _c5_kernel,
        out_shape=jax.ShapeDtypeStruct((N, HW, C), _BF16),
        grid=(N, HW // TM),
        in_specs=[
            pl.BlockSpec((1, TM, C), lambda n, m: (n, m, 0)),
            pl.BlockSpec((1, 1, C), lambda n, m: (n, 0, 0)),
            pl.BlockSpec((C, C), lambda n, m: (0, 0)),
            pl.BlockSpec((1, C), lambda n, m: (0, 0)),
            pl.BlockSpec((1, TM, C), lambda n, m: (n, m, 0)),
        ],
        out_specs=pl.BlockSpec((1, TM, C), lambda n, m: (n, m, 0)),
        compiler_params=_mosaic_params("parallel", "parallel"),
    )


def _conv_cat_kernel(*refs):
    """conv_cat: 12-way channel concat in VMEM -> one K=768 matmul + ReLU."""
    feats = refs[:-3]
    w_ref, b_ref, o_ref = refs[-3:]
    a = jnp.concatenate([f[0] for f in feats], axis=-1)     # (TM, 12*C) bf16
    t = jnp.dot(a, w_ref[...], preferred_element_type=jnp.float32) + b_ref[...]
    t = jnp.maximum(t, 0.0)
    o_ref[0] = t.astype(o_ref.dtype)


@functools.lru_cache(maxsize=None)
def _build_conv_cat(N, HW, TM, C, num):
    in_specs = [pl.BlockSpec((1, TM, C), lambda n, m: (n, m, 0))
                for _ in range(num)]
    in_specs += [pl.BlockSpec((num * C, C), lambda n, m: (0, 0)),
                 pl.BlockSpec((1, C), lambda n, m: (0, 0))]
    return pl.pallas_call(
        _conv_cat_kernel,
        out_shape=jax.ShapeDtypeStruct((N, HW, C), _BF16),
        grid=(N, HW // TM),
        in_specs=in_specs,
        out_specs=pl.BlockSpec((1, TM, C), lambda n, m: (n, m, 0)),
        compiler_params=_mosaic_params("parallel", "parallel"),
    )


# ---------------------------------------------------------------------------
# Thin JAX wrappers around the kernels
# ---------------------------------------------------------------------------
def conv3x3(x, wb, *, act=None, stride=1):
    """PyTorch-equivalent 3x3 Conv2d (padding=1) + optional ReLU."""
    w, b = wb                                   # (9*Cin, Cout) bf16, (1, Cout) f32
    N, H, W, Cin = x.shape
    Cout = w.shape[-1]
    assert w.shape[0] == 9 * Cin
    if stride == 2:
        assert H % 2 == 0 and W % 2 == 0
    TH, nt = _row_tiles(H, W, stride)
    fn = _build_conv3x3(N, H, W, Cin, Cout, TH, nt, act, stride)
    xf = x.reshape(N, H * W, Cin).astype(_BF16)
    if nt > 1:
        out = fn(xf, xf, xf, w, b)
    else:
        out = fn(xf, w, b)
    if stride == 1:
        return out.reshape(N, H, W, Cout)
    out = out.reshape(N, H // 2, W, Cout)
    return out[:, :, ::2, :]                    # TODO(synk): in-kernel col stride


def cca_forward(out, m):
    N, H, W, C = out.shape
    HW = H * W
    TM = _pick_rows(HW)
    return _build_cca(N, HW, TM, C)(out.reshape(N, HW, C),
                                    m["du1_w"], m["du1_b"],
                                    m["du2_w"], m["du2_b"])


def c5_fused(out, y, c5_w, c5_b, res):
    N, H, W, C = out.shape
    HW = H * W
    TM = _pick_rows(HW)
    feat = _build_c5(N, HW, TM, C)(out.reshape(N, HW, C), y, c5_w, c5_b,
                                   res.reshape(N, HW, C).astype(_BF16))
    return feat.reshape(N, H, W, C)


def conv_cat(feats, cat_w, cat_b):
    N, H, W, C = feats[0].shape
    HW = H * W
    TM = _pick_rows(HW)
    flat = [f.reshape(N, HW, C) for f in feats]
    out = _build_conv_cat(N, HW, TM, C, len(feats))(*flat, cat_w, cat_b)
    return out.reshape(N, H, W, C)


def pixel_shuffle_nhwc(x, r):
    N, H, W, Crr = x.shape
    C = Crr // (r * r)
    x = x.reshape(N, H, W, C, r, r)
    x = x.transpose(0, 1, 4, 2, 5, 3)            # (N, H, r, W, r, C)
    return x.reshape(N, H * r, W * r, C)


# ---------------------------------------------------------------------------
# Model
# ---------------------------------------------------------------------------
def imd_module(x, m):
    c1 = conv3x3(x, m["c1"], act=_ACT)
    c2 = conv3x3(c1, m["c2"], act=_ACT)          # Cin zero-padded to 64
    c3 = conv3x3(c2, m["c3"], act=_ACT)
    c4 = conv3x3(c3, m["c4"], act=None)          # -> 16 ch
    # TODO(synk): channel concat stays in XLA (16-lane blocks are not legal).
    out = jnp.concatenate([c1[..., :DC], c2[..., :DC], c3[..., :DC], c4],
                          axis=-1)               # (N, h, w, 64)
    y = cca_forward(out, m)                      # (N, 1, 64) attention scale
    return c5_fused(out, y, m["c5_w"], m["c5_b"], x)


def colorize_net_forward(x_nchw, P):
    x = jnp.transpose(x_nchw, (0, 2, 3, 1)).astype(_BF16)    # NCHW -> NHWC
    # downsampler
    h = conv3x3(x, P["d1"], act=_ACT, stride=2)
    h = conv3x3(h, P["d2"], act=_ACT)
    h = conv3x3(h, P["d3"], act=_ACT)
    h = conv3x3(h, P["d4"], act=_ACT, stride=2)
    h = conv3x3(h, P["d5"], act=_ACT)
    out_fea = conv3x3(h, P["d6"], act=None)

    feats = []
    cur = out_fea
    for i in range(NUM_MODULES):
        cur = imd_module(cur, P[f"imdb{i + 1}"])
        feats.append(cur)

    out_B = conv_cat(feats, P["cat_w"], P["cat_b"])           # K=768 + ReLU
    lr = conv3x3(out_B, P["lr"], act=None)
    out_lr = (lr.astype(_F32) + out_fea.astype(_F32)).astype(_BF16)
    up = conv3x3(out_lr, P["up"], act=None)                   # 64 -> 48
    out = pixel_shuffle_nhwc(up, UPSCALE)
    return jnp.transpose(out, (0, 3, 1, 2)).astype(_F32)      # back to NCHW


# ---------------------------------------------------------------------------
# Parameter preparation (done once, outside the per-call graph)
# ---------------------------------------------------------------------------
def _prep_conv3(w, b, pad_front=0):
    if pad_front:
        kh, kw, ci, co = w.shape
        w = jnp.concatenate(
            [jnp.zeros((kh, kw, pad_front, co), w.dtype), w], axis=2)
    kh, kw, ci, co = w.shape
    return (w.reshape(kh * kw * ci, co).astype(_BF16),
            b.reshape(1, co).astype(_F32))


def prepare_params(p):
    P = {}
    for k in ("d1", "d2", "d3", "d4", "d5", "d6", "lr", "up"):
        P[k] = _prep_conv3(p[f"{k}_w"], p[f"{k}_b"])
    for i in range(1, NUM_MODULES + 1):
        m = p[f"imdb{i}"]
        q = {
            "c1": _prep_conv3(m["c1_w"], m["c1_b"]),
            "c2": _prep_conv3(m["c2_w"], m["c2_b"], pad_front=DC),
            "c3": _prep_conv3(m["c3_w"], m["c3_b"], pad_front=DC),
            "c4": _prep_conv3(m["c4_w"], m["c4_b"], pad_front=DC),
            "du1_w": m["du1_w"].reshape(NF, NF // 16).astype(_BF16),
            "du1_b": m["du1_b"].reshape(1, NF // 16).astype(_F32),
            "du2_w": m["du2_w"].reshape(NF // 16, NF).astype(_BF16),
            "du2_b": m["du2_b"].reshape(1, NF).astype(_F32),
            "c5_w": m["c5_w"].reshape(NF, NF).astype(_BF16),
            "c5_b": m["c5_b"].reshape(1, NF).astype(_F32),
        }
        P[f"imdb{i}"] = q
    P["cat_w"] = p["cat_w"].reshape(NF * NUM_MODULES, NF).astype(_BF16)
    P["cat_b"] = p["cat_b"].reshape(1, NF).astype(_F32)
    return P


# ---------------------------------------------------------------------------
# Deterministic parameter initialization (HWIO weights, f32)
# ---------------------------------------------------------------------------
def _init_conv(key, kh, kw, cin, cout):
    kw_key, kb_key = jax.random.split(key)
    fan_in = kh * kw * cin
    w = jax.random.normal(kw_key, (kh, kw, cin, cout), jnp.float32)
    w = w * (0.1 / jnp.sqrt(jnp.float32(fan_in)))
    b = jax.random.normal(kb_key, (cout,), jnp.float32) * 0.01
    return w, b


def init_params(key):
    keys = iter(jax.random.split(key, 128))
    conv = lambda kh, kw, ci, co: _init_conv(next(keys), kh, kw, ci, co)
    p = {}
    p["d1_w"], p["d1_b"] = conv(3, 3, IN_NC, NF // UPSCALE)
    p["d2_w"], p["d2_b"] = conv(3, 3, NF // UPSCALE, NF // UPSCALE)
    p["d3_w"], p["d3_b"] = conv(3, 3, NF // UPSCALE, NF // UPSCALE)
    p["d4_w"], p["d4_b"] = conv(3, 3, NF // UPSCALE, NF)
    p["d5_w"], p["d5_b"] = conv(3, 3, NF, NF)
    p["d6_w"], p["d6_b"] = conv(3, 3, NF, NF)
    for i in range(1, NUM_MODULES + 1):
        m = {}
        m["c1_w"], m["c1_b"] = conv(3, 3, NF, NF)
        m["c2_w"], m["c2_b"] = conv(3, 3, NF - DC, NF)
        m["c3_w"], m["c3_b"] = conv(3, 3, NF - DC, NF)
        m["c4_w"], m["c4_b"] = conv(3, 3, NF - DC, DC)
        m["du1_w"], m["du1_b"] = conv(1, 1, NF, NF // 16)     # CCA reduce=16
        m["du2_w"], m["du2_b"] = conv(1, 1, NF // 16, NF)
        m["c5_w"], m["c5_b"] = conv(1, 1, NF, NF)
        p[f"imdb{i}"] = m
    p["cat_w"], p["cat_b"] = conv(1, 1, NF * NUM_MODULES, NF)
    p["lr_w"], p["lr_b"] = conv(3, 3, NF, NF)
    p["up_w"], p["up_b"] = conv(3, 3, NF, OUT_NC * UPSCALE * UPSCALE)
    return p


if __name__ == "__main__":
    key = jax.random.PRNGKey(0)
    pkey, xkey = jax.random.split(key)
    params = init_params(pkey)
    prepped = prepare_params(params)                          # one-time prep
    x = jax.random.normal(xkey, (2, IN_NC, 16, 16), jnp.float32)   # NCHW
    fwd = jax.jit(colorize_net_forward)
    out = jax.block_until_ready(fwd(x, prepped))
    assert out.shape == (2, OUT_NC, 16, 16), out.shape
    assert bool(jnp.all(jnp.isfinite(out)))
    print("KERNEL_OK")
</pallas_src>

<mosaic_0001>
module attributes {stable_mosaic.version = 11 : i64} {
  func.func @_conv3x3_kernel(%arg0: i32, %arg1: i32, %arg2: memref<1x256x3xbf16, #tpu.memory_space<vmem>>, %arg3: memref<27x16xbf16, #tpu.memory_space<vmem>>, %arg4: memref<1x16xf32, #tpu.memory_space<vmem>>, %arg5: memref<1x128x16xbf16, #tpu.memory_space<vmem>>) attributes {dimension_semantics = [#tpu.dimension_semantics<parallel>, #tpu.dimension_semantics<parallel>], iteration_bounds = array<i64: 2, 1>, scalar_prefetch = 0 : i64, scratch_operands = 0 : i64, tpu.core_type = #tpu.core_type<tc>, window_params = [{transform_indices = @transform_0, window_bounds = array<i64: 1, 256, 3>}, {pipeline_mode = #tpu.pipeline_mode<synchronous>, transform_indices = @transform_1, window_bounds = array<i64: 27, 16>}, {pipeline_mode = #tpu.pipeline_mode<synchronous>, transform_indices = @transform_2, window_bounds = array<i64: 1, 16>}, {transform_indices = @transform_3, window_bounds = array<i64: 1, 128, 16>}]} {
    %c0 = arith.constant 0 : index
    %c0_0 = arith.constant 0 : index
    %c0_1 = arith.constant 0 : index
    %0 = vector.load %arg2[%c0, %c0_0, %c0_1] : memref<1x256x3xbf16, #tpu.memory_space<vmem>>, vector<1x256x3xbf16>
    %1 = vector.shape_cast %0 : vector<1x256x3xbf16> to vector<256x3xbf16>
    %cst = arith.constant 0.000000e+00 : bf16
    %2 = vector.broadcast %cst : bf16 to vector<16x3xbf16>
    %cst_2 = arith.constant 0.000000e+00 : bf16
    %3 = vector.broadcast %cst_2 : bf16 to vector<16x3xbf16>
    %cst_3 = arith.constant 0.000000e+00 : bf16
    %4 = vector.broadcast %cst_3 : bf16 to vector<1x3xbf16>
    %5 = tpu.concatenate %4, %2, %1, %3, %4 in 0 : vector<1x3xbf16>, vector<16x3xbf16>, vector<256x3xbf16>, vector<16x3xbf16>, vector<1x3xbf16> -> vector<290x3xbf16>
    %6 = tpu.iota {dimensions = array<i32: 0>} : vector<256x1xi32>
    %c16_i32 = arith.constant 16 : i32
    %c0_i32 = arith.constant 0 : i32
    %7 = arith.cmpi eq, %c16_i32, %c0_i32 : i32
    %c1_i32 = arith.constant 1 : i32
    %8 = arith.select %7, %c1_i32, %c16_i32 : i32
    %9 = vector.broadcast %8 : i32 to vector<256x1xi32>
    %10 = arith.remsi %6, %9 : vector<256x1xi32>
    %c0_i32_4 = arith.constant 0 : i32
    %11 = vector.broadcast %c0_i32_4 : i32 to vector<256x1xi32>
    %12 = arith.cmpi ne, %10, %11 : vector<256x1xi32>
    %c0_i32_5 = arith.constant 0 : i32
    %13 = vector.broadcast %c0_i32_5 : i32 to vector<256x1xi32>
    %14 = arith.cmpi slt, %10, %13 : vector<256x1xi32>
    %c0_i32_6 = arith.constant 0 : i32
    %15 = arith.cmpi slt, %8, %c0_i32_6 : i32
    %16 = vector.broadcast %15 : i1 to vector<256x1xi1>
    %17 = vector.broadcast %16 : vector<256x1xi1> to vector<256x1xi1>
    %18 = arith.xori %14, %17 : vector<256x1xi1>
    %19 = arith.andi %18, %12 : vector<256x1xi1>
    %20 = vector.broadcast %8 : i32 to vector<256x1xi32>
    %21 = arith.addi %10, %20 : vector<256x1xi32>
    %22 = arith.select %19, %21, %10 : vector<256x1xi1>, vector<256x1xi32>
    %c0_i32_7 = arith.constant 0 : i32
    %23 = vector.broadcast %c0_i32_7 : i32 to vector<256x1xi32>
    %24 = arith.cmpi ne, %22, %23 : vector<256x1xi32>
    %25 = arith.extui %24 : vector<256x1xi1> to vector<256x1xi32>
    %26 = arith.sitofp %25 : vector<256x1xi32> to vector<256x1xf32>
    %27 = arith.truncf %26 : vector<256x1xf32> to vector<256x1xbf16>
    %c15_i32 = arith.constant 15 : i32
    %28 = vector.broadcast %c15_i32 : i32 to vector<256x1xi32>
    %29 = arith.cmpi ne, %22, %28 : vector<256x1xi32>
    %30 = arith.extui %29 : vector<256x1xi1> to vector<256x1xi32>
    %31 = arith.sitofp %30 : vector<256x1xi32> to vector<256x1xf32>
    %32 = arith.truncf %31 : vector<256x1xf32> to vector<256x1xbf16>
    %33 = vector.extract_strided_slice %5 {offsets = [0, 0], sizes = [256, 3], strides = [1, 1]} : vector<290x3xbf16> to vector<256x3xbf16>
    %34 = vector.broadcast %27 : vector<256x1xbf16> to vector<256x3xbf16>
    %35 = arith.mulf %33, %34 : vector<256x3xbf16>
    %36 = vector.extract_strided_slice %5 {offsets = [1, 0], sizes = [256, 3], strides = [1, 1]} : vector<290x3xbf16> to vector<256x3xbf16>
    %37 = vector.extract_strided_slice %5 {offsets = [2, 0], sizes = [256, 3], strides = [1, 1]} : vector<290x3xbf16> to vector<256x3xbf16>
    %38 = vector.broadcast %32 : vector<256x1xbf16> to vector<256x3xbf16>
    %39 = arith.mulf %37, %38 : vector<256x3xbf16>
    %40 = vector.extract_strided_slice %5 {offsets = [16, 0], sizes = [256, 3], strides = [1, 1]} : vector<290x3xbf16> to vector<256x3xbf16>
    %41 = vector.broadcast %27 : vector<256x1xbf16> to vector<256x3xbf16>
    %42 = arith.mulf %40, %41 : vector<256x3xbf16>
    %43 = vector.extract_strided_slice %5 {offsets = [17, 0], sizes = [256, 3], strides = [1, 1]} : vector<290x3xbf16> to vector<256x3xbf16>
    %44 = vector.extract_strided_slice %5 {offsets = [18, 0], sizes = [256, 3], strides = [1, 1]} : vector<290x3xbf16> to vector<256x3xbf16>
    %45 = vector.broadcast %32 : vector<256x1xbf16> to vector<256x3xbf16>
    %46 = arith.mulf %44, %45 : vector<256x3xbf16>
    %47 = vector.extract_strided_slice %5 {offsets = [32, 0], sizes = [256, 3], strides = [1, 1]} : vector<290x3xbf16> to vector<256x3xbf16>
    %48 = vector.broadcast %27 : vector<256x1xbf16> to vector<256x3xbf16>
    %49 = arith.mulf %47, %48 : vector<256x3xbf16>
    %50 = vector.extract_strided_slice %5 {offsets = [33, 0], sizes = [256, 3], strides = [1, 1]} : vector<290x3xbf16> to vector<256x3xbf16>
    %51 = vector.extract_strided_slice %5 {offsets = [34, 0], sizes = [256, 3], strides = [1, 1]} : vector<290x3xbf16> to vector<256x3xbf16>
    %52 = vector.broadcast %32 : vector<256x1xbf16> to vector<256x3xbf16>
    %53 = arith.mulf %51, %52 : vector<256x3xbf16>
    %54 = tpu.concatenate %35, %36, %39, %42, %43, %46, %49, %50, %53 in 1 : vector<256x3xbf16>, vector<256x3xbf16>, vector<256x3xbf16>, vector<256x3xbf16>, vector<256x3xbf16>, vector<256x3xbf16>, vector<256x3xbf16>, vector<256x3xbf16>, vector<256x3xbf16> -> vector<256x27xbf16>
    %c0_8 = arith.constant 0 : index
    %c0_9 = arith.constant 0 : index
    %55 = vector.load %arg3[%c0_8, %c0_9] : memref<27x16xbf16, #tpu.memory_space<vmem>>, vector<27x16xbf16>
    %cst_10 = arith.constant dense<0.000000e+00> : vector<256x16xf32>
    %56 = tpu.matmul %54, %55, %cst_10 {dimension_numbers = #tpu.dot_dimension_numbers<[1], [0], [0], [1], [0, 0, 1, 1], [], []>} : vector<256x27xbf16>, vector<27x16xbf16>, vector<256x16xf32> -> vector<256x16xf32>
    %c0_11 = arith.constant 0 : index
    %c0_12 = arith.constant 0 : index
    %57 = vector.load %arg4[%c0_11, %c0_12] : memref<1x16xf32, #tpu.memory_space<vmem>>, vector<1x16xf32>
    %58 = vector.broadcast %57 : vector<1x16xf32> to vector<256x16xf32>
    %59 = arith.addf %56, %58 : vector<256x16xf32>
    %cst_13 = arith.constant 0.000000e+00 : f32
    %60 = vector.broadcast %cst_13 : f32 to vector<256x16xf32>
    %61 = arith.maximumf %59, %60 : vector<256x16xf32>
    %62 = vector.extract_strided_slice %61 {offsets = [0, 0], sizes = [16, 16], strides = [1, 1]} : vector<256x16xf32> to vector<16x16xf32>
    %63 = vector.extract_strided_slice %61 {offsets = [32, 0], sizes = [16, 16], strides = [1, 1]} : vector<256x16xf32> to vector<16x16xf32>
    %64 = vector.extract_strided_slice %61 {offsets = [64, 0], sizes = [16, 16], strides = [1, 1]} : vector<256x16xf32> to vector<16x16xf32>
    %65 = vector.extract_strided_slice %61 {offsets = [96, 0], sizes = [16, 16], strides = [1, 1]} : vector<256x16xf32> to vector<16x16xf32>
    %66 = vector.extract_strided_slice %61 {offsets = [128, 0], sizes = [16, 16], strides = [1, 1]} : vector<256x16xf32> to vector<16x16xf32>
    %67 = vector.extract_strided_slice %61 {offsets = [160, 0], sizes = [16, 16], strides = [1, 1]} : vector<256x16xf32> to vector<16x16xf32>
    %68 = vector.extract_strided_slice %61 {offsets = [192, 0], sizes = [16, 16], strides = [1, 1]} : vector<256x16xf32> to vector<16x16xf32>
    %69 = vector.extract_strided_slice %61 {offsets = [224, 0], sizes = [16, 16], strides = [1, 1]} : vector<256x16xf32> to vector<16x16xf32>
    %70 = tpu.concatenate %62, %63, %64, %65, %66, %67, %68, %69 in 0 : vector<16x16xf32>, vector<16x16xf32>, vector<16x16xf32>, vector<16x16xf32>, vector<16x16xf32>, vector<16x16xf32>, vector<16x16xf32>, vector<16x16xf32> -> vector<128x16xf32>
    %71 = arith.truncf %70 : vector<128x16xf32> to vector<128x16xbf16>
    %c0_14 = arith.constant 0 : index
    %c0_15 = arith.constant 0 : index
    %c0_16 = arith.constant 0 : index
    %72 = vector.load %arg5[%c0_14, %c0_15, %c0_16] : memref<1x128x16xbf16, #tpu.memory_space<vmem>>, vector<1x128x16xbf16>
    %73 = vector.shape_cast %72 : vector<1x128x16xbf16> to vector<128x16xbf16>
    %74 = vector.shape_cast %71 : vector<128x16xbf16> to vector<1x128x16xbf16>
    tpu.vector_store %arg5[%c0_14, %c0_15, %c0_16], %74 {strides = array<i32>} : memref<1x128x16xbf16, #tpu.memory_space<vmem>>, vector<1x128x16xbf16>,
    return
  }
  func.func @transform_0(%arg0: i32, %arg1: i32) -> (i32, i32, i32) {
    %c0_i32 = arith.constant 0 : i32
    %c0_i32_0 = arith.constant 0 : i32
    return %arg0, %arg1, %c0_i32 : i32, i32, i32
  }
  func.func @transform_1(%arg0: i32, %arg1: i32) -> (i32, i32) {
    %c0_i32 = arith.constant 0 : i32
    %c0_i32_0 = arith.constant 0 : i32
    %c0_i32_1 = arith.constant 0 : i32
    return %c0_i32, %c0_i32_0 : i32, i32
  }
  func.func @transform_2(%arg0: i32, %arg1: i32) -> (i32, i32) {
    %c0_i32 = arith.constant 0 : i32
    %c0_i32_0 = arith.constant 0 : i32
    %c0_i32_1 = arith.constant 0 : i32
    return %c0_i32, %c0_i32_0 : i32, i32
  }
  func.func @transform_3(%arg0: i32, %arg1: i32) -> (i32, i32, i32) {
    %c0_i32 = arith.constant 0 : i32
    %c0_i32_0 = arith.constant 0 : i32
    return %arg0, %arg1, %c0_i32 : i32, i32, i32
  }
}

module attributes {stable_mosaic.version = 11 : i64} {
  func.func @_conv3x3_kernel(%arg0: i32, %arg1: i32, %arg2: memref<1x64x16xbf16, #tpu.memory_space<vmem>>, %arg3: memref<144x16xbf16, #tpu.memory_space<vmem>>, %arg4: memref<1x16xf32, #tpu.memory_space<vmem>>, %arg5: memref<1x64x16xbf16, #tpu.memory_space<vmem>>) attributes {dimension_semantics = [#tpu.dimension_semantics<parallel>, #tpu.dimension_semantics<parallel>], iteration_bounds = array<i64: 2, 1>, scalar_prefetch = 0 : i64, scratch_operands = 0 : i64, tpu.core_type = #tpu.core_type<tc>, window_params = [{transform_indices = @transform_0, window_bounds = array<i64: 1, 64, 16>}, {pipeline_mode = #tpu.pipeline_mode<synchronous>, transform_indices = @transform_1, window_bounds = array<i64: 144, 16>}, {pipeline_mode = #tpu.pipeline_mode<synchronous>, transform_indices = @transform_2, window_bounds = array<i64: 1, 16>}, {transform_indices = @transform_3, window_bounds = array<i64: 1, 64, 16>}]} {
    %c0 = arith.constant 0 : index
    %c0_0 = arith.constant 0 : index
    %c0_1 = arith.constant 0 : index
    %0 = vector.load %arg2[%c0, %c0_0, %c0_1] : memref<1x64x16xbf16, #tpu.memory_space<vmem>>, vector<1x64x16xbf16>
    %1 = vector.shape_cast %0 : vector<1x64x16xbf16> to vector<64x16xbf16>
    %cst = arith.constant 0.000000e+00 : bf16
    %2 = vector.broadcast %cst : bf16 to vector<8x16xbf16>
    %cst_2 = arith.constant 0.000000e+00 : bf16
    %3 = vector.broadcast %cst_2 : bf16 to vector<8x16xbf16>
    %cst_3 = arith.constant 0.000000e+00 : bf16
    %4 = vector.broadcast %cst_3 : bf16 to vector<1x16xbf16>
    %5 = tpu.concatenate %4, %2, %1, %3, %4 in 0 : vector<1x16xbf16>, vector<8x16xbf16>, vector<64x16xbf16>, vector<8x16xbf16>, vector<1x16xbf16> -> vector<82x16xbf16>
    %6 = tpu.iota {dimensions = array<i32: 0>} : vector<64x1xi32>
    %c8_i32 = arith.constant 8 : i32
    %c0_i32 = arith.constant 0 : i32
    %7 = arith.cmpi eq, %c8_i32, %c0_i32 : i32
    %c1_i32 = arith.constant 1 : i32
    %8 = arith.select %7, %c1_i32, %c8_i32 : i32
    %9 = vector.broadcast %8 : i32 to vector<64x1xi32>
    %10 = arith.remsi %6, %9 : vector<64x1xi32>
    %c0_i32_4 = arith.constant 0 : i32
    %11 = vector.broadcast %c0_i32_4 : i32 to vector<64x1xi32>
    %12 = arith.cmpi ne, %10, %11 : vector<64x1xi32>
    %c0_i32_5 = arith.constant 0 : i32
    %13 = vector.broadcast %c0_i32_5 : i32 to vector<64x1xi32>
    %14 = arith.cmpi slt, %10, %13 : vector<64x1xi32>
    %c0_i32_6 = arith.constant 0 : i32
    %15 = arith.cmpi slt, %8, %c0_i32_6 : i32
    %16 = vector.broadcast %15 : i1 to vector<64x1xi1>
    %17 = vector.broadcast %16 : vector<64x1xi1> to vector<64x1xi1>
    %18 = arith.xori %14, %17 : vector<64x1xi1>
    %19 = arith.andi %18, %12 : vector<64x1xi1>
    %20 = vector.broadcast %8 : i32 to vector<64x1xi32>
    %21 = arith.addi %10, %20 : vector<64x1xi32>
    %22 = arith.select %19, %21, %10 : vector<64x1xi1>, vector<64x1xi32>
    %c0_i32_7 = arith.constant 0 : i32
    %23 = vector.broadcast %c0_i32_7 : i32 to vector<64x1xi32>
    %24 = arith.cmpi ne, %22, %23 : vector<64x1xi32>
    %25 = arith.extui %24 : vector<64x1xi1> to vector<64x1xi32>
    %26 = arith.sitofp %25 : vector<64x1xi32> to vector<64x1xf32>
    %27 = arith.truncf %26 : vector<64x1xf32> to vector<64x1xbf16>
    %c7_i32 = arith.constant 7 : i32
    %28 = vector.broadcast %c7_i32 : i32 to vector<64x1xi32>
    %29 = arith.cmpi ne, %22, %28 : vector<64x1xi32>
    %30 = arith.extui %29 : vector<64x1xi1> to vector<64x1xi32>
    %31 = arith.sitofp %30 : vector<64x1xi32> to vector<64x1xf32>
    %32 = arith.truncf %31 : vector<64x1xf32> to vector<64x1xbf16>
    %33 = vector.extract_strided_slice %5 {offsets = [0, 0], sizes = [64, 16], strides = [1, 1]} : vector<82x16xbf16> to vector<64x16xbf16>
    %34 = vector.broadcast %27 : vector<64x1xbf16> to vector<64x16xbf16>
    %35 = arith.mulf %33, %34 : vector<64x16xbf16>
    %36 = vector.extract_strided_slice %5 {offsets = [1, 0], sizes = [64, 16], strides = [1, 1]} : vector<82x16xbf16> to vector<64x16xbf16>
    %37 = vector.extract_strided_slice %5 {offsets = [2, 0], sizes = [64, 16], strides = [1, 1]} : vector<82x16xbf16> to vector<64x16xbf16>
    %38 = vector.broadcast %32 : vector<64x1xbf16> to vector<64x16xbf16>
    %39 = arith.mulf %37, %38 : vector<64x16xbf16>
    %40 = vector.extract_strided_slice %5 {offsets = [8, 0], sizes = [64, 16], strides = [1, 1]} : vector<82x16xbf16> to vector<64x16xbf16>
    %41 = vector.broadcast %27 : vector<64x1xbf16> to vector<64x16xbf16>
    %42 = arith.mulf %40, %41 : vector<64x16xbf16>
    %43 = vector.extract_strided_slice %5 {offsets = [9, 0], sizes = [64, 16], strides = [1, 1]} : vector<82x16xbf16> to vector<64x16xbf16>
    %44 = vector.extract_strided_slice %5 {offsets = [10, 0], sizes = [64, 16], strides = [1, 1]} : vector<82x16xbf16> to vector<64x16xbf16>
    %45 = vector.broadcast %32 : vector<64x1xbf16> to vector<64x16xbf16>
    %46 = arith.mulf %44, %45 : vector<64x16xbf16>
    %47 = vector.extract_strided_slice %5 {offsets = [16, 0], sizes = [64, 16], strides = [1, 1]} : vector<82x16xbf16> to vector<64x16xbf16>
    %48 = vector.broadcast %27 : vector<64x1xbf16> to vector<64x16xbf16>
    %49 = arith.mulf %47, %48 : vector<64x16xbf16>
    %50 = vector.extract_strided_slice %5 {offsets = [17, 0], sizes = [64, 16], strides = [1, 1]} : vector<82x16xbf16> to vector<64x16xbf16>
    %51 = vector.extract_strided_slice %5 {offsets = [18, 0], sizes = [64, 16], strides = [1, 1]} : vector<82x16xbf16> to vector<64x16xbf16>
    %52 = vector.broadcast %32 : vector<64x1xbf16> to vector<64x16xbf16>
    %53 = arith.mulf %51, %52 : vector<64x16xbf16>
    %54 = tpu.concatenate %35, %36, %39, %42, %43, %46, %49, %50, %53 in 1 : vector<64x16xbf16>, vector<64x16xbf16>, vector<64x16xbf16>, vector<64x16xbf16>, vector<64x16xbf16>, vector<64x16xbf16>, vector<64x16xbf16>, vector<64x16xbf16>, vector<64x16xbf16> -> vector<64x144xbf16>
    %c0_8 = arith.constant 0 : index
    %c0_9 = arith.constant 0 : index
    %55 = vector.load %arg3[%c0_8, %c0_9] : memref<144x16xbf16, #tpu.memory_space<vmem>>, vector<144x16xbf16>
    %cst_10 = arith.constant dense<0.000000e+00> : vector<64x16xf32>
    %56 = tpu.matmul %54, %55, %cst_10 {dimension_numbers = #tpu.dot_dimension_numbers<[1], [0], [0], [1], [0, 0, 1, 1], [], []>} : vector<64x144xbf16>, vector<144x16xbf16>, vector<64x16xf32> -> vector<64x16xf32>
    %c0_11 = arith.constant 0 : index
    %c0_12 = arith.constant 0 : index
    %57 = vector.load %arg4[%c0_11, %c0_12] : memref<1x16xf32, #tpu.memory_space<vmem>>, vector<1x16xf32>
    %58 = vector.broadcast %57 : vector<1x16xf32> to vector<64x16xf32>
    %59 = arith.addf %56, %58 : vector<64x16xf32>
    %cst_13 = arith.constant 0.000000e+00 : f32
    %60 = vector.broadcast %cst_13 : f32 to vector<64x16xf32>
    %61 = arith.maximumf %59, %60 : vector<64x16xf32>
    %62 = arith.truncf %61 : vector<64x16xf32> to vector<64x16xbf16>
    %c0_14 = arith.constant 0 : index
    %c0_15 = arith.constant 0 : index
    %c0_16 = arith.constant 0 : index
    %63 = vector.load %arg5[%c0_14, %c0_15, %c0_16] : memref<1x64x16xbf16, #tpu.memory_space<vmem>>, vector<1x64x16xbf16>
    %64 = vector.shape_cast %63 : vector<1x64x16xbf16> to vector<64x16xbf16>
    %65 = vector.shape_cast %62 : vector<64x16xbf16> to vector<1x64x16xbf16>
    tpu.vector_store %arg5[%c0_14, %c0_15, %c0_16], %65 {strides = array<i32>} : memref<1x64x16xbf16, #tpu.memory_space<vmem>>, vector<1x64x16xbf16>,
    return
  }
  func.func @transform_0(%arg0: i32, %arg1: i32) -> (i32, i32, i32) {
    %c0_i32 = arith.constant 0 : i32
    %c0_i32_0 = arith.constant 0 : i32
    return %arg0, %arg1, %c0_i32 : i32, i32, i32
  }
  func.func @transform_1(%arg0: i32, %arg1: i32) -> (i32, i32) {
    %c0_i32 = arith.constant 0 : i32
    %c0_i32_0 = arith.constant 0 : i32
    %c0_i32_1 = arith.constant 0 : i32
    return %c0_i32, %c0_i32_0 : i32, i32
  }
  func.func @transform_2(%arg0: i32, %arg1: i32) -> (i32, i32) {
    %c0_i32 = arith.constant 0 : i32
    %c0_i32_0 = arith.constant 0 : i32
    %c0_i32_1 = arith.constant 0 : i32
    return %c0_i32, %c0_i32_0 : i32, i32
  }
  func.func @transform_3(%arg0: i32, %arg1: i32) -> (i32, i32, i32) {
    %c0_i32 = arith.constant 0 : i32
    %c0_i32_0 = arith.constant 0 : i32
    return %arg0, %arg1, %c0_i32 : i32, i32, i32
  }
}

module attributes {stable_mosaic.version = 11 : i64} {
  func.func @_conv3x3_kernel(%arg0: i32, %arg1: i32, %arg2: memref<1x64x16xbf16, #tpu.memory_space<vmem>>, %arg3: memref<144x64xbf16, #tpu.memory_space<vmem>>, %arg4: memref<1x64xf32, #tpu.memory_space<vmem>>, %arg5: memref<1x32x64xbf16, #tpu.memory_space<vmem>>) attributes {dimension_semantics = [#tpu.dimension_semantics<parallel>, #tpu.dimension_semantics<parallel>], iteration_bounds = array<i64: 2, 1>, scalar_prefetch = 0 : i64, scratch_operands = 0 : i64, tpu.core_type = #tpu.core_type<tc>, window_params = [{transform_indices = @transform_0, window_bounds = array<i64: 1, 64, 16>}, {pipeline_mode = #tpu.pipeline_mode<synchronous>, transform_indices = @transform_1, window_bounds = array<i64: 144, 64>}, {pipeline_mode = #tpu.pipeline_mode<synchronous>, transform_indices = @transform_2, window_bounds = array<i64: 1, 64>}, {transform_indices = @transform_3, window_bounds = array<i64: 1, 32, 64>}]} {
    %c0 = arith.constant 0 : index
    %c0_0 = arith.constant 0 : index
    %c0_1 = arith.constant 0 : index
    %0 = vector.load %arg2[%c0, %c0_0, %c0_1] : memref<1x64x16xbf16, #tpu.memory_space<vmem>>, vector<1x64x16xbf16>
    %1 = vector.shape_cast %0 : vector<1x64x16xbf16> to vector<64x16xbf16>
    %cst = arith.constant 0.000000e+00 : bf16
    %2 = vector.broadcast %cst : bf16 to vector<8x16xbf16>
    %cst_2 = arith.constant 0.000000e+00 : bf16
    %3 = vector.broadcast %cst_2 : bf16 to vector<8x16xbf16>
    %cst_3 = arith.constant 0.000000e+00 : bf16
    %4 = vector.broadcast %cst_3 : bf16 to vector<1x16xbf16>
    %5 = tpu.concatenate %4, %2, %1, %3, %4 in 0 : vector<1x16xbf16>, vector<8x16xbf16>, vector<64x16xbf16>, vector<8x16xbf16>, vector<1x16xbf16> -> vector<82x16xbf16>
    %6 = tpu.iota {dimensions = array<i32: 0>} : vector<64x1xi32>
    %c8_i32 = arith.constant 8 : i32
    %c0_i32 = arith.constant 0 : i32
    %7 = arith.cmpi eq, %c8_i32, %c0_i32 : i32
    %c1_i32 = arith.constant 1 : i32
    %8 = arith.select %7, %c1_i32, %c8_i32 : i32
    %9 = vector.broadcast %8 : i32 to vector<64x1xi32>
    %10 = arith.remsi %6, %9 : vector<64x1xi32>
    %c0_i32_4 = arith.constant 0 : i32
    %11 = vector.broadcast %c0_i32_4 : i32 to vector<64x1xi32>
    %12 = arith.cmpi ne, %10, %11 : vector<64x1xi32>
    %c0_i32_5 = arith.constant 0 : i32
    %13 = vector.broadcast %c0_i32_5 : i32 to vector<64x1xi32>
    %14 = arith.cmpi slt, %10, %13 : vector<64x1xi32>
    %c0_i32_6 = arith.constant 0 : i32
    %15 = arith.cmpi slt, %8, %c0_i32_6 : i32
    %16 = vector.broadcast %15 : i1 to vector<64x1xi1>
    %17 = vector.broadcast %16 : vector<64x1xi1> to vector<64x1xi1>
    %18 = arith.xori %14, %17 : vector<64x1xi1>
    %19 = arith.andi %18, %12 : vector<64x1xi1>
    %20 = vector.broadcast %8 : i32 to vector<64x1xi32>
    %21 = arith.addi %10, %20 : vector<64x1xi32>
    %22 = arith.select %19, %21, %10 : vector<64x1xi1>, vector<64x1xi32>
    %c0_i32_7 = arith.constant 0 : i32
    %23 = vector.broadcast %c0_i32_7 : i32 to vector<64x1xi32>
    %24 = arith.cmpi ne, %22, %23 : vector<64x1xi32>
    %25 = arith.extui %24 : vector<64x1xi1> to vector<64x1xi32>
    %26 = arith.sitofp %25 : vector<64x1xi32> to vector<64x1xf32>
    %27 = arith.truncf %26 : vector<64x1xf32> to vector<64x1xbf16>
    %c7_i32 = arith.constant 7 : i32
    %28 = vector.broadcast %c7_i32 : i32 to vector<64x1xi32>
    %29 = arith.cmpi ne, %22, %28 : vector<64x1xi32>
    %30 = arith.extui %29 : vector<64x1xi1> to vector<64x1xi32>
    %31 = arith.sitofp %30 : vector<64x1xi32> to vector<64x1xf32>
    %32 = arith.truncf %31 : vector<64x1xf32> to vector<64x1xbf16>
    %33 = vector.extract_strided_slice %5 {offsets = [0, 0], sizes = [64, 16], strides = [1, 1]} : vector<82x16xbf16> to vector<64x16xbf16>
    %34 = vector.broadcast %27 : vector<64x1xbf16> to vector<64x16xbf16>
    %35 = arith.mulf %33, %34 : vector<64x16xbf16>
    %36 = vector.extract_strided_slice %5 {offsets = [1, 0], sizes = [64, 16], strides = [1, 1]} : vector<82x16xbf16> to vector<64x16xbf16>
    %37 = vector.extract_strided_slice %5 {offsets = [2, 0], sizes = [64, 16], strides = [1, 1]} : vector<82x16xbf16> to vector<64x16xbf16>
    %38 = vector.broadcast %32 : vector<64x1xbf16> to vector<64x16xbf16>
    %39 = arith.mulf %37, %38 : vector<64x16xbf16>
    %40 = vector.extract_strided_slice %5 {offsets = [8, 0], sizes = [64, 16], strides = [1, 1]} : vector<82x16xbf16> to vector<64x16xbf16>
    %41 = vector.broadcast %27 : vector<64x1xbf16> to vector<64x16xbf16>
    %42 = arith.mulf %40, %41 : vector<64x16xbf16>
    %43 = vector.extract_strided_slice %5 {offsets = [9, 0], sizes = [64, 16], strides = [1, 1]} : vector<82x16xbf16> to vector<64x16xbf16>
    %44 = vector.extract_strided_slice %5 {offsets = [10, 0], sizes = [64, 16], strides = [1, 1]} : vector<82x16xbf16> to vector<64x16xbf16>
    %45 = vector.broadcast %32 : vector<64x1xbf16> to vector<64x16xbf16>
    %46 = arith.mulf %44, %45 : vector<64x16xbf16>
    %47 = vector.extract_strided_slice %5 {offsets = [16, 0], sizes = [64, 16], strides = [1, 1]} : vector<82x16xbf16> to vector<64x16xbf16>
    %48 = vector.broadcast %27 : vector<64x1xbf16> to vector<64x16xbf16>
    %49 = arith.mulf %47, %48 : vector<64x16xbf16>
    %50 = vector.extract_strided_slice %5 {offsets = [17, 0], sizes = [64, 16], strides = [1, 1]} : vector<82x16xbf16> to vector<64x16xbf16>
    %51 = vector.extract_strided_slice %5 {offsets = [18, 0], sizes = [64, 16], strides = [1, 1]} : vector<82x16xbf16> to vector<64x16xbf16>
    %52 = vector.broadcast %32 : vector<64x1xbf16> to vector<64x16xbf16>
    %53 = arith.mulf %51, %52 : vector<64x16xbf16>
    %54 = tpu.concatenate %35, %36, %39, %42, %43, %46, %49, %50, %53 in 1 : vector<64x16xbf16>, vector<64x16xbf16>, vector<64x16xbf16>, vector<64x16xbf16>, vector<64x16xbf16>, vector<64x16xbf16>, vector<64x16xbf16>, vector<64x16xbf16>, vector<64x16xbf16> -> vector<64x144xbf16>
    %c0_8 = arith.constant 0 : index
    %c0_9 = arith.constant 0 : index
    %55 = vector.load %arg3[%c0_8, %c0_9] : memref<144x64xbf16, #tpu.memory_space<vmem>>, vector<144x64xbf16>
    %cst_10 = arith.constant dense<0.000000e+00> : vector<64x64xf32>
    %56 = tpu.matmul %54, %55, %cst_10 {dimension_numbers = #tpu.dot_dimension_numbers<[1], [0], [0], [1], [0, 0, 1, 1], [], []>} : vector<64x144xbf16>, vector<144x64xbf16>, vector<64x64xf32> -> vector<64x64xf32>
    %c0_11 = arith.constant 0 : index
    %c0_12 = arith.constant 0 : index
    %57 = vector.load %arg4[%c0_11, %c0_12] : memref<1x64xf32, #tpu.memory_space<vmem>>, vector<1x64xf32>
    %58 = vector.broadcast %57 : vector<1x64xf32> to vector<64x64xf32>
    %59 = arith.addf %56, %58 : vector<64x64xf32>
    %cst_13 = arith.constant 0.000000e+00 : f32
    %60 = vector.broadcast %cst_13 : f32 to vector<64x64xf32>
    %61 = arith.maximumf %59, %60 : vector<64x64xf32>
    %62 = vector.extract_strided_slice %61 {offsets = [0, 0], sizes = [8, 64], strides = [1, 1]} : vector<64x64xf32> to vector<8x64xf32>
    %63 = vector.extract_strided_slice %61 {offsets = [16, 0], sizes = [8, 64], strides = [1, 1]} : vector<64x64xf32> to vector<8x64xf32>
    %64 = vector.extract_strided_slice %61 {offsets = [32, 0], sizes = [8, 64], strides = [1, 1]} : vector<64x64xf32> to vector<8x64xf32>
    %65 = vector.extract_strided_slice %61 {offsets = [48, 0], sizes = [8, 64], strides = [1, 1]} : vector<64x64xf32> to vector<8x64xf32>
    %66 = tpu.concatenate %62, %63, %64, %65 in 0 : vector<8x64xf32>, vector<8x64xf32>, vector<8x64xf32>, vector<8x64xf32> -> vector<32x64xf32>
    %67 = arith.truncf %66 : vector<32x64xf32> to vector<32x64xbf16>
    %c0_14 = arith.constant 0 : index
    %c0_15 = arith.constant 0 : index
    %c0_16 = arith.constant 0 : index
    %68 = vector.load %arg5[%c0_14, %c0_15, %c0_16] : memref<1x32x64xbf16, #tpu.memory_space<vmem>>, vector<1x32x64xbf16>
    %69 = vector.shape_cast %68 : vector<1x32x64xbf16> to vector<32x64xbf16>
    %70 = vector.shape_cast %67 : vector<32x64xbf16> to vector<1x32x64xbf16>
    tpu.vector_store %arg5[%c0_14, %c0_15, %c0_16], %70 {strides = array<i32>} : memref<1x32x64xbf16, #tpu.memory_space<vmem>>, vector<1x32x64xbf16>,
    return
  }
  func.func @transform_0(%arg0: i32, %arg1: i32) -> (i32, i32, i32) {
    %c0_i32 = arith.constant 0 : i32
    %c0_i32_0 = arith.constant 0 : i32
    return %arg0, %arg1, %c0_i32 : i32, i32, i32
  }
  func.func @transform_1(%arg0: i32, %arg1: i32) -> (i32, i32) {
    %c0_i32 = arith.constant 0 : i32
    %c0_i32_0 = arith.constant 0 : i32
    %c0_i32_1 = arith.constant 0 : i32
    return %c0_i32, %c0_i32_0 : i32, i32
  }
  func.func @transform_2(%arg0: i32, %arg1: i32) -> (i32, i32) {
    %c0_i32 = arith.constant 0 : i32
    %c0_i32_0 = arith.constant 0 : i32
    %c0_i32_1 = arith.constant 0 : i32
    return %c0_i32, %c0_i32_0 : i32, i32
  }
  func.func @transform_3(%arg0: i32, %arg1: i32) -> (i32, i32, i32) {
    %c0_i32 = arith.constant 0 : i32
    %c0_i32_0 = arith.constant 0 : i32
    return %arg0, %arg1, %c0_i32 : i32, i32, i32
  }
}

module attributes {stable_mosaic.version = 11 : i64} {
  func.func @_conv3x3_kernel(%arg0: i32, %arg1: i32, %arg2: memref<1x16x64xbf16, #tpu.memory_space<vmem>>, %arg3: memref<576x64xbf16, #tpu.memory_space<vmem>>, %arg4: memref<1x64xf32, #tpu.memory_space<vmem>>, %arg5: memref<1x16x64xbf16, #tpu.memory_space<vmem>>) attributes {dimension_semantics = [#tpu.dimension_semantics<parallel>, #tpu.dimension_semantics<parallel>], iteration_bounds = array<i64: 2, 1>, scalar_prefetch = 0 : i64, scratch_operands = 0 : i64, tpu.core_type = #tpu.core_type<tc>, window_params = [{transform_indices = @transform_0, window_bounds = array<i64: 1, 16, 64>}, {pipeline_mode = #tpu.pipeline_mode<synchronous>, transform_indices = @transform_1, window_bounds = array<i64: 576, 64>}, {pipeline_mode = #tpu.pipeline_mode<synchronous>, transform_indices = @transform_2, window_bounds = array<i64: 1, 64>}, {transform_indices = @transform_3, window_bounds = array<i64: 1, 16, 64>}]} {
    %c0 = arith.constant 0 : index
    %c0_0 = arith.constant 0 : index
    %c0_1 = arith.constant 0 : index
    %0 = vector.load %arg2[%c0, %c0_0, %c0_1] : memref<1x16x64xbf16, #tpu.memory_space<vmem>>, vector<1x16x64xbf16>
    %1 = vector.shape_cast %0 : vector<1x16x64xbf16> to vector<16x64xbf16>
    %cst = arith.constant 0.000000e+00 : bf16
    %2 = vector.broadcast %cst : bf16 to vector<4x64xbf16>
    %cst_2 = arith.constant 0.000000e+00 : bf16
    %3 = vector.broadcast %cst_2 : bf16 to vector<4x64xbf16>
    %cst_3 = arith.constant 0.000000e+00 : bf16
    %4 = vector.broadcast %cst_3 : bf16 to vector<1x64xbf16>
    %5 = tpu.concatenate %4, %2, %1, %3, %4 in 0 : vector<1x64xbf16>, vector<4x64xbf16>, vector<16x64xbf16>, vector<4x64xbf16>, vector<1x64xbf16> -> vector<26x64xbf16>
    %6 = tpu.iota {dimensions = array<i32: 0>} : vector<16x1xi32>
    %c4_i32 = arith.constant 4 : i32
    %c0_i32 = arith.constant 0 : i32
    %7 = arith.cmpi eq, %c4_i32, %c0_i32 : i32
    %c1_i32 = arith.constant 1 : i32
    %8 = arith.select %7, %c1_i32, %c4_i32 : i32
    %9 = vector.broadcast %8 : i32 to vector<16x1xi32>
    %10 = arith.remsi %6, %9 : vector<16x1xi32>
    %c0_i32_4 = arith.constant 0 : i32
    %11 = vector.broadcast %c0_i32_4 : i32 to vector<16x1xi32>
    %12 = arith.cmpi ne, %10, %11 : vector<16x1xi32>
    %c0_i32_5 = arith.constant 0 : i32
    %13 = vector.broadcast %c0_i32_5 : i32 to vector<16x1xi32>
    %14 = arith.cmpi slt, %10, %13 : vector<16x1xi32>
    %c0_i32_6 = arith.constant 0 : i32
    %15 = arith.cmpi slt, %8, %c0_i32_6 : i32
    %16 = vector.broadcast %15 : i1 to vector<16x1xi1>
    %17 = vector.broadcast %16 : vector<16x1xi1> to vector<16x1xi1>
    %18 = arith.xori %14, %17 : vector<16x1xi1>
    %19 = arith.andi %18, %12 : vector<16x1xi1>
    %20 = vector.broadcast %8 : i32 to vector<16x1xi32>
    %21 = arith.addi %10, %20 : vector<16x1xi32>
    %22 = arith.select %19, %21, %10 : vector<16x1xi1>, vector<16x1xi32>
    %c0_i32_7 = arith.constant 0 : i32
    %23 = vector.broadcast %c0_i32_7 : i32 to vector<16x1xi32>
    %24 = arith.cmpi ne, %22, %23 : vector<16x1xi32>
    %25 = arith.extui %24 : vector<16x1xi1> to vector<16x1xi32>
    %26 = arith.sitofp %25 : vector<16x1xi32> to vector<16x1xf32>
    %27 = arith.truncf %26 : vector<16x1xf32> to vector<16x1xbf16>
    %c3_i32 = arith.constant 3 : i32
    %28 = vector.broadcast %c3_i32 : i32 to vector<16x1xi32>
    %29 = arith.cmpi ne, %22, %28 : vector<16x1xi32>
    %30 = arith.extui %29 : vector<16x1xi1> to vector<16x1xi32>
    %31 = arith.sitofp %30 : vector<16x1xi32> to vector<16x1xf32>
    %32 = arith.truncf %31 : vector<16x1xf32> to vector<16x1xbf16>
    %33 = vector.extract_strided_slice %5 {offsets = [0, 0], sizes = [16, 64], strides = [1, 1]} : vector<26x64xbf16> to vector<16x64xbf16>
    %34 = vector.broadcast %27 : vector<16x1xbf16> to vector<16x64xbf16>
    %35 = arith.mulf %33, %34 : vector<16x64xbf16>
    %36 = vector.extract_strided_slice %5 {offsets = [1, 0], sizes = [16, 64], strides = [1, 1]} : vector<26x64xbf16> to vector<16x64xbf16>
    %37 = vector.extract_strided_slice %5 {offsets = [2, 0], sizes = [16, 64], strides = [1, 1]} : vector<26x64xbf16> to vector<16x64xbf16>
    %38 = vector.broadcast %32 : vector<16x1xbf16> to vector<16x64xbf16>
    %39 = arith.mulf %37, %38 : vector<16x64xbf16>
    %40 = vector.extract_strided_slice %5 {offsets = [4, 0], sizes = [16, 64], strides = [1, 1]} : vector<26x64xbf16> to vector<16x64xbf16>
    %41 = vector.broadcast %27 : vector<16x1xbf16> to vector<16x64xbf16>
    %42 = arith.mulf %40, %41 : vector<16x64xbf16>
    %43 = vector.extract_strided_slice %5 {offsets = [5, 0], sizes = [16, 64], strides = [1, 1]} : vector<26x64xbf16> to vector<16x64xbf16>
    %44 = vector.extract_strided_slice %5 {offsets = [6, 0], sizes = [16, 64], strides = [1, 1]} : vector<26x64xbf16> to vector<16x64xbf16>
    %45 = vector.broadcast %32 : vector<16x1xbf16> to vector<16x64xbf16>
    %46 = arith.mulf %44, %45 : vector<16x64xbf16>
    %47 = vector.extract_strided_slice %5 {offsets = [8, 0], sizes = [16, 64], strides = [1, 1]} : vector<26x64xbf16> to vector<16x64xbf16>
    %48 = vector.broadcast %27 : vector<16x1xbf16> to vector<16x64xbf16>
    %49 = arith.mulf %47, %48 : vector<16x64xbf16>
    %50 = vector.extract_strided_slice %5 {offsets = [9, 0], sizes = [16, 64], strides = [1, 1]} : vector<26x64xbf16> to vector<16x64xbf16>
    %51 = vector.extract_strided_slice %5 {offsets = [10, 0], sizes = [16, 64], strides = [1, 1]} : vector<26x64xbf16> to vector<16x64xbf16>
    %52 = vector.broadcast %32 : vector<16x1xbf16> to vector<16x64xbf16>
    %53 = arith.mulf %51, %52 : vector<16x64xbf16>
    %54 = tpu.concatenate %35, %36, %39, %42, %43, %46, %49, %50, %53 in 1 : vector<16x64xbf16>, vector<16x64xbf16>, vector<16x64xbf16>, vector<16x64xbf16>, vector<16x64xbf16>, vector<16x64xbf16>, vector<16x64xbf16>, vector<16x64xbf16>, vector<16x64xbf16> -> vector<16x576xbf16>
    %c0_8 = arith.constant 0 : index
    %c0_9 = arith.constant 0 : index
    %55 = vector.load %arg3[%c0_8, %c0_9] : memref<576x64xbf16, #tpu.memory_space<vmem>>, vector<576x64xbf16>
    %cst_10 = arith.constant dense<0.000000e+00> : vector<16x64xf32>
    %56 = tpu.matmul %54, %55, %cst_10 {dimension_numbers = #tpu.dot_dimension_numbers<[1], [0], [0], [1], [0, 0, 1, 1], [], []>} : vector<16x576xbf16>, vector<576x64xbf16>, vector<16x64xf32> -> vector<16x64xf32>
    %c0_11 = arith.constant 0 : index
    %c0_12 = arith.constant 0 : index
    %57 = vector.load %arg4[%c0_11, %c0_12] : memref<1x64xf32, #tpu.memory_space<vmem>>, vector<1x64xf32>
    %58 = vector.broadcast %57 : vector<1x64xf32> to vector<16x64xf32>
    %59 = arith.addf %56, %58 : vector<16x64xf32>
    %cst_13 = arith.constant 0.000000e+00 : f32
    %60 = vector.broadcast %cst_13 : f32 to vector<16x64xf32>
    %61 = arith.maximumf %59, %60 : vector<16x64xf32>
    %62 = arith.truncf %61 : vector<16x64xf32> to vector<16x64xbf16>
    %c0_14 = arith.constant 0 : index
    %c0_15 = arith.constant 0 : index
    %c0_16 = arith.constant 0 : index
    %63 = vector.load %arg5[%c0_14, %c0_15, %c0_16] : memref<1x16x64xbf16, #tpu.memory_space<vmem>>, vector<1x16x64xbf16>
    %64 = vector.shape_cast %63 : vector<1x16x64xbf16> to vector<16x64xbf16>
    %65 = vector.shape_cast %62 : vector<16x64xbf16> to vector<1x16x64xbf16>
    tpu.vector_store %arg5[%c0_14, %c0_15, %c0_16], %65 {strides = array<i32>} : memref<1x16x64xbf16, #tpu.memory_space<vmem>>, vector<1x16x64xbf16>,
    return
  }
  func.func @transform_0(%arg0: i32, %arg1: i32) -> (i32, i32, i32) {
    %c0_i32 = arith.constant 0 : i32
    %c0_i32_0 = arith.constant 0 : i32
    return %arg0, %arg1, %c0_i32 : i32, i32, i32
  }
  func.func @transform_1(%arg0: i32, %arg1: i32) -> (i32, i32) {
    %c0_i32 = arith.constant 0 : i32
    %c0_i32_0 = arith.constant 0 : i32
    %c0_i32_1 = arith.constant 0 : i32
    return %c0_i32, %c0_i32_0 : i32, i32
  }
  func.func @transform_2(%arg0: i32, %arg1: i32) -> (i32, i32) {
    %c0_i32 = arith.constant 0 : i32
    %c0_i32_0 = arith.constant 0 : i32
    %c0_i32_1 = arith.constant 0 : i32
    return %c0_i32, %c0_i32_0 : i32, i32
  }
  func.func @transform_3(%arg0: i32, %arg1: i32) -> (i32, i32, i32) {
    %c0_i32 = arith.constant 0 : i32
    %c0_i32_0 = arith.constant 0 : i32
    return %arg0, %arg1, %c0_i32 : i32, i32, i32
  }
}

module attributes {stable_mosaic.version = 11 : i64} {
  func.func @_conv3x3_kernel(%arg0: i32, %arg1: i32, %arg2: memref<1x16x64xbf16, #tpu.memory_space<vmem>>, %arg3: memref<576x64xbf16, #tpu.memory_space<vmem>>, %arg4: memref<1x64xf32, #tpu.memory_space<vmem>>, %arg5: memref<1x16x64xbf16, #tpu.memory_space<vmem>>) attributes {dimension_semantics = [#tpu.dimension_semantics<parallel>, #tpu.dimension_semantics<parallel>], iteration_bounds = array<i64: 2, 1>, scalar_prefetch = 0 : i64, scratch_operands = 0 : i64, tpu.core_type = #tpu.core_type<tc>, window_params = [{transform_indices = @transform_0, window_bounds = array<i64: 1, 16, 64>}, {pipeline_mode = #tpu.pipeline_mode<synchronous>, transform_indices = @transform_1, window_bounds = array<i64: 576, 64>}, {pipeline_mode = #tpu.pipeline_mode<synchronous>, transform_indices = @transform_2, window_bounds = array<i64: 1, 64>}, {transform_indices = @transform_3, window_bounds = array<i64: 1, 16, 64>}]} {
    %c0 = arith.constant 0 : index
    %c0_0 = arith.constant 0 : index
    %c0_1 = arith.constant 0 : index
    %0 = vector.load %arg2[%c0, %c0_0, %c0_1] : memref<1x16x64xbf16, #tpu.memory_space<vmem>>, vector<1x16x64xbf16>
    %1 = vector.shape_cast %0 : vector<1x16x64xbf16> to vector<16x64xbf16>
    %cst = arith.constant 0.000000e+00 : bf16
    %2 = vector.broadcast %cst : bf16 to vector<4x64xbf16>
    %cst_2 = arith.constant 0.000000e+00 : bf16
    %3 = vector.broadcast %cst_2 : bf16 to vector<4x64xbf16>
    %cst_3 = arith.constant 0.000000e+00 : bf16
    %4 = vector.broadcast %cst_3 : bf16 to vector<1x64xbf16>
    %5 = tpu.concatenate %4, %2, %1, %3, %4 in 0 : vector<1x64xbf16>, vector<4x64xbf16>, vector<16x64xbf16>, vector<4x64xbf16>, vector<1x64xbf16> -> vector<26x64xbf16>
    %6 = tpu.iota {dimensions = array<i32: 0>} : vector<16x1xi32>
    %c4_i32 = arith.constant 4 : i32
    %c0_i32 = arith.constant 0 : i32
    %7 = arith.cmpi eq, %c4_i32, %c0_i32 : i32
    %c1_i32 = arith.constant 1 : i32
    %8 = arith.select %7, %c1_i32, %c4_i32 : i32
    %9 = vector.broadcast %8 : i32 to vector<16x1xi32>
    %10 = arith.remsi %6, %9 : vector<16x1xi32>
    %c0_i32_4 = arith.constant 0 : i32
    %11 = vector.broadcast %c0_i32_4 : i32 to vector<16x1xi32>
    %12 = arith.cmpi ne, %10, %11 : vector<16x1xi32>
    %c0_i32_5 = arith.constant 0 : i32
    %13 = vector.broadcast %c0_i32_5 : i32 to vector<16x1xi32>
    %14 = arith.cmpi slt, %10, %13 : vector<16x1xi32>
    %c0_i32_6 = arith.constant 0 : i32
    %15 = arith.cmpi slt, %8, %c0_i32_6 : i32
    %16 = vector.broadcast %15 : i1 to vector<16x1xi1>
    %17 = vector.broadcast %16 : vector<16x1xi1> to vector<16x1xi1>
    %18 = arith.xori %14, %17 : vector<16x1xi1>
    %19 = arith.andi %18, %12 : vector<16x1xi1>
    %20 = vector.broadcast %8 : i32 to vector<16x1xi32>
    %21 = arith.addi %10, %20 : vector<16x1xi32>
    %22 = arith.select %19, %21, %10 : vector<16x1xi1>, vector<16x1xi32>
    %c0_i32_7 = arith.constant 0 : i32
    %23 = vector.broadcast %c0_i32_7 : i32 to vector<16x1xi32>
    %24 = arith.cmpi ne, %22, %23 : vector<16x1xi32>
    %25 = arith.extui %24 : vector<16x1xi1> to vector<16x1xi32>
    %26 = arith.sitofp %25 : vector<16x1xi32> to vector<16x1xf32>
    %27 = arith.truncf %26 : vector<16x1xf32> to vector<16x1xbf16>
    %c3_i32 = arith.constant 3 : i32
    %28 = vector.broadcast %c3_i32 : i32 to vector<16x1xi32>
    %29 = arith.cmpi ne, %22, %28 : vector<16x1xi32>
    %30 = arith.extui %29 : vector<16x1xi1> to vector<16x1xi32>
    %31 = arith.sitofp %30 : vector<16x1xi32> to vector<16x1xf32>
    %32 = arith.truncf %31 : vector<16x1xf32> to vector<16x1xbf16>
    %33 = vector.extract_strided_slice %5 {offsets = [0, 0], sizes = [16, 64], strides = [1, 1]} : vector<26x64xbf16> to vector<16x64xbf16>
    %34 = vector.broadcast %27 : vector<16x1xbf16> to vector<16x64xbf16>
    %35 = arith.mulf %33, %34 : vector<16x64xbf16>
    %36 = vector.extract_strided_slice %5 {offsets = [1, 0], sizes = [16, 64], strides = [1, 1]} : vector<26x64xbf16> to vector<16x64xbf16>
    %37 = vector.extract_strided_slice %5 {offsets = [2, 0], sizes = [16, 64], strides = [1, 1]} : vector<26x64xbf16> to vector<16x64xbf16>
    %38 = vector.broadcast %32 : vector<16x1xbf16> to vector<16x64xbf16>
    %39 = arith.mulf %37, %38 : vector<16x64xbf16>
    %40 = vector.extract_strided_slice %5 {offsets = [4, 0], sizes = [16, 64], strides = [1, 1]} : vector<26x64xbf16> to vector<16x64xbf16>
    %41 = vector.broadcast %27 : vector<16x1xbf16> to vector<16x64xbf16>
    %42 = arith.mulf %40, %41 : vector<16x64xbf16>
    %43 = vector.extract_strided_slice %5 {offsets = [5, 0], sizes = [16, 64], strides = [1, 1]} : vector<26x64xbf16> to vector<16x64xbf16>
    %44 = vector.extract_strided_slice %5 {offsets = [6, 0], sizes = [16, 64], strides = [1, 1]} : vector<26x64xbf16> to vector<16x64xbf16>
    %45 = vector.broadcast %32 : vector<16x1xbf16> to vector<16x64xbf16>
    %46 = arith.mulf %44, %45 : vector<16x64xbf16>
    %47 = vector.extract_strided_slice %5 {offsets = [8, 0], sizes = [16, 64], strides = [1, 1]} : vector<26x64xbf16> to vector<16x64xbf16>
    %48 = vector.broadcast %27 : vector<16x1xbf16> to vector<16x64xbf16>
    %49 = arith.mulf %47, %48 : vector<16x64xbf16>
    %50 = vector.extract_strided_slice %5 {offsets = [9, 0], sizes = [16, 64], strides = [1, 1]} : vector<26x64xbf16> to vector<16x64xbf16>
    %51 = vector.extract_strided_slice %5 {offsets = [10, 0], sizes = [16, 64], strides = [1, 1]} : vector<26x64xbf16> to vector<16x64xbf16>
    %52 = vector.broadcast %32 : vector<16x1xbf16> to vector<16x64xbf16>
    %53 = arith.mulf %51, %52 : vector<16x64xbf16>
    %54 = tpu.concatenate %35, %36, %39, %42, %43, %46, %49, %50, %53 in 1 : vector<16x64xbf16>, vector<16x64xbf16>, vector<16x64xbf16>, vector<16x64xbf16>, vector<16x64xbf16>, vector<16x64xbf16>, vector<16x64xbf16>, vector<16x64xbf16>, vector<16x64xbf16> -> vector<16x576xbf16>
    %c0_8 = arith.constant 0 : index
    %c0_9 = arith.constant 0 : index
    %55 = vector.load %arg3[%c0_8, %c0_9] : memref<576x64xbf16, #tpu.memory_space<vmem>>, vector<576x64xbf16>
    %cst_10 = arith.constant dense<0.000000e+00> : vector<16x64xf32>
    %56 = tpu.matmul %54, %55, %cst_10 {dimension_numbers = #tpu.dot_dimension_numbers<[1], [0], [0], [1], [0, 0, 1, 1], [], []>} : vector<16x576xbf16>, vector<576x64xbf16>, vector<16x64xf32> -> vector<16x64xf32>
    %c0_11 = arith.constant 0 : index
    %c0_12 = arith.constant 0 : index
    %57 = vector.load %arg4[%c0_11, %c0_12] : memref<1x64xf32, #tpu.memory_space<vmem>>, vector<1x64xf32>
    %58 = vector.broadcast %57 : vector<1x64xf32> to vector<16x64xf32>
    %59 = arith.addf %56, %58 : vector<16x64xf32>
    %60 = arith.truncf %59 : vector<16x64xf32> to vector<16x64xbf16>
    %c0_13 = arith.constant 0 : index
    %c0_14 = arith.constant 0 : index
    %c0_15 = arith.constant 0 : index
    %61 = vector.load %arg5[%c0_13, %c0_14, %c0_15] : memref<1x16x64xbf16, #tpu.memory_space<vmem>>, vector<1x16x64xbf16>
    %62 = vector.shape_cast %61 : vector<1x16x64xbf16> to vector<16x64xbf16>
    %63 = vector.shape_cast %60 : vector<16x64xbf16> to vector<1x16x64xbf16>
    tpu.vector_store %arg5[%c0_13, %c0_14, %c0_15], %63 {strides = array<i32>} : memref<1x16x64xbf16, #tpu.memory_space<vmem>>, vector<1x16x64xbf16>,
    return
  }
  func.func @transform_0(%arg0: i32, %arg1: i32) -> (i32, i32, i32) {
    %c0_i32 = arith.constant 0 : i32
    %c0_i32_0 = arith.constant 0 : i32
    return %arg0, %arg1, %c0_i32 : i32, i32, i32
  }
  func.func @transform_1(%arg0: i32, %arg1: i32) -> (i32, i32) {
    %c0_i32 = arith.constant 0 : i32
    %c0_i32_0 = arith.constant 0 : i32
    %c0_i32_1 = arith.constant 0 : i32
    return %c0_i32, %c0_i32_0 : i32, i32
  }
  func.func @transform_2(%arg0: i32, %arg1: i32) -> (i32, i32) {
    %c0_i32 = arith.constant 0 : i32
    %c0_i32_0 = arith.constant 0 : i32
    %c0_i32_1 = arith.constant 0 : i32
    return %c0_i32, %c0_i32_0 : i32, i32
  }
  func.func @transform_3(%arg0: i32, %arg1: i32) -> (i32, i32, i32) {
    %c0_i32 = arith.constant 0 : i32
    %c0_i32_0 = arith.constant 0 : i32
    return %arg0, %arg1, %c0_i32 : i32, i32, i32
  }
}

module attributes {stable_mosaic.version = 11 : i64} {
  func.func @_conv3x3_kernel(%arg0: i32, %arg1: i32, %arg2: memref<1x16x64xbf16, #tpu.memory_space<vmem>>, %arg3: memref<576x16xbf16, #tpu.memory_space<vmem>>, %arg4: memref<1x16xf32, #tpu.memory_space<vmem>>, %arg5: memref<1x16x16xbf16, #tpu.memory_space<vmem>>) attributes {dimension_semantics = [#tpu.dimension_semantics<parallel>, #tpu.dimension_semantics<parallel>], iteration_bounds = array<i64: 2, 1>, scalar_prefetch = 0 : i64, scratch_operands = 0 : i64, tpu.core_type = #tpu.core_type<tc>, window_params = [{transform_indices = @transform_0, window_bounds = array<i64: 1, 16, 64>}, {pipeline_mode = #tpu.pipeline_mode<synchronous>, transform_indices = @transform_1, window_bounds = array<i64: 576, 16>}, {pipeline_mode = #tpu.pipeline_mode<synchronous>, transform_indices = @transform_2, window_bounds = array<i64: 1, 16>}, {transform_indices = @transform_3, window_bounds = array<i64: 1, 16, 16>}]} {
    %c0 = arith.constant 0 : index
    %c0_0 = arith.constant 0 : index
    %c0_1 = arith.constant 0 : index
    %0 = vector.load %arg2[%c0, %c0_0, %c0_1] : memref<1x16x64xbf16, #tpu.memory_space<vmem>>, vector<1x16x64xbf16>
    %1 = vector.shape_cast %0 : vector<1x16x64xbf16> to vector<16x64xbf16>
    %cst = arith.constant 0.000000e+00 : bf16
    %2 = vector.broadcast %cst : bf16 to vector<4x64xbf16>
    %cst_2 = arith.constant 0.000000e+00 : bf16
    %3 = vector.broadcast %cst_2 : bf16 to vector<4x64xbf16>
    %cst_3 = arith.constant 0.000000e+00 : bf16
    %4 = vector.broadcast %cst_3 : bf16 to vector<1x64xbf16>
    %5 = tpu.concatenate %4, %2, %1, %3, %4 in 0 : vector<1x64xbf16>, vector<4x64xbf16>, vector<16x64xbf16>, vector<4x64xbf16>, vector<1x64xbf16> -> vector<26x64xbf16>
    %6 = tpu.iota {dimensions = array<i32: 0>} : vector<16x1xi32>
    %c4_i32 = arith.constant 4 : i32
    %c0_i32 = arith.constant 0 : i32
    %7 = arith.cmpi eq, %c4_i32, %c0_i32 : i32
    %c1_i32 = arith.constant 1 : i32
    %8 = arith.select %7, %c1_i32, %c4_i32 : i32
    %9 = vector.broadcast %8 : i32 to vector<16x1xi32>
    %10 = arith.remsi %6, %9 : vector<16x1xi32>
    %c0_i32_4 = arith.constant 0 : i32
    %11 = vector.broadcast %c0_i32_4 : i32 to vector<16x1xi32>
    %12 = arith.cmpi ne, %10, %11 : vector<16x1xi32>
    %c0_i32_5 = arith.constant 0 : i32
    %13 = vector.broadcast %c0_i32_5 : i32 to vector<16x1xi32>
    %14 = arith.cmpi slt, %10, %13 : vector<16x1xi32>
    %c0_i32_6 = arith.constant 0 : i32
    %15 = arith.cmpi slt, %8, %c0_i32_6 : i32
    %16 = vector.broadcast %15 : i1 to vector<16x1xi1>
    %17 = vector.broadcast %16 : vector<16x1xi1> to vector<16x1xi1>
    %18 = arith.xori %14, %17 : vector<16x1xi1>
    %19 = arith.andi %18, %12 : vector<16x1xi1>
    %20 = vector.broadcast %8 : i32 to vector<16x1xi32>
    %21 = arith.addi %10, %20 : vector<16x1xi32>
    %22 = arith.select %19, %21, %10 : vector<16x1xi1>, vector<16x1xi32>
    %c0_i32_7 = arith.constant 0 : i32
    %23 = vector.broadcast %c0_i32_7 : i32 to vector<16x1xi32>
    %24 = arith.cmpi ne, %22, %23 : vector<16x1xi32>
    %25 = arith.extui %24 : vector<16x1xi1> to vector<16x1xi32>
    %26 = arith.sitofp %25 : vector<16x1xi32> to vector<16x1xf32>
    %27 = arith.truncf %26 : vector<16x1xf32> to vector<16x1xbf16>
    %c3_i32 = arith.constant 3 : i32
    %28 = vector.broadcast %c3_i32 : i32 to vector<16x1xi32>
    %29 = arith.cmpi ne, %22, %28 : vector<16x1xi32>
    %30 = arith.extui %29 : vector<16x1xi1> to vector<16x1xi32>
    %31 = arith.sitofp %30 : vector<16x1xi32> to vector<16x1xf32>
    %32 = arith.truncf %31 : vector<16x1xf32> to vector<16x1xbf16>
    %33 = vector.extract_strided_slice %5 {offsets = [0, 0], sizes = [16, 64], strides = [1, 1]} : vector<26x64xbf16> to vector<16x64xbf16>
    %34 = vector.broadcast %27 : vector<16x1xbf16> to vector<16x64xbf16>
    %35 = arith.mulf %33, %34 : vector<16x64xbf16>
    %36 = vector.extract_strided_slice %5 {offsets = [1, 0], sizes = [16, 64], strides = [1, 1]} : vector<26x64xbf16> to vector<16x64xbf16>
    %37 = vector.extract_strided_slice %5 {offsets = [2, 0], sizes = [16, 64], strides = [1, 1]} : vector<26x64xbf16> to vector<16x64xbf16>
    %38 = vector.broadcast %32 : vector<16x1xbf16> to vector<16x64xbf16>
    %39 = arith.mulf %37, %38 : vector<16x64xbf16>
    %40 = vector.extract_strided_slice %5 {offsets = [4, 0], sizes = [16, 64], strides = [1, 1]} : vector<26x64xbf16> to vector<16x64xbf16>
    %41 = vector.broadcast %27 : vector<16x1xbf16> to vector<16x64xbf16>
    %42 = arith.mulf %40, %41 : vector<16x64xbf16>
    %43 = vector.extract_strided_slice %5 {offsets = [5, 0], sizes = [16, 64], strides = [1, 1]} : vector<26x64xbf16> to vector<16x64xbf16>
    %44 = vector.extract_strided_slice %5 {offsets = [6, 0], sizes = [16, 64], strides = [1, 1]} : vector<26x64xbf16> to vector<16x64xbf16>
    %45 = vector.broadcast %32 : vector<16x1xbf16> to vector<16x64xbf16>
    %46 = arith.mulf %44, %45 : vector<16x64xbf16>
    %47 = vector.extract_strided_slice %5 {offsets = [8, 0], sizes = [16, 64], strides = [1, 1]} : vector<26x64xbf16> to vector<16x64xbf16>
    %48 = vector.broadcast %27 : vector<16x1xbf16> to vector<16x64xbf16>
    %49 = arith.mulf %47, %48 : vector<16x64xbf16>
    %50 = vector.extract_strided_slice %5 {offsets = [9, 0], sizes = [16, 64], strides = [1, 1]} : vector<26x64xbf16> to vector<16x64xbf16>
    %51 = vector.extract_strided_slice %5 {offsets = [10, 0], sizes = [16, 64], strides = [1, 1]} : vector<26x64xbf16> to vector<16x64xbf16>
    %52 = vector.broadcast %32 : vector<16x1xbf16> to vector<16x64xbf16>
    %53 = arith.mulf %51, %52 : vector<16x64xbf16>
    %54 = tpu.concatenate %35, %36, %39, %42, %43, %46, %49, %50, %53 in 1 : vector<16x64xbf16>, vector<16x64xbf16>, vector<16x64xbf16>, vector<16x64xbf16>, vector<16x64xbf16>, vector<16x64xbf16>, vector<16x64xbf16>, vector<16x64xbf16>, vector<16x64xbf16> -> vector<16x576xbf16>
    %c0_8 = arith.constant 0 : index
    %c0_9 = arith.constant 0 : index
    %55 = vector.load %arg3[%c0_8, %c0_9] : memref<576x16xbf16, #tpu.memory_space<vmem>>, vector<576x16xbf16>
    %cst_10 = arith.constant dense<0.000000e+00> : vector<16x16xf32>
    %56 = tpu.matmul %54, %55, %cst_10 {dimension_numbers = #tpu.dot_dimension_numbers<[1], [0], [0], [1], [0, 0, 1, 1], [], []>} : vector<16x576xbf16>, vector<576x16xbf16>, vector<16x16xf32> -> vector<16x16xf32>
    %c0_11 = arith.constant 0 : index
    %c0_12 = arith.constant 0 : index
    %57 = vector.load %arg4[%c0_11, %c0_12] : memref<1x16xf32, #tpu.memory_space<vmem>>, vector<1x16xf32>
    %58 = vector.broadcast %57 : vector<1x16xf32> to vector<16x16xf32>
    %59 = arith.addf %56, %58 : vector<16x16xf32>
    %60 = arith.truncf %59 : vector<16x16xf32> to vector<16x16xbf16>
    %c0_13 = arith.constant 0 : index
    %c0_14 = arith.constant 0 : index
    %c0_15 = arith.constant 0 : index
    %61 = vector.load %arg5[%c0_13, %c0_14, %c0_15] : memref<1x16x16xbf16, #tpu.memory_space<vmem>>, vector<1x16x16xbf16>
    %62 = vector.shape_cast %61 : vector<1x16x16xbf16> to vector<16x16xbf16>
    %63 = vector.shape_cast %60 : vector<16x16xbf16> to vector<1x16x16xbf16>
    tpu.vector_store %arg5[%c0_13, %c0_14, %c0_15], %63 {strides = array<i32>} : memref<1x16x16xbf16, #tpu.memory_space<vmem>>, vector<1x16x16xbf16>,
    return
  }
  func.func @transform_0(%arg0: i32, %arg1: i32) -> (i32, i32, i32) {
    %c0_i32 = arith.constant 0 : i32
    %c0_i32_0 = arith.constant 0 : i32
    return %arg0, %arg1, %c0_i32 : i32, i32, i32
  }
  func.func @transform_1(%arg0: i32, %arg1: i32) -> (i32, i32) {
    %c0_i32 = arith.constant 0 : i32
    %c0_i32_0 = arith.constant 0 : i32
    %c0_i32_1 = arith.constant 0 : i32
    return %c0_i32, %c0_i32_0 : i32, i32
  }
  func.func @transform_2(%arg0: i32, %arg1: i32) -> (i32, i32) {
    %c0_i32 = arith.constant 0 : i32
    %c0_i32_0 = arith.constant 0 : i32
    %c0_i32_1 = arith.constant 0 : i32
    return %c0_i32, %c0_i32_0 : i32, i32
  }
  func.func @transform_3(%arg0: i32, %arg1: i32) -> (i32, i32, i32) {
    %c0_i32 = arith.constant 0 : i32
    %c0_i32_0 = arith.constant 0 : i32
    return %arg0, %arg1, %c0_i32 : i32, i32, i32
  }
}

module attributes {stable_mosaic.version = 11 : i64} {
  func.func @_cca_kernel(%arg0: i32, %arg1: i32, %arg2: memref<1x16x64xbf16, #tpu.memory_space<vmem>>, %arg3: memref<64x4xbf16, #tpu.memory_space<vmem>>, %arg4: memref<1x4xf32, #tpu.memory_space<vmem>>, %arg5: memref<4x64xbf16, #tpu.memory_space<vmem>>, %arg6: memref<1x64xf32, #tpu.memory_space<vmem>>, %arg7: memref<1x1x64xf32, #tpu.memory_space<vmem>>, %arg8: memref<1x64xf32, #tpu.memory_space<vmem>>, %arg9: memref<1x64xf32, #tpu.memory_space<vmem>>) attributes {dimension_semantics = [#tpu.dimension_semantics<parallel>, #tpu.dimension_semantics<arbitrary>], iteration_bounds = array<i64: 2, 1>, scalar_prefetch = 0 : i64, scratch_operands = 2 : i64, tpu.core_type = #tpu.core_type<tc>, window_params = [{transform_indices = @transform_0, window_bounds = array<i64: 1, 16, 64>}, {pipeline_mode = #tpu.pipeline_mode<synchronous>, transform_indices = @transform_1, window_bounds = array<i64: 64, 4>}, {pipeline_mode = #tpu.pipeline_mode<synchronous>, transform_indices = @transform_2, window_bounds = array<i64: 1, 4>}, {pipeline_mode = #tpu.pipeline_mode<synchronous>, transform_indices = @transform_3, window_bounds = array<i64: 4, 64>}, {pipeline_mode = #tpu.pipeline_mode<synchronous>, transform_indices = @transform_4, window_bounds = array<i64: 1, 64>}, {transform_indices = @transform_5, window_bounds = array<i64: 1, 1, 64>}]} {
    %c0_i32 = arith.constant 0 : i32
    %0 = arith.cmpi eq, %arg1, %c0_i32 : i32
    %1 = arith.extui %0 : i1 to i32
    %c0_i32_0 = arith.constant 0 : i32
    %2 = arith.cmpi ne, %1, %c0_i32_0 : i32
    scf.if %2 {
      %cst_14 = arith.constant 0.000000e+00 : f32
      %20 = vector.broadcast %cst_14 : f32 to vector<1x64xf32>
      %c0_15 = arith.constant 0 : index
      %c0_16 = arith.constant 0 : index
      %21 = vector.load %arg8[%c0_15, %c0_16] : memref<1x64xf32, #tpu.memory_space<vmem>>, vector<1x64xf32>
      tpu.vector_store %arg8[%c0_15, %c0_16], %20 {strides = array<i32>} : memref<1x64xf32, #tpu.memory_space<vmem>>, vector<1x64xf32>,
      %cst_17 = arith.constant 0.000000e+00 : f32
      %22 = vector.broadcast %cst_17 : f32 to vector<1x64xf32>
      %c0_18 = arith.constant 0 : index
      %c0_19 = arith.constant 0 : index
      %23 = vector.load %arg9[%c0_18, %c0_19] : memref<1x64xf32, #tpu.memory_space<vmem>>, vector<1x64xf32>
      tpu.vector_store %arg9[%c0_18, %c0_19], %22 {strides = array<i32>} : memref<1x64xf32, #tpu.memory_space<vmem>>, vector<1x64xf32>,
    } else {
    }
    %c0 = arith.constant 0 : index
    %c0_1 = arith.constant 0 : index
    %c0_2 = arith.constant 0 : index
    %3 = vector.load %arg2[%c0, %c0_1, %c0_2] : memref<1x16x64xbf16, #tpu.memory_space<vmem>>, vector<1x16x64xbf16>
    %4 = vector.shape_cast %3 : vector<1x16x64xbf16> to vector<16x64xbf16>
    %5 = arith.extf %4 : vector<16x64xbf16> to vector<16x64xf32>
    %c0_3 = arith.constant 0 : index
    %c0_4 = arith.constant 0 : index
    %6 = vector.load %arg8[%c0_3, %c0_4] : memref<1x64xf32, #tpu.memory_space<vmem>>, vector<1x64xf32>
    %cst = arith.constant dense<0.000000e+00> : vector<64xf32>
    %7 = vector.multi_reduction <add>, %5, %cst [0] : vector<16x64xf32> to vector<64xf32>
    %8 = vector.shape_cast %7 : vector<64xf32> to vector<1x64xf32>
    %9 = arith.addf %6, %8 : vector<1x64xf32>
    %c0_5 = arith.constant 0 : index
    %c0_6 = arith.constant 0 : index
    %10 = vector.load %arg8[%c0_5, %c0_6] : memref<1x64xf32, #tpu.memory_space<vmem>>, vector<1x64xf32>
    tpu.vector_store %arg8[%c0_5, %c0_6], %9 {strides = array<i32>} : memref<1x64xf32, #tpu.memory_space<vmem>>, vector<1x64xf32>,
    %c0_7 = arith.constant 0 : index
    %c0_8 = arith.constant 0 : index
    %11 = vector.load %arg9[%c0_7, %c0_8] : memref<1x64xf32, #tpu.memory_space<vmem>>, vector<1x64xf32>
    %12 = arith.mulf %5, %5 : vector<16x64xf32>
    %cst_9 = arith.constant dense<0.000000e+00> : vector<64xf32>
    %13 = vector.multi_reduction <add>, %12, %cst_9 [0] : vector<16x64xf32> to vector<64xf32>
    %14 = vector.shape_cast %13 : vector<64xf32> to vector<1x64xf32>
    %15 = arith.addf %11, %14 : vector<1x64xf32>
    %c0_10 = arith.constant 0 : index
    %c0_11 = arith.constant 0 : index
    %16 = vector.load %arg9[%c0_10, %c0_11] : memref<1x64xf32, #tpu.memory_space<vmem>>, vector<1x64xf32>
    tpu.vector_store %arg9[%c0_10, %c0_11], %15 {strides = array<i32>} : memref<1x64xf32, #tpu.memory_space<vmem>>, vector<1x64xf32>,
    %c0_i32_12 = arith.constant 0 : i32
    %17 = arith.cmpi eq, %arg1, %c0_i32_12 : i32
    %18 = arith.extui %17 : i1 to i32
    %c0_i32_13 = arith.constant 0 : i32
    %19 = arith.cmpi ne, %18, %c0_i32_13 : i32
    scf.if %19 {
      %c0_14 = arith.constant 0 : index
      %c0_15 = arith.constant 0 : index
      %20 = vector.load %arg8[%c0_14, %c0_15] : memref<1x64xf32, #tpu.memory_space<vmem>>, vector<1x64xf32>
      %cst_16 = arith.constant 6.250000e-02 : f32
      %21 = vector.broadcast %cst_16 : f32 to vector<1x64xf32>
      %22 = arith.mulf %20, %21 : vector<1x64xf32>
      %c0_17 = arith.constant 0 : index
      %c0_18 = arith.constant 0 : index
      %23 = vector.load %arg9[%c0_17, %c0_18] : memref<1x64xf32, #tpu.memory_space<vmem>>, vector<1x64xf32>
      %cst_19 = arith.constant 6.250000e-02 : f32
      %24 = vector.broadcast %cst_19 : f32 to vector<1x64xf32>
      %25 = arith.mulf %23, %24 : vector<1x64xf32>
      %26 = arith.mulf %22, %22 : vector<1x64xf32>
      %27 = arith.subf %25, %26 : vector<1x64xf32>
      %cst_20 = arith.constant 0.000000e+00 : f32
      %28 = vector.broadcast %cst_20 : f32 to vector<1x64xf32>
      %29 = arith.maximumf %27, %28 : vector<1x64xf32>
      %30 = math.sqrt %29 : vector<1x64xf32>
      %31 = arith.addf %30, %22 : vector<1x64xf32>
      %32 = arith.truncf %31 : vector<1x64xf32> to vector<1x64xbf16>
      %c0_21 = arith.constant 0 : index
      %c0_22 = arith.constant 0 : index
      %33 = vector.load %arg3[%c0_21, %c0_22] : memref<64x4xbf16, #tpu.memory_space<vmem>>, vector<64x4xbf16>
      %cst_23 = arith.constant dense<0.000000e+00> : vector<1x4xf32>
      %34 = tpu.matmul %32, %33, %cst_23 {dimension_numbers = #tpu.dot_dimension_numbers<[1], [0], [0], [1], [0, 0, 1, 1], [], []>} : vector<1x64xbf16>, vector<64x4xbf16>, vector<1x4xf32> -> vector<1x4xf32>
      %c0_24 = arith.constant 0 : index
      %c0_25 = arith.constant 0 : index
      %35 = vector.load %arg4[%c0_24, %c0_25] : memref<1x4xf32, #tpu.memory_space<vmem>>, vector<1x4xf32>
      %36 = arith.addf %34, %35 : vector<1x4xf32>
      %cst_26 = arith.constant 0.000000e+00 : f32
      %37 = vector.broadcast %cst_26 : f32 to vector<1x4xf32>
      %38 = arith.maximumf %36, %37 : vector<1x4xf32>
      %39 = arith.truncf %38 : vector<1x4xf32> to vector<1x4xbf16>
      %c0_27 = arith.constant 0 : index
      %c0_28 = arith.constant 0 : index
      %40 = vector.load %arg5[%c0_27, %c0_28] : memref<4x64xbf16, #tpu.memory_space<vmem>>, vector<4x64xbf16>
      %cst_29 = arith.constant dense<0.000000e+00> : vector<1x64xf32>
      %41 = tpu.matmul %39, %40, %cst_29 {dimension_numbers = #tpu.dot_dimension_numbers<[1], [0], [0], [1], [0, 0, 1, 1], [], []>} : vector<1x4xbf16>, vector<4x64xbf16>, vector<1x64xf32> -> vector<1x64xf32>
      %c0_30 = arith.constant 0 : index
      %c0_31 = arith.constant 0 : index
      %42 = vector.load %arg6[%c0_30, %c0_31] : memref<1x64xf32, #tpu.memory_space<vmem>>, vector<1x64xf32>
      %43 = arith.addf %41, %42 : vector<1x64xf32>
      %44 = arith.negf %43 : vector<1x64xf32>
      %45 = math.exp %44 : vector<1x64xf32>
      %cst_32 = arith.constant 1.000000e+00 : f32
      %46 = vector.broadcast %cst_32 : f32 to vector<1x64xf32>
      %47 = arith.addf %46, %45 : vector<1x64xf32>
      %48 = arith.divf %46, %47 : vector<1x64xf32>
      %c0_33 = arith.constant 0 : index
      %c0_34 = arith.constant 0 : index
      %c0_35 = arith.constant 0 : index
      %49 = vector.load %arg7[%c0_33, %c0_34, %c0_35] : memref<1x1x64xf32, #tpu.memory_space<vmem>>, vector<1x1x64xf32>
      %50 = vector.shape_cast %49 : vector<1x1x64xf32> to vector<1x64xf32>
      %51 = vector.shape_cast %48 : vector<1x64xf32> to vector<1x1x64xf32>
      tpu.vector_store %arg7[%c0_33, %c0_34, %c0_35], %51 {strides = array<i32>} : memref<1x1x64xf32, #tpu.memory_space<vmem>>, vector<1x1x64xf32>,
    } else {
    }
    return
  }
  func.func @transform_0(%arg0: i32, %arg1: i32) -> (i32, i32, i32) {
    %c0_i32 = arith.constant 0 : i32
    %c0_i32_0 = arith.constant 0 : i32
    return %arg0, %arg1, %c0_i32 : i32, i32, i32
  }
  func.func @transform_1(%arg0: i32, %arg1: i32) -> (i32, i32) {
    %c0_i32 = arith.constant 0 : i32
    %c0_i32_0 = arith.constant 0 : i32
    %c0_i32_1 = arith.constant 0 : i32
    return %c0_i32, %c0_i32_0 : i32, i32
  }
  func.func @transform_2(%arg0: i32, %arg1: i32) -> (i32, i32) {
    %c0_i32 = arith.constant 0 : i32
    %c0_i32_0 = arith.constant 0 : i32
    %c0_i32_1 = arith.constant 0 : i32
    return %c0_i32, %c0_i32_0 : i32, i32
  }
  func.func @transform_3(%arg0: i32, %arg1: i32) -> (i32, i32) {
    %c0_i32 = arith.constant 0 : i32
    %c0_i32_0 = arith.constant 0 : i32
    %c0_i32_1 = arith.constant 0 : i32
    return %c0_i32, %c0_i32_0 : i32, i32
  }
  func.func @transform_4(%arg0: i32, %arg1: i32) -> (i32, i32) {
    %c0_i32 = arith.constant 0 : i32
    %c0_i32_0 = arith.constant 0 : i32
    %c0_i32_1 = arith.constant 0 : i32
    return %c0_i32, %c0_i32_0 : i32, i32
  }
  func.func @transform_5(%arg0: i32, %arg1: i32) -> (i32, i32, i32) {
    %c0_i32 = arith.constant 0 : i32
    %c0_i32_0 = arith.constant 0 : i32
    %c0_i32_1 = arith.constant 0 : i32
    return %arg0, %c0_i32, %c0_i32_0 : i32, i32, i32
  }
}

module attributes {stable_mosaic.version = 11 : i64} {
  func.func @_c5_kernel(%arg0: i32, %arg1: i32, %arg2: memref<1x16x64xbf16, #tpu.memory_space<vmem>>, %arg3: memref<1x1x64xf32, #tpu.memory_space<vmem>>, %arg4: memref<64x64xbf16, #tpu.memory_space<vmem>>, %arg5: memref<1x64xf32, #tpu.memory_space<vmem>>, %arg6: memref<1x16x64xbf16, #tpu.memory_space<vmem>>, %arg7: memref<1x16x64xbf16, #tpu.memory_space<vmem>>) attributes {dimension_semantics = [#tpu.dimension_semantics<parallel>, #tpu.dimension_semantics<parallel>], iteration_bounds = array<i64: 2, 1>, scalar_prefetch = 0 : i64, scratch_operands = 0 : i64, tpu.core_type = #tpu.core_type<tc>, window_params = [{transform_indices = @transform_0, window_bounds = array<i64: 1, 16, 64>}, {transform_indices = @transform_1, window_bounds = array<i64: 1, 1, 64>}, {pipeline_mode = #tpu.pipeline_mode<synchronous>, transform_indices = @transform_2, window_bounds = array<i64: 64, 64>}, {pipeline_mode = #tpu.pipeline_mode<synchronous>, transform_indices = @transform_3, window_bounds = array<i64: 1, 64>}, {transform_indices = @transform_4, window_bounds = array<i64: 1, 16, 64>}, {transform_indices = @transform_5, window_bounds = array<i64: 1, 16, 64>}]} {
    %c0 = arith.constant 0 : index
    %c0_0 = arith.constant 0 : index
    %c0_1 = arith.constant 0 : index
    %0 = vector.load %arg2[%c0, %c0_0, %c0_1] : memref<1x16x64xbf16, #tpu.memory_space<vmem>>, vector<1x16x64xbf16>
    %1 = vector.shape_cast %0 : vector<1x16x64xbf16> to vector<16x64xbf16>
    %2 = arith.extf %1 : vector<16x64xbf16> to vector<16x64xf32>
    %c0_2 = arith.constant 0 : index
    %c0_3 = arith.constant 0 : index
    %c0_4 = arith.constant 0 : index
    %3 = vector.load %arg3[%c0_2, %c0_3, %c0_4] : memref<1x1x64xf32, #tpu.memory_space<vmem>>, vector<1x1x64xf32>
    %4 = vector.shape_cast %3 : vector<1x1x64xf32> to vector<1x64xf32>
    %5 = vector.broadcast %4 : vector<1x64xf32> to vector<16x64xf32>
    %6 = arith.mulf %2, %5 : vector<16x64xf32>
    %7 = arith.truncf %6 : vector<16x64xf32> to vector<16x64xbf16>
    %c0_5 = arith.constant 0 : index
    %c0_6 = arith.constant 0 : index
    %8 = vector.load %arg4[%c0_5, %c0_6] : memref<64x64xbf16, #tpu.memory_space<vmem>>, vector<64x64xbf16>
    %cst = arith.constant dense<0.000000e+00> : vector<16x64xf32>
    %9 = tpu.matmul %7, %8, %cst {dimension_numbers = #tpu.dot_dimension_numbers<[1], [0], [0], [1], [0, 0, 1, 1], [], []>} : vector<16x64xbf16>, vector<64x64xbf16>, vector<16x64xf32> -> vector<16x64xf32>
    %c0_7 = arith.constant 0 : index
    %c0_8 = arith.constant 0 : index
    %10 = vector.load %arg5[%c0_7, %c0_8] : memref<1x64xf32, #tpu.memory_space<vmem>>, vector<1x64xf32>
    %11 = vector.broadcast %10 : vector<1x64xf32> to vector<16x64xf32>
    %12 = arith.addf %9, %11 : vector<16x64xf32>
    %c0_9 = arith.constant 0 : index
    %c0_10 = arith.constant 0 : index
    %c0_11 = arith.constant 0 : index
    %13 = vector.load %arg6[%c0_9, %c0_10, %c0_11] : memref<1x16x64xbf16, #tpu.memory_space<vmem>>, vector<1x16x64xbf16>
    %14 = vector.shape_cast %13 : vector<1x16x64xbf16> to vector<16x64xbf16>
    %15 = arith.extf %14 : vector<16x64xbf16> to vector<16x64xf32>
    %16 = arith.addf %12, %15 : vector<16x64xf32>
    %17 = arith.truncf %16 : vector<16x64xf32> to vector<16x64xbf16>
    %c0_12 = arith.constant 0 : index
    %c0_13 = arith.constant 0 : index
    %c0_14 = arith.constant 0 : index
    %18 = vector.load %arg7[%c0_12, %c0_13, %c0_14] : memref<1x16x64xbf16, #tpu.memory_space<vmem>>, vector<1x16x64xbf16>
    %19 = vector.shape_cast %18 : vector<1x16x64xbf16> to vector<16x64xbf16>
    %20 = vector.shape_cast %17 : vector<16x64xbf16> to vector<1x16x64xbf16>
    tpu.vector_store %arg7[%c0_12, %c0_13, %c0_14], %20 {strides = array<i32>} : memref<1x16x64xbf16, #tpu.memory_space<vmem>>, vector<1x16x64xbf16>,
    return
  }
  func.func @transform_0(%arg0: i32, %arg1: i32) -> (i32, i32, i32) {
    %c0_i32 = arith.constant 0 : i32
    %c0_i32_0 = arith.constant 0 : i32
    return %arg0, %arg1, %c0_i32 : i32, i32, i32
  }
  func.func @transform_1(%arg0: i32, %arg1: i32) -> (i32, i32, i32) {
    %c0_i32 = arith.constant 0 : i32
    %c0_i32_0 = arith.constant 0 : i32
    %c0_i32_1 = arith.constant 0 : i32
    return %arg0, %c0_i32, %c0_i32_0 : i32, i32, i32
  }
  func.func @transform_2(%arg0: i32, %arg1: i32) -> (i32, i32) {
    %c0_i32 = arith.constant 0 : i32
    %c0_i32_0 = arith.constant 0 : i32
    %c0_i32_1 = arith.constant 0 : i32
    return %c0_i32, %c0_i32_0 : i32, i32
  }
  func.func @transform_3(%arg0: i32, %arg1: i32) -> (i32, i32) {
    %c0_i32 = arith.constant 0 : i32
    %c0_i32_0 = arith.constant 0 : i32
    %c0_i32_1 = arith.constant 0 : i32
    return %c0_i32, %c0_i32_0 : i32, i32
  }
  func.func @transform_4(%arg0: i32, %arg1: i32) -> (i32, i32, i32) {
    %c0_i32 = arith.constant 0 : i32
    %c0_i32_0 = arith.constant 0 : i32
    return %arg0, %arg1, %c0_i32 : i32, i32, i32
  }
  func.func @transform_5(%arg0: i32, %arg1: i32) -> (i32, i32, i32) {
    %c0_i32 = arith.constant 0 : i32
    %c0_i32_0 = arith.constant 0 : i32
    return %arg0, %arg1, %c0_i32 : i32, i32, i32
  }
}

module attributes {stable_mosaic.version = 11 : i64} {
  func.func @_conv_cat_kernel(%arg0: i32, %arg1: i32, %arg2: memref<1x16x64xbf16, #tpu.memory_space<vmem>>, %arg3: memref<1x16x64xbf16, #tpu.memory_space<vmem>>, %arg4: memref<1x16x64xbf16, #tpu.memory_space<vmem>>, %arg5: memref<1x16x64xbf16, #tpu.memory_space<vmem>>, %arg6: memref<1x16x64xbf16, #tpu.memory_space<vmem>>, %arg7: memref<1x16x64xbf16, #tpu.memory_space<vmem>>, %arg8: memref<1x16x64xbf16, #tpu.memory_space<vmem>>, %arg9: memref<1x16x64xbf16, #tpu.memory_space<vmem>>, %arg10: memref<1x16x64xbf16, #tpu.memory_space<vmem>>, %arg11: memref<1x16x64xbf16, #tpu.memory_space<vmem>>, %arg12: memref<1x16x64xbf16, #tpu.memory_space<vmem>>, %arg13: memref<1x16x64xbf16, #tpu.memory_space<vmem>>, %arg14: memref<768x64xbf16, #tpu.memory_space<vmem>>, %arg15: memref<1x64xf32, #tpu.memory_space<vmem>>, %arg16: memref<1x16x64xbf16, #tpu.memory_space<vmem>>) attributes {dimension_semantics = [#tpu.dimension_semantics<parallel>, #tpu.dimension_semantics<parallel>], iteration_bounds = array<i64: 2, 1>, scalar_prefetch = 0 : i64, scratch_operands = 0 : i64, tpu.core_type = #tpu.core_type<tc>, window_params = [{transform_indices = @transform_0, window_bounds = array<i64: 1, 16, 64>}, {transform_indices = @transform_1, window_bounds = array<i64: 1, 16, 64>}, {transform_indices = @transform_2, window_bounds = array<i64: 1, 16, 64>}, {transform_indices = @transform_3, window_bounds = array<i64: 1, 16, 64>}, {transform_indices = @transform_4, window_bounds = array<i64: 1, 16, 64>}, {transform_indices = @transform_5, window_bounds = array<i64: 1, 16, 64>}, {transform_indices = @transform_6, window_bounds = array<i64: 1, 16, 64>}, {transform_indices = @transform_7, window_bounds = array<i64: 1, 16, 64>}, {transform_indices = @transform_8, window_bounds = array<i64: 1, 16, 64>}, {transform_indices = @transform_9, window_bounds = array<i64: 1, 16, 64>}, {transform_indices = @transform_10, window_bounds = array<i64: 1, 16, 64>}, {transform_indices = @transform_11, window_bounds = array<i64: 1, 16, 64>}, {pipeline_mode = #tpu.pipeline_mode<synchronous>, transform_indices = @transform_12, window_bounds = array<i64: 768, 64>}, {pipeline_mode = #tpu.pipeline_mode<synchronous>, transform_indices = @transform_13, window_bounds = array<i64: 1, 64>}, {transform_indices = @transform_14, window_bounds = array<i64: 1, 16, 64>}]} {
    %c0 = arith.constant 0 : index
    %c0_0 = arith.constant 0 : index
    %c0_1 = arith.constant 0 : index
    %0 = vector.load %arg2[%c0, %c0_0, %c0_1] : memref<1x16x64xbf16, #tpu.memory_space<vmem>>, vector<1x16x64xbf16>
    %1 = vector.shape_cast %0 : vector<1x16x64xbf16> to vector<16x64xbf16>
    %c0_2 = arith.constant 0 : index
    %c0_3 = arith.constant 0 : index
    %c0_4 = arith.constant 0 : index
    %2 = vector.load %arg3[%c0_2, %c0_3, %c0_4] : memref<1x16x64xbf16, #tpu.memory_space<vmem>>, vector<1x16x64xbf16>
    %3 = vector.shape_cast %2 : vector<1x16x64xbf16> to vector<16x64xbf16>
    %c0_5 = arith.constant 0 : index
    %c0_6 = arith.constant 0 : index
    %c0_7 = arith.constant 0 : index
    %4 = vector.load %arg4[%c0_5, %c0_6, %c0_7] : memref<1x16x64xbf16, #tpu.memory_space<vmem>>, vector<1x16x64xbf16>
    %5 = vector.shape_cast %4 : vector<1x16x64xbf16> to vector<16x64xbf16>
    %c0_8 = arith.constant 0 : index
    %c0_9 = arith.constant 0 : index
    %c0_10 = arith.constant 0 : index
    %6 = vector.load %arg5[%c0_8, %c0_9, %c0_10] : memref<1x16x64xbf16, #tpu.memory_space<vmem>>, vector<1x16x64xbf16>
    %7 = vector.shape_cast %6 : vector<1x16x64xbf16> to vector<16x64xbf16>
    %c0_11 = arith.constant 0 : index
    %c0_12 = arith.constant 0 : index
    %c0_13 = arith.constant 0 : index
    %8 = vector.load %arg6[%c0_11, %c0_12, %c0_13] : memref<1x16x64xbf16, #tpu.memory_space<vmem>>, vector<1x16x64xbf16>
    %9 = vector.shape_cast %8 : vector<1x16x64xbf16> to vector<16x64xbf16>
    %c0_14 = arith.constant 0 : index
    %c0_15 = arith.constant 0 : index
    %c0_16 = arith.constant 0 : index
    %10 = vector.load %arg7[%c0_14, %c0_15, %c0_16] : memref<1x16x64xbf16, #tpu.memory_space<vmem>>, vector<1x16x64xbf16>
    %11 = vector.shape_cast %10 : vector<1x16x64xbf16> to vector<16x64xbf16>
    %c0_17 = arith.constant 0 : index
    %c0_18 = arith.constant 0 : index
    %c0_19 = arith.constant 0 : index
    %12 = vector.load %arg8[%c0_17, %c0_18, %c0_19] : memref<1x16x64xbf16, #tpu.memory_space<vmem>>, vector<1x16x64xbf16>
    %13 = vector.shape_cast %12 : vector<1x16x64xbf16> to vector<16x64xbf16>
    %c0_20 = arith.constant 0 : index
    %c0_21 = arith.constant 0 : index
    %c0_22 = arith.constant 0 : index
    %14 = vector.load %arg9[%c0_20, %c0_21, %c0_22] : memref<1x16x64xbf16, #tpu.memory_space<vmem>>, vector<1x16x64xbf16>
    %15 = vector.shape_cast %14 : vector<1x16x64xbf16> to vector<16x64xbf16>
    %c0_23 = arith.constant 0 : index
    %c0_24 = arith.constant 0 : index
    %c0_25 = arith.constant 0 : index
    %16 = vector.load %arg10[%c0_23, %c0_24, %c0_25] : memref<1x16x64xbf16, #tpu.memory_space<vmem>>, vector<1x16x64xbf16>
    %17 = vector.shape_cast %16 : vector<1x16x64xbf16> to vector<16x64xbf16>
    %c0_26 = arith.constant 0 : index
    %c0_27 = arith.constant 0 : index
    %c0_28 = arith.constant 0 : index
    %18 = vector.load %arg11[%c0_26, %c0_27, %c0_28] : memref<1x16x64xbf16, #tpu.memory_space<vmem>>, vector<1x16x64xbf16>
    %19 = vector.shape_cast %18 : vector<1x16x64xbf16> to vector<16x64xbf16>
    %c0_29 = arith.constant 0 : index
    %c0_30 = arith.constant 0 : index
    %c0_31 = arith.constant 0 : index
    %20 = vector.load %arg12[%c0_29, %c0_30, %c0_31] : memref<1x16x64xbf16, #tpu.memory_space<vmem>>, vector<1x16x64xbf16>
    %21 = vector.shape_cast %20 : vector<1x16x64xbf16> to vector<16x64xbf16>
    %c0_32 = arith.constant 0 : index
    %c0_33 = arith.constant 0 : index
    %c0_34 = arith.constant 0 : index
    %22 = vector.load %arg13[%c0_32, %c0_33, %c0_34] : memref<1x16x64xbf16, #tpu.memory_space<vmem>>, vector<1x16x64xbf16>
    %23 = vector.shape_cast %22 : vector<1x16x64xbf16> to vector<16x64xbf16>
    %24 = tpu.concatenate %1, %3, %5, %7, %9, %11, %13, %15, %17, %19, %21, %23 in 1 : vector<16x64xbf16>, vector<16x64xbf16>, vector<16x64xbf16>, vector<16x64xbf16>, vector<16x64xbf16>, vector<16x64xbf16>, vector<16x64xbf16>, vector<16x64xbf16>, vector<16x64xbf16>, vector<16x64xbf16>, vector<16x64xbf16>, vector<16x64xbf16> -> vector<16x768xbf16>
    %c0_35 = arith.constant 0 : index
    %c0_36 = arith.constant 0 : index
    %25 = vector.load %arg14[%c0_35, %c0_36] : memref<768x64xbf16, #tpu.memory_space<vmem>>, vector<768x64xbf16>
    %cst = arith.constant dense<0.000000e+00> : vector<16x64xf32>
    %26 = tpu.matmul %24, %25, %cst {dimension_numbers = #tpu.dot_dimension_numbers<[1], [0], [0], [1], [0, 0, 1, 1], [], []>} : vector<16x768xbf16>, vector<768x64xbf16>, vector<16x64xf32> -> vector<16x64xf32>
    %c0_37 = arith.constant 0 : index
    %c0_38 = arith.constant 0 : index
    %27 = vector.load %arg15[%c0_37, %c0_38] : memref<1x64xf32, #tpu.memory_space<vmem>>, vector<1x64xf32>
    %28 = vector.broadcast %27 : vector<1x64xf32> to vector<16x64xf32>
    %29 = arith.addf %26, %28 : vector<16x64xf32>
    %cst_39 = arith.constant 0.000000e+00 : f32
    %30 = vector.broadcast %cst_39 : f32 to vector<16x64xf32>
    %31 = arith.maximumf %29, %30 : vector<16x64xf32>
    %32 = arith.truncf %31 : vector<16x64xf32> to vector<16x64xbf16>
    %c0_40 = arith.constant 0 : index
    %c0_41 = arith.constant 0 : index
    %c0_42 = arith.constant 0 : index
    %33 = vector.load %arg16[%c0_40, %c0_41, %c0_42] : memref<1x16x64xbf16, #tpu.memory_space<vmem>>, vector<1x16x64xbf16>
    %34 = vector.shape_cast %33 : vector<1x16x64xbf16> to vector<16x64xbf16>
    %35 = vector.shape_cast %32 : vector<16x64xbf16> to vector<1x16x64xbf16>
    tpu.vector_store %arg16[%c0_40, %c0_41, %c0_42], %35 {strides = array<i32>} : memref<1x16x64xbf16, #tpu.memory_space<vmem>>, vector<1x16x64xbf16>,
    return
  }
  func.func @transform_0(%arg0: i32, %arg1: i32) -> (i32, i32, i32) {
    %c0_i32 = arith.constant 0 : i32
    %c0_i32_0 = arith.constant 0 : i32
    return %arg0, %arg1, %c0_i32 : i32, i32, i32
  }
  func.func @transform_1(%arg0: i32, %arg1: i32) -> (i32, i32, i32) {
    %c0_i32 = arith.constant 0 : i32
    %c0_i32_0 = arith.constant 0 : i32
    return %arg0, %arg1, %c0_i32 : i32, i32, i32
  }
  func.func @transform_2(%arg0: i32, %arg1: i32) -> (i32, i32, i32) {
    %c0_i32 = arith.constant 0 : i32
    %c0_i32_0 = arith.constant 0 : i32
    return %arg0, %arg1, %c0_i32 : i32, i32, i32
  }
  func.func @transform_3(%arg0: i32, %arg1: i32) -> (i32, i32, i32) {
    %c0_i32 = arith.constant 0 : i32
    %c0_i32_0 = arith.constant 0 : i32
    return %arg0, %arg1, %c0_i32 : i32, i32, i32
  }
  func.func @transform_4(%arg0: i32, %arg1: i32) -> (i32, i32, i32) {
    %c0_i32 = arith.constant 0 : i32
    %c0_i32_0 = arith.constant 0 : i32
    return %arg0, %arg1, %c0_i32 : i32, i32, i32
  }
  func.func @transform_5(%arg0: i32, %arg1: i32) -> (i32, i32, i32) {
    %c0_i32 = arith.constant 0 : i32
    %c0_i32_0 = arith.constant 0 : i32
    return %arg0, %arg1, %c0_i32 : i32, i32, i32
  }
  func.func @transform_6(%arg0: i32, %arg1: i32) -> (i32, i32, i32) {
    %c0_i32 = arith.constant 0 : i32
    %c0_i32_0 = arith.constant 0 : i32
    return %arg0, %arg1, %c0_i32 : i32, i32, i32
  }
  func.func @transform_7(%arg0: i32, %arg1: i32) -> (i32, i32, i32) {
    %c0_i32 = arith.constant 0 : i32
    %c0_i32_0 = arith.constant 0 : i32
    return %arg0, %arg1, %c0_i32 : i32, i32, i32
  }
  func.func @transform_8(%arg0: i32, %arg1: i32) -> (i32, i32, i32) {
    %c0_i32 = arith.constant 0 : i32
    %c0_i32_0 = arith.constant 0 : i32
    return %arg0, %arg1, %c0_i32 : i32, i32, i32
  }
  func.func @transform_9(%arg0: i32, %arg1: i32) -> (i32, i32, i32) {
    %c0_i32 = arith.constant 0 : i32
    %c0_i32_0 = arith.constant 0 : i32
    return %arg0, %arg1, %c0_i32 : i32, i32, i32
  }
  func.func @transform_10(%arg0: i32, %arg1: i32) -> (i32, i32, i32) {
    %c0_i32 = arith.constant 0 : i32
    %c0_i32_0 = arith.constant 0 : i32
    return %arg0, %arg1, %c0_i32 : i32, i32, i32
  }
  func.func @transform_11(%arg0: i32, %arg1: i32) -> (i32, i32, i32) {
    %c0_i32 = arith.constant 0 : i32
    %c0_i32_0 = arith.constant 0 : i32
    return %arg0, %arg1, %c0_i32 : i32, i32, i32
  }
  func.func @transform_12(%arg0: i32, %arg1: i32) -> (i32, i32) {
    %c0_i32 = arith.constant 0 : i32
    %c0_i32_0 = arith.constant 0 : i32
    %c0_i32_1 = arith.constant 0 : i32
    return %c0_i32, %c0_i32_0 : i32, i32
  }
  func.func @transform_13(%arg0: i32, %arg1: i32) -> (i32, i32) {
    %c0_i32 = arith.constant 0 : i32
    %c0_i32_0 = arith.constant 0 : i32
    %c0_i32_1 = arith.constant 0 : i32
    return %c0_i32, %c0_i32_0 : i32, i32
  }
  func.func @transform_14(%arg0: i32, %arg1: i32) -> (i32, i32, i32) {
    %c0_i32 = arith.constant 0 : i32
    %c0_i32_0 = arith.constant 0 : i32
    return %arg0, %arg1, %c0_i32 : i32, i32, i32
  }
}

module attributes {stable_mosaic.version = 11 : i64} {
  func.func @_conv3x3_kernel(%arg0: i32, %arg1: i32, %arg2: memref<1x16x64xbf16, #tpu.memory_space<vmem>>, %arg3: memref<576x48xbf16, #tpu.memory_space<vmem>>, %arg4: memref<1x48xf32, #tpu.memory_space<vmem>>, %arg5: memref<1x16x48xbf16, #tpu.memory_space<vmem>>) attributes {dimension_semantics = [#tpu.dimension_semantics<parallel>, #tpu.dimension_semantics<parallel>], iteration_bounds = array<i64: 2, 1>, scalar_prefetch = 0 : i64, scratch_operands = 0 : i64, tpu.core_type = #tpu.core_type<tc>, window_params = [{transform_indices = @transform_0, window_bounds = array<i64: 1, 16, 64>}, {pipeline_mode = #tpu.pipeline_mode<synchronous>, transform_indices = @transform_1, window_bounds = array<i64: 576, 48>}, {pipeline_mode = #tpu.pipeline_mode<synchronous>, transform_indices = @transform_2, window_bounds = array<i64: 1, 48>}, {transform_indices = @transform_3, window_bounds = array<i64: 1, 16, 48>}]} {
    %c0 = arith.constant 0 : index
    %c0_0 = arith.constant 0 : index
    %c0_1 = arith.constant 0 : index
    %0 = vector.load %arg2[%c0, %c0_0, %c0_1] : memref<1x16x64xbf16, #tpu.memory_space<vmem>>, vector<1x16x64xbf16>
    %1 = vector.shape_cast %0 : vector<1x16x64xbf16> to vector<16x64xbf16>
    %cst = arith.constant 0.000000e+00 : bf16
    %2 = vector.broadcast %cst : bf16 to vector<4x64xbf16>
    %cst_2 = arith.constant 0.000000e+00 : bf16
    %3 = vector.broadcast %cst_2 : bf16 to vector<4x64xbf16>
    %cst_3 = arith.constant 0.000000e+00 : bf16
    %4 = vector.broadcast %cst_3 : bf16 to vector<1x64xbf16>
    %5 = tpu.concatenate %4, %2, %1, %3, %4 in 0 : vector<1x64xbf16>, vector<4x64xbf16>, vector<16x64xbf16>, vector<4x64xbf16>, vector<1x64xbf16> -> vector<26x64xbf16>
    %6 = tpu.iota {dimensions = array<i32: 0>} : vector<16x1xi32>
    %c4_i32 = arith.constant 4 : i32
    %c0_i32 = arith.constant 0 : i32
    %7 = arith.cmpi eq, %c4_i32, %c0_i32 : i32
    %c1_i32 = arith.constant 1 : i32
    %8 = arith.select %7, %c1_i32, %c4_i32 : i32
    %9 = vector.broadcast %8 : i32 to vector<16x1xi32>
    %10 = arith.remsi %6, %9 : vector<16x1xi32>
    %c0_i32_4 = arith.constant 0 : i32
    %11 = vector.broadcast %c0_i32_4 : i32 to vector<16x1xi32>
    %12 = arith.cmpi ne, %10, %11 : vector<16x1xi32>
    %c0_i32_5 = arith.constant 0 : i32
    %13 = vector.broadcast %c0_i32_5 : i32 to vector<16x1xi32>
    %14 = arith.cmpi slt, %10, %13 : vector<16x1xi32>
    %c0_i32_6 = arith.constant 0 : i32
    %15 = arith.cmpi slt, %8, %c0_i32_6 : i32
    %16 = vector.broadcast %15 : i1 to vector<16x1xi1>
    %17 = vector.broadcast %16 : vector<16x1xi1> to vector<16x1xi1>
    %18 = arith.xori %14, %17 : vector<16x1xi1>
    %19 = arith.andi %18, %12 : vector<16x1xi1>
    %20 = vector.broadcast %8 : i32 to vector<16x1xi32>
    %21 = arith.addi %10, %20 : vector<16x1xi32>
    %22 = arith.select %19, %21, %10 : vector<16x1xi1>, vector<16x1xi32>
    %c0_i32_7 = arith.constant 0 : i32
    %23 = vector.broadcast %c0_i32_7 : i32 to vector<16x1xi32>
    %24 = arith.cmpi ne, %22, %23 : vector<16x1xi32>
    %25 = arith.extui %24 : vector<16x1xi1> to vector<16x1xi32>
    %26 = arith.sitofp %25 : vector<16x1xi32> to vector<16x1xf32>
    %27 = arith.truncf %26 : vector<16x1xf32> to vector<16x1xbf16>
    %c3_i32 = arith.constant 3 : i32
    %28 = vector.broadcast %c3_i32 : i32 to vector<16x1xi32>
    %29 = arith.cmpi ne, %22, %28 : vector<16x1xi32>
    %30 = arith.extui %29 : vector<16x1xi1> to vector<16x1xi32>
    %31 = arith.sitofp %30 : vector<16x1xi32> to vector<16x1xf32>
    %32 = arith.truncf %31 : vector<16x1xf32> to vector<16x1xbf16>
    %33 = vector.extract_strided_slice %5 {offsets = [0, 0], sizes = [16, 64], strides = [1, 1]} : vector<26x64xbf16> to vector<16x64xbf16>
    %34 = vector.broadcast %27 : vector<16x1xbf16> to vector<16x64xbf16>
    %35 = arith.mulf %33, %34 : vector<16x64xbf16>
    %36 = vector.extract_strided_slice %5 {offsets = [1, 0], sizes = [16, 64], strides = [1, 1]} : vector<26x64xbf16> to vector<16x64xbf16>
    %37 = vector.extract_strided_slice %5 {offsets = [2, 0], sizes = [16, 64], strides = [1, 1]} : vector<26x64xbf16> to vector<16x64xbf16>
    %38 = vector.broadcast %32 : vector<16x1xbf16> to vector<16x64xbf16>
    %39 = arith.mulf %37, %38 : vector<16x64xbf16>
    %40 = vector.extract_strided_slice %5 {offsets = [4, 0], sizes = [16, 64], strides = [1, 1]} : vector<26x64xbf16> to vector<16x64xbf16>
    %41 = vector.broadcast %27 : vector<16x1xbf16> to vector<16x64xbf16>
    %42 = arith.mulf %40, %41 : vector<16x64xbf16>
    %43 = vector.extract_strided_slice %5 {offsets = [5, 0], sizes = [16, 64], strides = [1, 1]} : vector<26x64xbf16> to vector<16x64xbf16>
    %44 = vector.extract_strided_slice %5 {offsets = [6, 0], sizes = [16, 64], strides = [1, 1]} : vector<26x64xbf16> to vector<16x64xbf16>
    %45 = vector.broadcast %32 : vector<16x1xbf16> to vector<16x64xbf16>
    %46 = arith.mulf %44, %45 : vector<16x64xbf16>
    %47 = vector.extract_strided_slice %5 {offsets = [8, 0], sizes = [16, 64], strides = [1, 1]} : vector<26x64xbf16> to vector<16x64xbf16>
    %48 = vector.broadcast %27 : vector<16x1xbf16> to vector<16x64xbf16>
    %49 = arith.mulf %47, %48 : vector<16x64xbf16>
    %50 = vector.extract_strided_slice %5 {offsets = [9, 0], sizes = [16, 64], strides = [1, 1]} : vector<26x64xbf16> to vector<16x64xbf16>
    %51 = vector.extract_strided_slice %5 {offsets = [10, 0], sizes = [16, 64], strides = [1, 1]} : vector<26x64xbf16> to vector<16x64xbf16>
    %52 = vector.broadcast %32 : vector<16x1xbf16> to vector<16x64xbf16>
    %53 = arith.mulf %51, %52 : vector<16x64xbf16>
    %54 = tpu.concatenate %35, %36, %39, %42, %43, %46, %49, %50, %53 in 1 : vector<16x64xbf16>, vector<16x64xbf16>, vector<16x64xbf16>, vector<16x64xbf16>, vector<16x64xbf16>, vector<16x64xbf16>, vector<16x64xbf16>, vector<16x64xbf16>, vector<16x64xbf16> -> vector<16x576xbf16>
    %c0_8 = arith.constant 0 : index
    %c0_9 = arith.constant 0 : index
    %55 = vector.load %arg3[%c0_8, %c0_9] : memref<576x48xbf16, #tpu.memory_space<vmem>>, vector<576x48xbf16>
    %cst_10 = arith.constant dense<0.000000e+00> : vector<16x48xf32>
    %56 = tpu.matmul %54, %55, %cst_10 {dimension_numbers = #tpu.dot_dimension_numbers<[1], [0], [0], [1], [0, 0, 1, 1], [], []>} : vector<16x576xbf16>, vector<576x48xbf16>, vector<16x48xf32> -> vector<16x48xf32>
    %c0_11 = arith.constant 0 : index
    %c0_12 = arith.constant 0 : index
    %57 = vector.load %arg4[%c0_11, %c0_12] : memref<1x48xf32, #tpu.memory_space<vmem>>, vector<1x48xf32>
    %58 = vector.broadcast %57 : vector<1x48xf32> to vector<16x48xf32>
    %59 = arith.addf %56, %58 : vector<16x48xf32>
    %60 = arith.truncf %59 : vector<16x48xf32> to vector<16x48xbf16>
    %c0_13 = arith.constant 0 : index
    %c0_14 = arith.constant 0 : index
    %c0_15 = arith.constant 0 : index
    %61 = vector.load %arg5[%c0_13, %c0_14, %c0_15] : memref<1x16x48xbf16, #tpu.memory_space<vmem>>, vector<1x16x48xbf16>
    %62 = vector.shape_cast %61 : vector<1x16x48xbf16> to vector<16x48xbf16>
    %63 = vector.shape_cast %60 : vector<16x48xbf16> to vector<1x16x48xbf16>
    tpu.vector_store %arg5[%c0_13, %c0_14, %c0_15], %63 {strides = array<i32>} : memref<1x16x48xbf16, #tpu.memory_space<vmem>>, vector<1x16x48xbf16>,
    return
  }
  func.func @transform_0(%arg0: i32, %arg1: i32) -> (i32, i32, i32) {
    %c0_i32 = arith.constant 0 : i32
    %c0_i32_0 = arith.constant 0 : i32
    return %arg0, %arg1, %c0_i32 : i32, i32, i32
  }
  func.func @transform_1(%arg0: i32, %arg1: i32) -> (i32, i32) {
    %c0_i32 = arith.constant 0 : i32
    %c0_i32_0 = arith.constant 0 : i32
    %c0_i32_1 = arith.constant 0 : i32
    return %c0_i32, %c0_i32_0 : i32, i32
  }
  func.func @transform_2(%arg0: i32, %arg1: i32) -> (i32, i32) {
    %c0_i32 = arith.constant 0 : i32
    %c0_i32_0 = arith.constant 0 : i32
    %c0_i32_1 = arith.constant 0 : i32
    return %c0_i32, %c0_i32_0 : i32, i32
  }
  func.func @transform_3(%arg0: i32, %arg1: i32) -> (i32, i32, i32) {
    %c0_i32 = arith.constant 0 : i32
    %c0_i32_0 = arith.constant 0 : i32
    return %arg0, %arg1, %c0_i32 : i32, i32, i32
  }
}

</mosaic_0001>

<llo_original>
// kernel: colorize_net_forward.82
$region0: #{colorize_net_forward.82}
  #allocation0 [shape = 'u32[]', space=smem, size = 0x4, offset = 0x4, fixed_abs, tag = 'smem constant byte address 0x4 - core index']
  #allocation1 [shape = 'u32[144,128]{1,0:T(1,128)}', space=vmem, size = 0x12000, scoped, tag = 'internal scratch']
  %s0 = inlined_call_operand.vmem [shape: bf16[2,64,16], index: 0, kind: input, shape index: {}]
  %s1 = inlined_call_operand.vmem [shape: bf16[144,16], index: 1, kind: input, shape index: {}]
  %s2 = inlined_call_operand.vmem [shape: f32[1,16], index: 2, kind: input, shape index: {}]
  %s3 = inlined_call_operand.vmem [shape: bf16[2,64,16], index: 3, kind: output, shape index: {}]
  %s4 = sld [smem:[#allocation0]]
  $region45: #{colorize_net_forward.82} parent=0
    _
  %s6 = ssub.s32 1, %s4
  %s7 = scalar_select 0, %s6, %s4
  loop: start=0, step=1, limit=4
  $region2: #{colorize_net_forward.82} parent=0 // loop_pre_header
    _
  $region3: #{colorize_net_forward.82} parent=0 // loop_header
    %s9 = sphi 0, %s13
    %p10 = scmp.ge.s32.totalorder %s9, 4
    %s16 = sphi 0, %s28
    %s17 = sphi 0, %s24
    %s18 = sphi 0, %s16
    %s19 = sphi 0, %s17
    %s20 = sphi 0, %s18
    %s21 = sphi 0, %s19
    %s33 = sphi 0, %s35
    %s36 = sphi 0, %s33
    %s37 = sphi 0, %s36
    %s53 = sphi 0, %s37
    %s57 = sphi 0, %s57
    %s59 = sphi 0, %s57
    %s60 = sphi 0, %s59
    %s74 = sphi 0, %s60
    %s78 = sphi 0, %s78
    %s80 = sphi 0, %s78
    %s81 = sphi 0, %s80
    %s95 = sphi 0, %s81
    %s103 = sphi 0, %s105
    %s106 = sphi 0, %s103
    %s107 = sphi 0, %s106
    %s123 = sphi 0, %s107
  $region4: #{colorize_net_forward.82} parent=0 // loop_header_branch
    %12 = sbr.rel (%p10) target = $region8
  $region5: #{colorize_net_forward.82} parent=0 // loop_body
    %s14 = ssub.s32 %s9, 1
    %s15 = ssub.s32 %s9, 2
    %s22 = sadd.s32 1, %s17
    %p23 = scmp.ge.s32.totalorder %s22, 1
    %s24 = scalar_select %p23, 0, %s22
    %s25 = sadd.s32 1, %s16
    %s26 = scalar_select %p23, %s25, %s16
    %p27 = scmp.ge.s32.totalorder %s26, 2
    %s28 = scalar_select %p27, 0, %s26
    %s29 = ssub.s32 %s16, %s28
    %s30 = ssub.s32 %s17, %s24
    %s31 = sor.u32 %s29, %s30
    %p32 = scmp.eq.s32.totalorder %s31, 0
    %s34 = sadd.s32 %s33, 1
    %s35 = scalar_select %p32, %s33, %s34
    %p38 = pneg %p32
    %p39 = scmp.eq.s32.totalorder %s9, 1
    %p40 = por %p38, %p39
    %p41 = scmp.ne.s32.totalorder %s33, %s36
    %p42 = scmp.eq.s32.totalorder %s9, 0
    %p43 = por %p41, %p42
    %p44 = scmp.ne.s32.totalorder %s33, %s36
    %p45 = scmp.eq.s32.totalorder %s14, 1
    %p46 = por %p44, %p45
    %p47 = scmp.ne.s32.totalorder %s36, %s37
    %p48 = scmp.eq.s32.totalorder %s14, 0
    %p49 = por %p47, %p48
    %p50 = scmp.ne.s32.totalorder %s36, %s37
    %p51 = scmp.eq.s32.totalorder %s15, 1
    %p52 = por %p50, %p51
    %p54 = scmp.ne.s32.totalorder %s37, %s53
    %p55 = scmp.eq.s32.totalorder %s15, 0
    %p56 = por %p54, %p55
    %s58 = sadd.s32 %s57, 1
    %p61 = scmp.eq.s32.totalorder %s9, 1
    %p62 = scmp.ne.s32.totalorder %s57, %s59
    %p63 = scmp.eq.s32.totalorder %s9, 0
    %p64 = por %p62, %p63
    %p65 = scmp.ne.s32.totalorder %s57, %s59
    %p66 = scmp.eq.s32.totalorder %s14, 1
    %p67 = por %p65, %p66
    %p68 = scmp.ne.s32.totalorder %s59, %s60
    %p69 = scmp.eq.s32.totalorder %s14, 0
    %p70 = por %p68, %p69
    %p71 = scmp.ne.s32.totalorder %s59, %s60
    %p72 = scmp.eq.s32.totalorder %s15, 1
    %p73 = por %p71, %p72
    %p75 = scmp.ne.s32.totalorder %s60, %s74
    %p76 = scmp.eq.s32.totalorder %s15, 0
    %p77 = por %p75, %p76
    %s79 = sadd.s32 %s78, 1
    %p82 = scmp.eq.s32.totalorder %s9, 1
    %p83 = scmp.ne.s32.totalorder %s78, %s80
    %p84 = scmp.eq.s32.totalorder %s9, 0
    %p85 = por %p83, %p84
    %p86 = scmp.ne.s32.totalorder %s78, %s80
    %p87 = scmp.eq.s32.totalorder %s14, 1
    %p88 = por %p86, %p87
    %p89 = scmp.ne.s32.totalorder %s80, %s81
    %p90 = scmp.eq.s32.totalorder %s14, 0
    %p91 = por %p89, %p90
    %p92 = scmp.ne.s32.totalorder %s80, %s81
    %p93 = scmp.eq.s32.totalorder %s15, 1
    %p94 = por %p92, %p93
    %p96 = scmp.ne.s32.totalorder %s81, %s95
    %p97 = scmp.eq.s32.totalorder %s15, 0
    %p98 = por %p96, %p97
    %s99 = ssub.s32 %s16, %s28
    %s100 = ssub.s32 %s17, %s24
    %s101 = sor.u32 %s99, %s100
    %p102 = scmp.eq.s32.totalorder %s101, 0
    %s104 = sadd.s32 %s103, 1
    %s105 = scalar_select %p102, %s103, %s104
    %p108 = pneg %p102
    %p109 = scmp.eq.s32.totalorder %s9, 1
    %p110 = por %p108, %p109
    %p111 = scmp.ne.s32.totalorder %s103, %s106
    %p112 = scmp.eq.s32.totalorder %s9, 0
    %p113 = por %p111, %p112
    %p114 = scmp.ne.s32.totalorder %s103, %s106
    %p115 = scmp.eq.s32.totalorder %s14, 1
    %p116 = por %p114, %p115
    %p117 = scmp.ne.s32.totalorder %s106, %s107
    %p118 = scmp.eq.s32.totalorder %s14, 0
    %p119 = por %p117, %p118
    %p120 = scmp.ne.s32.totalorder %s106, %s107
    %p121 = scmp.eq.s32.totalorder %s15, 1
    %p122 = por %p120, %p121
    %p124 = scmp.ne.s32.totalorder %s107, %s123
    %p125 = scmp.eq.s32.totalorder %s15, 0
    %p126 = por %p124, %p125
    %p127 = scmp.le.s32.totalorder 1, %s9
    %p128 = scmp.lt.s32.totalorder %s9, 3
    %p129 = pnand %p127, %p128
    %p130 = pneg %p129
    // Predicated region
    $region9: #{colorize_net_forward.82} parent=5 // pred_check
      _
    $region10: #{colorize_net_forward.82} parent=5 // pred_check_branch
      %132 = sbr.rel (%p129) target = $region12
    $region11: #{colorize_net_forward.82} parent=5 // pred_region
      %s133 = ssub.s32 %s9, 1
      // Predicated region
      $region13: #{colorize_net_forward.82} parent=11 // pred_check
        %p134 = pneg %p70
      $region14: #{colorize_net_forward.82} parent=11 // pred_check_branch
        %136 = sbr.rel (%p134) target = $region16
      $region15: #{colorize_net_forward.82} parent=11 // pred_region
        _
      $region16: #{colorize_net_forward.82} parent=11 // pred_fallthru
        _
      // Predicated region
      $region17: #{colorize_net_forward.82} parent=11 // pred_check
        %p137 = pneg %p91
      $region18: #{colorize_net_forward.82} parent=11 // pred_check_branch
        %139 = sbr.rel (%p137) target = $region20
      $region19: #{colorize_net_forward.82} parent=11 // pred_region
        _
      $region20: #{colorize_net_forward.82} parent=11 // pred_fallthru
        _
    $region12: #{colorize_net_forward.82} parent=5 // pred_fallthru
      _
    %p140 = scmp.lt.s32.totalorder %s9, 2
    // Predicated region
    $region21: #{colorize_net_forward.82} parent=5 // pred_check
      %p141 = pneg %p140
    $region22: #{colorize_net_forward.82} parent=5 // pred_check_branch
      %143 = sbr.rel (%p141) target = $region24
    $region23: #{colorize_net_forward.82} parent=5 // pred_region
      // Predicated region
      $region25: #{colorize_net_forward.82} parent=23 // pred_check
        %p144 = pneg %p43
      $region26: #{colorize_net_forward.82} parent=23 // pred_check_branch
        %146 = sbr.rel (%p144) target = $region28
      $region27: #{colorize_net_forward.82} parent=23 // pred_region
        %s147 = smul.u32 8, %s17
        %p148 = scmp.lt.s32.totalorder %s16, 1
        %s149 = scalar_select %p148, %s16, 1
        %p150 = scmp.lt.s32.totalorder %s147, 7
        %s151 = scalar_select %p150, %s147, 7
        %s152 = smul.addr %s149, 8
        %s153 = sadd.s32 %s151, %s152
        %s154 = smul.addr %s153, 4
        %s155 = scalar_lea.vmem %s0, %s154
        %s156 = smul.u32 8, %s17
      $region28: #{colorize_net_forward.82} parent=23 // pred_fallthru
        _
    $region24: #{colorize_net_forward.82} parent=5 // pred_fallthru
      _
    %p157 = scmp.le.s32.totalorder 1, %s9
    %p158 = scmp.lt.s32.totalorder %s9, 3
    %p159 = pnand %p157, %p158
    %p160 = pneg %p159
    // Predicated region
    $region29: #{colorize_net_forward.82} parent=5 // pred_check
      _
    $region30: #{colorize_net_forward.82} parent=5 // pred_check_branch
      %162 = sbr.rel (%p159) target = $region32
    $region31: #{colorize_net_forward.82} parent=5 // pred_region
      %s163 = ssub.s32 %s9, 1
      %s164 = smul.u32 8, %s19
      %p165 = scmp.lt.s32.totalorder %s18, 1
      %s166 = scalar_select %p165, %s18, 1
      %p167 = scmp.lt.s32.totalorder %s164, 7
      %s168 = scalar_select %p167, %s164, 7
      %s169 = smul.addr %s166, 8
      %s170 = sadd.s32 %s168, %s169
      %s171 = smul.addr %s170, 4
      %s172 = scalar_lea.vmem %s0, %s171
      %p173 = pneg %p49
      %p174 = pneg %p46
      %p175 = pneg %p70
      %p176 = pneg %p67
      %p177 = pneg %p91
      %p178 = pneg %p88
      %p179 = pneg %p119
      %p180 = pneg %p116
      %s181 = smul.u32 8, %s19
      %p182 = scmp.lt.s32.totalorder %s18, 1
      %s183 = scalar_select %p182, %s18, 1
      %p184 = scmp.lt.s32.totalorder %s181, 7
      %s185 = scalar_select %p184, %s181, 7
      %s186 = smul.addr %s183, 8
      %s187 = sadd.s32 %s185, %s186
      %s188 = smul.addr %s187, 4
      %s189 = scalar_lea.vmem %s3, %s188
      %s190 = smul.u32 8, %s19
      %p191 = scmp.lt.s32.totalorder %s18, 1
      %s192 = scalar_select %p191, %s18, 1
      %p193 = scmp.lt.s32.totalorder %s190, 7
      %s194 = scalar_select %p193, %s190, 7
      %s195 = smul.addr %s192, 8
      %s196 = sadd.s32 %s194, %s195
      %s197 = smul.addr %s196, 4
      %s198 = scalar_lea.vmem %s0, %s197
      %s199 = smul.u32 8, %s19
      %s200 = smul.u32 8, %s19
      %p201 = scmp.lt.s32.totalorder %s18, 1
      %s202 = scalar_select %p201, %s18, 1
      %p203 = scmp.lt.s32.totalorder %s200, 7
      %s204 = scalar_select %p203, %s200, 7
      %s205 = smul.addr %s202, 8
      %s206 = sadd.s32 %s204, %s205
      %s207 = smul.addr %s206, 4
      %s208 = scalar_lea.vmem %s3, %s207
      %s209 = smul.u32 8, %s19
      %v211 = vld [vmem:[%s198] sm:$0xf]
      %v212 = vld [vmem:[%s198 + $0x4] sm:$0xf]
      %v213 = vld [vmem:[%s198 + $0x8] sm:$0xf]
      %v214 = vld [vmem:[%s198 + $0xc] sm:$0xf]
      %v215 = vld [vmem:[%s198 + $0x10] sm:$0xf]
      %v216 = vld [vmem:[%s198 + $0x14] sm:$0xf]
      %v217 = vld [vmem:[%s198 + $0x18] sm:$0xf]
      %v218 = vld [vmem:[%s198 + $0x1c] sm:$0xf]
      %v227 = vunpack.c.l.b16 %v211
      %v228 = vunpack.c.l.b16 %v212
      %v229 = vunpack.c.l.b16 %v213
      %v230 = vunpack.c.l.b16 %v214
      %v231 = vunpack.c.l.b16 %v215
      %v232 = vunpack.c.l.b16 %v216
      %v233 = vunpack.c.l.b16 %v217
      %v234 = vunpack.c.l.b16 %v218
      %v235 = vpack.c.b16 %v228, %v227
      %v236 = vpack.c.b16 %v230, %v229
      %v237 = vpack.c.b16 %v232, %v231
      %v238 = vpack.c.b16 %v234, %v233
      %vm239 = vsmask.f32 4352
      %v241 = vshrl.u32 %v235, 16
      %v243 = vrot.slane %v241, 3
      %v244 = vshll.u32 %v235, 16
      %v246 = vrot.slane %v244, 4
      %v247 = vor.u32 %v243, %v246
      %v249 = vshrl.u32 %v236, 16
      %v251 = vrot.slane %v249, 3
      %v252 = vshll.u32 %v236, 16
      %v254 = vrot.slane %v252, 4
      %v255 = vor.u32 %v251, %v254
      %v256 = vsel %vm239, %v247, %v255
      %v258 = vshrl.u32 %v237, 16
      %v260 = vrot.slane %v258, 3
      %v261 = vshll.u32 %v237, 16
      %v263 = vrot.slane %v261, 4
      %v264 = vor.u32 %v260, %v263
      %v265 = vsel %vm239, %v255, %v264
      %v267 = vshrl.u32 %v238, 16
      %v269 = vrot.slane %v267, 3
      %v270 = vshll.u32 %v238, 16
      %v272 = vrot.slane %v270, 4
      %v273 = vor.u32 %v269, %v272
      %v274 = vsel %vm239, %v264, %v273
      %vm280 = vcmask 1044480
      %vm281 = vmand %vm280, %vm239
      %v282 = vsel %vm281, 0, %v247
      %v283 = vsel %vm281, %v273, 0
      %v284 = vlaneseq
      %v285 = vshrl.u32 %v284, 7
      %v286 = vadd.s32 %v285, 8
      %v287 = vadd.s32 %v285, 16
      %v288 = vadd.s32 %v285, 24
      %v289 = vadd.s32 %v285, 32
      %v290 = vadd.s32 %v285, 40
      %v291 = vadd.s32 %v285, 48
      %v292 = vadd.s32 %v285, 56
      %vm293 = vcmp.lt.s32.totalorder %v285, 0
      %v294 = vsub.s32 0, %v285
      %v295 = vsel %vm293, %v294, %v285
      %v296 = vshrl.u32 %v295, 3
      %v297 = vand.u32 %v295, 7
      %v298 = vsub.s32 0, %v297
      %v299 = vsel %vm293, %v298, %v297
      %vm300 = vcmp.lt.s32.totalorder %v286, 0
      %v301 = vsub.s32 0, %v286
      %v302 = vsel %vm300, %v301, %v286
      %v303 = vshrl.u32 %v302, 3
      %v304 = vand.u32 %v302, 7
      %v305 = vsub.s32 0, %v304
      %v306 = vsel %vm300, %v305, %v304
      %vm307 = vcmp.lt.s32.totalorder %v287, 0
      %v308 = vsub.s32 0, %v287
      %v309 = vsel %vm307, %v308, %v287
      %v310 = vshrl.u32 %v309, 3
      %v311 = vand.u32 %v309, 7
      %v312 = vsub.s32 0, %v311
      %v313 = vsel %vm307, %v312, %v311
      %vm314 = vcmp.lt.s32.totalorder %v288, 0
      %v315 = vsub.s32 0, %v288
      %v316 = vsel %vm314, %v315, %v288
      %v317 = vshrl.u32 %v316, 3
      %v318 = vand.u32 %v316, 7
      %v319 = vsub.s32 0, %v318
      %v320 = vsel %vm314, %v319, %v318
      %vm321 = vcmp.lt.s32.totalorder %v289, 0
      %v322 = vsub.s32 0, %v289
      %v323 = vsel %vm321, %v322, %v289
      %v324 = vshrl.u32 %v323, 3
      %v325 = vand.u32 %v323, 7
      %v326 = vsub.s32 0, %v325
      %v327 = vsel %vm321, %v326, %v325
      %vm328 = vcmp.lt.s32.totalorder %v290, 0
      %v329 = vsub.s32 0, %v290
      %v330 = vsel %vm328, %v329, %v290
      %v331 = vshrl.u32 %v330, 3
      %v332 = vand.u32 %v330, 7
      %v333 = vsub.s32 0, %v332
      %v334 = vsel %vm328, %v333, %v332
      %vm335 = vcmp.lt.s32.totalorder %v291, 0
      %v336 = vsub.s32 0, %v291
      %v337 = vsel %vm335, %v336, %v291
      %v338 = vshrl.u32 %v337, 3
      %v339 = vand.u32 %v337, 7
      %v340 = vsub.s32 0, %v339
      %v341 = vsel %vm335, %v340, %v339
      %vm342 = vcmp.lt.s32.totalorder %v292, 0
      %v343 = vsub.s32 0, %v292
      %v344 = vsel %vm342, %v343, %v292
      %v345 = vshrl.u32 %v344, 3
      %v346 = vand.u32 %v344, 7
      %v347 = vsub.s32 0, %v346
      %v348 = vsel %vm342, %v347, %v346
      %vm349 = vcmp.ne.s32.totalorder %v299, 0
      %vm350 = vcmp.ne.s32.totalorder %v306, 0
      %vm351 = vcmp.ne.s32.totalorder %v313, 0
      %vm352 = vcmp.ne.s32.totalorder %v320, 0
      %vm353 = vcmp.ne.s32.totalorder %v327, 0
      %vm354 = vcmp.ne.s32.totalorder %v334, 0
      %vm355 = vcmp.ne.s32.totalorder %v341, 0
      %vm356 = vcmp.ne.s32.totalorder %v348, 0
      %vm357 = vcmp.lt.s32.totalorder %v299, 0
      %vm358 = vcmp.lt.s32.totalorder %v306, 0
      %vm359 = vcmp.lt.s32.totalorder %v313, 0
      %vm360 = vcmp.lt.s32.totalorder %v320, 0
      %vm361 = vcmp.lt.s32.totalorder %v327, 0
      %vm362 = vcmp.lt.s32.totalorder %v334, 0
      %vm363 = vcmp.lt.s32.totalorder %v341, 0
      %vm364 = vcmp.lt.s32.totalorder %v348, 0
      %vm365 = vmand %vm357, %vm349
      %vm366 = vmand %vm358, %vm350
      %vm367 = vmand %vm359, %vm351
      %vm368 = vmand %vm360, %vm352
      %vm369 = vmand %vm361, %vm353
      %vm370 = vmand %vm362, %vm354
      %vm371 = vmand %vm363, %vm355
      %vm372 = vmand %vm364, %vm356
      %v373 = vadd.s32 %v299, 8
      %v374 = vadd.s32 %v306, 8
      %v375 = vadd.s32 %v313, 8
      %v376 = vadd.s32 %v320, 8
      %v377 = vadd.s32 %v327, 8
      %v378 = vadd.s32 %v334, 8
      %v379 = vadd.s32 %v341, 8
      %v380 = vadd.s32 %v348, 8
      %v381 = vsel %vm365, %v373, %v299
      %v382 = vsel %vm366, %v374, %v306
      %v383 = vsel %vm367, %v375, %v313
      %v384 = vsel %vm368, %v376, %v320
      %v385 = vsel %vm369, %v377, %v327
      %v386 = vsel %vm370, %v378, %v334
      %v387 = vsel %vm371, %v379, %v341
      %v388 = vsel %vm372, %v380, %v348
      %vm389 = vcmp.ne.s32.totalorder %v381, 0
      %vm390 = vcmp.ne.s32.totalorder %v382, 0
      %vm391 = vcmp.ne.s32.totalorder %v383, 0
      %vm392 = vcmp.ne.s32.totalorder %v384, 0
      %vm393 = vcmp.ne.s32.totalorder %v385, 0
      %vm394 = vcmp.ne.s32.totalorder %v386, 0
      %vm395 = vcmp.ne.s32.totalorder %v387, 0
      %vm396 = vcmp.ne.s32.totalorder %v388, 0
      %v397 = vsel %vm389, 1, 0
      %v398 = vsel %vm390, 1, 0
      %v399 = vsel %vm391, 1, 0
      %v400 = vsel %vm392, 1, 0
      %v401 = vsel %vm393, 1, 0
      %v402 = vsel %vm394, 1, 0
      %v403 = vsel %vm395, 1, 0
      %v404 = vsel %vm396, 1, 0
      %v405 = vcvt.s32.f32 %v397
      %v406 = vcvt.s32.f32 %v398
      %v407 = vcvt.s32.f32 %v399
      %v408 = vcvt.s32.f32 %v400
      %v409 = vcvt.s32.f32 %v401
      %v410 = vcvt.s32.f32 %v402
      %v411 = vcvt.s32.f32 %v403
      %v412 = vcvt.s32.f32 %v404
      %v413 = vpack.c.bf16 %v406, %v405
      %v414 = vpack.c.bf16 %v408, %v407
      %v415 = vpack.c.bf16 %v410, %v409
      %v416 = vpack.c.bf16 %v412, %v411
      %vm417 = vcmp.ne.s32.totalorder %v381, 7
      %vm418 = vcmp.ne.s32.totalorder %v382, 7
      %vm419 = vcmp.ne.s32.totalorder %v383, 7
      %vm420 = vcmp.ne.s32.totalorder %v384, 7
      %vm421 = vcmp.ne.s32.totalorder %v385, 7
      %vm422 = vcmp.ne.s32.totalorder %v386, 7
      %vm423 = vcmp.ne.s32.totalorder %v387, 7
      %vm424 = vcmp.ne.s32.totalorder %v388, 7
      %v425 = vsel %vm417, 1, 0
      %v426 = vsel %vm418, 1, 0
      %v427 = vsel %vm419, 1, 0
      %v428 = vsel %vm420, 1, 0
      %v429 = vsel %vm421, 1, 0
      %v430 = vsel %vm422, 1, 0
      %v431 = vsel %vm423, 1, 0
      %v432 = vsel %vm424, 1, 0
      %v433 = vcvt.s32.f32 %v425
      %v434 = vcvt.s32.f32 %v426
      %v435 = vcvt.s32.f32 %v427
      %v436 = vcvt.s32.f32 %v428
      %v437 = vcvt.s32.f32 %v429
      %v438 = vcvt.s32.f32 %v430
      %v439 = vcvt.s32.f32 %v431
      %v440 = vcvt.s32.f32 %v432
      %v441 = vpack.c.bf16 %v434, %v433
      %v442 = vpack.c.bf16 %v436, %v435
      %v443 = vpack.c.bf16 %v438, %v437
      %v444 = vpack.c.bf16 %v440, %v439
      %v445 = vmul.bf16 %v282, %v413
      %v446 = vmul.bf16 %v256, %v414
      %v447 = vmul.bf16 %v265, %v415
      %v448 = vmul.bf16 %v274, %v416
      %vm453 = vcmask 1040384
      %v454 = vrot.slane %v441, 7
      %v455 = vrot.slane %v442, 7
      %v456 = vsel %vm453, %v454, %v455
      %v457 = vrot.slane %v443, 7
      %v458 = vsel %vm453, %v455, %v457
      %v459 = vrot.slane %v444, 7
      %v460 = vsel %vm453, %v457, %v459
      %v466 = vmul.bf16 %v282, %v454
      %v467 = vmul.bf16 %v256, %v456
      %v468 = vmul.bf16 %v265, %v458
      %v469 = vmul.bf16 %v274, %v460
      %v470 = vmul.bf16 %v283, %v459
      %vm475 = vcmask 1043456
      %v476 = vrot.slane %v413, 4
      %v477 = vrot.slane %v414, 4
      %v478 = vsel %vm475, %v476, %v477
      %v479 = vrot.slane %v415, 4
      %v480 = vsel %vm475, %v477, %v479
      %v481 = vrot.slane %v416, 4
      %v482 = vsel %vm475, %v479, %v481
      %v488 = vmul.bf16 %v282, %v476
      %v489 = vmul.bf16 %v256, %v478
      %v490 = vmul.bf16 %v265, %v480
      %v491 = vmul.bf16 %v274, %v482
      %v492 = vmul.bf16 %v283, %v481
      %v493 = vrot.slane %v441, 3
      %v494 = vrot.slane %v442, 3
      %v495 = vsel %vm280, %v493, %v494
      %v496 = vrot.slane %v443, 3
      %v497 = vsel %vm280, %v494, %v496
      %v498 = vrot.slane %v444, 3
      %v499 = vsel %vm280, %v496, %v498
      %v505 = vmul.bf16 %v282, %v493
      %v506 = vmul.bf16 %v256, %v495
      %v507 = vmul.bf16 %v265, %v497
      %v508 = vmul.bf16 %v274, %v499
      %v509 = vmul.bf16 %v283, %v498
      %v510 = vmul.bf16 %v256, %v413
      %v511 = vmul.bf16 %v265, %v414
      %v512 = vmul.bf16 %v274, %v415
      %v513 = vmul.bf16 %v283, %v416
      %v514 = vmul.bf16 %v256, %v454
      %v515 = vmul.bf16 %v265, %v456
      %v516 = vmul.bf16 %v274, %v458
      %v517 = vmul.bf16 %v283, %v460
      %v518 = vmul.bf16 %v459, 0
      %vm519 = vsmask.f32 7424
      %v521 = vshrl.u32 %v282, 16
      %v523 = vshll.u32 %v282, 16
      %v525 = vrot.slane %v523, 1
      %v526 = vor.u32 %v521, %v525
      %v528 = vshll.u32 %v256, 16
      %v530 = vrot.slane %v528, 1
      %v531 = vsel %vm519, %v526, %v530
      %v532 = vshrl.u32 %v256, 16
      %v534 = vor.u32 %v532, %v530
      %v536 = vshll.u32 %v265, 16
      %v538 = vrot.slane %v536, 1
      %v539 = vsel %vm519, %v534, %v538
      %v540 = vshrl.u32 %v265, 16
      %v542 = vor.u32 %v540, %v538
      %v544 = vshll.u32 %v274, 16
      %v546 = vrot.slane %v544, 1
      %v547 = vsel %vm519, %v542, %v546
      %v548 = vshrl.u32 %v274, 16
      %v550 = vor.u32 %v548, %v546
      %v552 = vshll.u32 %v283, 16
      %v554 = vrot.slane %v552, 1
      %v555 = vsel %vm519, %v550, %v554
      %556 = vrot.lane.b32.xlu0 %v531, 16
      %v557 = vpop.permute.xlu0 %556
      %558 = vrot.lane.b32.xlu0 %v539, 16
      %v559 = vpop.permute.xlu0 %558
      %560 = vrot.lane.b32.xlu0 %v547, 16
      %v561 = vpop.permute.xlu0 %560
      %562 = vrot.lane.b32.xlu0 %v555, 16
      %v563 = vpop.permute.xlu0 %562
      %vm569 = vcmask 1046528
      %v570 = vrot.slane %v466, 1
      %v571 = vrot.slane %v467, 1
      %v572 = vsel %vm569, %v570, %v571
      %v573 = vrot.slane %v468, 1
      %v574 = vsel %vm569, %v571, %v573
      %v575 = vrot.slane %v469, 1
      %v576 = vsel %vm569, %v573, %v575
      %v577 = vrot.slane %v470, 1
      %v578 = vsel %vm569, %v575, %v577
      %579 = vrot.lane.b32.xlu0 %v572, 32
      %v580 = vpop.permute.xlu0 %579
      %581 = vrot.lane.b32.xlu0 %v574, 32
      %v582 = vpop.permute.xlu0 %581
      %583 = vrot.lane.b32.xlu0 %v576, 32
      %v584 = vpop.permute.xlu0 %583
      %585 = vrot.lane.b32.xlu0 %v578, 32
      %v586 = vpop.permute.xlu0 %585
      %v592 = vrot.slane %v488, 4
      %v593 = vrot.slane %v489, 4
      %v594 = vsel %vm475, %v592, %v593
      %v595 = vrot.slane %v490, 4
      %v596 = vsel %vm475, %v593, %v595
      %v597 = vrot.slane %v491, 4
      %v598 = vsel %vm475, %v595, %v597
      %v599 = vrot.slane %v492, 4
      %v600 = vsel %vm475, %v597, %v599
      %601 = vrot.lane.b32.xlu0 %v594, 48
      %v602 = vpop.permute.xlu0 %601
      %603 = vrot.lane.b32.xlu0 %v596, 48
      %v604 = vpop.permute.xlu0 %603
      %605 = vrot.lane.b32.xlu0 %v598, 48
      %v606 = vpop.permute.xlu0 %605
      %607 = vrot.lane.b32.xlu0 %v600, 48
      %v608 = vpop.permute.xlu0 %607
      %vm609 = vsmask.f32 3328
      %v610 = vrot.slane %v521, 4
      %v611 = vrot.slane %v523, 5
      %v612 = vor.u32 %v610, %v611
      %v613 = vrot.slane %v532, 4
      %v614 = vrot.slane %v528, 5
      %v615 = vor.u32 %v613, %v614
      %v616 = vsel %vm609, %v612, %v615
      %v617 = vrot.slane %v540, 4
      %v618 = vrot.slane %v536, 5
      %v619 = vor.u32 %v617, %v618
      %v620 = vsel %vm609, %v615, %v619
      %v621 = vrot.slane %v548, 4
      %v622 = vrot.slane %v544, 5
      %v623 = vor.u32 %v621, %v622
      %v624 = vsel %vm609, %v619, %v623
      %v625 = vshrl.u32 %v283, 16
      %v627 = vrot.slane %v625, 4
      %v628 = vrot.slane %v552, 5
      %v629 = vor.u32 %v627, %v628
      %v630 = vsel %vm609, %v623, %v629
      %631 = vrot.lane.b32.xlu0 %v616, 64
      %v632 = vpop.permute.xlu0 %631
      %633 = vrot.lane.b32.xlu0 %v620, 64
      %v634 = vpop.permute.xlu0 %633
      %635 = vrot.lane.b32.xlu0 %v624, 64
      %v636 = vpop.permute.xlu0 %635
      %637 = vrot.lane.b32.xlu0 %v630, 64
      %v638 = vpop.permute.xlu0 %637
      %vm644 = vcmask 1042432
      %v645 = vrot.slane %v505, 5
      %v646 = vrot.slane %v506, 5
      %v647 = vsel %vm644, %v645, %v646
      %v648 = vrot.slane %v507, 5
      %v649 = vsel %vm644, %v646, %v648
      %v650 = vrot.slane %v508, 5
      %v651 = vsel %vm644, %v648, %v650
      %v652 = vrot.slane %v509, 5
      %v653 = vsel %vm644, %v650, %v652
      %654 = vrot.lane.b32.xlu0 %v647, 80
      %v655 = vpop.permute.xlu0 %654
      %656 = vrot.lane.b32.xlu0 %v649, 80
      %v657 = vpop.permute.xlu0 %656
      %658 = vrot.lane.b32.xlu0 %v651, 80
      %v659 = vpop.permute.xlu0 %658
      %660 = vrot.lane.b32.xlu0 %v653, 80
      %v661 = vpop.permute.xlu0 %660
      %666 = vrot.lane.b32.xlu0 %v510, 96
      %v667 = vpop.permute.xlu0 %666
      %668 = vrot.lane.b32.xlu0 %v511, 96
      %v669 = vpop.permute.xlu0 %668
      %670 = vrot.lane.b32.xlu0 %v512, 96
      %v671 = vpop.permute.xlu0 %670
      %672 = vrot.lane.b32.xlu0 %v513, 96
      %v673 = vpop.permute.xlu0 %672
      %v674 = vor.u32 %v625, %v554
      %v676 = vshll.u32 0, 16
      %v678 = vrot.slane %v676, 1
      %v679 = vsel %vm519, %v674, %v678
      %680 = vrot.lane.b32.xlu0 %v539, 112
      %v681 = vpop.permute.xlu0 %680
      %682 = vrot.lane.b32.xlu0 %v547, 112
      %v683 = vpop.permute.xlu0 %682
      %684 = vrot.lane.b32.xlu0 %v555, 112
      %v685 = vpop.permute.xlu0 %684
      %686 = vrot.lane.b32.xlu0 %v679, 112
      %v687 = vpop.permute.xlu0 %686
      %v693 = vrot.slane %v514, 1
      %v694 = vrot.slane %v515, 1
      %v695 = vsel %vm569, %v693, %v694
      %v696 = vrot.slane %v516, 1
      %v697 = vsel %vm569, %v694, %v696
      %v698 = vrot.slane %v517, 1
      %v699 = vsel %vm569, %v696, %v698
      %v700 = vrot.slane %v518, 1
      %v701 = vsel %vm569, %v698, %v700
      %vm702 = vcmask 130048
      %v705 = vsel %vm702, %v445, %v557
      %v708 = vsel %vm702, %v446, %v559
      %v711 = vsel %vm702, %v447, %v561
      %v714 = vsel %vm702, %v448, %v563
      %vm715 = vcmask 261120
      %v717 = vsel %vm715, %v705, %v580
      %v719 = vsel %vm715, %v708, %v582
      %v721 = vsel %vm715, %v711, %v584
      %v723 = vsel %vm715, %v714, %v586
      %vm724 = vcmask 392192
      %v726 = vsel %vm724, %v717, %v602
      %v728 = vsel %vm724, %v719, %v604
      %v730 = vsel %vm724, %v721, %v606
      %v732 = vsel %vm724, %v723, %v608
      %vm733 = vcmask 523264
      %v735 = vsel %vm733, %v726, %v632
      %v737 = vsel %vm733, %v728, %v634
      %v739 = vsel %vm733, %v730, %v636
      %v741 = vsel %vm733, %v732, %v638
      %vm742 = vcmask 654336
      %v744 = vsel %vm742, %v735, %v655
      %v746 = vsel %vm742, %v737, %v657
      %v748 = vsel %vm742, %v739, %v659
      %v750 = vsel %vm742, %v741, %v661
      %vm751 = vcmask 785408
      %v753 = vsel %vm751, %v744, %v667
      %v755 = vsel %vm751, %v746, %v669
      %v757 = vsel %vm751, %v748, %v671
      %v759 = vsel %vm751, %v750, %v673
      %vm760 = vcmask 916480
      %v762 = vsel %vm760, %v753, %v681
      %v765 = vsel %vm760, %v755, %v683
      %v768 = vsel %vm760, %v757, %v685
      %v771 = vsel %vm760, %v759, %v687
      %v773 = vld [vmem:[%s1] sm:$0xf]
      %v774 = vld [vmem:[%s1 + $0x4] sm:$0xf]
      %v775 = vld [vmem:[%s1 + $0x8] sm:$0xf]
      %v776 = vld [vmem:[%s1 + $0xc] sm:$0xf]
      %v777 = vld [vmem:[%s1 + $0x10] sm:$0xf]
      %v778 = vld [vmem:[%s1 + $0x14] sm:$0xf]
      %v779 = vld [vmem:[%s1 + $0x18] sm:$0xf]
      %v780 = vld [vmem:[%s1 + $0x1c] sm:$0xf]
      %v781 = vld [vmem:[%s1 + $0x20] sm:$0xf]
      %v782 = vld [vmem:[%s1 + $0x24] sm:$0xf]
      %v783 = vld [vmem:[%s1 + $0x28] sm:$0xf]
      %v784 = vld [vmem:[%s1 + $0x2c] sm:$0xf]
      %v785 = vld [vmem:[%s1 + $0x30] sm:$0xf]
      %v786 = vld [vmem:[%s1 + $0x34] sm:$0xf]
      %v787 = vld [vmem:[%s1 + $0x38] sm:$0xf]
      %v788 = vld [vmem:[%s1 + $0x3c] sm:$0xf]
      %v789 = vld [vmem:[%s1 + $0x40] sm:$0xf]
      %v790 = vld [vmem:[%s1 + $0x44] sm:$0xf]
      %v791 = vld [vmem:[%s2] sm:$0x1]
      %v793 = vlaneseq
      %v794 = vshrl.u32 %v793, 7
      %v795 = vsub.s32 0, %v794
      %v796 = vrot.slane %v791, %v795
      %v816 = vunpack.c.l.b16 %v773
      %v817 = vunpack.c.l.b16 %v774
      %v818 = vunpack.c.l.b16 %v775
      %v819 = vunpack.c.l.b16 %v776
      %v820 = vunpack.c.l.b16 %v777
      %v821 = vunpack.c.l.b16 %v778
      %v822 = vunpack.c.l.b16 %v779
      %v823 = vunpack.c.l.b16 %v780
      %v824 = vunpack.c.l.b16 %v781
      %v825 = vunpack.c.l.b16 %v782
      %v826 = vunpack.c.l.b16 %v783
      %v827 = vunpack.c.l.b16 %v784
      %v828 = vunpack.c.l.b16 %v785
      %v829 = vunpack.c.l.b16 %v786
      %v830 = vunpack.c.l.b16 %v787
      %v831 = vunpack.c.l.b16 %v788
      %v832 = vunpack.c.l.b16 %v789
      %v833 = vunpack.c.l.b16 %v790
      %v834 = vpack.c.b16 %v817, %v816
      %v835 = vpack.c.b16 %v819, %v818
      %v836 = vpack.c.b16 %v821, %v820
      %v837 = vpack.c.b16 %v823, %v822
      %v838 = vpack.c.b16 %v825, %v824
      %v839 = vpack.c.b16 %v827, %v826
      %v840 = vpack.c.b16 %v829, %v828
      %v841 = vpack.c.b16 %v831, %v830
      %v842 = vpack.c.b16 %v833, %v832
      %v853 = vsel %vm702, %v695, 0
      %v856 = vsel %vm702, %v697, 0
      %v859 = vsel %vm702, %v699, 0
      %v862 = vsel %vm702, %v701, 0
      %864 = vmatprep.subr.bf16.mxu0 0
      %865 = vmatpush1.bf16.msra.mxu0 %v841
      %866 = vmatprep.subr.bf16.mxu0 0
      %867 = vmatpush1.bf16.msra.mxu0 %v840
      %868 = vmatprep.subr.bf16.mxu0 0
      %869 = vmatpush1.bf16.msra.mxu0 %v839
      %870 = vmatprep.subr.bf16.mxu0 0
      %871 = vmatpush1.bf16.msra.mxu0 %v838
      %872 = vmatprep.subr.bf16.mxu0 0
      %873 = vmatpush1.bf16.msra.mxu0 %v837
      %874 = vmatprep.subr.bf16.mxu0 0
      %875 = vmatpush1.bf16.msra.mxu0 %v836
      %876 = vmatprep.subr.bf16.mxu0 0
      %877 = vmatpush1.bf16.msra.mxu0 %v835
      %878 = vmatprep.subr.bf16.mxu0 0
      %879 = vmatpush1.bf16.msra.mxu0 %v834
      %880 = vmatprep.subr.bf16.mxu0 0
      %881 = vmatpush2.bf16.msra.mxu0 0
      %882 = vmatprep.subr.bf16.mxu0 0
      %883 = vmatpush2.bf16.msra.mxu0 0
      %884 = vmatprep.subr.bf16.mxu0 0
      %885 = vmatpush2.bf16.msra.mxu0 0
      %886 = vmatprep.subr.bf16.mxu0 0
      %887 = vmatpush2.bf16.msra.mxu0 0
      %888 = vmatprep.subr.bf16.mxu0 0
      %889 = vmatpush2.bf16.msra.mxu0 0
      %890 = vmatprep.subr.bf16.mxu0 0
      %891 = vmatpush2.bf16.msra.mxu0 0
      %892 = vmatprep.subr.bf16.mxu0 0
      %893 = vmatpush2.bf16.msra.mxu0 0
      %894 = vmatprep.subr.bf16.mxu0 0
      %895 = vmatpush2.bf16.msra.mxu0 %v842
      %896 = vmatprep.mubr.bf16.mxu0 %v853
      %897 = vmatmul.mubr.bf16.gmra.mxu0 %v762
      %v898 = vpop.f32.mrf.mxu0
      %v899 = vadd.f32 %v796, %v898
      %v900 = vpop.f32.mrf.mxu0
      %v901 = vpop.f32.mrf.mxu0
      %v902 = vadd.f32 %v796, %v901
      %v903 = vpop.f32.mrf.mxu0
      %904 = vmatprep.mubr.bf16.mxu0 %v856
      %905 = vmatmul.mubr.bf16.gmra.mxu0 %v765
      %v906 = vpop.f32.mrf.mxu0
      %v907 = vadd.f32 %v796, %v906
      %v908 = vpop.f32.mrf.mxu0
      %v909 = vpop.f32.mrf.mxu0
      %v910 = vadd.f32 %v796, %v909
      %v911 = vpop.f32.mrf.mxu0
      %912 = vmatprep.mubr.bf16.mxu0 %v859
      %913 = vmatmul.mubr.bf16.gmra.mxu0 %v768
      %v914 = vpop.f32.mrf.mxu0
      %v915 = vadd.f32 %v796, %v914
      %v916 = vpop.f32.mrf.mxu0
      %v917 = vpop.f32.mrf.mxu0
      %v918 = vadd.f32 %v796, %v917
      %v919 = vpop.f32.mrf.mxu0
      %920 = vmatprep.mubr.bf16.mxu0 %v862
      %921 = vmatmul.mubr.bf16.gmra.mxu0 %v771
      %v922 = vpop.f32.mrf.mxu0
      %v923 = vadd.f32 %v796, %v922
      %v924 = vpop.f32.mrf.mxu0
      %v925 = vpop.f32.mrf.mxu0
      %v926 = vadd.f32 %v796, %v925
      %v927 = vpop.f32.mrf.mxu0
      %928 = vdwg.mxu0
      %v929 = vmax.f32 %v899, 0.0
      %v930 = vmax.f32 %v902, 0.0
      %v931 = vmax.f32 %v907, 0.0
      %v932 = vmax.f32 %v910, 0.0
      %v933 = vmax.f32 %v915, 0.0
      %v934 = vmax.f32 %v918, 0.0
      %v935 = vmax.f32 %v923, 0.0
      %v936 = vmax.f32 %v926, 0.0
      %v937 = vpack.c.bf16 %v930, %v929
      %v938 = vpack.c.bf16 %v932, %v931
      %v939 = vpack.c.bf16 %v934, %v933
      %v940 = vpack.c.bf16 %v936, %v935
      %v945 = vunpack.c.l.b16 %v937
      %v946 = vunpack.c.h.b16 %v937
      %v947 = vunpack.c.l.b16 %v938
      %v948 = vunpack.c.h.b16 %v938
      %v949 = vunpack.c.l.b16 %v939
      %v950 = vunpack.c.h.b16 %v939
      %v951 = vunpack.c.l.b16 %v940
      %v952 = vunpack.c.h.b16 %v940
      %v953 = vpack.c.b16 %v945, %v945
      %v954 = vpack.c.b16 %v946, %v946
      %v955 = vpack.c.b16 %v947, %v947
      %v956 = vpack.c.b16 %v948, %v948
      %v957 = vpack.c.b16 %v949, %v949
      %v958 = vpack.c.b16 %v950, %v950
      %v959 = vpack.c.b16 %v951, %v951
      %v960 = vpack.c.b16 %v952, %v952
      %vm969 = vcmask 125952
      %970 = vst.msk [vmem:[%s208] sm:$0xf] %vm969, %v953
      %971 = vst.msk [vmem:[%s208 + $0x4] sm:$0xf] %vm969, %v954
      %972 = vst.msk [vmem:[%s208 + $0x8] sm:$0xf] %vm969, %v955
      %973 = vst.msk [vmem:[%s208 + $0xc] sm:$0xf] %vm969, %v956
      %974 = vst.msk [vmem:[%s208 + $0x10] sm:$0xf] %vm969, %v957
      %975 = vst.msk [vmem:[%s208 + $0x14] sm:$0xf] %vm969, %v958
      %976 = vst.msk [vmem:[%s208 + $0x18] sm:$0xf] %vm969, %v959
      %977 = vst.msk [vmem:[%s208 + $0x1c] sm:$0xf] %vm969, %v960
      %s978 = smul.u32 8, %s19
      %p979 = scmp.lt.s32.totalorder %s18, 1
      %s980 = scalar_select %p979, %s18, 1
      %p981 = scmp.lt.s32.totalorder %s978, 7
      %s982 = scalar_select %p981, %s978, 7
      %s983 = smul.addr %s980, 8
      %s984 = sadd.s32 %s982, %s983
      %s985 = smul.addr %s984, 4
      %s986 = scalar_lea.vmem %s3, %s985
      // Predicated region
      $region33: #{colorize_net_forward.82} parent=31 // pred_check
        %p987 = pneg %p116
      $region34: #{colorize_net_forward.82} parent=31 // pred_check_branch
        %989 = sbr.rel (%p987) target = $region36
      $region35: #{colorize_net_forward.82} parent=31 // pred_region
        %s990 = smul.u32 8, %s19
      $region36: #{colorize_net_forward.82} parent=31 // pred_fallthru
        _
    $region32: #{colorize_net_forward.82} parent=5 // pred_fallthru
      _
    %p991 = scmp.le.s32.totalorder 2, %s9
    // Predicated region
    $region37: #{colorize_net_forward.82} parent=5 // pred_check
      %p992 = pneg %p991
    $region38: #{colorize_net_forward.82} parent=5 // pred_check_branch
      %994 = sbr.rel (%p992) target = $region40
    $region39: #{colorize_net_forward.82} parent=5 // pred_region
      %s995 = ssub.s32 %s9, 2
      // Predicated region
      $region41: #{colorize_net_forward.82} parent=39 // pred_check
        %p996 = pneg %p122
      $region42: #{colorize_net_forward.82} parent=39 // pred_check_branch
        %998 = sbr.rel (%p996) target = $region44
      $region43: #{colorize_net_forward.82} parent=39 // pred_region
        %s999 = smul.u32 8, %s21
        %p1000 = scmp.lt.s32.totalorder %s20, 1
        %s1001 = scalar_select %p1000, %s20, 1
        %p1002 = scmp.lt.s32.totalorder %s999, 7
        %s1003 = scalar_select %p1002, %s999, 7
        %s1004 = smul.addr %s1001, 8
        %s1005 = sadd.s32 %s1003, %s1004
        %s1006 = smul.addr %s1005, 4
        %s1007 = scalar_lea.vmem %s3, %s1006
      $region44: #{colorize_net_forward.82} parent=39 // pred_fallthru
        _
    $region40: #{colorize_net_forward.82} parent=5 // pred_fallthru
      _
  $region6: #{colorize_net_forward.82} parent=0 // loop_footer
    %s13 = sadd.s32 1, %s9
  $region7: #{colorize_net_forward.82} parent=0 // loop_footer_branch
    %8 = sbr.rel target = $region3
  $region8: #{colorize_net_forward.82} parent=0 // loop_exit
    _

// kernel: colorize_net_forward.84
$region0: #{colorize_net_forward.84}
  #allocation0 [shape = 'u32[]', space=smem, size = 0x4, offset = 0x4, fixed_abs, tag = 'smem constant byte address 0x4 - core index']
  #allocation1 [shape = 'u32[144,128]{1,0:T(1,128)}', space=vmem, size = 0x12000, scoped, tag = 'internal scratch']
  %s0 = inlined_call_operand.vmem [shape: bf16[2,64,16], index: 0, kind: input, shape index: {}]
  %s1 = inlined_call_operand.vmem [shape: bf16[144,64], index: 1, kind: input, shape index: {}]
  %s2 = inlined_call_operand.vmem [shape: f32[1,64], index: 2, kind: input, shape index: {}]
  %s3 = inlined_call_operand.vmem [shape: bf16[2,32,64], index: 3, kind: output, shape index: {}]
  %s4 = sld [smem:[#allocation0]]
  $region45: #{colorize_net_forward.84} parent=0
    _
  %s6 = ssub.s32 1, %s4
  %s7 = scalar_select 0, %s6, %s4
  loop: start=0, step=1, limit=4
  $region2: #{colorize_net_forward.84} parent=0 // loop_pre_header
    _
  $region3: #{colorize_net_forward.84} parent=0 // loop_header
    %s9 = sphi 0, %s13
    %p10 = scmp.ge.s32.totalorder %s9, 4
    %s16 = sphi 0, %s28
    %s17 = sphi 0, %s24
    %s18 = sphi 0, %s16
    %s19 = sphi 0, %s17
    %s20 = sphi 0, %s18
    %s21 = sphi 0, %s19
    %s33 = sphi 0, %s35
    %s36 = sphi 0, %s33
    %s37 = sphi 0, %s36
    %s53 = sphi 0, %s37
    %s57 = sphi 0, %s57
    %s59 = sphi 0, %s57
    %s60 = sphi 0, %s59
    %s74 = sphi 0, %s60
    %s78 = sphi 0, %s78
    %s80 = sphi 0, %s78
    %s81 = sphi 0, %s80
    %s95 = sphi 0, %s81
    %s103 = sphi 0, %s105
    %s106 = sphi 0, %s103
    %s107 = sphi 0, %s106
    %s123 = sphi 0, %s107
  $region4: #{colorize_net_forward.84} parent=0 // loop_header_branch
    %12 = sbr.rel (%p10) target = $region8
  $region5: #{colorize_net_forward.84} parent=0 // loop_body
    %s14 = ssub.s32 %s9, 1
    %s15 = ssub.s32 %s9, 2
    %s22 = sadd.s32 1, %s17
    %p23 = scmp.ge.s32.totalorder %s22, 1
    %s24 = scalar_select %p23, 0, %s22
    %s25 = sadd.s32 1, %s16
    %s26 = scalar_select %p23, %s25, %s16
    %p27 = scmp.ge.s32.totalorder %s26, 2
    %s28 = scalar_select %p27, 0, %s26
    %s29 = ssub.s32 %s16, %s28
    %s30 = ssub.s32 %s17, %s24
    %s31 = sor.u32 %s29, %s30
    %p32 = scmp.eq.s32.totalorder %s31, 0
    %s34 = sadd.s32 %s33, 1
    %s35 = scalar_select %p32, %s33, %s34
    %p38 = pneg %p32
    %p39 = scmp.eq.s32.totalorder %s9, 1
    %p40 = por %p38, %p39
    %p41 = scmp.ne.s32.totalorder %s33, %s36
    %p42 = scmp.eq.s32.totalorder %s9, 0
    %p43 = por %p41, %p42
    %p44 = scmp.ne.s32.totalorder %s33, %s36
    %p45 = scmp.eq.s32.totalorder %s14, 1
    %p46 = por %p44, %p45
    %p47 = scmp.ne.s32.totalorder %s36, %s37
    %p48 = scmp.eq.s32.totalorder %s14, 0
    %p49 = por %p47, %p48
    %p50 = scmp.ne.s32.totalorder %s36, %s37
    %p51 = scmp.eq.s32.totalorder %s15, 1
    %p52 = por %p50, %p51
    %p54 = scmp.ne.s32.totalorder %s37, %s53
    %p55 = scmp.eq.s32.totalorder %s15, 0
    %p56 = por %p54, %p55
    %s58 = sadd.s32 %s57, 1
    %p61 = scmp.eq.s32.totalorder %s9, 1
    %p62 = scmp.ne.s32.totalorder %s57, %s59
    %p63 = scmp.eq.s32.totalorder %s9, 0
    %p64 = por %p62, %p63
    %p65 = scmp.ne.s32.totalorder %s57, %s59
    %p66 = scmp.eq.s32.totalorder %s14, 1
    %p67 = por %p65, %p66
    %p68 = scmp.ne.s32.totalorder %s59, %s60
    %p69 = scmp.eq.s32.totalorder %s14, 0
    %p70 = por %p68, %p69
    %p71 = scmp.ne.s32.totalorder %s59, %s60
    %p72 = scmp.eq.s32.totalorder %s15, 1
    %p73 = por %p71, %p72
    %p75 = scmp.ne.s32.totalorder %s60, %s74
    %p76 = scmp.eq.s32.totalorder %s15, 0
    %p77 = por %p75, %p76
    %s79 = sadd.s32 %s78, 1
    %p82 = scmp.eq.s32.totalorder %s9, 1
    %p83 = scmp.ne.s32.totalorder %s78, %s80
    %p84 = scmp.eq.s32.totalorder %s9, 0
    %p85 = por %p83, %p84
    %p86 = scmp.ne.s32.totalorder %s78, %s80
    %p87 = scmp.eq.s32.totalorder %s14, 1
    %p88 = por %p86, %p87
    %p89 = scmp.ne.s32.totalorder %s80, %s81
    %p90 = scmp.eq.s32.totalorder %s14, 0
    %p91 = por %p89, %p90
    %p92 = scmp.ne.s32.totalorder %s80, %s81
    %p93 = scmp.eq.s32.totalorder %s15, 1
    %p94 = por %p92, %p93
    %p96 = scmp.ne.s32.totalorder %s81, %s95
    %p97 = scmp.eq.s32.totalorder %s15, 0
    %p98 = por %p96, %p97
    %s99 = ssub.s32 %s16, %s28
    %s100 = ssub.s32 %s17, %s24
    %s101 = sor.u32 %s99, %s100
    %p102 = scmp.eq.s32.totalorder %s101, 0
    %s104 = sadd.s32 %s103, 1
    %s105 = scalar_select %p102, %s103, %s104
    %p108 = pneg %p102
    %p109 = scmp.eq.s32.totalorder %s9, 1
    %p110 = por %p108, %p109
    %p111 = scmp.ne.s32.totalorder %s103, %s106
    %p112 = scmp.eq.s32.totalorder %s9, 0
    %p113 = por %p111, %p112
    %p114 = scmp.ne.s32.totalorder %s103, %s106
    %p115 = scmp.eq.s32.totalorder %s14, 1
    %p116 = por %p114, %p115
    %p117 = scmp.ne.s32.totalorder %s106, %s107
    %p118 = scmp.eq.s32.totalorder %s14, 0
    %p119 = por %p117, %p118
    %p120 = scmp.ne.s32.totalorder %s106, %s107
    %p121 = scmp.eq.s32.totalorder %s15, 1
    %p122 = por %p120, %p121
    %p124 = scmp.ne.s32.totalorder %s107, %s123
    %p125 = scmp.eq.s32.totalorder %s15, 0
    %p126 = por %p124, %p125
    %p127 = scmp.le.s32.totalorder 1, %s9
    %p128 = scmp.lt.s32.totalorder %s9, 3
    %p129 = pnand %p127, %p128
    %p130 = pneg %p129
    // Predicated region
    $region9: #{colorize_net_forward.84} parent=5 // pred_check
      _
    $region10: #{colorize_net_forward.84} parent=5 // pred_check_branch
      %132 = sbr.rel (%p129) target = $region12
    $region11: #{colorize_net_forward.84} parent=5 // pred_region
      %s133 = ssub.s32 %s9, 1
      // Predicated region
      $region13: #{colorize_net_forward.84} parent=11 // pred_check
        %p134 = pneg %p70
      $region14: #{colorize_net_forward.84} parent=11 // pred_check_branch
        %136 = sbr.rel (%p134) target = $region16
      $region15: #{colorize_net_forward.84} parent=11 // pred_region
        _
      $region16: #{colorize_net_forward.84} parent=11 // pred_fallthru
        _
      // Predicated region
      $region17: #{colorize_net_forward.84} parent=11 // pred_check
        %p137 = pneg %p91
      $region18: #{colorize_net_forward.84} parent=11 // pred_check_branch
        %139 = sbr.rel (%p137) target = $region20
      $region19: #{colorize_net_forward.84} parent=11 // pred_region
        _
      $region20: #{colorize_net_forward.84} parent=11 // pred_fallthru
        _
    $region12: #{colorize_net_forward.84} parent=5 // pred_fallthru
      _
    %p140 = scmp.lt.s32.totalorder %s9, 2
    // Predicated region
    $region21: #{colorize_net_forward.84} parent=5 // pred_check
      %p141 = pneg %p140
    $region22: #{colorize_net_forward.84} parent=5 // pred_check_branch
      %143 = sbr.rel (%p141) target = $region24
    $region23: #{colorize_net_forward.84} parent=5 // pred_region
      // Predicated region
      $region25: #{colorize_net_forward.84} parent=23 // pred_check
        %p144 = pneg %p43
      $region26: #{colorize_net_forward.84} parent=23 // pred_check_branch
        %146 = sbr.rel (%p144) target = $region28
      $region27: #{colorize_net_forward.84} parent=23 // pred_region
        %s147 = smul.u32 8, %s17
        %p148 = scmp.lt.s32.totalorder %s16, 1
        %s149 = scalar_select %p148, %s16, 1
        %p150 = scmp.lt.s32.totalorder %s147, 7
        %s151 = scalar_select %p150, %s147, 7
        %s152 = smul.addr %s149, 8
        %s153 = sadd.s32 %s151, %s152
        %s154 = smul.addr %s153, 4
        %s155 = scalar_lea.vmem %s0, %s154
        %s156 = smul.u32 8, %s17
      $region28: #{colorize_net_forward.84} parent=23 // pred_fallthru
        _
    $region24: #{colorize_net_forward.84} parent=5 // pred_fallthru
      _
    %p157 = scmp.le.s32.totalorder 1, %s9
    %p158 = scmp.lt.s32.totalorder %s9, 3
    %p159 = pnand %p157, %p158
    %p160 = pneg %p159
    // Predicated region
    $region29: #{colorize_net_forward.84} parent=5 // pred_check
      _
    $region30: #{colorize_net_forward.84} parent=5 // pred_check_branch
      %162 = sbr.rel (%p159) target = $region32
    $region31: #{colorize_net_forward.84} parent=5 // pred_region
      %s163 = ssub.s32 %s9, 1
      %s164 = smul.u32 8, %s19
      %p165 = scmp.lt.s32.totalorder %s18, 1
      %s166 = scalar_select %p165, %s18, 1
      %p167 = scmp.lt.s32.totalorder %s164, 7
      %s168 = scalar_select %p167, %s164, 7
      %s169 = smul.addr %s166, 8
      %s170 = sadd.s32 %s168, %s169
      %s171 = smul.addr %s170, 4
      %s172 = scalar_lea.vmem %s0, %s171
      %p173 = pneg %p49
      %p174 = pneg %p46
      %p175 = pneg %p70
      %p176 = pneg %p67
      %p177 = pneg %p91
      %p178 = pneg %p88
      %p179 = pneg %p119
      %p180 = pneg %p116
      %s181 = smul.u32 4, %s19
      %p182 = scmp.lt.s32.totalorder %s18, 1
      %s183 = scalar_select %p182, %s18, 1
      %p184 = scmp.lt.s32.totalorder %s181, 3
      %s185 = scalar_select %p184, %s181, 3
      %s186 = smul.addr %s183, 4
      %s187 = sadd.s32 %s185, %s186
      %s188 = smul.addr %s187, 4
      %s189 = scalar_lea.vmem %s3, %s188
      %s190 = smul.u32 8, %s19
      %p191 = scmp.lt.s32.totalorder %s18, 1
      %s192 = scalar_select %p191, %s18, 1
      %p193 = scmp.lt.s32.totalorder %s190, 7
      %s194 = scalar_select %p193, %s190, 7
      %s195 = smul.addr %s192, 8
      %s196 = sadd.s32 %s194, %s195
      %s197 = smul.addr %s196, 4
      %s198 = scalar_lea.vmem %s0, %s197
      %s199 = smul.u32 8, %s19
      %s200 = smul.u32 4, %s19
      %p201 = scmp.lt.s32.totalorder %s18, 1
      %s202 = scalar_select %p201, %s18, 1
      %p203 = scmp.lt.s32.totalorder %s200, 3
      %s204 = scalar_select %p203, %s200, 3
      %s205 = smul.addr %s202, 4
      %s206 = sadd.s32 %s204, %s205
      %s207 = smul.addr %s206, 4
      %s208 = scalar_lea.vmem %s3, %s207
      %s209 = smul.u32 4, %s19
      %v211 = vld [vmem:[%s198] sm:$0xf]
      %v212 = vld [vmem:[%s198 + $0x4] sm:$0xf]
      %v213 = vld [vmem:[%s198 + $0x8] sm:$0xf]
      %v214 = vld [vmem:[%s198 + $0xc] sm:$0xf]
      %v215 = vld [vmem:[%s198 + $0x10] sm:$0xf]
      %v216 = vld [vmem:[%s198 + $0x14] sm:$0xf]
      %v217 = vld [vmem:[%s198 + $0x18] sm:$0xf]
      %v218 = vld [vmem:[%s198 + $0x1c] sm:$0xf]
      %v227 = vunpack.c.l.b16 %v211
      %v228 = vunpack.c.l.b16 %v212
      %v229 = vunpack.c.l.b16 %v213
      %v230 = vunpack.c.l.b16 %v214
      %v231 = vunpack.c.l.b16 %v215
      %v232 = vunpack.c.l.b16 %v216
      %v233 = vunpack.c.l.b16 %v217
      %v234 = vunpack.c.l.b16 %v218
      %v235 = vpack.c.b16 %v228, %v227
      %v236 = vpack.c.b16 %v230, %v229
      %v237 = vpack.c.b16 %v232, %v231
      %v238 = vpack.c.b16 %v234, %v233
      %vm239 = vsmask.f32 4352
      %v241 = vshrl.u32 %v235, 16
      %v243 = vrot.slane %v241, 3
      %v244 = vshll.u32 %v235, 16
      %v246 = vrot.slane %v244, 4
      %v247 = vor.u32 %v243, %v246
      %v249 = vshrl.u32 %v236, 16
      %v251 = vrot.slane %v249, 3
      %v252 = vshll.u32 %v236, 16
      %v254 = vrot.slane %v252, 4
      %v255 = vor.u32 %v251, %v254
      %v256 = vsel %vm239, %v247, %v255
      %v258 = vshrl.u32 %v237, 16
      %v260 = vrot.slane %v258, 3
      %v261 = vshll.u32 %v237, 16
      %v263 = vrot.slane %v261, 4
      %v264 = vor.u32 %v260, %v263
      %v265 = vsel %vm239, %v255, %v264
      %v267 = vshrl.u32 %v238, 16
      %v269 = vrot.slane %v267, 3
      %v270 = vshll.u32 %v238, 16
      %v272 = vrot.slane %v270, 4
      %v273 = vor.u32 %v269, %v272
      %v274 = vsel %vm239, %v264, %v273
      %vm280 = vcmask 1044480
      %vm281 = vmand %vm280, %vm239
      %v282 = vsel %vm281, 0, %v247
      %v283 = vsel %vm281, %v273, 0
      %v284 = vlaneseq
      %v285 = vshrl.u32 %v284, 7
      %v286 = vadd.s32 %v285, 8
      %v287 = vadd.s32 %v285, 16
      %v288 = vadd.s32 %v285, 24
      %v289 = vadd.s32 %v285, 32
      %v290 = vadd.s32 %v285, 40
      %v291 = vadd.s32 %v285, 48
      %v292 = vadd.s32 %v285, 56
      %vm293 = vcmp.lt.s32.totalorder %v285, 0
      %v294 = vsub.s32 0, %v285
      %v295 = vsel %vm293, %v294, %v285
      %v296 = vshrl.u32 %v295, 3
      %v297 = vand.u32 %v295, 7
      %v298 = vsub.s32 0, %v297
      %v299 = vsel %vm293, %v298, %v297
      %vm300 = vcmp.lt.s32.totalorder %v286, 0
      %v301 = vsub.s32 0, %v286
      %v302 = vsel %vm300, %v301, %v286
      %v303 = vshrl.u32 %v302, 3
      %v304 = vand.u32 %v302, 7
      %v305 = vsub.s32 0, %v304
      %v306 = vsel %vm300, %v305, %v304
      %vm307 = vcmp.lt.s32.totalorder %v287, 0
      %v308 = vsub.s32 0, %v287
      %v309 = vsel %vm307, %v308, %v287
      %v310 = vshrl.u32 %v309, 3
      %v311 = vand.u32 %v309, 7
      %v312 = vsub.s32 0, %v311
      %v313 = vsel %vm307, %v312, %v311
      %vm314 = vcmp.lt.s32.totalorder %v288, 0
      %v315 = vsub.s32 0, %v288
      %v316 = vsel %vm314, %v315, %v288
      %v317 = vshrl.u32 %v316, 3
      %v318 = vand.u32 %v316, 7
      %v319 = vsub.s32 0, %v318
      %v320 = vsel %vm314, %v319, %v318
      %vm321 = vcmp.lt.s32.totalorder %v289, 0
      %v322 = vsub.s32 0, %v289
      %v323 = vsel %vm321, %v322, %v289
      %v324 = vshrl.u32 %v323, 3
      %v325 = vand.u32 %v323, 7
      %v326 = vsub.s32 0, %v325
      %v327 = vsel %vm321, %v326, %v325
      %vm328 = vcmp.lt.s32.totalorder %v290, 0
      %v329 = vsub.s32 0, %v290
      %v330 = vsel %vm328, %v329, %v290
      %v331 = vshrl.u32 %v330, 3
      %v332 = vand.u32 %v330, 7
      %v333 = vsub.s32 0, %v332
      %v334 = vsel %vm328, %v333, %v332
      %vm335 = vcmp.lt.s32.totalorder %v291, 0
      %v336 = vsub.s32 0, %v291
      %v337 = vsel %vm335, %v336, %v291
      %v338 = vshrl.u32 %v337, 3
      %v339 = vand.u32 %v337, 7
      %v340 = vsub.s32 0, %v339
      %v341 = vsel %vm335, %v340, %v339
      %vm342 = vcmp.lt.s32.totalorder %v292, 0
      %v343 = vsub.s32 0, %v292
      %v344 = vsel %vm342, %v343, %v292
      %v345 = vshrl.u32 %v344, 3
      %v346 = vand.u32 %v344, 7
      %v347 = vsub.s32 0, %v346
      %v348 = vsel %vm342, %v347, %v346
      %vm349 = vcmp.ne.s32.totalorder %v299, 0
      %vm350 = vcmp.ne.s32.totalorder %v306, 0
      %vm351 = vcmp.ne.s32.totalorder %v313, 0
      %vm352 = vcmp.ne.s32.totalorder %v320, 0
      %vm353 = vcmp.ne.s32.totalorder %v327, 0
      %vm354 = vcmp.ne.s32.totalorder %v334, 0
      %vm355 = vcmp.ne.s32.totalorder %v341, 0
      %vm356 = vcmp.ne.s32.totalorder %v348, 0
      %vm357 = vcmp.lt.s32.totalorder %v299, 0
      %vm358 = vcmp.lt.s32.totalorder %v306, 0
      %vm359 = vcmp.lt.s32.totalorder %v313, 0
      %vm360 = vcmp.lt.s32.totalorder %v320, 0
      %vm361 = vcmp.lt.s32.totalorder %v327, 0
      %vm362 = vcmp.lt.s32.totalorder %v334, 0
      %vm363 = vcmp.lt.s32.totalorder %v341, 0
      %vm364 = vcmp.lt.s32.totalorder %v348, 0
      %vm365 = vmand %vm357, %vm349
      %vm366 = vmand %vm358, %vm350
      %vm367 = vmand %vm359, %vm351
      %vm368 = vmand %vm360, %vm352
      %vm369 = vmand %vm361, %vm353
      %vm370 = vmand %vm362, %vm354
      %vm371 = vmand %vm363, %vm355
      %vm372 = vmand %vm364, %vm356
      %v373 = vadd.s32 %v299, 8
      %v374 = vadd.s32 %v306, 8
      %v375 = vadd.s32 %v313, 8
      %v376 = vadd.s32 %v320, 8
      %v377 = vadd.s32 %v327, 8
      %v378 = vadd.s32 %v334, 8
      %v379 = vadd.s32 %v341, 8
      %v380 = vadd.s32 %v348, 8
      %v381 = vsel %vm365, %v373, %v299
      %v382 = vsel %vm366, %v374, %v306
      %v383 = vsel %vm367, %v375, %v313
      %v384 = vsel %vm368, %v376, %v320
      %v385 = vsel %vm369, %v377, %v327
      %v386 = vsel %vm370, %v378, %v334
      %v387 = vsel %vm371, %v379, %v341
      %v388 = vsel %vm372, %v380, %v348
      %vm389 = vcmp.ne.s32.totalorder %v381, 0
      %vm390 = vcmp.ne.s32.totalorder %v382, 0
      %vm391 = vcmp.ne.s32.totalorder %v383, 0
      %vm392 = vcmp.ne.s32.totalorder %v384, 0
      %vm393 = vcmp.ne.s32.totalorder %v385, 0
      %vm394 = vcmp.ne.s32.totalorder %v386, 0
      %vm395 = vcmp.ne.s32.totalorder %v387, 0
      %vm396 = vcmp.ne.s32.totalorder %v388, 0
      %v397 = vsel %vm389, 1, 0
      %v398 = vsel %vm390, 1, 0
      %v399 = vsel %vm391, 1, 0
      %v400 = vsel %vm392, 1, 0
      %v401 = vsel %vm393, 1, 0
      %v402 = vsel %vm394, 1, 0
      %v403 = vsel %vm395, 1, 0
      %v404 = vsel %vm396, 1, 0
      %v405 = vcvt.s32.f32 %v397
      %v406 = vcvt.s32.f32 %v398
      %v407 = vcvt.s32.f32 %v399
      %v408 = vcvt.s32.f32 %v400
      %v409 = vcvt.s32.f32 %v401
      %v410 = vcvt.s32.f32 %v402
      %v411 = vcvt.s32.f32 %v403
      %v412 = vcvt.s32.f32 %v404
      %v413 = vpack.c.bf16 %v406, %v405
      %v414 = vpack.c.bf16 %v408, %v407
      %v415 = vpack.c.bf16 %v410, %v409
      %v416 = vpack.c.bf16 %v412, %v411
      %vm417 = vcmp.ne.s32.totalorder %v381, 7
      %vm418 = vcmp.ne.s32.totalorder %v382, 7
      %vm419 = vcmp.ne.s32.totalorder %v383, 7
      %vm420 = vcmp.ne.s32.totalorder %v384, 7
      %vm421 = vcmp.ne.s32.totalorder %v385, 7
      %vm422 = vcmp.ne.s32.totalorder %v386, 7
      %vm423 = vcmp.ne.s32.totalorder %v387, 7
      %vm424 = vcmp.ne.s32.totalorder %v388, 7
      %v425 = vsel %vm417, 1, 0
      %v426 = vsel %vm418, 1, 0
      %v427 = vsel %vm419, 1, 0
      %v428 = vsel %vm420, 1, 0
      %v429 = vsel %vm421, 1, 0
      %v430 = vsel %vm422, 1, 0
      %v431 = vsel %vm423, 1, 0
      %v432 = vsel %vm424, 1, 0
      %v433 = vcvt.s32.f32 %v425
      %v434 = vcvt.s32.f32 %v426
      %v435 = vcvt.s32.f32 %v427
      %v436 = vcvt.s32.f32 %v428
      %v437 = vcvt.s32.f32 %v429
      %v438 = vcvt.s32.f32 %v430
      %v439 = vcvt.s32.f32 %v431
      %v440 = vcvt.s32.f32 %v432
      %v441 = vpack.c.bf16 %v434, %v433
      %v442 = vpack.c.bf16 %v436, %v435
      %v443 = vpack.c.bf16 %v438, %v437
      %v444 = vpack.c.bf16 %v440, %v439
      %v445 = vmul.bf16 %v282, %v413
      %v446 = vmul.bf16 %v256, %v414
      %v447 = vmul.bf16 %v265, %v415
      %v448 = vmul.bf16 %v274, %v416
      %vm453 = vcmask 1040384
      %v454 = vrot.slane %v441, 7
      %v455 = vrot.slane %v442, 7
      %v456 = vsel %vm453, %v454, %v455
      %v457 = vrot.slane %v443, 7
      %v458 = vsel %vm453, %v455, %v457
      %v459 = vrot.slane %v444, 7
      %v460 = vsel %vm453, %v457, %v459
      %v466 = vmul.bf16 %v282, %v454
      %v467 = vmul.bf16 %v256, %v456
      %v468 = vmul.bf16 %v265, %v458
      %v469 = vmul.bf16 %v274, %v460
      %v470 = vmul.bf16 %v283, %v459
      %vm475 = vcmask 1043456
      %v476 = vrot.slane %v413, 4
      %v477 = vrot.slane %v414, 4
      %v478 = vsel %vm475, %v476, %v477
      %v479 = vrot.slane %v415, 4
      %v480 = vsel %vm475, %v477, %v479
      %v481 = vrot.slane %v416, 4
      %v482 = vsel %vm475, %v479, %v481
      %v488 = vmul.bf16 %v282, %v476
      %v489 = vmul.bf16 %v256, %v478
      %v490 = vmul.bf16 %v265, %v480
      %v491 = vmul.bf16 %v274, %v482
      %v492 = vmul.bf16 %v283, %v481
      %v493 = vrot.slane %v441, 3
      %v494 = vrot.slane %v442, 3
      %v495 = vsel %vm280, %v493, %v494
      %v496 = vrot.slane %v443, 3
      %v497 = vsel %vm280, %v494, %v496
      %v498 = vrot.slane %v444, 3
      %v499 = vsel %vm280, %v496, %v498
      %v505 = vmul.bf16 %v282, %v493
      %v506 = vmul.bf16 %v256, %v495
      %v507 = vmul.bf16 %v265, %v497
      %v508 = vmul.bf16 %v274, %v499
      %v509 = vmul.bf16 %v283, %v498
      %v510 = vmul.bf16 %v256, %v413
      %v511 = vmul.bf16 %v265, %v414
      %v512 = vmul.bf16 %v274, %v415
      %v513 = vmul.bf16 %v283, %v416
      %v514 = vmul.bf16 %v256, %v454
      %v515 = vmul.bf16 %v265, %v456
      %v516 = vmul.bf16 %v274, %v458
      %v517 = vmul.bf16 %v283, %v460
      %v518 = vmul.bf16 %v459, 0
      %vm519 = vsmask.f32 7424
      %v521 = vshrl.u32 %v282, 16
      %v523 = vshll.u32 %v282, 16
      %v525 = vrot.slane %v523, 1
      %v526 = vor.u32 %v521, %v525
      %v528 = vshll.u32 %v256, 16
      %v530 = vrot.slane %v528, 1
      %v531 = vsel %vm519, %v526, %v530
      %v532 = vshrl.u32 %v256, 16
      %v534 = vor.u32 %v532, %v530
      %v536 = vshll.u32 %v265, 16
      %v538 = vrot.slane %v536, 1
      %v539 = vsel %vm519, %v534, %v538
      %v540 = vshrl.u32 %v265, 16
      %v542 = vor.u32 %v540, %v538
      %v544 = vshll.u32 %v274, 16
      %v546 = vrot.slane %v544, 1
      %v547 = vsel %vm519, %v542, %v546
      %v548 = vshrl.u32 %v274, 16
      %v550 = vor.u32 %v548, %v546
      %v552 = vshll.u32 %v283, 16
      %v554 = vrot.slane %v552, 1
      %v555 = vsel %vm519, %v550, %v554
      %556 = vrot.lane.b32.xlu0 %v531, 16
      %v557 = vpop.permute.xlu0 %556
      %558 = vrot.lane.b32.xlu0 %v539, 16
      %v559 = vpop.permute.xlu0 %558
      %560 = vrot.lane.b32.xlu0 %v547, 16
      %v561 = vpop.permute.xlu0 %560
      %562 = vrot.lane.b32.xlu0 %v555, 16
      %v563 = vpop.permute.xlu0 %562
      %vm569 = vcmask 1046528
      %v570 = vrot.slane %v466, 1
      %v571 = vrot.slane %v467, 1
      %v572 = vsel %vm569, %v570, %v571
      %v573 = vrot.slane %v468, 1
      %v574 = vsel %vm569, %v571, %v573
      %v575 = vrot.slane %v469, 1
      %v576 = vsel %vm569, %v573, %v575
      %v577 = vrot.slane %v470, 1
      %v578 = vsel %vm569, %v575, %v577
      %579 = vrot.lane.b32.xlu0 %v572, 32
      %v580 = vpop.permute.xlu0 %579
      %581 = vrot.lane.b32.xlu0 %v574, 32
      %v582 = vpop.permute.xlu0 %581
      %583 = vrot.lane.b32.xlu0 %v576, 32
      %v584 = vpop.permute.xlu0 %583
      %585 = vrot.lane.b32.xlu0 %v578, 32
      %v586 = vpop.permute.xlu0 %585
      %v592 = vrot.slane %v488, 4
      %v593 = vrot.slane %v489, 4
      %v594 = vsel %vm475, %v592, %v593
      %v595 = vrot.slane %v490, 4
      %v596 = vsel %vm475, %v593, %v595
      %v597 = vrot.slane %v491, 4
      %v598 = vsel %vm475, %v595, %v597
      %v599 = vrot.slane %v492, 4
      %v600 = vsel %vm475, %v597, %v599
      %601 = vrot.lane.b32.xlu0 %v594, 48
      %v602 = vpop.permute.xlu0 %601
      %603 = vrot.lane.b32.xlu0 %v596, 48
      %v604 = vpop.permute.xlu0 %603
      %605 = vrot.lane.b32.xlu0 %v598, 48
      %v606 = vpop.permute.xlu0 %605
      %607 = vrot.lane.b32.xlu0 %v600, 48
      %v608 = vpop.permute.xlu0 %607
      %vm609 = vsmask.f32 3328
      %v610 = vrot.slane %v521, 4
      %v611 = vrot.slane %v523, 5
      %v612 = vor.u32 %v610, %v611
      %v613 = vrot.slane %v532, 4
      %v614 = vrot.slane %v528, 5
      %v615 = vor.u32 %v613, %v614
      %v616 = vsel %vm609, %v612, %v615
      %v617 = vrot.slane %v540, 4
      %v618 = vrot.slane %v536, 5
      %v619 = vor.u32 %v617, %v618
      %v620 = vsel %vm609, %v615, %v619
      %v621 = vrot.slane %v548, 4
      %v622 = vrot.slane %v544, 5
      %v623 = vor.u32 %v621, %v622
      %v624 = vsel %vm609, %v619, %v623
      %v625 = vshrl.u32 %v283, 16
      %v627 = vrot.slane %v625, 4
      %v628 = vrot.slane %v552, 5
      %v629 = vor.u32 %v627, %v628
      %v630 = vsel %vm609, %v623, %v629
      %631 = vrot.lane.b32.xlu0 %v616, 64
      %v632 = vpop.permute.xlu0 %631
      %633 = vrot.lane.b32.xlu0 %v620, 64
      %v634 = vpop.permute.xlu0 %633
      %635 = vrot.lane.b32.xlu0 %v624, 64
      %v636 = vpop.permute.xlu0 %635
      %637 = vrot.lane.b32.xlu0 %v630, 64
      %v638 = vpop.permute.xlu0 %637
      %vm644 = vcmask 1042432
      %v645 = vrot.slane %v505, 5
      %v646 = vrot.slane %v506, 5
      %v647 = vsel %vm644, %v645, %v646
      %v648 = vrot.slane %v507, 5
      %v649 = vsel %vm644, %v646, %v648
      %v650 = vrot.slane %v508, 5
      %v651 = vsel %vm644, %v648, %v650
      %v652 = vrot.slane %v509, 5
      %v653 = vsel %vm644, %v650, %v652
      %654 = vrot.lane.b32.xlu0 %v647, 80
      %v655 = vpop.permute.xlu0 %654
      %656 = vrot.lane.b32.xlu0 %v649, 80
      %v657 = vpop.permute.xlu0 %656
      %658 = vrot.lane.b32.xlu0 %v651, 80
      %v659 = vpop.permute.xlu0 %658
      %660 = vrot.lane.b32.xlu0 %v653, 80
      %v661 = vpop.permute.xlu0 %660
      %666 = vrot.lane.b32.xlu0 %v510, 96
      %v667 = vpop.permute.xlu0 %666
      %668 = vrot.lane.b32.xlu0 %v511, 96
      %v669 = vpop.permute.xlu0 %668
      %670 = vrot.lane.b32.xlu0 %v512, 96
      %v671 = vpop.permute.xlu0 %670
      %672 = vrot.lane.b32.xlu0 %v513, 96
      %v673 = vpop.permute.xlu0 %672
      %v674 = vor.u32 %v625, %v554
      %v676 = vshll.u32 0, 16
      %v678 = vrot.slane %v676, 1
      %v679 = vsel %vm519, %v674, %v678
      %680 = vrot.lane.b32.xlu0 %v539, 112
      %v681 = vpop.permute.xlu0 %680
      %682 = vrot.lane.b32.xlu0 %v547, 112
      %v683 = vpop.permute.xlu0 %682
      %684 = vrot.lane.b32.xlu0 %v555, 112
      %v685 = vpop.permute.xlu0 %684
      %686 = vrot.lane.b32.xlu0 %v679, 112
      %v687 = vpop.permute.xlu0 %686
      %v693 = vrot.slane %v514, 1
      %v694 = vrot.slane %v515, 1
      %v695 = vsel %vm569, %v693, %v694
      %v696 = vrot.slane %v516, 1
      %v697 = vsel %vm569, %v694, %v696
      %v698 = vrot.slane %v517, 1
      %v699 = vsel %vm569, %v696, %v698
      %v700 = vrot.slane %v518, 1
      %v701 = vsel %vm569, %v698, %v700
      %vm702 = vcmask 130048
      %v705 = vsel %vm702, %v445, %v557
      %v708 = vsel %vm702, %v446, %v559
      %v711 = vsel %vm702, %v447, %v561
      %v714 = vsel %vm702, %v448, %v563
      %vm715 = vcmask 261120
      %v717 = vsel %vm715, %v705, %v580
      %v719 = vsel %vm715, %v708, %v582
      %v721 = vsel %vm715, %v711, %v584
      %v723 = vsel %vm715, %v714, %v586
      %vm724 = vcmask 392192
      %v726 = vsel %vm724, %v717, %v602
      %v728 = vsel %vm724, %v719, %v604
      %v730 = vsel %vm724, %v721, %v606
      %v732 = vsel %vm724, %v723, %v608
      %vm733 = vcmask 523264
      %v735 = vsel %vm733, %v726, %v632
      %v737 = vsel %vm733, %v728, %v634
      %v739 = vsel %vm733, %v730, %v636
      %v741 = vsel %vm733, %v732, %v638
      %vm742 = vcmask 654336
      %v744 = vsel %vm742, %v735, %v655
      %v746 = vsel %vm742, %v737, %v657
      %v748 = vsel %vm742, %v739, %v659
      %v750 = vsel %vm742, %v741, %v661
      %vm751 = vcmask 785408
      %v753 = vsel %vm751, %v744, %v667
      %v755 = vsel %vm751, %v746, %v669
      %v757 = vsel %vm751, %v748, %v671
      %v759 = vsel %vm751, %v750, %v673
      %vm760 = vcmask 916480
      %v762 = vsel %vm760, %v753, %v681
      %v765 = vsel %vm760, %v755, %v683
      %v768 = vsel %vm760, %v757, %v685
      %v771 = vsel %vm760, %v759, %v687
      %v773 = vld [vmem:[%s1] sm:$0xf]
      %v774 = vld [vmem:[%s1 + $0x4] sm:$0xf]
      %v775 = vld [vmem:[%s1 + $0x8] sm:$0xf]
      %v776 = vld [vmem:[%s1 + $0xc] sm:$0xf]
      %v777 = vld [vmem:[%s1 + $0x10] sm:$0xf]
      %v778 = vld [vmem:[%s1 + $0x14] sm:$0xf]
      %v779 = vld [vmem:[%s1 + $0x18] sm:$0xf]
      %v780 = vld [vmem:[%s1 + $0x1c] sm:$0xf]
      %v781 = vld [vmem:[%s1 + $0x20] sm:$0xf]
      %v782 = vld [vmem:[%s1 + $0x24] sm:$0xf]
      %v783 = vld [vmem:[%s1 + $0x28] sm:$0xf]
      %v784 = vld [vmem:[%s1 + $0x2c] sm:$0xf]
      %v785 = vld [vmem:[%s1 + $0x30] sm:$0xf]
      %v786 = vld [vmem:[%s1 + $0x34] sm:$0xf]
      %v787 = vld [vmem:[%s1 + $0x38] sm:$0xf]
      %v788 = vld [vmem:[%s1 + $0x3c] sm:$0xf]
      %v789 = vld [vmem:[%s1 + $0x40] sm:$0xf]
      %v790 = vld [vmem:[%s1 + $0x44] sm:$0xf]
      %v791 = vld [vmem:[%s2] sm:$0x1]
      %v793 = vlaneseq
      %v794 = vshrl.u32 %v793, 7
      %v795 = vsub.s32 0, %v794
      %v796 = vrot.slane %v791, %v795
      %v816 = vunpack.c.l.b16 %v773
      %v817 = vunpack.c.l.b16 %v774
      %v818 = vunpack.c.l.b16 %v775
      %v819 = vunpack.c.l.b16 %v776
      %v820 = vunpack.c.l.b16 %v777
      %v821 = vunpack.c.l.b16 %v778
      %v822 = vunpack.c.l.b16 %v779
      %v823 = vunpack.c.l.b16 %v780
      %v824 = vunpack.c.l.b16 %v781
      %v825 = vunpack.c.l.b16 %v782
      %v826 = vunpack.c.l.b16 %v783
      %v827 = vunpack.c.l.b16 %v784
      %v828 = vunpack.c.l.b16 %v785
      %v829 = vunpack.c.l.b16 %v786
      %v830 = vunpack.c.l.b16 %v787
      %v831 = vunpack.c.l.b16 %v788
      %v832 = vunpack.c.l.b16 %v789
      %v833 = vunpack.c.l.b16 %v790
      %v834 = vpack.c.b16 %v817, %v816
      %v835 = vpack.c.b16 %v819, %v818
      %v836 = vpack.c.b16 %v821, %v820
      %v837 = vpack.c.b16 %v823, %v822
      %v838 = vpack.c.b16 %v825, %v824
      %v839 = vpack.c.b16 %v827, %v826
      %v840 = vpack.c.b16 %v829, %v828
      %v841 = vpack.c.b16 %v831, %v830
      %v842 = vpack.c.b16 %v833, %v832
      %v853 = vsel %vm702, %v695, 0
      %v856 = vsel %vm702, %v697, 0
      %v859 = vsel %vm702, %v699, 0
      %v862 = vsel %vm702, %v701, 0
      %864 = vmatprep.subr.bf16.mxu0 0
      %865 = vmatpush1.bf16.msra.mxu0 %v841
      %866 = vmatprep.subr.bf16.mxu0 0
      %867 = vmatpush1.bf16.msra.mxu0 %v840
      %868 = vmatprep.subr.bf16.mxu0 0
      %869 = vmatpush1.bf16.msra.mxu0 %v839
      %870 = vmatprep.subr.bf16.mxu0 0
      %871 = vmatpush1.bf16.msra.mxu0 %v838
      %872 = vmatprep.subr.bf16.mxu0 0
      %873 = vmatpush1.bf16.msra.mxu0 %v837
      %874 = vmatprep.subr.bf16.mxu0 0
      %875 = vmatpush1.bf16.msra.mxu0 %v836
      %876 = vmatprep.subr.bf16.mxu0 0
      %877 = vmatpush1.bf16.msra.mxu0 %v835
      %878 = vmatprep.subr.bf16.mxu0 0
      %879 = vmatpush1.bf16.msra.mxu0 %v834
      %880 = vmatprep.subr.bf16.mxu0 0
      %881 = vmatpush2.bf16.msra.mxu0 0
      %882 = vmatprep.subr.bf16.mxu0 0
      %883 = vmatpush2.bf16.msra.mxu0 0
      %884 = vmatprep.subr.bf16.mxu0 0
      %885 = vmatpush2.bf16.msra.mxu0 0
      %886 = vmatprep.subr.bf16.mxu0 0
      %887 = vmatpush2.bf16.msra.mxu0 0
      %888 = vmatprep.subr.bf16.mxu0 0
      %889 = vmatpush2.bf16.msra.mxu0 0
      %890 = vmatprep.subr.bf16.mxu0 0
      %891 = vmatpush2.bf16.msra.mxu0 0
      %892 = vmatprep.subr.bf16.mxu0 0
      %893 = vmatpush2.bf16.msra.mxu0 0
      %894 = vmatprep.subr.bf16.mxu0 0
      %895 = vmatpush2.bf16.msra.mxu0 %v842
      %896 = vmatprep.mubr.bf16.mxu0 %v853
      %897 = vmatmul.mubr.bf16.gmra.mxu0 %v762
      %v898 = vpop.f32.mrf.mxu0
      %v899 = vadd.f32 %v796, %v898
      %v900 = vpop.f32.mrf.mxu0
      %v901 = vpop.f32.mrf.mxu0
      %v902 = vpop.f32.mrf.mxu0
      %903 = vmatprep.mubr.bf16.mxu0 %v856
      %904 = vmatmul.mubr.bf16.gmra.mxu0 %v765
      %v905 = vpop.f32.mrf.mxu0
      %v906 = vadd.f32 %v796, %v905
      %v907 = vpop.f32.mrf.mxu0
      %v908 = vpop.f32.mrf.mxu0
      %v909 = vpop.f32.mrf.mxu0
      %910 = vmatprep.mubr.bf16.mxu0 %v859
      %911 = vmatmul.mubr.bf16.gmra.mxu0 %v768
      %v912 = vpop.f32.mrf.mxu0
      %v913 = vadd.f32 %v796, %v912
      %v914 = vpop.f32.mrf.mxu0
      %v915 = vpop.f32.mrf.mxu0
      %v916 = vpop.f32.mrf.mxu0
      %917 = vmatprep.mubr.bf16.mxu0 %v862
      %918 = vmatmul.mubr.bf16.gmra.mxu0 %v771
      %v919 = vpop.f32.mrf.mxu0
      %v920 = vadd.f32 %v796, %v919
      %v921 = vpop.f32.mrf.mxu0
      %v922 = vpop.f32.mrf.mxu0
      %v923 = vpop.f32.mrf.mxu0
      %924 = vdwg.mxu0
      %v925 = vmax.f32 %v899, 0.0
      %v926 = vmax.f32 %v906, 0.0
      %v927 = vmax.f32 %v913, 0.0
      %v928 = vmax.f32 %v920, 0.0
      %v929 = vpack.c.bf16 %v926, %v925
      %v930 = vpack.c.bf16 %v928, %v927
      %v933 = vunpack.c.l.b16 %v929
      %v934 = vunpack.c.h.b16 %v929
      %v935 = vunpack.c.l.b16 %v930
      %v936 = vunpack.c.h.b16 %v930
      %v937 = vpack.c.b16 %v933, %v933
      %v938 = vpack.c.b16 %v934, %v934
      %v939 = vpack.c.b16 %v935, %v935
      %v940 = vpack.c.b16 %v936, %v936
      %vm945 = vcmask 519168
      %946 = vst.msk [vmem:[%s208] sm:$0xf] %vm945, %v937
      %947 = vst.msk [vmem:[%s208 + $0x4] sm:$0xf] %vm945, %v938
      %948 = vst.msk [vmem:[%s208 + $0x8] sm:$0xf] %vm945, %v939
      %949 = vst.msk [vmem:[%s208 + $0xc] sm:$0xf] %vm945, %v940
      %s950 = smul.u32 4, %s19
      %p951 = scmp.lt.s32.totalorder %s18, 1
      %s952 = scalar_select %p951, %s18, 1
      %p953 = scmp.lt.s32.totalorder %s950, 3
      %s954 = scalar_select %p953, %s950, 3
      %s955 = smul.addr %s952, 4
      %s956 = sadd.s32 %s954, %s955
      %s957 = smul.addr %s956, 4
      %s958 = scalar_lea.vmem %s3, %s957
      // Predicated region
      $region33: #{colorize_net_forward.84} parent=31 // pred_check
        %p959 = pneg %p116
      $region34: #{colorize_net_forward.84} parent=31 // pred_check_branch
        %961 = sbr.rel (%p959) target = $region36
      $region35: #{colorize_net_forward.84} parent=31 // pred_region
        %s962 = smul.u32 4, %s19
      $region36: #{colorize_net_forward.84} parent=31 // pred_fallthru
        _
    $region32: #{colorize_net_forward.84} parent=5 // pred_fallthru
      _
    %p963 = scmp.le.s32.totalorder 2, %s9
    // Predicated region
    $region37: #{colorize_net_forward.84} parent=5 // pred_check
      %p964 = pneg %p963
    $region38: #{colorize_net_forward.84} parent=5 // pred_check_branch
      %966 = sbr.rel (%p964) target = $region40
    $region39: #{colorize_net_forward.84} parent=5 // pred_region
      %s967 = ssub.s32 %s9, 2
      // Predicated region
      $region41: #{colorize_net_forward.84} parent=39 // pred_check
        %p968 = pneg %p122
      $region42: #{colorize_net_forward.84} parent=39 // pred_check_branch
        %970 = sbr.rel (%p968) target = $region44
      $region43: #{colorize_net_forward.84} parent=39 // pred_region
        %s971 = smul.u32 4, %s21
        %p972 = scmp.lt.s32.totalorder %s20, 1
        %s973 = scalar_select %p972, %s20, 1
        %p974 = scmp.lt.s32.totalorder %s971, 3
        %s975 = scalar_select %p974, %s971, 3
        %s976 = smul.addr %s973, 4
        %s977 = sadd.s32 %s975, %s976
        %s978 = smul.addr %s977, 4
        %s979 = scalar_lea.vmem %s3, %s978
      $region44: #{colorize_net_forward.84} parent=39 // pred_fallthru
        _
    $region40: #{colorize_net_forward.84} parent=5 // pred_fallthru
      _
  $region6: #{colorize_net_forward.84} parent=0 // loop_footer
    %s13 = sadd.s32 1, %s9
  $region7: #{colorize_net_forward.84} parent=0 // loop_footer_branch
    %8 = sbr.rel target = $region3
  $region8: #{colorize_net_forward.84} parent=0 // loop_exit
    _

// kernel: colorize_net_forward.85
$region0: #{colorize_net_forward.85}
  #allocation0 [shape = 'u32[]', space=smem, size = 0x4, offset = 0x4, fixed_abs, tag = 'smem constant byte address 0x4 - core index']
  #allocation1 [shape = 'u32[144,128]{1,0:T(1,128)}', space=vmem, size = 0x12000, scoped, tag = 'internal scratch']
  %s0 = inlined_call_operand.vmem [shape: bf16[2,16,64], index: 0, kind: input, shape index: {}]
  %s1 = inlined_call_operand.vmem [shape: bf16[576,64], index: 1, kind: input, shape index: {}]
  %s2 = inlined_call_operand.vmem [shape: f32[1,64], index: 2, kind: input, shape index: {}]
  %s3 = inlined_call_operand.vmem [shape: bf16[2,16,64], index: 3, kind: output, shape index: {}]
  %s4 = sld [smem:[#allocation0]]
  $region45: #{colorize_net_forward.85} parent=0
    _
  %s6 = ssub.s32 1, %s4
  %s7 = scalar_select 0, %s6, %s4
  loop: start=0, step=1, limit=4
  $region2: #{colorize_net_forward.85} parent=0 // loop_pre_header
    _
  $region3: #{colorize_net_forward.85} parent=0 // loop_header
    %s9 = sphi 0, %s13
    %p10 = scmp.ge.s32.totalorder %s9, 4
    %s16 = sphi 0, %s28
    %s17 = sphi 0, %s24
    %s18 = sphi 0, %s16
    %s19 = sphi 0, %s17
    %s20 = sphi 0, %s18
    %s21 = sphi 0, %s19
    %s33 = sphi 0, %s35
    %s36 = sphi 0, %s33
    %s37 = sphi 0, %s36
    %s53 = sphi 0, %s37
    %s57 = sphi 0, %s57
    %s59 = sphi 0, %s57
    %s60 = sphi 0, %s59
    %s74 = sphi 0, %s60
    %s78 = sphi 0, %s78
    %s80 = sphi 0, %s78
    %s81 = sphi 0, %s80
    %s95 = sphi 0, %s81
    %s103 = sphi 0, %s105
    %s106 = sphi 0, %s103
    %s107 = sphi 0, %s106
    %s123 = sphi 0, %s107
  $region4: #{colorize_net_forward.85} parent=0 // loop_header_branch
    %12 = sbr.rel (%p10) target = $region8
  $region5: #{colorize_net_forward.85} parent=0 // loop_body
    %s14 = ssub.s32 %s9, 1
    %s15 = ssub.s32 %s9, 2
    %s22 = sadd.s32 1, %s17
    %p23 = scmp.ge.s32.totalorder %s22, 1
    %s24 = scalar_select %p23, 0, %s22
    %s25 = sadd.s32 1, %s16
    %s26 = scalar_select %p23, %s25, %s16
    %p27 = scmp.ge.s32.totalorder %s26, 2
    %s28 = scalar_select %p27, 0, %s26
    %s29 = ssub.s32 %s16, %s28
    %s30 = ssub.s32 %s17, %s24
    %s31 = sor.u32 %s29, %s30
    %p32 = scmp.eq.s32.totalorder %s31, 0
    %s34 = sadd.s32 %s33, 1
    %s35 = scalar_select %p32, %s33, %s34
    %p38 = pneg %p32
    %p39 = scmp.eq.s32.totalorder %s9, 1
    %p40 = por %p38, %p39
    %p41 = scmp.ne.s32.totalorder %s33, %s36
    %p42 = scmp.eq.s32.totalorder %s9, 0
    %p43 = por %p41, %p42
    %p44 = scmp.ne.s32.totalorder %s33, %s36
    %p45 = scmp.eq.s32.totalorder %s14, 1
    %p46 = por %p44, %p45
    %p47 = scmp.ne.s32.totalorder %s36, %s37
    %p48 = scmp.eq.s32.totalorder %s14, 0
    %p49 = por %p47, %p48
    %p50 = scmp.ne.s32.totalorder %s36, %s37
    %p51 = scmp.eq.s32.totalorder %s15, 1
    %p52 = por %p50, %p51
    %p54 = scmp.ne.s32.totalorder %s37, %s53
    %p55 = scmp.eq.s32.totalorder %s15, 0
    %p56 = por %p54, %p55
    %s58 = sadd.s32 %s57, 1
    %p61 = scmp.eq.s32.totalorder %s9, 1
    %p62 = scmp.ne.s32.totalorder %s57, %s59
    %p63 = scmp.eq.s32.totalorder %s9, 0
    %p64 = por %p62, %p63
    %p65 = scmp.ne.s32.totalorder %s57, %s59
    %p66 = scmp.eq.s32.totalorder %s14, 1
    %p67 = por %p65, %p66
    %p68 = scmp.ne.s32.totalorder %s59, %s60
    %p69 = scmp.eq.s32.totalorder %s14, 0
    %p70 = por %p68, %p69
    %p71 = scmp.ne.s32.totalorder %s59, %s60
    %p72 = scmp.eq.s32.totalorder %s15, 1
    %p73 = por %p71, %p72
    %p75 = scmp.ne.s32.totalorder %s60, %s74
    %p76 = scmp.eq.s32.totalorder %s15, 0
    %p77 = por %p75, %p76
    %s79 = sadd.s32 %s78, 1
    %p82 = scmp.eq.s32.totalorder %s9, 1
    %p83 = scmp.ne.s32.totalorder %s78, %s80
    %p84 = scmp.eq.s32.totalorder %s9, 0
    %p85 = por %p83, %p84
    %p86 = scmp.ne.s32.totalorder %s78, %s80
    %p87 = scmp.eq.s32.totalorder %s14, 1
    %p88 = por %p86, %p87
    %p89 = scmp.ne.s32.totalorder %s80, %s81
    %p90 = scmp.eq.s32.totalorder %s14, 0
    %p91 = por %p89, %p90
    %p92 = scmp.ne.s32.totalorder %s80, %s81
    %p93 = scmp.eq.s32.totalorder %s15, 1
    %p94 = por %p92, %p93
    %p96 = scmp.ne.s32.totalorder %s81, %s95
    %p97 = scmp.eq.s32.totalorder %s15, 0
    %p98 = por %p96, %p97
    %s99 = ssub.s32 %s16, %s28
    %s100 = ssub.s32 %s17, %s24
    %s101 = sor.u32 %s99, %s100
    %p102 = scmp.eq.s32.totalorder %s101, 0
    %s104 = sadd.s32 %s103, 1
    %s105 = scalar_select %p102, %s103, %s104
    %p108 = pneg %p102
    %p109 = scmp.eq.s32.totalorder %s9, 1
    %p110 = por %p108, %p109
    %p111 = scmp.ne.s32.totalorder %s103, %s106
    %p112 = scmp.eq.s32.totalorder %s9, 0
    %p113 = por %p111, %p112
    %p114 = scmp.ne.s32.totalorder %s103, %s106
    %p115 = scmp.eq.s32.totalorder %s14, 1
    %p116 = por %p114, %p115
    %p117 = scmp.ne.s32.totalorder %s106, %s107
    %p118 = scmp.eq.s32.totalorder %s14, 0
    %p119 = por %p117, %p118
    %p120 = scmp.ne.s32.totalorder %s106, %s107
    %p121 = scmp.eq.s32.totalorder %s15, 1
    %p122 = por %p120, %p121
    %p124 = scmp.ne.s32.totalorder %s107, %s123
    %p125 = scmp.eq.s32.totalorder %s15, 0
    %p126 = por %p124, %p125
    %p127 = scmp.le.s32.totalorder 1, %s9
    %p128 = scmp.lt.s32.totalorder %s9, 3
    %p129 = pnand %p127, %p128
    %p130 = pneg %p129
    // Predicated region
    $region9: #{colorize_net_forward.85} parent=5 // pred_check
      _
    $region10: #{colorize_net_forward.85} parent=5 // pred_check_branch
      %132 = sbr.rel (%p129) target = $region12
    $region11: #{colorize_net_forward.85} parent=5 // pred_region
      %s133 = ssub.s32 %s9, 1
      // Predicated region
      $region13: #{colorize_net_forward.85} parent=11 // pred_check
        %p134 = pneg %p70
      $region14: #{colorize_net_forward.85} parent=11 // pred_check_branch
        %136 = sbr.rel (%p134) target = $region16
      $region15: #{colorize_net_forward.85} parent=11 // pred_region
        _
      $region16: #{colorize_net_forward.85} parent=11 // pred_fallthru
        _
      // Predicated region
      $region17: #{colorize_net_forward.85} parent=11 // pred_check
        %p137 = pneg %p91
      $region18: #{colorize_net_forward.85} parent=11 // pred_check_branch
        %139 = sbr.rel (%p137) target = $region20
      $region19: #{colorize_net_forward.85} parent=11 // pred_region
        _
      $region20: #{colorize_net_forward.85} parent=11 // pred_fallthru
        _
    $region12: #{colorize_net_forward.85} parent=5 // pred_fallthru
      _
    %p140 = scmp.lt.s32.totalorder %s9, 2
    // Predicated region
    $region21: #{colorize_net_forward.85} parent=5 // pred_check
      %p141 = pneg %p140
    $region22: #{colorize_net_forward.85} parent=5 // pred_check_branch
      %143 = sbr.rel (%p141) target = $region24
    $region23: #{colorize_net_forward.85} parent=5 // pred_region
      // Predicated region
      $region25: #{colorize_net_forward.85} parent=23 // pred_check
        %p144 = pneg %p43
      $region26: #{colorize_net_forward.85} parent=23 // pred_check_branch
        %146 = sbr.rel (%p144) target = $region28
      $region27: #{colorize_net_forward.85} parent=23 // pred_region
        %s147 = smul.u32 2, %s17
        %p148 = scmp.lt.s32.totalorder %s16, 1
        %s149 = scalar_select %p148, %s16, 1
        %p150 = scmp.lt.s32.totalorder %s147, 1
        %s151 = scalar_select %p150, %s147, 1
        %s152 = smul.addr %s149, 2
        %s153 = sadd.s32 %s151, %s152
        %s154 = smul.addr %s153, 4
        %s155 = scalar_lea.vmem %s0, %s154
        %s156 = smul.u32 2, %s17
      $region28: #{colorize_net_forward.85} parent=23 // pred_fallthru
        _
    $region24: #{colorize_net_forward.85} parent=5 // pred_fallthru
      _
    %p157 = scmp.le.s32.totalorder 1, %s9
    %p158 = scmp.lt.s32.totalorder %s9, 3
    %p159 = pnand %p157, %p158
    %p160 = pneg %p159
    // Predicated region
    $region29: #{colorize_net_forward.85} parent=5 // pred_check
      _
    $region30: #{colorize_net_forward.85} parent=5 // pred_check_branch
      %162 = sbr.rel (%p159) target = $region32
    $region31: #{colorize_net_forward.85} parent=5 // pred_region
      %s163 = ssub.s32 %s9, 1
      %s164 = smul.u32 2, %s19
      %p165 = scmp.lt.s32.totalorder %s18, 1
      %s166 = scalar_select %p165, %s18, 1
      %p167 = scmp.lt.s32.totalorder %s164, 1
      %s168 = scalar_select %p167, %s164, 1
      %s169 = smul.addr %s166, 2
      %s170 = sadd.s32 %s168, %s169
      %s171 = smul.addr %s170, 4
      %s172 = scalar_lea.vmem %s0, %s171
      %p173 = pneg %p49
      %p174 = pneg %p46
      %p175 = pneg %p70
      %p176 = pneg %p67
      %p177 = pneg %p91
      %p178 = pneg %p88
      %p179 = pneg %p119
      %p180 = pneg %p116
      %s181 = smul.u32 2, %s19
      %p182 = scmp.lt.s32.totalorder %s18, 1
      %s183 = scalar_select %p182, %s18, 1
      %p184 = scmp.lt.s32.totalorder %s181, 1
      %s185 = scalar_select %p184, %s181, 1
      %s186 = smul.addr %s183, 2
      %s187 = sadd.s32 %s185, %s186
      %s188 = smul.addr %s187, 4
      %s189 = scalar_lea.vmem %s3, %s188
      %s190 = smul.u32 2, %s19
      %p191 = scmp.lt.s32.totalorder %s18, 1
      %s192 = scalar_select %p191, %s18, 1
      %p193 = scmp.lt.s32.totalorder %s190, 1
      %s194 = scalar_select %p193, %s190, 1
      %s195 = smul.addr %s192, 2
      %s196 = sadd.s32 %s194, %s195
      %s197 = smul.addr %s196, 4
      %s198 = scalar_lea.vmem %s0, %s197
      %s199 = smul.u32 2, %s19
      %s200 = smul.u32 2, %s19
      %p201 = scmp.lt.s32.totalorder %s18, 1
      %s202 = scalar_select %p201, %s18, 1
      %p203 = scmp.lt.s32.totalorder %s200, 1
      %s204 = scalar_select %p203, %s200, 1
      %s205 = smul.addr %s202, 2
      %s206 = sadd.s32 %s204, %s205
      %s207 = smul.addr %s206, 4
      %s208 = scalar_lea.vmem %s3, %s207
      %s209 = smul.u32 2, %s19
      %v211 = vld [vmem:[%s198] sm:$0xf]
      %v212 = vld [vmem:[%s198 + $0x4] sm:$0xf]
      %v215 = vunpack.c.l.b16 %v211
      %v216 = vunpack.c.l.b16 %v212
      %v217 = vpack.c.b16 %v216, %v215
      %v219 = vshrl.u32 %v217, 16
      %v221 = vrot.slane %v219, 5
      %v222 = vshll.u32 %v217, 16
      %v224 = vrot.slane %v222, 6
      %v225 = vor.u32 %v221, %v224
      %vm227 = vcmask 1042432
      %vm228 = vsmask.f32 2304
      %vm229 = vmand %vm227, %vm228
      %v230 = vsel %vm229, 0, %v225
      %v231 = vsel %vm229, %v225, 0
      %vm232 = vcmask 1044480
      %vm233 = vsmask.f32 4352
      %vm234 = vmand %vm232, %vm233
      %v235 = vsel %vm234, %v231, 0
      %v236 = vlaneseq
      %v237 = vshrl.u32 %v236, 7
      %v238 = vadd.s32 %v237, 8
      %vm239 = vcmp.lt.s32.totalorder %v237, 0
      %v240 = vsub.s32 0, %v237
      %v241 = vsel %vm239, %v240, %v237
      %v242 = vshrl.u32 %v241, 2
      %v243 = vand.u32 %v241, 3
      %v244 = vsub.s32 0, %v243
      %v245 = vsel %vm239, %v244, %v243
      %vm246 = vcmp.lt.s32.totalorder %v238, 0
      %v247 = vsub.s32 0, %v238
      %v248 = vsel %vm246, %v247, %v238
      %v249 = vshrl.u32 %v248, 2
      %v250 = vand.u32 %v248, 3
      %v251 = vsub.s32 0, %v250
      %v252 = vsel %vm246, %v251, %v250
      %vm253 = vcmp.ne.s32.totalorder %v245, 0
      %vm254 = vcmp.ne.s32.totalorder %v252, 0
      %vm255 = vcmp.lt.s32.totalorder %v245, 0
      %vm256 = vcmp.lt.s32.totalorder %v252, 0
      %vm257 = vmand %vm255, %vm253
      %vm258 = vmand %vm256, %vm254
      %v259 = vadd.s32 %v245, 4
      %v260 = vadd.s32 %v252, 4
      %v261 = vsel %vm257, %v259, %v245
      %v262 = vsel %vm258, %v260, %v252
      %vm263 = vcmp.ne.s32.totalorder %v261, 0
      %vm264 = vcmp.ne.s32.totalorder %v262, 0
      %v265 = vsel %vm263, 1, 0
      %v266 = vsel %vm264, 1, 0
      %v267 = vcvt.s32.f32 %v265
      %v268 = vcvt.s32.f32 %v266
      %v269 = vpack.c.bf16 %v268, %v267
      %vm270 = vcmp.ne.s32.totalorder %v261, 3
      %vm271 = vcmp.ne.s32.totalorder %v262, 3
      %v272 = vsel %vm270, 1, 0
      %v273 = vsel %vm271, 1, 0
      %v274 = vcvt.s32.f32 %v272
      %v275 = vcvt.s32.f32 %v273
      %v276 = vpack.c.bf16 %v275, %v274
      %v277 = vmul.bf16 %v230, %v269
      %v279 = vrot.slane %v276, 7
      %v281 = vmul.bf16 %v230, %v279
      %v282 = vmul.bf16 %v235, %v279
      %v284 = vrot.slane %v269, 6
      %v286 = vmul.bf16 %v230, %v284
      %v287 = vmul.bf16 %v235, %v284
      %v288 = vrot.slane %v276, 5
      %v290 = vmul.bf16 %v230, %v288
      %v291 = vmul.bf16 %v235, %v288
      %v292 = vrot.slane %v269, 4
      %v294 = vmul.bf16 %v230, %v292
      %v295 = vmul.bf16 %v235, %v292
      %v296 = vrot.slane %v276, 3
      %v298 = vmul.bf16 %v230, %v296
      %v299 = vmul.bf16 %v235, %v296
      %vm300 = vsmask.f32 7424
      %v302 = vshrl.u32 %v230, 16
      %v304 = vshll.u32 %v230, 16
      %v306 = vrot.slane %v304, 1
      %v307 = vor.u32 %v302, %v306
      %v309 = vshll.u32 %v235, 16
      %v311 = vrot.slane %v309, 1
      %v312 = vsel %vm300, %v307, %v311
      %313 = vrot.lane.b32.xlu0 %v312, 64
      %v314 = vpop.permute.xlu0 %313
      %vm317 = vcmask 1046528
      %v318 = vrot.slane %v281, 1
      %v319 = vrot.slane %v282, 1
      %v320 = vsel %vm317, %v318, %v319
      %vm323 = vcmask 1045504
      %v324 = vrot.slane %v286, 2
      %v325 = vrot.slane %v287, 2
      %v326 = vsel %vm323, %v324, %v325
      %327 = vrot.lane.b32.xlu0 %v326, 64
      %v328 = vpop.permute.xlu0 %327
      %vm329 = vsmask.f32 5376
      %v330 = vrot.slane %v302, 2
      %v331 = vrot.slane %v304, 3
      %v332 = vor.u32 %v330, %v331
      %v333 = vshrl.u32 %v235, 16
      %v335 = vrot.slane %v333, 2
      %v336 = vrot.slane %v309, 3
      %v337 = vor.u32 %v335, %v336
      %v338 = vsel %vm329, %v332, %v337
      %v341 = vrot.slane %v290, 3
      %v342 = vrot.slane %v291, 3
      %v343 = vsel %vm232, %v341, %v342
      %344 = vrot.lane.b32.xlu0 %v343, 64
      %v345 = vpop.permute.xlu0 %344
      %vm348 = vcmask 1043456
      %v349 = vrot.slane %v294, 4
      %v350 = vrot.slane %v295, 4
      %v351 = vsel %vm348, %v349, %v350
      %vm352 = vsmask.f32 3328
      %v353 = vrot.slane %v302, 4
      %v354 = vrot.slane %v304, 5
      %v355 = vor.u32 %v353, %v354
      %v356 = vrot.slane %v333, 4
      %v357 = vrot.slane %v309, 5
      %v358 = vor.u32 %v356, %v357
      %v359 = vsel %vm352, %v355, %v358
      %360 = vrot.lane.b32.xlu0 %v359, 64
      %v361 = vpop.permute.xlu0 %360
      %v364 = vrot.slane %v298, 5
      %v365 = vrot.slane %v299, 5
      %v366 = vsel %vm227, %v364, %v365
      %vm367 = vcmask 523264
      %v370 = vsel %vm367, %v277, %v314
      %v374 = vsel %vm367, %v320, %v328
      %v378 = vsel %vm367, %v338, %v345
      %v382 = vsel %vm367, %v351, %v361
      %v384 = vld [vmem:[%s1] sm:$0xf]
      %v385 = vld [vmem:[%s1 + $0x4] sm:$0xf]
      %v386 = vld [vmem:[%s1 + $0x8] sm:$0xf]
      %v387 = vld [vmem:[%s1 + $0xc] sm:$0xf]
      %v388 = vld [vmem:[%s1 + $0x10] sm:$0xf]
      %v389 = vld [vmem:[%s1 + $0x14] sm:$0xf]
      %v390 = vld [vmem:[%s1 + $0x18] sm:$0xf]
      %v391 = vld [vmem:[%s1 + $0x1c] sm:$0xf]
      %v392 = vld [vmem:[%s1 + $0x20] sm:$0xf]
      %v393 = vld [vmem:[%s1 + $0x24] sm:$0xf]
      %v394 = vld [vmem:[%s1 + $0x28] sm:$0xf]
      %v395 = vld [vmem:[%s1 + $0x2c] sm:$0xf]
      %v396 = vld [vmem:[%s1 + $0x30] sm:$0xf]
      %v397 = vld [vmem:[%s1 + $0x34] sm:$0xf]
      %v398 = vld [vmem:[%s1 + $0x38] sm:$0xf]
      %v399 = vld [vmem:[%s1 + $0x3c] sm:$0xf]
      %v400 = vld [vmem:[%s1 + $0x40] sm:$0xf]
      %v401 = vld [vmem:[%s1 + $0x44] sm:$0xf]
      %v402 = vld [vmem:[%s1 + $0x48] sm:$0xf]
      %v403 = vld [vmem:[%s1 + $0x4c] sm:$0xf]
      %v404 = vld [vmem:[%s1 + $0x50] sm:$0xf]
      %v405 = vld [vmem:[%s1 + $0x54] sm:$0xf]
      %v406 = vld [vmem:[%s1 + $0x58] sm:$0xf]
      %v407 = vld [vmem:[%s1 + $0x5c] sm:$0xf]
      %v408 = vld [vmem:[%s1 + $0x60] sm:$0xf]
      %v409 = vld [vmem:[%s1 + $0x64] sm:$0xf]
      %v410 = vld [vmem:[%s1 + $0x68] sm:$0xf]
      %v411 = vld [vmem:[%s1 + $0x6c] sm:$0xf]
      %v412 = vld [vmem:[%s1 + $0x70] sm:$0xf]
      %v413 = vld [vmem:[%s1 + $0x74] sm:$0xf]
      %v414 = vld [vmem:[%s1 + $0x78] sm:$0xf]
      %v415 = vld [vmem:[%s1 + $0x7c] sm:$0xf]
      %v416 = vld [vmem:[%s1 + $0x80] sm:$0xf]
      %v417 = vld [vmem:[%s1 + $0x84] sm:$0xf]
      %v418 = vld [vmem:[%s1 + $0x88] sm:$0xf]
      %v419 = vld [vmem:[%s1 + $0x8c] sm:$0xf]
      %v420 = vld [vmem:[%s1 + $0x90] sm:$0xf]
      %v421 = vld [vmem:[%s1 + $0x94] sm:$0xf]
      %v422 = vld [vmem:[%s1 + $0x98] sm:$0xf]
      %v423 = vld [vmem:[%s1 + $0x9c] sm:$0xf]
      %v424 = vld [vmem:[%s1 + $0xa0] sm:$0xf]
      %v425 = vld [vmem:[%s1 + $0xa4] sm:$0xf]
      %v426 = vld [vmem:[%s1 + $0xa8] sm:$0xf]
      %v427 = vld [vmem:[%s1 + $0xac] sm:$0xf]
      %v428 = vld [vmem:[%s1 + $0xb0] sm:$0xf]
      %v429 = vld [vmem:[%s1 + $0xb4] sm:$0xf]
      %v430 = vld [vmem:[%s1 + $0xb8] sm:$0xf]
      %v431 = vld [vmem:[%s1 + $0xbc] sm:$0xf]
      %v432 = vld [vmem:[%s1 + $0xc0] sm:$0xf]
      %v433 = vld [vmem:[%s1 + $0xc4] sm:$0xf]
      %v434 = vld [vmem:[%s1 + $0xc8] sm:$0xf]
      %v435 = vld [vmem:[%s1 + $0xcc] sm:$0xf]
      %v436 = vld [vmem:[%s1 + $0xd0] sm:$0xf]
      %v437 = vld [vmem:[%s1 + $0xd4] sm:$0xf]
      %v438 = vld [vmem:[%s1 + $0xd8] sm:$0xf]
      %v439 = vld [vmem:[%s1 + $0xdc] sm:$0xf]
      %v440 = vld [vmem:[%s1 + $0xe0] sm:$0xf]
      %v441 = vld [vmem:[%s1 + $0xe4] sm:$0xf]
      %v442 = vld [vmem:[%s1 + $0xe8] sm:$0xf]
      %v443 = vld [vmem:[%s1 + $0xec] sm:$0xf]
      %v444 = vld [vmem:[%s1 + $0xf0] sm:$0xf]
      %v445 = vld [vmem:[%s1 + $0xf4] sm:$0xf]
      %v446 = vld [vmem:[%s1 + $0xf8] sm:$0xf]
      %v447 = vld [vmem:[%s1 + $0xfc] sm:$0xf]
      %v448 = vld [vmem:[%s1 + $0x100] sm:$0xf]
      %v449 = vld [vmem:[%s1 + $0x104] sm:$0xf]
      %v450 = vld [vmem:[%s1 + $0x108] sm:$0xf]
      %v451 = vld [vmem:[%s1 + $0x10c] sm:$0xf]
      %v452 = vld [vmem:[%s1 + $0x110] sm:$0xf]
      %v453 = vld [vmem:[%s1 + $0x114] sm:$0xf]
      %v454 = vld [vmem:[%s1 + $0x118] sm:$0xf]
      %v455 = vld [vmem:[%s1 + $0x11c] sm:$0xf]
      %v456 = vld [vmem:[%s2] sm:$0x1]
      %v458 = vlaneseq
      %v459 = vshrl.u32 %v458, 7
      %v460 = vsub.s32 0, %v459
      %v461 = vrot.slane %v456, %v460
      %v535 = vunpack.c.l.b16 %v384
      %v536 = vunpack.c.l.b16 %v385
      %v537 = vunpack.c.l.b16 %v386
      %v538 = vunpack.c.l.b16 %v387
      %v539 = vunpack.c.l.b16 %v388
      %v540 = vunpack.c.l.b16 %v389
      %v541 = vunpack.c.l.b16 %v390
      %v542 = vunpack.c.l.b16 %v391
      %v543 = vunpack.c.l.b16 %v392
      %v544 = vunpack.c.l.b16 %v393
      %v545 = vunpack.c.l.b16 %v394
      %v546 = vunpack.c.l.b16 %v395
      %v547 = vunpack.c.l.b16 %v396
      %v548 = vunpack.c.l.b16 %v397
      %v549 = vunpack.c.l.b16 %v398
      %v550 = vunpack.c.l.b16 %v399
      %v551 = vunpack.c.l.b16 %v400
      %v552 = vunpack.c.l.b16 %v401
      %v553 = vunpack.c.l.b16 %v402
      %v554 = vunpack.c.l.b16 %v403
      %v555 = vunpack.c.l.b16 %v404
      %v556 = vunpack.c.l.b16 %v405
      %v557 = vunpack.c.l.b16 %v406
      %v558 = vunpack.c.l.b16 %v407
      %v559 = vunpack.c.l.b16 %v408
      %v560 = vunpack.c.l.b16 %v409
      %v561 = vunpack.c.l.b16 %v410
      %v562 = vunpack.c.l.b16 %v411
      %v563 = vunpack.c.l.b16 %v412
      %v564 = vunpack.c.l.b16 %v413
      %v565 = vunpack.c.l.b16 %v414
      %v566 = vunpack.c.l.b16 %v415
      %v567 = vunpack.c.l.b16 %v416
      %v568 = vunpack.c.l.b16 %v417
      %v569 = vunpack.c.l.b16 %v418
      %v570 = vunpack.c.l.b16 %v419
      %v571 = vunpack.c.l.b16 %v420
      %v572 = vunpack.c.l.b16 %v421
      %v573 = vunpack.c.l.b16 %v422
      %v574 = vunpack.c.l.b16 %v423
      %v575 = vunpack.c.l.b16 %v424
      %v576 = vunpack.c.l.b16 %v425
      %v577 = vunpack.c.l.b16 %v426
      %v578 = vunpack.c.l.b16 %v427
      %v579 = vunpack.c.l.b16 %v428
      %v580 = vunpack.c.l.b16 %v429
      %v581 = vunpack.c.l.b16 %v430
      %v582 = vunpack.c.l.b16 %v431
      %v583 = vunpack.c.l.b16 %v432
      %v584 = vunpack.c.l.b16 %v433
      %v585 = vunpack.c.l.b16 %v434
      %v586 = vunpack.c.l.b16 %v435
      %v587 = vunpack.c.l.b16 %v436
      %v588 = vunpack.c.l.b16 %v437
      %v589 = vunpack.c.l.b16 %v438
      %v590 = vunpack.c.l.b16 %v439
      %v591 = vunpack.c.l.b16 %v440
      %v592 = vunpack.c.l.b16 %v441
      %v593 = vunpack.c.l.b16 %v442
      %v594 = vunpack.c.l.b16 %v443
      %v595 = vunpack.c.l.b16 %v444
      %v596 = vunpack.c.l.b16 %v445
      %v597 = vunpack.c.l.b16 %v446
      %v598 = vunpack.c.l.b16 %v447
      %v599 = vunpack.c.l.b16 %v448
      %v600 = vunpack.c.l.b16 %v449
      %v601 = vunpack.c.l.b16 %v450
      %v602 = vunpack.c.l.b16 %v451
      %v603 = vunpack.c.l.b16 %v452
      %v604 = vunpack.c.l.b16 %v453
      %v605 = vunpack.c.l.b16 %v454
      %v606 = vunpack.c.l.b16 %v455
      %v607 = vpack.c.b16 %v536, %v535
      %v608 = vpack.c.b16 %v538, %v537
      %v609 = vpack.c.b16 %v540, %v539
      %v610 = vpack.c.b16 %v542, %v541
      %v611 = vpack.c.b16 %v544, %v543
      %v612 = vpack.c.b16 %v546, %v545
      %v613 = vpack.c.b16 %v548, %v547
      %v614 = vpack.c.b16 %v550, %v549
      %v615 = vpack.c.b16 %v552, %v551
      %v616 = vpack.c.b16 %v554, %v553
      %v617 = vpack.c.b16 %v556, %v555
      %v618 = vpack.c.b16 %v558, %v557
      %v619 = vpack.c.b16 %v560, %v559
      %v620 = vpack.c.b16 %v562, %v561
      %v621 = vpack.c.b16 %v564, %v563
      %v622 = vpack.c.b16 %v566, %v565
      %v623 = vpack.c.b16 %v568, %v567
      %v624 = vpack.c.b16 %v570, %v569
      %v625 = vpack.c.b16 %v572, %v571
      %v626 = vpack.c.b16 %v574, %v573
      %v627 = vpack.c.b16 %v576, %v575
      %v628 = vpack.c.b16 %v578, %v577
      %v629 = vpack.c.b16 %v580, %v579
      %v630 = vpack.c.b16 %v582, %v581
      %v631 = vpack.c.b16 %v584, %v583
      %v632 = vpack.c.b16 %v586, %v585
      %v633 = vpack.c.b16 %v588, %v587
      %v634 = vpack.c.b16 %v590, %v589
      %v635 = vpack.c.b16 %v592, %v591
      %v636 = vpack.c.b16 %v594, %v593
      %v637 = vpack.c.b16 %v596, %v595
      %v638 = vpack.c.b16 %v598, %v597
      %v639 = vpack.c.b16 %v600, %v599
      %v640 = vpack.c.b16 %v602, %v601
      %v641 = vpack.c.b16 %v604, %v603
      %v642 = vpack.c.b16 %v606, %v605
      %v680 = vsel %vm367, %v366, 0
      %682 = vmatprep.subr.bf16.mxu0 0
      %683 = vmatpush1.bf16.msra.mxu0 %v614
      %684 = vmatprep.subr.bf16.mxu0 0
      %685 = vmatpush1.bf16.msra.mxu0 %v613
      %686 = vmatprep.subr.bf16.mxu0 0
      %687 = vmatpush1.bf16.msra.mxu0 %v612
      %688 = vmatprep.subr.bf16.mxu0 0
      %689 = vmatpush1.bf16.msra.mxu0 %v611
      %690 = vmatprep.subr.bf16.mxu0 0
      %691 = vmatpush1.bf16.msra.mxu0 %v610
      %692 = vmatprep.subr.bf16.mxu0 0
      %693 = vmatpush1.bf16.msra.mxu0 %v609
      %694 = vmatprep.subr.bf16.mxu0 0
      %695 = vmatpush1.bf16.msra.mxu0 %v608
      %696 = vmatprep.subr.bf16.mxu0 0
      %697 = vmatpush1.bf16.msra.mxu0 %v607
      %698 = vmatprep.subr.bf16.mxu0 0
      %699 = vmatpush2.bf16.msra.mxu0 %v622
      %700 = vmatprep.subr.bf16.mxu0 0
      %701 = vmatpush2.bf16.msra.mxu0 %v621
      %702 = vmatprep.subr.bf16.mxu0 0
      %703 = vmatpush2.bf16.msra.mxu0 %v620
      %704 = vmatprep.subr.bf16.mxu0 0
      %705 = vmatpush2.bf16.msra.mxu0 %v619
      %706 = vmatprep.subr.bf16.mxu0 0
      %707 = vmatpush2.bf16.msra.mxu0 %v618
      %708 = vmatprep.subr.bf16.mxu0 0
      %709 = vmatpush2.bf16.msra.mxu0 %v617
      %710 = vmatprep.subr.bf16.mxu0 0
      %711 = vmatpush2.bf16.msra.mxu0 %v616
      %712 = vmatprep.subr.bf16.mxu0 0
      %713 = vmatpush2.bf16.msra.mxu0 %v615
      %714 = vmatprep.mubr.bf16.mxu0 %v374
      %715 = vmatmul.mubr.bf16.gmra.mxu0 %v370
      %v716 = vpop.f32.mrf.mxu0
      %v717 = vadd.f32 %v461, %v716
      %v718 = vpop.f32.mrf.mxu0
      %v719 = vpop.f32.mrf.mxu0
      %v720 = vadd.f32 %v461, %v719
      %v721 = vpop.f32.mrf.mxu0
      %722 = vdwg.mxu0
      %723 = vmatprep.subr.bf16.mxu0 0
      %724 = vmatpush1.bf16.msra.mxu0 %v630
      %725 = vmatprep.subr.bf16.mxu0 0
      %726 = vmatpush1.bf16.msra.mxu0 %v629
      %727 = vmatprep.subr.bf16.mxu0 0
      %728 = vmatpush1.bf16.msra.mxu0 %v628
      %729 = vmatprep.subr.bf16.mxu0 0
      %730 = vmatpush1.bf16.msra.mxu0 %v627
      %731 = vmatprep.subr.bf16.mxu0 0
      %732 = vmatpush1.bf16.msra.mxu0 %v626
      %733 = vmatprep.subr.bf16.mxu0 0
      %734 = vmatpush1.bf16.msra.mxu0 %v625
      %735 = vmatprep.subr.bf16.mxu0 0
      %736 = vmatpush1.bf16.msra.mxu0 %v624
      %737 = vmatprep.subr.bf16.mxu0 0
      %738 = vmatpush1.bf16.msra.mxu0 %v623
      %739 = vmatprep.subr.bf16.mxu0 0
      %740 = vmatpush2.bf16.msra.mxu0 %v638
      %741 = vmatprep.subr.bf16.mxu0 0
      %742 = vmatpush2.bf16.msra.mxu0 %v637
      %743 = vmatprep.subr.bf16.mxu0 0
      %744 = vmatpush2.bf16.msra.mxu0 %v636
      %745 = vmatprep.subr.bf16.mxu0 0
      %746 = vmatpush2.bf16.msra.mxu0 %v635
      %747 = vmatprep.subr.bf16.mxu0 0
      %748 = vmatpush2.bf16.msra.mxu0 %v634
      %749 = vmatprep.subr.bf16.mxu0 0
      %750 = vmatpush2.bf16.msra.mxu0 %v633
      %751 = vmatprep.subr.bf16.mxu0 0
      %752 = vmatpush2.bf16.msra.mxu0 %v632
      %753 = vmatprep.subr.bf16.mxu0 0
      %754 = vmatpush2.bf16.msra.mxu0 %v631
      %755 = vmatprep.mubr.bf16.mxu0 %v382
      %756 = vmatmul.mubr.bf16.gmra.mxu0 %v378
      %v757 = vpop.f32.mrf.mxu0
      %v758 = vadd.f32 %v717, %v757
      %v759 = vpop.f32.mrf.mxu0
      %v760 = vpop.f32.mrf.mxu0
      %v761 = vadd.f32 %v720, %v760
      %v762 = vpop.f32.mrf.mxu0
      %763 = vdwg.mxu0
      %764 = vmatprep.subr.bf16.mxu0 0
      %765 = vmatpush1.bf16.msra.mxu0 0
      %766 = vmatprep.subr.bf16.mxu0 0
      %767 = vmatpush1.bf16.msra.mxu0 0
      %768 = vmatprep.subr.bf16.mxu0 0
      %769 = vmatpush1.bf16.msra.mxu0 0
      %770 = vmatprep.subr.bf16.mxu0 0
      %771 = vmatpush1.bf16.msra.mxu0 0
      %772 = vmatprep.subr.bf16.mxu0 0
      %773 = vmatpush1.bf16.msra.mxu0 %v642
      %774 = vmatprep.subr.bf16.mxu0 0
      %775 = vmatpush1.bf16.msra.mxu0 %v641
      %776 = vmatprep.subr.bf16.mxu0 0
      %777 = vmatpush1.bf16.msra.mxu0 %v640
      %778 = vmatprep.subr.bf16.mxu0 0
      %779 = vmatpush1.bf16.msra.mxu0 %v639
      %780 = vmatprep.subr.bf16.mxu0 0
      %781 = vmatpush2.bf16.msra.mxu0 0
      %782 = vmatprep.subr.bf16.mxu0 0
      %783 = vmatpush2.bf16.msra.mxu0 0
      %784 = vmatprep.subr.bf16.mxu0 0
      %785 = vmatpush2.bf16.msra.mxu0 0
      %786 = vmatprep.subr.bf16.mxu0 0
      %787 = vmatpush2.bf16.msra.mxu0 0
      %788 = vmatprep.subr.bf16.mxu0 0
      %789 = vmatpush2.bf16.msra.mxu0 0
      %790 = vmatprep.subr.bf16.mxu0 0
      %791 = vmatpush2.bf16.msra.mxu0 0
      %792 = vmatprep.subr.bf16.mxu0 0
      %793 = vmatpush2.bf16.msra.mxu0 0
      %794 = vmatprep.subr.bf16.mxu0 0
      %795 = vmatpush2.bf16.msra.mxu0 0
      %796 = vmatprep.mubr.bf16.mxu0 0
      %797 = vmatmul.mubr.bf16.gmra.mxu0 %v680
      %v798 = vpop.f32.mrf.mxu0
      %v799 = vadd.f32 %v758, %v798
      %v800 = vpop.f32.mrf.mxu0
      %v801 = vpop.f32.mrf.mxu0
      %v802 = vadd.f32 %v761, %v801
      %v803 = vpop.f32.mrf.mxu0
      %804 = vdwg.mxu0
      %v805 = vmax.f32 %v799, 0.0
      %v806 = vmax.f32 %v802, 0.0
      %v807 = vpack.c.bf16 %v806, %v805
      %v809 = vunpack.c.l.b16 %v807
      %v810 = vunpack.c.h.b16 %v807
      %v811 = vpack.c.b16 %v809, %v809
      %v812 = vpack.c.b16 %v810, %v810
      %vm815 = vcmask 519168
      %816 = vst.msk [vmem:[%s208] sm:$0xf] %vm815, %v811
      %817 = vst.msk [vmem:[%s208 + $0x4] sm:$0xf] %vm815, %v812
      %s818 = smul.u32 2, %s19
      %p819 = scmp.lt.s32.totalorder %s18, 1
      %s820 = scalar_select %p819, %s18, 1
      %p821 = scmp.lt.s32.totalorder %s818, 1
      %s822 = scalar_select %p821, %s818, 1
      %s823 = smul.addr %s820, 2
      %s824 = sadd.s32 %s822, %s823
      %s825 = smul.addr %s824, 4
      %s826 = scalar_lea.vmem %s3, %s825
      // Predicated region
      $region33: #{colorize_net_forward.85} parent=31 // pred_check
        %p827 = pneg %p116
      $region34: #{colorize_net_forward.85} parent=31 // pred_check_branch
        %829 = sbr.rel (%p827) target = $region36
      $region35: #{colorize_net_forward.85} parent=31 // pred_region
        %s830 = smul.u32 2, %s19
      $region36: #{colorize_net_forward.85} parent=31 // pred_fallthru
        _
    $region32: #{colorize_net_forward.85} parent=5 // pred_fallthru
      _
    %p831 = scmp.le.s32.totalorder 2, %s9
    // Predicated region
    $region37: #{colorize_net_forward.85} parent=5 // pred_check
      %p832 = pneg %p831
    $region38: #{colorize_net_forward.85} parent=5 // pred_check_branch
      %834 = sbr.rel (%p832) target = $region40
    $region39: #{colorize_net_forward.85} parent=5 // pred_region
      %s835 = ssub.s32 %s9, 2
      // Predicated region
      $region41: #{colorize_net_forward.85} parent=39 // pred_check
        %p836 = pneg %p122
      $region42: #{colorize_net_forward.85} parent=39 // pred_check_branch
        %838 = sbr.rel (%p836) target = $region44
      $region43: #{colorize_net_forward.85} parent=39 // pred_region
        %s839 = smul.u32 2, %s21
        %p840 = scmp.lt.s32.totalorder %s20, 1
        %s841 = scalar_select %p840, %s20, 1
        %p842 = scmp.lt.s32.totalorder %s839, 1
        %s843 = scalar_select %p842, %s839, 1
        %s844 = smul.addr %s841, 2
        %s845 = sadd.s32 %s843, %s844
        %s846 = smul.addr %s845, 4
        %s847 = scalar_lea.vmem %s3, %s846
      $region44: #{colorize_net_forward.85} parent=39 // pred_fallthru
        _
    $region40: #{colorize_net_forward.85} parent=5 // pred_fallthru
      _
  $region6: #{colorize_net_forward.85} parent=0 // loop_footer
    %s13 = sadd.s32 1, %s9
  $region7: #{colorize_net_forward.85} parent=0 // loop_footer_branch
    %8 = sbr.rel target = $region3
  $region8: #{colorize_net_forward.85} parent=0 // loop_exit
    _

// kernel: colorize_net_forward.81
$region0: #{colorize_net_forward.81}
  #allocation0 [shape = 'u32[]', space=smem, size = 0x4, offset = 0x4, fixed_abs, tag = 'smem constant byte address 0x4 - core index']
  #allocation1 [shape = 'u32[144,128]{1,0:T(1,128)}', space=vmem, size = 0x12000, scoped, tag = 'internal scratch']
  %s0 = inlined_call_operand.vmem [shape: bf16[2,256,3], index: 0, kind: input, shape index: {}]
  %s1 = inlined_call_operand.vmem [shape: bf16[27,16], index: 1, kind: input, shape index: {}]
  %s2 = inlined_call_operand.vmem [shape: f32[1,16], index: 2, kind: input, shape index: {}]
  %s3 = inlined_call_operand.vmem [shape: bf16[2,128,16], index: 3, kind: output, shape index: {}]
  %s4 = sld [smem:[#allocation0]]
  $region45: #{colorize_net_forward.81} parent=0
    _
  %s6 = ssub.s32 1, %s4
  %s7 = scalar_select 0, %s6, %s4
  loop: start=0, step=1, limit=4
  $region2: #{colorize_net_forward.81} parent=0 // loop_pre_header
    _
  $region3: #{colorize_net_forward.81} parent=0 // loop_header
    %s9 = sphi 0, %s13
    %p10 = scmp.ge.s32.totalorder %s9, 4
    %s16 = sphi 0, %s28
    %s17 = sphi 0, %s24
    %s18 = sphi 0, %s16
    %s19 = sphi 0, %s17
    %s20 = sphi 0, %s18
    %s21 = sphi 0, %s19
    %s33 = sphi 0, %s35
    %s36 = sphi 0, %s33
    %s37 = sphi 0, %s36
    %s53 = sphi 0, %s37
    %s57 = sphi 0, %s57
    %s59 = sphi 0, %s57
    %s60 = sphi 0, %s59
    %s74 = sphi 0, %s60
    %s78 = sphi 0, %s78
    %s80 = sphi 0, %s78
    %s81 = sphi 0, %s80
    %s95 = sphi 0, %s81
    %s103 = sphi 0, %s105
    %s106 = sphi 0, %s103
    %s107 = sphi 0, %s106
    %s123 = sphi 0, %s107
  $region4: #{colorize_net_forward.81} parent=0 // loop_header_branch
    %12 = sbr.rel (%p10) target = $region8
  $region5: #{colorize_net_forward.81} parent=0 // loop_body
    %s14 = ssub.s32 %s9, 1
    %s15 = ssub.s32 %s9, 2
    %s22 = sadd.s32 1, %s17
    %p23 = scmp.ge.s32.totalorder %s22, 1
    %s24 = scalar_select %p23, 0, %s22
    %s25 = sadd.s32 1, %s16
    %s26 = scalar_select %p23, %s25, %s16
    %p27 = scmp.ge.s32.totalorder %s26, 2
    %s28 = scalar_select %p27, 0, %s26
    %s29 = ssub.s32 %s16, %s28
    %s30 = ssub.s32 %s17, %s24
    %s31 = sor.u32 %s29, %s30
    %p32 = scmp.eq.s32.totalorder %s31, 0
    %s34 = sadd.s32 %s33, 1
    %s35 = scalar_select %p32, %s33, %s34
    %p38 = pneg %p32
    %p39 = scmp.eq.s32.totalorder %s9, 1
    %p40 = por %p38, %p39
    %p41 = scmp.ne.s32.totalorder %s33, %s36
    %p42 = scmp.eq.s32.totalorder %s9, 0
    %p43 = por %p41, %p42
    %p44 = scmp.ne.s32.totalorder %s33, %s36
    %p45 = scmp.eq.s32.totalorder %s14, 1
    %p46 = por %p44, %p45
    %p47 = scmp.ne.s32.totalorder %s36, %s37
    %p48 = scmp.eq.s32.totalorder %s14, 0
    %p49 = por %p47, %p48
    %p50 = scmp.ne.s32.totalorder %s36, %s37
    %p51 = scmp.eq.s32.totalorder %s15, 1
    %p52 = por %p50, %p51
    %p54 = scmp.ne.s32.totalorder %s37, %s53
    %p55 = scmp.eq.s32.totalorder %s15, 0
    %p56 = por %p54, %p55
    %s58 = sadd.s32 %s57, 1
    %p61 = scmp.eq.s32.totalorder %s9, 1
    %p62 = scmp.ne.s32.totalorder %s57, %s59
    %p63 = scmp.eq.s32.totalorder %s9, 0
    %p64 = por %p62, %p63
    %p65 = scmp.ne.s32.totalorder %s57, %s59
    %p66 = scmp.eq.s32.totalorder %s14, 1
    %p67 = por %p65, %p66
    %p68 = scmp.ne.s32.totalorder %s59, %s60
    %p69 = scmp.eq.s32.totalorder %s14, 0
    %p70 = por %p68, %p69
    %p71 = scmp.ne.s32.totalorder %s59, %s60
    %p72 = scmp.eq.s32.totalorder %s15, 1
    %p73 = por %p71, %p72
    %p75 = scmp.ne.s32.totalorder %s60, %s74
    %p76 = scmp.eq.s32.totalorder %s15, 0
    %p77 = por %p75, %p76
    %s79 = sadd.s32 %s78, 1
    %p82 = scmp.eq.s32.totalorder %s9, 1
    %p83 = scmp.ne.s32.totalorder %s78, %s80
    %p84 = scmp.eq.s32.totalorder %s9, 0
    %p85 = por %p83, %p84
    %p86 = scmp.ne.s32.totalorder %s78, %s80
    %p87 = scmp.eq.s32.totalorder %s14, 1
    %p88 = por %p86, %p87
    %p89 = scmp.ne.s32.totalorder %s80, %s81
    %p90 = scmp.eq.s32.totalorder %s14, 0
    %p91 = por %p89, %p90
    %p92 = scmp.ne.s32.totalorder %s80, %s81
    %p93 = scmp.eq.s32.totalorder %s15, 1
    %p94 = por %p92, %p93
    %p96 = scmp.ne.s32.totalorder %s81, %s95
    %p97 = scmp.eq.s32.totalorder %s15, 0
    %p98 = por %p96, %p97
    %s99 = ssub.s32 %s16, %s28
    %s100 = ssub.s32 %s17, %s24
    %s101 = sor.u32 %s99, %s100
    %p102 = scmp.eq.s32.totalorder %s101, 0
    %s104 = sadd.s32 %s103, 1
    %s105 = scalar_select %p102, %s103, %s104
    %p108 = pneg %p102
    %p109 = scmp.eq.s32.totalorder %s9, 1
    %p110 = por %p108, %p109
    %p111 = scmp.ne.s32.totalorder %s103, %s106
    %p112 = scmp.eq.s32.totalorder %s9, 0
    %p113 = por %p111, %p112
    %p114 = scmp.ne.s32.totalorder %s103, %s106
    %p115 = scmp.eq.s32.totalorder %s14, 1
    %p116 = por %p114, %p115
    %p117 = scmp.ne.s32.totalorder %s106, %s107
    %p118 = scmp.eq.s32.totalorder %s14, 0
    %p119 = por %p117, %p118
    %p120 = scmp.ne.s32.totalorder %s106, %s107
    %p121 = scmp.eq.s32.totalorder %s15, 1
    %p122 = por %p120, %p121
    %p124 = scmp.ne.s32.totalorder %s107, %s123
    %p125 = scmp.eq.s32.totalorder %s15, 0
    %p126 = por %p124, %p125
    %p127 = scmp.le.s32.totalorder 1, %s9
    %p128 = scmp.lt.s32.totalorder %s9, 3
    %p129 = pnand %p127, %p128
    %p130 = pneg %p129
    // Predicated region
    $region9: #{colorize_net_forward.81} parent=5 // pred_check
      _
    $region10: #{colorize_net_forward.81} parent=5 // pred_check_branch
      %132 = sbr.rel (%p129) target = $region12
    $region11: #{colorize_net_forward.81} parent=5 // pred_region
      %s133 = ssub.s32 %s9, 1
      // Predicated region
      $region13: #{colorize_net_forward.81} parent=11 // pred_check
        %p134 = pneg %p70
      $region14: #{colorize_net_forward.81} parent=11 // pred_check_branch
        %136 = sbr.rel (%p134) target = $region16
      $region15: #{colorize_net_forward.81} parent=11 // pred_region
        _
      $region16: #{colorize_net_forward.81} parent=11 // pred_fallthru
        _
      // Predicated region
      $region17: #{colorize_net_forward.81} parent=11 // pred_check
        %p137 = pneg %p91
      $region18: #{colorize_net_forward.81} parent=11 // pred_check_branch
        %139 = sbr.rel (%p137) target = $region20
      $region19: #{colorize_net_forward.81} parent=11 // pred_region
        _
      $region20: #{colorize_net_forward.81} parent=11 // pred_fallthru
        _
    $region12: #{colorize_net_forward.81} parent=5 // pred_fallthru
      _
    %p140 = scmp.lt.s32.totalorder %s9, 2
    // Predicated region
    $region21: #{colorize_net_forward.81} parent=5 // pred_check
      %p141 = pneg %p140
    $region22: #{colorize_net_forward.81} parent=5 // pred_check_branch
      %143 = sbr.rel (%p141) target = $region24
    $region23: #{colorize_net_forward.81} parent=5 // pred_region
      // Predicated region
      $region25: #{colorize_net_forward.81} parent=23 // pred_check
        %p144 = pneg %p43
      $region26: #{colorize_net_forward.81} parent=23 // pred_check_branch
        %146 = sbr.rel (%p144) target = $region28
      $region27: #{colorize_net_forward.81} parent=23 // pred_region
        %s147 = smul.u32 32, %s17
        %p148 = scmp.lt.s32.totalorder %s16, 1
        %s149 = scalar_select %p148, %s16, 1
        %p150 = scmp.lt.s32.totalorder %s147, 31
        %s151 = scalar_select %p150, %s147, 31
        %s152 = smul.addr %s149, 32
        %s153 = sadd.s32 %s151, %s152
        %s154 = smul.addr %s153, 4
        %s155 = scalar_lea.vmem %s0, %s154
        %s156 = smul.u32 32, %s17
      $region28: #{colorize_net_forward.81} parent=23 // pred_fallthru
        _
    $region24: #{colorize_net_forward.81} parent=5 // pred_fallthru
      _
    %p157 = scmp.le.s32.totalorder 1, %s9
    %p158 = scmp.lt.s32.totalorder %s9, 3
    %p159 = pnand %p157, %p158
    %p160 = pneg %p159
    // Predicated region
    $region29: #{colorize_net_forward.81} parent=5 // pred_check
      _
    $region30: #{colorize_net_forward.81} parent=5 // pred_check_branch
      %162 = sbr.rel (%p159) target = $region32
    $region31: #{colorize_net_forward.81} parent=5 // pred_region
      %s163 = ssub.s32 %s9, 1
      %s164 = smul.u32 32, %s19
      %p165 = scmp.lt.s32.totalorder %s18, 1
      %s166 = scalar_select %p165, %s18, 1
      %p167 = scmp.lt.s32.totalorder %s164, 31
      %s168 = scalar_select %p167, %s164, 31
      %s169 = smul.addr %s166, 32
      %s170 = sadd.s32 %s168, %s169
      %s171 = smul.addr %s170, 4
      %s172 = scalar_lea.vmem %s0, %s171
      %p173 = pneg %p49
      %p174 = pneg %p46
      %p175 = pneg %p70
      %p176 = pneg %p67
      %p177 = pneg %p91
      %p178 = pneg %p88
      %p179 = pneg %p119
      %p180 = pneg %p116
      %s181 = smul.u32 16, %s19
      %p182 = scmp.lt.s32.totalorder %s18, 1
      %s183 = scalar_select %p182, %s18, 1
      %p184 = scmp.lt.s32.totalorder %s181, 15
      %s185 = scalar_select %p184, %s181, 15
      %s186 = smul.addr %s183, 16
      %s187 = sadd.s32 %s185, %s186
      %s188 = smul.addr %s187, 4
      %s189 = scalar_lea.vmem %s3, %s188
      %s190 = smul.u32 32, %s19
      %p191 = scmp.lt.s32.totalorder %s18, 1
      %s192 = scalar_select %p191, %s18, 1
      %p193 = scmp.lt.s32.totalorder %s190, 31
      %s194 = scalar_select %p193, %s190, 31
      %s195 = smul.addr %s192, 32
      %s196 = sadd.s32 %s194, %s195
      %s197 = smul.addr %s196, 4
      %s198 = scalar_lea.vmem %s0, %s197
      %s199 = smul.u32 32, %s19
      %s200 = smul.u32 16, %s19
      %p201 = scmp.lt.s32.totalorder %s18, 1
      %s202 = scalar_select %p201, %s18, 1
      %p203 = scmp.lt.s32.totalorder %s200, 15
      %s204 = scalar_select %p203, %s200, 15
      %s205 = smul.addr %s202, 16
      %s206 = sadd.s32 %s204, %s205
      %s207 = smul.addr %s206, 4
      %s208 = scalar_lea.vmem %s3, %s207
      %s209 = smul.u32 16, %s19
      %v211 = vld [vmem:[%s198] sm:$0xf]
      %v212 = vld [vmem:[%s198 + $0x4] sm:$0xf]
      %v213 = vld [vmem:[%s198 + $0x8] sm:$0xf]
      %v214 = vld [vmem:[%s198 + $0xc] sm:$0xf]
      %v215 = vld [vmem:[%s198 + $0x10] sm:$0xf]
      %v216 = vld [vmem:[%s198 + $0x14] sm:$0xf]
      %v217 = vld [vmem:[%s198 + $0x18] sm:$0xf]
      %v218 = vld [vmem:[%s198 + $0x1c] sm:$0xf]
      %v219 = vld [vmem:[%s198 + $0x20] sm:$0xf]
      %v220 = vld [vmem:[%s198 + $0x24] sm:$0xf]
      %v221 = vld [vmem:[%s198 + $0x28] sm:$0xf]
      %v222 = vld [vmem:[%s198 + $0x2c] sm:$0xf]
      %v223 = vld [vmem:[%s198 + $0x30] sm:$0xf]
      %v224 = vld [vmem:[%s198 + $0x34] sm:$0xf]
      %v225 = vld [vmem:[%s198 + $0x38] sm:$0xf]
      %v226 = vld [vmem:[%s198 + $0x3c] sm:$0xf]
      %v227 = vld [vmem:[%s198 + $0x40] sm:$0xf]
      %v228 = vld [vmem:[%s198 + $0x44] sm:$0xf]
      %v229 = vld [vmem:[%s198 + $0x48] sm:$0xf]
      %v230 = vld [vmem:[%s198 + $0x4c] sm:$0xf]
      %v231 = vld [vmem:[%s198 + $0x50] sm:$0xf]
      %v232 = vld [vmem:[%s198 + $0x54] sm:$0xf]
      %v233 = vld [vmem:[%s198 + $0x58] sm:$0xf]
      %v234 = vld [vmem:[%s198 + $0x5c] sm:$0xf]
      %v235 = vld [vmem:[%s198 + $0x60] sm:$0xf]
      %v236 = vld [vmem:[%s198 + $0x64] sm:$0xf]
      %v237 = vld [vmem:[%s198 + $0x68] sm:$0xf]
      %v238 = vld [vmem:[%s198 + $0x6c] sm:$0xf]
      %v239 = vld [vmem:[%s198 + $0x70] sm:$0xf]
      %v240 = vld [vmem:[%s198 + $0x74] sm:$0xf]
      %v241 = vld [vmem:[%s198 + $0x78] sm:$0xf]
      %v242 = vld [vmem:[%s198 + $0x7c] sm:$0xf]
      %v275 = vunpack.c.l.b16 %v211
      %v276 = vunpack.c.l.b16 %v212
      %v277 = vunpack.c.l.b16 %v213
      %v278 = vunpack.c.l.b16 %v214
      %v279 = vunpack.c.l.b16 %v215
      %v280 = vunpack.c.l.b16 %v216
      %v281 = vunpack.c.l.b16 %v217
      %v282 = vunpack.c.l.b16 %v218
      %v283 = vunpack.c.l.b16 %v219
      %v284 = vunpack.c.l.b16 %v220
      %v285 = vunpack.c.l.b16 %v221
      %v286 = vunpack.c.l.b16 %v222
      %v287 = vunpack.c.l.b16 %v223
      %v288 = vunpack.c.l.b16 %v224
      %v289 = vunpack.c.l.b16 %v225
      %v290 = vunpack.c.l.b16 %v226
      %v291 = vunpack.c.l.b16 %v227
      %v292 = vunpack.c.l.b16 %v228
      %v293 = vunpack.c.l.b16 %v229
      %v294 = vunpack.c.l.b16 %v230
      %v295 = vunpack.c.l.b16 %v231
      %v296 = vunpack.c.l.b16 %v232
      %v297 = vunpack.c.l.b16 %v233
      %v298 = vunpack.c.l.b16 %v234
      %v299 = vunpack.c.l.b16 %v235
      %v300 = vunpack.c.l.b16 %v236
      %v301 = vunpack.c.l.b16 %v237
      %v302 = vunpack.c.l.b16 %v238
      %v303 = vunpack.c.l.b16 %v239
      %v304 = vunpack.c.l.b16 %v240
      %v305 = vunpack.c.l.b16 %v241
      %v306 = vunpack.c.l.b16 %v242
      %v307 = vpack.c.b16 %v276, %v275
      %v308 = vpack.c.b16 %v278, %v277
      %v309 = vpack.c.b16 %v280, %v279
      %v310 = vpack.c.b16 %v282, %v281
      %v311 = vpack.c.b16 %v284, %v283
      %v312 = vpack.c.b16 %v286, %v285
      %v313 = vpack.c.b16 %v288, %v287
      %v314 = vpack.c.b16 %v290, %v289
      %v315 = vpack.c.b16 %v292, %v291
      %v316 = vpack.c.b16 %v294, %v293
      %v317 = vpack.c.b16 %v296, %v295
      %v318 = vpack.c.b16 %v298, %v297
      %v319 = vpack.c.b16 %v300, %v299
      %v320 = vpack.c.b16 %v302, %v301
      %v321 = vpack.c.b16 %v304, %v303
      %v322 = vpack.c.b16 %v306, %v305
      %vm323 = vsmask.f32 256
      %v325 = vshrl.u32 %v307, 16
      %v327 = vrot.slane %v325, 7
      %v328 = vshll.u32 %v307, 16
      %v330 = vor.u32 %v327, %v328
      %v332 = vshrl.u32 %v308, 16
      %v334 = vrot.slane %v332, 7
      %v335 = vshll.u32 %v308, 16
      %v337 = vor.u32 %v334, %v335
      %v338 = vsel %vm323, %v327, %v337
      %v340 = vshrl.u32 %v309, 16
      %v342 = vrot.slane %v340, 7
      %v343 = vshll.u32 %v309, 16
      %v345 = vor.u32 %v342, %v343
      %v346 = vsel %vm323, %v334, %v345
      %v348 = vshrl.u32 %v310, 16
      %v350 = vrot.slane %v348, 7
      %v351 = vshll.u32 %v310, 16
      %v353 = vor.u32 %v350, %v351
      %v354 = vsel %vm323, %v342, %v353
      %v356 = vshrl.u32 %v311, 16
      %v358 = vrot.slane %v356, 7
      %v359 = vshll.u32 %v311, 16
      %v361 = vor.u32 %v358, %v359
      %v362 = vsel %vm323, %v350, %v361
      %v364 = vshrl.u32 %v312, 16
      %v366 = vrot.slane %v364, 7
      %v367 = vshll.u32 %v312, 16
      %v369 = vor.u32 %v366, %v367
      %v370 = vsel %vm323, %v358, %v369
      %v372 = vshrl.u32 %v313, 16
      %v374 = vrot.slane %v372, 7
      %v375 = vshll.u32 %v313, 16
      %v377 = vor.u32 %v374, %v375
      %v378 = vsel %vm323, %v366, %v377
      %v380 = vshrl.u32 %v314, 16
      %v382 = vrot.slane %v380, 7
      %v383 = vshll.u32 %v314, 16
      %v385 = vor.u32 %v382, %v383
      %v386 = vsel %vm323, %v374, %v385
      %v388 = vshrl.u32 %v315, 16
      %v390 = vrot.slane %v388, 7
      %v391 = vshll.u32 %v315, 16
      %v393 = vor.u32 %v390, %v391
      %v394 = vsel %vm323, %v382, %v393
      %v396 = vshrl.u32 %v316, 16
      %v398 = vrot.slane %v396, 7
      %v399 = vshll.u32 %v316, 16
      %v401 = vor.u32 %v398, %v399
      %v402 = vsel %vm323, %v390, %v401
      %v404 = vshrl.u32 %v317, 16
      %v406 = vrot.slane %v404, 7
      %v407 = vshll.u32 %v317, 16
      %v409 = vor.u32 %v406, %v407
      %v410 = vsel %vm323, %v398, %v409
      %v412 = vshrl.u32 %v318, 16
      %v414 = vrot.slane %v412, 7
      %v415 = vshll.u32 %v318, 16
      %v417 = vor.u32 %v414, %v415
      %v418 = vsel %vm323, %v406, %v417
      %v420 = vshrl.u32 %v319, 16
      %v422 = vrot.slane %v420, 7
      %v423 = vshll.u32 %v319, 16
      %v425 = vor.u32 %v422, %v423
      %v426 = vsel %vm323, %v414, %v425
      %v428 = vshrl.u32 %v320, 16
      %v430 = vrot.slane %v428, 7
      %v431 = vshll.u32 %v320, 16
      %v433 = vor.u32 %v430, %v431
      %v434 = vsel %vm323, %v422, %v433
      %v436 = vshrl.u32 %v321, 16
      %v438 = vrot.slane %v436, 7
      %v439 = vshll.u32 %v321, 16
      %v441 = vor.u32 %v438, %v439
      %v442 = vsel %vm323, %v430, %v441
      %v444 = vshrl.u32 %v322, 16
      %v446 = vrot.slane %v444, 7
      %v447 = vshll.u32 %v322, 16
      %v449 = vor.u32 %v446, %v447
      %v450 = vsel %vm323, %v438, %v449
      %vm468 = vcmask 1040384
      %vm469 = vmand %vm468, %vm323
      %v470 = vsel %vm469, 0, %v330
      %v471 = vsel %vm469, %v446, 0
      %v472 = vlaneseq
      %v473 = vshrl.u32 %v472, 7
      %v474 = vadd.s32 %v473, 8
      %v475 = vadd.s32 %v473, 16
      %v476 = vadd.s32 %v473, 24
      %v477 = vadd.s32 %v473, 32
      %v478 = vadd.s32 %v473, 40
      %v479 = vadd.s32 %v473, 48
      %v480 = vadd.s32 %v473, 56
      %v481 = vadd.s32 %v473, 64
      %v482 = vadd.s32 %v473, 72
      %v483 = vadd.s32 %v473, 80
      %v484 = vadd.s32 %v473, 88
      %v485 = vadd.s32 %v473, 96
      %v486 = vadd.s32 %v473, 104
      %v487 = vadd.s32 %v473, 112
      %v488 = vadd.s32 %v473, 120
      %v489 = vadd.s32 %v473, 128
      %v490 = vadd.s32 %v473, 136
      %v491 = vadd.s32 %v473, 144
      %v492 = vadd.s32 %v473, 152
      %v493 = vadd.s32 %v473, 160
      %v494 = vadd.s32 %v473, 168
      %v495 = vadd.s32 %v473, 176
      %v496 = vadd.s32 %v473, 184
      %v497 = vadd.s32 %v473, 192
      %v498 = vadd.s32 %v473, 200
      %v499 = vadd.s32 %v473, 208
      %v500 = vadd.s32 %v473, 216
      %v501 = vadd.s32 %v473, 224
      %v502 = vadd.s32 %v473, 232
      %v503 = vadd.s32 %v473, 240
      %v504 = vadd.s32 %v473, 248
      %vm505 = vcmp.lt.s32.totalorder %v473, 0
      %v506 = vsub.s32 0, %v473
      %v507 = vsel %vm505, %v506, %v473
      %v508 = vshrl.u32 %v507, 4
      %v509 = vand.u32 %v507, 15
      %v510 = vsub.s32 0, %v509
      %v511 = vsel %vm505, %v510, %v509
      %vm512 = vcmp.lt.s32.totalorder %v474, 0
      %v513 = vsub.s32 0, %v474
      %v514 = vsel %vm512, %v513, %v474
      %v515 = vshrl.u32 %v514, 4
      %v516 = vand.u32 %v514, 15
      %v517 = vsub.s32 0, %v516
      %v518 = vsel %vm512, %v517, %v516
      %vm519 = vcmp.lt.s32.totalorder %v475, 0
      %v520 = vsub.s32 0, %v475
      %v521 = vsel %vm519, %v520, %v475
      %v522 = vshrl.u32 %v521, 4
      %v523 = vand.u32 %v521, 15
      %v524 = vsub.s32 0, %v523
      %v525 = vsel %vm519, %v524, %v523
      %vm526 = vcmp.lt.s32.totalorder %v476, 0
      %v527 = vsub.s32 0, %v476
      %v528 = vsel %vm526, %v527, %v476
      %v529 = vshrl.u32 %v528, 4
      %v530 = vand.u32 %v528, 15
      %v531 = vsub.s32 0, %v530
      %v532 = vsel %vm526, %v531, %v530
      %vm533 = vcmp.lt.s32.totalorder %v477, 0
      %v534 = vsub.s32 0, %v477
      %v535 = vsel %vm533, %v534, %v477
      %v536 = vshrl.u32 %v535, 4
      %v537 = vand.u32 %v535, 15
      %v538 = vsub.s32 0, %v537
      %v539 = vsel %vm533, %v538, %v537
      %vm540 = vcmp.lt.s32.totalorder %v478, 0
      %v541 = vsub.s32 0, %v478
      %v542 = vsel %vm540, %v541, %v478
      %v543 = vshrl.u32 %v542, 4
      %v544 = vand.u32 %v542, 15
      %v545 = vsub.s32 0, %v544
      %v546 = vsel %vm540, %v545, %v544
      %vm547 = vcmp.lt.s32.totalorder %v479, 0
      %v548 = vsub.s32 0, %v479
      %v549 = vsel %vm547, %v548, %v479
      %v550 = vshrl.u32 %v549, 4
      %v551 = vand.u32 %v549, 15
      %v552 = vsub.s32 0, %v551
      %v553 = vsel %vm547, %v552, %v551
      %vm554 = vcmp.lt.s32.totalorder %v480, 0
      %v555 = vsub.s32 0, %v480
      %v556 = vsel %vm554, %v555, %v480
      %v557 = vshrl.u32 %v556, 4
      %v558 = vand.u32 %v556, 15
      %v559 = vsub.s32 0, %v558
      %v560 = vsel %vm554, %v559, %v558
      %vm561 = vcmp.lt.s32.totalorder %v481, 0
      %v562 = vsub.s32 0, %v481
      %v563 = vsel %vm561, %v562, %v481
      %v564 = vshrl.u32 %v563, 4
      %v565 = vand.u32 %v563, 15
      %v566 = vsub.s32 0, %v565
      %v567 = vsel %vm561, %v566, %v565
      %vm568 = vcmp.lt.s32.totalorder %v482, 0
      %v569 = vsub.s32 0, %v482
      %v570 = vsel %vm568, %v569, %v482
      %v571 = vshrl.u32 %v570, 4
      %v572 = vand.u32 %v570, 15
      %v573 = vsub.s32 0, %v572
      %v574 = vsel %vm568, %v573, %v572
      %vm575 = vcmp.lt.s32.totalorder %v483, 0
      %v576 = vsub.s32 0, %v483
      %v577 = vsel %vm575, %v576, %v483
      %v578 = vshrl.u32 %v577, 4
      %v579 = vand.u32 %v577, 15
      %v580 = vsub.s32 0, %v579
      %v581 = vsel %vm575, %v580, %v579
      %vm582 = vcmp.lt.s32.totalorder %v484, 0
      %v583 = vsub.s32 0, %v484
      %v584 = vsel %vm582, %v583, %v484
      %v585 = vshrl.u32 %v584, 4
      %v586 = vand.u32 %v584, 15
      %v587 = vsub.s32 0, %v586
      %v588 = vsel %vm582, %v587, %v586
      %vm589 = vcmp.lt.s32.totalorder %v485, 0
      %v590 = vsub.s32 0, %v485
      %v591 = vsel %vm589, %v590, %v485
      %v592 = vshrl.u32 %v591, 4
      %v593 = vand.u32 %v591, 15
      %v594 = vsub.s32 0, %v593
      %v595 = vsel %vm589, %v594, %v593
      %vm596 = vcmp.lt.s32.totalorder %v486, 0
      %v597 = vsub.s32 0, %v486
      %v598 = vsel %vm596, %v597, %v486
      %v599 = vshrl.u32 %v598, 4
      %v600 = vand.u32 %v598, 15
      %v601 = vsub.s32 0, %v600
      %v602 = vsel %vm596, %v601, %v600
      %vm603 = vcmp.lt.s32.totalorder %v487, 0
      %v604 = vsub.s32 0, %v487
      %v605 = vsel %vm603, %v604, %v487
      %v606 = vshrl.u32 %v605, 4
      %v607 = vand.u32 %v605, 15
      %v608 = vsub.s32 0, %v607
      %v609 = vsel %vm603, %v608, %v607
      %vm610 = vcmp.lt.s32.totalorder %v488, 0
      %v611 = vsub.s32 0, %v488
      %v612 = vsel %vm610, %v611, %v488
      %v613 = vshrl.u32 %v612, 4
      %v614 = vand.u32 %v612, 15
      %v615 = vsub.s32 0, %v614
      %v616 = vsel %vm610, %v615, %v614
      %vm617 = vcmp.lt.s32.totalorder %v489, 0
      %v618 = vsub.s32 0, %v489
      %v619 = vsel %vm617, %v618, %v489
      %v620 = vshrl.u32 %v619, 4
      %v621 = vand.u32 %v619, 15
      %v622 = vsub.s32 0, %v621
      %v623 = vsel %vm617, %v622, %v621
      %vm624 = vcmp.lt.s32.totalorder %v490, 0
      %v625 = vsub.s32 0, %v490
      %v626 = vsel %vm624, %v625, %v490
      %v627 = vshrl.u32 %v626, 4
      %v628 = vand.u32 %v626, 15
      %v629 = vsub.s32 0, %v628
      %v630 = vsel %vm624, %v629, %v628
      %vm631 = vcmp.lt.s32.totalorder %v491, 0
      %v632 = vsub.s32 0, %v491
      %v633 = vsel %vm631, %v632, %v491
      %v634 = vshrl.u32 %v633, 4
      %v635 = vand.u32 %v633, 15
      %v636 = vsub.s32 0, %v635
      %v637 = vsel %vm631, %v636, %v635
      %vm638 = vcmp.lt.s32.totalorder %v492, 0
      %v639 = vsub.s32 0, %v492
      %v640 = vsel %vm638, %v639, %v492
      %v641 = vshrl.u32 %v640, 4
      %v642 = vand.u32 %v640, 15
      %v643 = vsub.s32 0, %v642
      %v644 = vsel %vm638, %v643, %v642
      %vm645 = vcmp.lt.s32.totalorder %v493, 0
      %v646 = vsub.s32 0, %v493
      %v647 = vsel %vm645, %v646, %v493
      %v648 = vshrl.u32 %v647, 4
      %v649 = vand.u32 %v647, 15
      %v650 = vsub.s32 0, %v649
      %v651 = vsel %vm645, %v650, %v649
      %vm652 = vcmp.lt.s32.totalorder %v494, 0
      %v653 = vsub.s32 0, %v494
      %v654 = vsel %vm652, %v653, %v494
      %v655 = vshrl.u32 %v654, 4
      %v656 = vand.u32 %v654, 15
      %v657 = vsub.s32 0, %v656
      %v658 = vsel %vm652, %v657, %v656
      %vm659 = vcmp.lt.s32.totalorder %v495, 0
      %v660 = vsub.s32 0, %v495
      %v661 = vsel %vm659, %v660, %v495
      %v662 = vshrl.u32 %v661, 4
      %v663 = vand.u32 %v661, 15
      %v664 = vsub.s32 0, %v663
      %v665 = vsel %vm659, %v664, %v663
      %vm666 = vcmp.lt.s32.totalorder %v496, 0
      %v667 = vsub.s32 0, %v496
      %v668 = vsel %vm666, %v667, %v496
      %v669 = vshrl.u32 %v668, 4
      %v670 = vand.u32 %v668, 15
      %v671 = vsub.s32 0, %v670
      %v672 = vsel %vm666, %v671, %v670
      %vm673 = vcmp.lt.s32.totalorder %v497, 0
      %v674 = vsub.s32 0, %v497
      %v675 = vsel %vm673, %v674, %v497
      %v676 = vshrl.u32 %v675, 4
      %v677 = vand.u32 %v675, 15
      %v678 = vsub.s32 0, %v677
      %v679 = vsel %vm673, %v678, %v677
      %vm680 = vcmp.lt.s32.totalorder %v498, 0
      %v681 = vsub.s32 0, %v498
      %v682 = vsel %vm680, %v681, %v498
      %v683 = vshrl.u32 %v682, 4
      %v684 = vand.u32 %v682, 15
      %v685 = vsub.s32 0, %v684
      %v686 = vsel %vm680, %v685, %v684
      %vm687 = vcmp.lt.s32.totalorder %v499, 0
      %v688 = vsub.s32 0, %v499
      %v689 = vsel %vm687, %v688, %v499
      %v690 = vshrl.u32 %v689, 4
      %v691 = vand.u32 %v689, 15
      %v692 = vsub.s32 0, %v691
      %v693 = vsel %vm687, %v692, %v691
      %vm694 = vcmp.lt.s32.totalorder %v500, 0
      %v695 = vsub.s32 0, %v500
      %v696 = vsel %vm694, %v695, %v500
      %v697 = vshrl.u32 %v696, 4
      %v698 = vand.u32 %v696, 15
      %v699 = vsub.s32 0, %v698
      %v700 = vsel %vm694, %v699, %v698
      %vm701 = vcmp.lt.s32.totalorder %v501, 0
      %v702 = vsub.s32 0, %v501
      %v703 = vsel %vm701, %v702, %v501
      %v704 = vshrl.u32 %v703, 4
      %v705 = vand.u32 %v703, 15
      %v706 = vsub.s32 0, %v705
      %v707 = vsel %vm701, %v706, %v705
      %vm708 = vcmp.lt.s32.totalorder %v502, 0
      %v709 = vsub.s32 0, %v502
      %v710 = vsel %vm708, %v709, %v502
      %v711 = vshrl.u32 %v710, 4
      %v712 = vand.u32 %v710, 15
      %v713 = vsub.s32 0, %v712
      %v714 = vsel %vm708, %v713, %v712
      %vm715 = vcmp.lt.s32.totalorder %v503, 0
      %v716 = vsub.s32 0, %v503
      %v717 = vsel %vm715, %v716, %v503
      %v718 = vshrl.u32 %v717, 4
      %v719 = vand.u32 %v717, 15
      %v720 = vsub.s32 0, %v719
      %v721 = vsel %vm715, %v720, %v719
      %vm722 = vcmp.lt.s32.totalorder %v504, 0
      %v723 = vsub.s32 0, %v504
      %v724 = vsel %vm722, %v723, %v504
      %v725 = vshrl.u32 %v724, 4
      %v726 = vand.u32 %v724, 15
      %v727 = vsub.s32 0, %v726
      %v728 = vsel %vm722, %v727, %v726
      %vm729 = vcmp.ne.s32.totalorder %v511, 0
      %vm730 = vcmp.ne.s32.totalorder %v518, 0
      %vm731 = vcmp.ne.s32.totalorder %v525, 0
      %vm732 = vcmp.ne.s32.totalorder %v532, 0
      %vm733 = vcmp.ne.s32.totalorder %v539, 0
      %vm734 = vcmp.ne.s32.totalorder %v546, 0
      %vm735 = vcmp.ne.s32.totalorder %v553, 0
      %vm736 = vcmp.ne.s32.totalorder %v560, 0
      %vm737 = vcmp.ne.s32.totalorder %v567, 0
      %vm738 = vcmp.ne.s32.totalorder %v574, 0
      %vm739 = vcmp.ne.s32.totalorder %v581, 0
      %vm740 = vcmp.ne.s32.totalorder %v588, 0
      %vm741 = vcmp.ne.s32.totalorder %v595, 0
      %vm742 = vcmp.ne.s32.totalorder %v602, 0
      %vm743 = vcmp.ne.s32.totalorder %v609, 0
      %vm744 = vcmp.ne.s32.totalorder %v616, 0
      %vm745 = vcmp.ne.s32.totalorder %v623, 0
      %vm746 = vcmp.ne.s32.totalorder %v630, 0
      %vm747 = vcmp.ne.s32.totalorder %v637, 0
      %vm748 = vcmp.ne.s32.totalorder %v644, 0
      %vm749 = vcmp.ne.s32.totalorder %v651, 0
      %vm750 = vcmp.ne.s32.totalorder %v658, 0
      %vm751 = vcmp.ne.s32.totalorder %v665, 0
      %vm752 = vcmp.ne.s32.totalorder %v672, 0
      %vm753 = vcmp.ne.s32.totalorder %v679, 0
      %vm754 = vcmp.ne.s32.totalorder %v686, 0
      %vm755 = vcmp.ne.s32.totalorder %v693, 0
      %vm756 = vcmp.ne.s32.totalorder %v700, 0
      %vm757 = vcmp.ne.s32.totalorder %v707, 0
      %vm758 = vcmp.ne.s32.totalorder %v714, 0
      %vm759 = vcmp.ne.s32.totalorder %v721, 0
      %vm760 = vcmp.ne.s32.totalorder %v728, 0
      %vm761 = vcmp.lt.s32.totalorder %v511, 0
      %vm762 = vcmp.lt.s32.totalorder %v518, 0
      %vm763 = vcmp.lt.s32.totalorder %v525, 0
      %vm764 = vcmp.lt.s32.totalorder %v532, 0
      %vm765 = vcmp.lt.s32.totalorder %v539, 0
      %vm766 = vcmp.lt.s32.totalorder %v546, 0
      %vm767 = vcmp.lt.s32.totalorder %v553, 0
      %vm768 = vcmp.lt.s32.totalorder %v560, 0
      %vm769 = vcmp.lt.s32.totalorder %v567, 0
      %vm770 = vcmp.lt.s32.totalorder %v574, 0
      %vm771 = vcmp.lt.s32.totalorder %v581, 0
      %vm772 = vcmp.lt.s32.totalorder %v588, 0
      %vm773 = vcmp.lt.s32.totalorder %v595, 0
      %vm774 = vcmp.lt.s32.totalorder %v602, 0
      %vm775 = vcmp.lt.s32.totalorder %v609, 0
      %vm776 = vcmp.lt.s32.totalorder %v616, 0
      %vm777 = vcmp.lt.s32.totalorder %v623, 0
      %vm778 = vcmp.lt.s32.totalorder %v630, 0
      %vm779 = vcmp.lt.s32.totalorder %v637, 0
      %vm780 = vcmp.lt.s32.totalorder %v644, 0
      %vm781 = vcmp.lt.s32.totalorder %v651, 0
      %vm782 = vcmp.lt.s32.totalorder %v658, 0
      %vm783 = vcmp.lt.s32.totalorder %v665, 0
      %vm784 = vcmp.lt.s32.totalorder %v672, 0
      %vm785 = vcmp.lt.s32.totalorder %v679, 0
      %vm786 = vcmp.lt.s32.totalorder %v686, 0
      %vm787 = vcmp.lt.s32.totalorder %v693, 0
      %vm788 = vcmp.lt.s32.totalorder %v700, 0
      %vm789 = vcmp.lt.s32.totalorder %v707, 0
      %vm790 = vcmp.lt.s32.totalorder %v714, 0
      %vm791 = vcmp.lt.s32.totalorder %v721, 0
      %vm792 = vcmp.lt.s32.totalorder %v728, 0
      %vm793 = vmand %vm761, %vm729
      %vm794 = vmand %vm762, %vm730
      %vm795 = vmand %vm763, %vm731
      %vm796 = vmand %vm764, %vm732
      %vm797 = vmand %vm765, %vm733
      %vm798 = vmand %vm766, %vm734
      %vm799 = vmand %vm767, %vm735
      %vm800 = vmand %vm768, %vm736
      %vm801 = vmand %vm769, %vm737
      %vm802 = vmand %vm770, %vm738
      %vm803 = vmand %vm771, %vm739
      %vm804 = vmand %vm772, %vm740
      %vm805 = vmand %vm773, %vm741
      %vm806 = vmand %vm774, %vm742
      %vm807 = vmand %vm775, %vm743
      %vm808 = vmand %vm776, %vm744
      %vm809 = vmand %vm777, %vm745
      %vm810 = vmand %vm778, %vm746
      %vm811 = vmand %vm779, %vm747
      %vm812 = vmand %vm780, %vm748
      %vm813 = vmand %vm781, %vm749
      %vm814 = vmand %vm782, %vm750
      %vm815 = vmand %vm783, %vm751
      %vm816 = vmand %vm784, %vm752
      %vm817 = vmand %vm785, %vm753
      %vm818 = vmand %vm786, %vm754
      %vm819 = vmand %vm787, %vm755
      %vm820 = vmand %vm788, %vm756
      %vm821 = vmand %vm789, %vm757
      %vm822 = vmand %vm790, %vm758
      %vm823 = vmand %vm791, %vm759
      %vm824 = vmand %vm792, %vm760
      %v825 = vadd.s32 %v511, 16
      %v826 = vadd.s32 %v518, 16
      %v827 = vadd.s32 %v525, 16
      %v828 = vadd.s32 %v532, 16
      %v829 = vadd.s32 %v539, 16
      %v830 = vadd.s32 %v546, 16
      %v831 = vadd.s32 %v553, 16
      %v832 = vadd.s32 %v560, 16
      %v833 = vadd.s32 %v567, 16
      %v834 = vadd.s32 %v574, 16
      %v835 = vadd.s32 %v581, 16
      %v836 = vadd.s32 %v588, 16
      %v837 = vadd.s32 %v595, 16
      %v838 = vadd.s32 %v602, 16
      %v839 = vadd.s32 %v609, 16
      %v840 = vadd.s32 %v616, 16
      %v841 = vadd.s32 %v623, 16
      %v842 = vadd.s32 %v630, 16
      %v843 = vadd.s32 %v637, 16
      %v844 = vadd.s32 %v644, 16
      %v845 = vadd.s32 %v651, 16
      %v846 = vadd.s32 %v658, 16
      %v847 = vadd.s32 %v665, 16
      %v848 = vadd.s32 %v672, 16
      %v849 = vadd.s32 %v679, 16
      %v850 = vadd.s32 %v686, 16
      %v851 = vadd.s32 %v693, 16
      %v852 = vadd.s32 %v700, 16
      %v853 = vadd.s32 %v707, 16
      %v854 = vadd.s32 %v714, 16
      %v855 = vadd.s32 %v721, 16
      %v856 = vadd.s32 %v728, 16
      %v857 = vsel %vm793, %v825, %v511
      %v858 = vsel %vm794, %v826, %v518
      %v859 = vsel %vm795, %v827, %v525
      %v860 = vsel %vm796, %v828, %v532
      %v861 = vsel %vm797, %v829, %v539
      %v862 = vsel %vm798, %v830, %v546
      %v863 = vsel %vm799, %v831, %v553
      %v864 = vsel %vm800, %v832, %v560
      %v865 = vsel %vm801, %v833, %v567
      %v866 = vsel %vm802, %v834, %v574
      %v867 = vsel %vm803, %v835, %v581
      %v868 = vsel %vm804, %v836, %v588
      %v869 = vsel %vm805, %v837, %v595
      %v870 = vsel %vm806, %v838, %v602
      %v871 = vsel %vm807, %v839, %v609
      %v872 = vsel %vm808, %v840, %v616
      %v873 = vsel %vm809, %v841, %v623
      %v874 = vsel %vm810, %v842, %v630
      %v875 = vsel %vm811, %v843, %v637
      %v876 = vsel %vm812, %v844, %v644
      %v877 = vsel %vm813, %v845, %v651
      %v878 = vsel %vm814, %v846, %v658
      %v879 = vsel %vm815, %v847, %v665
      %v880 = vsel %vm816, %v848, %v672
      %v881 = vsel %vm817, %v849, %v679
      %v882 = vsel %vm818, %v850, %v686
      %v883 = vsel %vm819, %v851, %v693
      %v884 = vsel %vm820, %v852, %v700
      %v885 = vsel %vm821, %v853, %v707
      %v886 = vsel %vm822, %v854, %v714
      %v887 = vsel %vm823, %v855, %v721
      %v888 = vsel %vm824, %v856, %v728
      %vm889 = vcmp.ne.s32.totalorder %v857, 0
      %vm890 = vcmp.ne.s32.totalorder %v858, 0
      %vm891 = vcmp.ne.s32.totalorder %v859, 0
      %vm892 = vcmp.ne.s32.totalorder %v860, 0
      %vm893 = vcmp.ne.s32.totalorder %v861, 0
      %vm894 = vcmp.ne.s32.totalorder %v862, 0
      %vm895 = vcmp.ne.s32.totalorder %v863, 0
      %vm896 = vcmp.ne.s32.totalorder %v864, 0
      %vm897 = vcmp.ne.s32.totalorder %v865, 0
      %vm898 = vcmp.ne.s32.totalorder %v866, 0
      %vm899 = vcmp.ne.s32.totalorder %v867, 0
      %vm900 = vcmp.ne.s32.totalorder %v868, 0
      %vm901 = vcmp.ne.s32.totalorder %v869, 0
      %vm902 = vcmp.ne.s32.totalorder %v870, 0
      %vm903 = vcmp.ne.s32.totalorder %v871, 0
      %vm904 = vcmp.ne.s32.totalorder %v872, 0
      %vm905 = vcmp.ne.s32.totalorder %v873, 0
      %vm906 = vcmp.ne.s32.totalorder %v874, 0
      %vm907 = vcmp.ne.s32.totalorder %v875, 0
      %vm908 = vcmp.ne.s32.totalorder %v876, 0
      %vm909 = vcmp.ne.s32.totalorder %v877, 0
      %vm910 = vcmp.ne.s32.totalorder %v878, 0
      %vm911 = vcmp.ne.s32.totalorder %v879, 0
      %vm912 = vcmp.ne.s32.totalorder %v880, 0
      %vm913 = vcmp.ne.s32.totalorder %v881, 0
      %vm914 = vcmp.ne.s32.totalorder %v882, 0
      %vm915 = vcmp.ne.s32.totalorder %v883, 0
      %vm916 = vcmp.ne.s32.totalorder %v884, 0
      %vm917 = vcmp.ne.s32.totalorder %v885, 0
      %vm918 = vcmp.ne.s32.totalorder %v886, 0
      %vm919 = vcmp.ne.s32.totalorder %v887, 0
      %vm920 = vcmp.ne.s32.totalorder %v888, 0
      %v921 = vsel %vm889, 1, 0
      %v922 = vsel %vm890, 1, 0
      %v923 = vsel %vm891, 1, 0
      %v924 = vsel %vm892, 1, 0
      %v925 = vsel %vm893, 1, 0
      %v926 = vsel %vm894, 1, 0
      %v927 = vsel %vm895, 1, 0
      %v928 = vsel %vm896, 1, 0
      %v929 = vsel %vm897, 1, 0
      %v930 = vsel %vm898, 1, 0
      %v931 = vsel %vm899, 1, 0
      %v932 = vsel %vm900, 1, 0
      %v933 = vsel %vm901, 1, 0
      %v934 = vsel %vm902, 1, 0
      %v935 = vsel %vm903, 1, 0
      %v936 = vsel %vm904, 1, 0
      %v937 = vsel %vm905, 1, 0
      %v938 = vsel %vm906, 1, 0
      %v939 = vsel %vm907, 1, 0
      %v940 = vsel %vm908, 1, 0
      %v941 = vsel %vm909, 1, 0
      %v942 = vsel %vm910, 1, 0
      %v943 = vsel %vm911, 1, 0
      %v944 = vsel %vm912, 1, 0
      %v945 = vsel %vm913, 1, 0
      %v946 = vsel %vm914, 1, 0
      %v947 = vsel %vm915, 1, 0
      %v948 = vsel %vm916, 1, 0
      %v949 = vsel %vm917, 1, 0
      %v950 = vsel %vm918, 1, 0
      %v951 = vsel %vm919, 1, 0
      %v952 = vsel %vm920, 1, 0
      %v953 = vcvt.s32.f32 %v921
      %v954 = vcvt.s32.f32 %v922
      %v955 = vcvt.s32.f32 %v923
      %v956 = vcvt.s32.f32 %v924
      %v957 = vcvt.s32.f32 %v925
      %v958 = vcvt.s32.f32 %v926
      %v959 = vcvt.s32.f32 %v927
      %v960 = vcvt.s32.f32 %v928
      %v961 = vcvt.s32.f32 %v929
      %v962 = vcvt.s32.f32 %v930
      %v963 = vcvt.s32.f32 %v931
      %v964 = vcvt.s32.f32 %v932
      %v965 = vcvt.s32.f32 %v933
      %v966 = vcvt.s32.f32 %v934
      %v967 = vcvt.s32.f32 %v935
      %v968 = vcvt.s32.f32 %v936
      %v969 = vcvt.s32.f32 %v937
      %v970 = vcvt.s32.f32 %v938
      %v971 = vcvt.s32.f32 %v939
      %v972 = vcvt.s32.f32 %v940
      %v973 = vcvt.s32.f32 %v941
      %v974 = vcvt.s32.f32 %v942
      %v975 = vcvt.s32.f32 %v943
      %v976 = vcvt.s32.f32 %v944
      %v977 = vcvt.s32.f32 %v945
      %v978 = vcvt.s32.f32 %v946
      %v979 = vcvt.s32.f32 %v947
      %v980 = vcvt.s32.f32 %v948
      %v981 = vcvt.s32.f32 %v949
      %v982 = vcvt.s32.f32 %v950
      %v983 = vcvt.s32.f32 %v951
      %v984 = vcvt.s32.f32 %v952
      %v985 = vpack.c.bf16 %v954, %v953
      %v986 = vpack.c.bf16 %v956, %v955
      %v987 = vpack.c.bf16 %v958, %v957
      %v988 = vpack.c.bf16 %v960, %v959
      %v989 = vpack.c.bf16 %v962, %v961
      %v990 = vpack.c.bf16 %v964, %v963
      %v991 = vpack.c.bf16 %v966, %v965
      %v992 = vpack.c.bf16 %v968, %v967
      %v993 = vpack.c.bf16 %v970, %v969
      %v994 = vpack.c.bf16 %v972, %v971
      %v995 = vpack.c.bf16 %v974, %v973
      %v996 = vpack.c.bf16 %v976, %v975
      %v997 = vpack.c.bf16 %v978, %v977
      %v998 = vpack.c.bf16 %v980, %v979
      %v999 = vpack.c.bf16 %v982, %v981
      %v1000 = vpack.c.bf16 %v984, %v983
      %vm1001 = vcmp.ne.s32.totalorder %v857, 15
      %vm1002 = vcmp.ne.s32.totalorder %v858, 15
      %vm1003 = vcmp.ne.s32.totalorder %v859, 15
      %vm1004 = vcmp.ne.s32.totalorder %v860, 15
      %vm1005 = vcmp.ne.s32.totalorder %v861, 15
      %vm1006 = vcmp.ne.s32.totalorder %v862, 15
      %vm1007 = vcmp.ne.s32.totalorder %v863, 15
      %vm1008 = vcmp.ne.s32.totalorder %v864, 15
      %vm1009 = vcmp.ne.s32.totalorder %v865, 15
      %vm1010 = vcmp.ne.s32.totalorder %v866, 15
      %vm1011 = vcmp.ne.s32.totalorder %v867, 15
      %vm1012 = vcmp.ne.s32.totalorder %v868, 15
      %vm1013 = vcmp.ne.s32.totalorder %v869, 15
      %vm1014 = vcmp.ne.s32.totalorder %v870, 15
      %vm1015 = vcmp.ne.s32.totalorder %v871, 15
      %vm1016 = vcmp.ne.s32.totalorder %v872, 15
      %vm1017 = vcmp.ne.s32.totalorder %v873, 15
      %vm1018 = vcmp.ne.s32.totalorder %v874, 15
      %vm1019 = vcmp.ne.s32.totalorder %v875, 15
      %vm1020 = vcmp.ne.s32.totalorder %v876, 15
      %vm1021 = vcmp.ne.s32.totalorder %v877, 15
      %vm1022 = vcmp.ne.s32.totalorder %v878, 15
      %vm1023 = vcmp.ne.s32.totalorder %v879, 15
      %vm1024 = vcmp.ne.s32.totalorder %v880, 15
      %vm1025 = vcmp.ne.s32.totalorder %v881, 15
      %vm1026 = vcmp.ne.s32.totalorder %v882, 15
      %vm1027 = vcmp.ne.s32.totalorder %v883, 15
      %vm1028 = vcmp.ne.s32.totalorder %v884, 15
      %vm1029 = vcmp.ne.s32.totalorder %v885, 15
      %vm1030 = vcmp.ne.s32.totalorder %v886, 15
      %vm1031 = vcmp.ne.s32.totalorder %v887, 15
      %vm1032 = vcmp.ne.s32.totalorder %v888, 15
      %v1033 = vsel %vm1001, 1, 0
      %v1034 = vsel %vm1002, 1, 0
      %v1035 = vsel %vm1003, 1, 0
      %v1036 = vsel %vm1004, 1, 0
      %v1037 = vsel %vm1005, 1, 0
      %v1038 = vsel %vm1006, 1, 0
      %v1039 = vsel %vm1007, 1, 0
      %v1040 = vsel %vm1008, 1, 0
      %v1041 = vsel %vm1009, 1, 0
      %v1042 = vsel %vm1010, 1, 0
      %v1043 = vsel %vm1011, 1, 0
      %v1044 = vsel %vm1012, 1, 0
      %v1045 = vsel %vm1013, 1, 0
      %v1046 = vsel %vm1014, 1, 0
      %v1047 = vsel %vm1015, 1, 0
      %v1048 = vsel %vm1016, 1, 0
      %v1049 = vsel %vm1017, 1, 0
      %v1050 = vsel %vm1018, 1, 0
      %v1051 = vsel %vm1019, 1, 0
      %v1052 = vsel %vm1020, 1, 0
      %v1053 = vsel %vm1021, 1, 0
      %v1054 = vsel %vm1022, 1, 0
      %v1055 = vsel %vm1023, 1, 0
      %v1056 = vsel %vm1024, 1, 0
      %v1057 = vsel %vm1025, 1, 0
      %v1058 = vsel %vm1026, 1, 0
      %v1059 = vsel %vm1027, 1, 0
      %v1060 = vsel %vm1028, 1, 0
      %v1061 = vsel %vm1029, 1, 0
      %v1062 = vsel %vm1030, 1, 0
      %v1063 = vsel %vm1031, 1, 0
      %v1064 = vsel %vm1032, 1, 0
      %v1065 = vcvt.s32.f32 %v1033
      %v1066 = vcvt.s32.f32 %v1034
      %v1067 = vcvt.s32.f32 %v1035
      %v1068 = vcvt.s32.f32 %v1036
      %v1069 = vcvt.s32.f32 %v1037
      %v1070 = vcvt.s32.f32 %v1038
      %v1071 = vcvt.s32.f32 %v1039
      %v1072 = vcvt.s32.f32 %v1040
      %v1073 = vcvt.s32.f32 %v1041
      %v1074 = vcvt.s32.f32 %v1042
      %v1075 = vcvt.s32.f32 %v1043
      %v1076 = vcvt.s32.f32 %v1044
      %v1077 = vcvt.s32.f32 %v1045
      %v1078 = vcvt.s32.f32 %v1046
      %v1079 = vcvt.s32.f32 %v1047
      %v1080 = vcvt.s32.f32 %v1048
      %v1081 = vcvt.s32.f32 %v1049
      %v1082 = vcvt.s32.f32 %v1050
      %v1083 = vcvt.s32.f32 %v1051
      %v1084 = vcvt.s32.f32 %v1052
      %v1085 = vcvt.s32.f32 %v1053
      %v1086 = vcvt.s32.f32 %v1054
      %v1087 = vcvt.s32.f32 %v1055
      %v1088 = vcvt.s32.f32 %v1056
      %v1089 = vcvt.s32.f32 %v1057
      %v1090 = vcvt.s32.f32 %v1058
      %v1091 = vcvt.s32.f32 %v1059
      %v1092 = vcvt.s32.f32 %v1060
      %v1093 = vcvt.s32.f32 %v1061
      %v1094 = vcvt.s32.f32 %v1062
      %v1095 = vcvt.s32.f32 %v1063
      %v1096 = vcvt.s32.f32 %v1064
      %v1097 = vpack.c.bf16 %v1066, %v1065
      %v1098 = vpack.c.bf16 %v1068, %v1067
      %v1099 = vpack.c.bf16 %v1070, %v1069
      %v1100 = vpack.c.bf16 %v1072, %v1071
      %v1101 = vpack.c.bf16 %v1074, %v1073
      %v1102 = vpack.c.bf16 %v1076, %v1075
      %v1103 = vpack.c.bf16 %v1078, %v1077
      %v1104 = vpack.c.bf16 %v1080, %v1079
      %v1105 = vpack.c.bf16 %v1082, %v1081
      %v1106 = vpack.c.bf16 %v1084, %v1083
      %v1107 = vpack.c.bf16 %v1086, %v1085
      %v1108 = vpack.c.bf16 %v1088, %v1087
      %v1109 = vpack.c.bf16 %v1090, %v1089
      %v1110 = vpack.c.bf16 %v1092, %v1091
      %v1111 = vpack.c.bf16 %v1094, %v1093
      %v1112 = vpack.c.bf16 %v1096, %v1095
      %v1113 = vmul.bf16 %v985, 0
      %v1114 = vmul.bf16 %v470, %v986
      %v1115 = vmul.bf16 %v338, %v987
      %v1116 = vmul.bf16 %v346, %v988
      %v1117 = vmul.bf16 %v354, %v989
      %v1118 = vmul.bf16 %v362, %v990
      %v1119 = vmul.bf16 %v370, %v991
      %v1120 = vmul.bf16 %v378, %v992
      %v1121 = vmul.bf16 %v386, %v993
      %v1122 = vmul.bf16 %v394, %v994
      %v1123 = vmul.bf16 %v402, %v995
      %v1124 = vmul.bf16 %v410, %v996
      %v1125 = vmul.bf16 %v418, %v997
      %v1126 = vmul.bf16 %v426, %v998
      %v1127 = vmul.bf16 %v434, %v999
      %v1128 = vmul.bf16 %v442, %v1000
      %v1145 = vrot.slane %v1097, 7
      %v1146 = vrot.slane %v1098, 7
      %v1147 = vsel %vm468, %v1145, %v1146
      %v1148 = vrot.slane %v1099, 7
      %v1149 = vsel %vm468, %v1146, %v1148
      %v1150 = vrot.slane %v1100, 7
      %v1151 = vsel %vm468, %v1148, %v1150
      %v1152 = vrot.slane %v1101, 7
      %v1153 = vsel %vm468, %v1150, %v1152
      %v1154 = vrot.slane %v1102, 7
      %v1155 = vsel %vm468, %v1152, %v1154
      %v1156 = vrot.slane %v1103, 7
      %v1157 = vsel %vm468, %v1154, %v1156
      %v1158 = vrot.slane %v1104, 7
      %v1159 = vsel %vm468, %v1156, %v1158
      %v1160 = vrot.slane %v1105, 7
      %v1161 = vsel %vm468, %v1158, %v1160
      %v1162 = vrot.slane %v1106, 7
      %v1163 = vsel %vm468, %v1160, %v1162
      %v1164 = vrot.slane %v1107, 7
      %v1165 = vsel %vm468, %v1162, %v1164
      %v1166 = vrot.slane %v1108, 7
      %v1167 = vsel %vm468, %v1164, %v1166
      %v1168 = vrot.slane %v1109, 7
      %v1169 = vsel %vm468, %v1166, %v1168
      %v1170 = vrot.slane %v1110, 7
      %v1171 = vsel %vm468, %v1168, %v1170
      %v1172 = vrot.slane %v1111, 7
      %v1173 = vsel %vm468, %v1170, %v1172
      %v1174 = vrot.slane %v1112, 7
      %v1175 = vsel %vm468, %v1172, %v1174
      %v1193 = vmul.bf16 %v1145, 0
      %v1194 = vmul.bf16 %v470, %v1147
      %v1195 = vmul.bf16 %v338, %v1149
      %v1196 = vmul.bf16 %v346, %v1151
      %v1197 = vmul.bf16 %v354, %v1153
      %v1198 = vmul.bf16 %v362, %v1155
      %v1199 = vmul.bf16 %v370, %v1157
      %v1200 = vmul.bf16 %v378, %v1159
      %v1201 = vmul.bf16 %v386, %v1161
      %v1202 = vmul.bf16 %v394, %v1163
      %v1203 = vmul.bf16 %v402, %v1165
      %v1204 = vmul.bf16 %v410, %v1167
      %v1205 = vmul.bf16 %v418, %v1169
      %v1206 = vmul.bf16 %v426, %v1171
      %v1207 = vmul.bf16 %v434, %v1173
      %v1208 = vmul.bf16 %v442, %v1175
      %v1209 = vmul.bf16 %v450, %v1174
      %v1210 = vmul.bf16 %v470, %v985
      %v1211 = vmul.bf16 %v338, %v986
      %v1212 = vmul.bf16 %v346, %v987
      %v1213 = vmul.bf16 %v354, %v988
      %v1214 = vmul.bf16 %v362, %v989
      %v1215 = vmul.bf16 %v370, %v990
      %v1216 = vmul.bf16 %v378, %v991
      %v1217 = vmul.bf16 %v386, %v992
      %v1218 = vmul.bf16 %v394, %v993
      %v1219 = vmul.bf16 %v402, %v994
      %v1220 = vmul.bf16 %v410, %v995
      %v1221 = vmul.bf16 %v418, %v996
      %v1222 = vmul.bf16 %v426, %v997
      %v1223 = vmul.bf16 %v434, %v998
      %v1224 = vmul.bf16 %v442, %v999
      %v1225 = vmul.bf16 %v450, %v1000
      %v1226 = vmul.bf16 %v470, %v1145
      %v1227 = vmul.bf16 %v338, %v1147
      %v1228 = vmul.bf16 %v346, %v1149
      %v1229 = vmul.bf16 %v354, %v1151
      %v1230 = vmul.bf16 %v362, %v1153
      %v1231 = vmul.bf16 %v370, %v1155
      %v1232 = vmul.bf16 %v378, %v1157
      %v1233 = vmul.bf16 %v386, %v1159
      %v1234 = vmul.bf16 %v394, %v1161
      %v1235 = vmul.bf16 %v402, %v1163
      %v1236 = vmul.bf16 %v410, %v1165
      %v1237 = vmul.bf16 %v418, %v1167
      %v1238 = vmul.bf16 %v426, %v1169
      %v1239 = vmul.bf16 %v434, %v1171
      %v1240 = vmul.bf16 %v442, %v1173
      %v1241 = vmul.bf16 %v450, %v1175
      %v1242 = vmul.bf16 %v471, %v1174
      %v1243 = vmul.bf16 %v338, %v985
      %v1244 = vmul.bf16 %v346, %v986
      %v1245 = vmul.bf16 %v354, %v987
      %v1246 = vmul.bf16 %v362, %v988
      %v1247 = vmul.bf16 %v370, %v989
      %v1248 = vmul.bf16 %v378, %v990
      %v1249 = vmul.bf16 %v386, %v991
      %v1250 = vmul.bf16 %v394, %v992
      %v1251 = vmul.bf16 %v402, %v993
      %v1252 = vmul.bf16 %v410, %v994
      %v1253 = vmul.bf16 %v418, %v995
      %v1254 = vmul.bf16 %v426, %v996
      %v1255 = vmul.bf16 %v434, %v997
      %v1256 = vmul.bf16 %v442, %v998
      %v1257 = vmul.bf16 %v450, %v999
      %v1258 = vmul.bf16 %v471, %v1000
      %v1259 = vmul.bf16 %v338, %v1145
      %v1260 = vmul.bf16 %v346, %v1147
      %v1261 = vmul.bf16 %v354, %v1149
      %v1262 = vmul.bf16 %v362, %v1151
      %v1263 = vmul.bf16 %v370, %v1153
      %v1264 = vmul.bf16 %v378, %v1155
      %v1265 = vmul.bf16 %v386, %v1157
      %v1266 = vmul.bf16 %v394, %v1159
      %v1267 = vmul.bf16 %v402, %v1161
      %v1268 = vmul.bf16 %v410, %v1163
      %v1269 = vmul.bf16 %v418, %v1165
      %v1270 = vmul.bf16 %v426, %v1167
      %v1271 = vmul.bf16 %v434, %v1169
      %v1272 = vmul.bf16 %v442, %v1171
      %v1273 = vmul.bf16 %v450, %v1173
      %v1274 = vmul.bf16 %v471, %v1175
      %v1275 = vmul.bf16 %v1174, 0
      %vm1276 = vsmask.f32 7424
      %v1278 = vshrl.u32 0, 16
      %v1280 = vshll.u32 0, 16
      %v1282 = vrot.slane %v1280, 1
      %v1283 = vor.u32 %v1278, %v1282
      %v1285 = vshll.u32 %v470, 16
      %v1287 = vrot.slane %v1285, 1
      %v1288 = vsel %vm1276, %v1283, %v1287
      %v1289 = vshrl.u32 %v470, 16
      %v1291 = vor.u32 %v1289, %v1287
      %v1293 = vshll.u32 %v338, 16
      %v1295 = vrot.slane %v1293, 1
      %v1296 = vsel %vm1276, %v1291, %v1295
      %v1297 = vshrl.u32 %v338, 16
      %v1299 = vor.u32 %v1297, %v1295
      %v1301 = vshll.u32 %v346, 16
      %v1303 = vrot.slane %v1301, 1
      %v1304 = vsel %vm1276, %v1299, %v1303
      %v1305 = vshrl.u32 %v346, 16
      %v1307 = vor.u32 %v1305, %v1303
      %v1309 = vshll.u32 %v354, 16
      %v1311 = vrot.slane %v1309, 1
      %v1312 = vsel %vm1276, %v1307, %v1311
      %v1313 = vshrl.u32 %v354, 16
      %v1315 = vor.u32 %v1313, %v1311
      %v1317 = vshll.u32 %v362, 16
      %v1319 = vrot.slane %v1317, 1
      %v1320 = vsel %vm1276, %v1315, %v1319
      %v1321 = vshrl.u32 %v362, 16
      %v1323 = vor.u32 %v1321, %v1319
      %v1325 = vshll.u32 %v370, 16
      %v1327 = vrot.slane %v1325, 1
      %v1328 = vsel %vm1276, %v1323, %v1327
      %v1329 = vshrl.u32 %v370, 16
      %v1331 = vor.u32 %v1329, %v1327
      %v1333 = vshll.u32 %v378, 16
      %v1335 = vrot.slane %v1333, 1
      %v1336 = vsel %vm1276, %v1331, %v1335
      %v1337 = vshrl.u32 %v378, 16
      %v1339 = vor.u32 %v1337, %v1335
      %v1341 = vshll.u32 %v386, 16
      %v1343 = vrot.slane %v1341, 1
      %v1344 = vsel %vm1276, %v1339, %v1343
      %v1345 = vshrl.u32 %v386, 16
      %v1347 = vor.u32 %v1345, %v1343
      %v1349 = vshll.u32 %v394, 16
      %v1351 = vrot.slane %v1349, 1
      %v1352 = vsel %vm1276, %v1347, %v1351
      %v1353 = vshrl.u32 %v394, 16
      %v1355 = vor.u32 %v1353, %v1351
      %v1357 = vshll.u32 %v402, 16
      %v1359 = vrot.slane %v1357, 1
      %v1360 = vsel %vm1276, %v1355, %v1359
      %v1361 = vshrl.u32 %v402, 16
      %v1363 = vor.u32 %v1361, %v1359
      %v1365 = vshll.u32 %v410, 16
      %v1367 = vrot.slane %v1365, 1
      %v1368 = vsel %vm1276, %v1363, %v1367
      %v1369 = vshrl.u32 %v410, 16
      %v1371 = vor.u32 %v1369, %v1367
      %v1373 = vshll.u32 %v418, 16
      %v1375 = vrot.slane %v1373, 1
      %v1376 = vsel %vm1276, %v1371, %v1375
      %v1377 = vshrl.u32 %v418, 16
      %v1379 = vor.u32 %v1377, %v1375
      %v1381 = vshll.u32 %v426, 16
      %v1383 = vrot.slane %v1381, 1
      %v1384 = vsel %vm1276, %v1379, %v1383
      %v1385 = vshrl.u32 %v426, 16
      %v1387 = vor.u32 %v1385, %v1383
      %v1389 = vshll.u32 %v434, 16
      %v1391 = vrot.slane %v1389, 1
      %v1392 = vsel %vm1276, %v1387, %v1391
      %v1393 = vshrl.u32 %v434, 16
      %v1395 = vor.u32 %v1393, %v1391
      %v1397 = vshll.u32 %v442, 16
      %v1399 = vrot.slane %v1397, 1
      %v1400 = vsel %vm1276, %v1395, %v1399
      %v1401 = vshrl.u32 %v442, 16
      %v1403 = vor.u32 %v1401, %v1399
      %v1405 = vshll.u32 %v450, 16
      %v1407 = vrot.slane %v1405, 1
      %v1408 = vsel %vm1276, %v1403, %v1407
      %1409 = vrot.lane.b32.xlu0 %v1288, 3
      %v1410 = vpop.permute.xlu0 %1409
      %1411 = vrot.lane.b32.xlu0 %v1296, 3
      %v1412 = vpop.permute.xlu0 %1411
      %1413 = vrot.lane.b32.xlu0 %v1304, 3
      %v1414 = vpop.permute.xlu0 %1413
      %1415 = vrot.lane.b32.xlu0 %v1312, 3
      %v1416 = vpop.permute.xlu0 %1415
      %1417 = vrot.lane.b32.xlu0 %v1320, 3
      %v1418 = vpop.permute.xlu0 %1417
      %1419 = vrot.lane.b32.xlu0 %v1328, 3
      %v1420 = vpop.permute.xlu0 %1419
      %1421 = vrot.lane.b32.xlu0 %v1336, 3
      %v1422 = vpop.permute.xlu0 %1421
      %1423 = vrot.lane.b32.xlu0 %v1344, 3
      %v1424 = vpop.permute.xlu0 %1423
      %1425 = vrot.lane.b32.xlu0 %v1352, 3
      %v1426 = vpop.permute.xlu0 %1425
      %1427 = vrot.lane.b32.xlu0 %v1360, 3
      %v1428 = vpop.permute.xlu0 %1427
      %1429 = vrot.lane.b32.xlu0 %v1368, 3
      %v1430 = vpop.permute.xlu0 %1429
      %1431 = vrot.lane.b32.xlu0 %v1376, 3
      %v1432 = vpop.permute.xlu0 %1431
      %1433 = vrot.lane.b32.xlu0 %v1384, 3
      %v1434 = vpop.permute.xlu0 %1433
      %1435 = vrot.lane.b32.xlu0 %v1392, 3
      %v1436 = vpop.permute.xlu0 %1435
      %1437 = vrot.lane.b32.xlu0 %v1400, 3
      %v1438 = vpop.permute.xlu0 %1437
      %1439 = vrot.lane.b32.xlu0 %v1408, 3
      %v1440 = vpop.permute.xlu0 %1439
      %vm1458 = vcmask 1046528
      %v1459 = vrot.slane %v1193, 1
      %v1460 = vrot.slane %v1194, 1
      %v1461 = vsel %vm1458, %v1459, %v1460
      %v1462 = vrot.slane %v1195, 1
      %v1463 = vsel %vm1458, %v1460, %v1462
      %v1464 = vrot.slane %v1196, 1
      %v1465 = vsel %vm1458, %v1462, %v1464
      %v1466 = vrot.slane %v1197, 1
      %v1467 = vsel %vm1458, %v1464, %v1466
      %v1468 = vrot.slane %v1198, 1
      %v1469 = vsel %vm1458, %v1466, %v1468
      %v1470 = vrot.slane %v1199, 1
      %v1471 = vsel %vm1458, %v1468, %v1470
      %v1472 = vrot.slane %v1200, 1
      %v1473 = vsel %vm1458, %v1470, %v1472
      %v1474 = vrot.slane %v1201, 1
      %v1475 = vsel %vm1458, %v1472, %v1474
      %v1476 = vrot.slane %v1202, 1
      %v1477 = vsel %vm1458, %v1474, %v1476
      %v1478 = vrot.slane %v1203, 1
      %v1479 = vsel %vm1458, %v1476, %v1478
      %v1480 = vrot.slane %v1204, 1
      %v1481 = vsel %vm1458, %v1478, %v1480
      %v1482 = vrot.slane %v1205, 1
      %v1483 = vsel %vm1458, %v1480, %v1482
      %v1484 = vrot.slane %v1206, 1
      %v1485 = vsel %vm1458, %v1482, %v1484
      %v1486 = vrot.slane %v1207, 1
      %v1487 = vsel %vm1458, %v1484, %v1486
      %v1488 = vrot.slane %v1208, 1
      %v1489 = vsel %vm1458, %v1486, %v1488
      %v1490 = vrot.slane %v1209, 1
      %v1491 = vsel %vm1458, %v1488, %v1490
      %1492 = vrot.lane.b32.xlu0 %v1461, 6
      %v1493 = vpop.permute.xlu0 %1492
      %1494 = vrot.lane.b32.xlu0 %v1463, 6
      %v1495 = vpop.permute.xlu0 %1494
      %1496 = vrot.lane.b32.xlu0 %v1465, 6
      %v1497 = vpop.permute.xlu0 %1496
      %1498 = vrot.lane.b32.xlu0 %v1467, 6
      %v1499 = vpop.permute.xlu0 %1498
      %1500 = vrot.lane.b32.xlu0 %v1469, 6
      %v1501 = vpop.permute.xlu0 %1500
      %1502 = vrot.lane.b32.xlu0 %v1471, 6
      %v1503 = vpop.permute.xlu0 %1502
      %1504 = vrot.lane.b32.xlu0 %v1473, 6
      %v1505 = vpop.permute.xlu0 %1504
      %1506 = vrot.lane.b32.xlu0 %v1475, 6
      %v1507 = vpop.permute.xlu0 %1506
      %1508 = vrot.lane.b32.xlu0 %v1477, 6
      %v1509 = vpop.permute.xlu0 %1508
      %1510 = vrot.lane.b32.xlu0 %v1479, 6
      %v1511 = vpop.permute.xlu0 %1510
      %1512 = vrot.lane.b32.xlu0 %v1481, 6
      %v1513 = vpop.permute.xlu0 %1512
      %1514 = vrot.lane.b32.xlu0 %v1483, 6
      %v1515 = vpop.permute.xlu0 %1514
      %1516 = vrot.lane.b32.xlu0 %v1485, 6
      %v1517 = vpop.permute.xlu0 %1516
      %1518 = vrot.lane.b32.xlu0 %v1487, 6
      %v1519 = vpop.permute.xlu0 %1518
      %1520 = vrot.lane.b32.xlu0 %v1489, 6
      %v1521 = vpop.permute.xlu0 %1520
      %1522 = vrot.lane.b32.xlu0 %v1491, 6
      %v1523 = vpop.permute.xlu0 %1522
      %1540 = vrot.lane.b32.xlu0 %v1210, 9
      %v1541 = vpop.permute.xlu0 %1540
      %1542 = vrot.lane.b32.xlu0 %v1211, 9
      %v1543 = vpop.permute.xlu0 %1542
      %1544 = vrot.lane.b32.xlu0 %v1212, 9
      %v1545 = vpop.permute.xlu0 %1544
      %1546 = vrot.lane.b32.xlu0 %v1213, 9
      %v1547 = vpop.permute.xlu0 %1546
      %1548 = vrot.lane.b32.xlu0 %v1214, 9
      %v1549 = vpop.permute.xlu0 %1548
      %1550 = vrot.lane.b32.xlu0 %v1215, 9
      %v1551 = vpop.permute.xlu0 %1550
      %1552 = vrot.lane.b32.xlu0 %v1216, 9
      %v1553 = vpop.permute.xlu0 %1552
      %1554 = vrot.lane.b32.xlu0 %v1217, 9
      %v1555 = vpop.permute.xlu0 %1554
      %1556 = vrot.lane.b32.xlu0 %v1218, 9
      %v1557 = vpop.permute.xlu0 %1556
      %1558 = vrot.lane.b32.xlu0 %v1219, 9
      %v1559 = vpop.permute.xlu0 %1558
      %1560 = vrot.lane.b32.xlu0 %v1220, 9
      %v1561 = vpop.permute.xlu0 %1560
      %1562 = vrot.lane.b32.xlu0 %v1221, 9
      %v1563 = vpop.permute.xlu0 %1562
      %1564 = vrot.lane.b32.xlu0 %v1222, 9
      %v1565 = vpop.permute.xlu0 %1564
      %1566 = vrot.lane.b32.xlu0 %v1223, 9
      %v1567 = vpop.permute.xlu0 %1566
      %1568 = vrot.lane.b32.xlu0 %v1224, 9
      %v1569 = vpop.permute.xlu0 %1568
      %1570 = vrot.lane.b32.xlu0 %v1225, 9
      %v1571 = vpop.permute.xlu0 %1570
      %v1572 = vshrl.u32 %v450, 16
      %v1574 = vor.u32 %v1572, %v1407
      %v1576 = vshll.u32 %v471, 16
      %v1578 = vrot.slane %v1576, 1
      %v1579 = vsel %vm1276, %v1574, %v1578
      %1580 = vrot.lane.b32.xlu0 %v1296, 12
      %v1581 = vpop.permute.xlu0 %1580
      %1582 = vrot.lane.b32.xlu0 %v1304, 12
      %v1583 = vpop.permute.xlu0 %1582
      %1584 = vrot.lane.b32.xlu0 %v1312, 12
      %v1585 = vpop.permute.xlu0 %1584
      %1586 = vrot.lane.b32.xlu0 %v1320, 12
      %v1587 = vpop.permute.xlu0 %1586
      %1588 = vrot.lane.b32.xlu0 %v1328, 12
      %v1589 = vpop.permute.xlu0 %1588
      %1590 = vrot.lane.b32.xlu0 %v1336, 12
      %v1591 = vpop.permute.xlu0 %1590
      %1592 = vrot.lane.b32.xlu0 %v1344, 12
      %v1593 = vpop.permute.xlu0 %1592
      %1594 = vrot.lane.b32.xlu0 %v1352, 12
      %v1595 = vpop.permute.xlu0 %1594
      %1596 = vrot.lane.b32.xlu0 %v1360, 12
      %v1597 = vpop.permute.xlu0 %1596
      %1598 = vrot.lane.b32.xlu0 %v1368, 12
      %v1599 = vpop.permute.xlu0 %1598
      %1600 = vrot.lane.b32.xlu0 %v1376, 12
      %v1601 = vpop.permute.xlu0 %1600
      %1602 = vrot.lane.b32.xlu0 %v1384, 12
      %v1603 = vpop.permute.xlu0 %1602
      %1604 = vrot.lane.b32.xlu0 %v1392, 12
      %v1605 = vpop.permute.xlu0 %1604
      %1606 = vrot.lane.b32.xlu0 %v1400, 12
      %v1607 = vpop.permute.xlu0 %1606
      %1608 = vrot.lane.b32.xlu0 %v1408, 12
      %v1609 = vpop.permute.xlu0 %1608
      %1610 = vrot.lane.b32.xlu0 %v1579, 12
      %v1611 = vpop.permute.xlu0 %1610
      %v1629 = vrot.slane %v1226, 1
      %v1630 = vrot.slane %v1227, 1
      %v1631 = vsel %vm1458, %v1629, %v1630
      %v1632 = vrot.slane %v1228, 1
      %v1633 = vsel %vm1458, %v1630, %v1632
      %v1634 = vrot.slane %v1229, 1
      %v1635 = vsel %vm1458, %v1632, %v1634
      %v1636 = vrot.slane %v1230, 1
      %v1637 = vsel %vm1458, %v1634, %v1636
      %v1638 = vrot.slane %v1231, 1
      %v1639 = vsel %vm1458, %v1636, %v1638
      %v1640 = vrot.slane %v1232, 1
      %v1641 = vsel %vm1458, %v1638, %v1640
      %v1642 = vrot.slane %v1233, 1
      %v1643 = vsel %vm1458, %v1640, %v1642
      %v1644 = vrot.slane %v1234, 1
      %v1645 = vsel %vm1458, %v1642, %v1644
      %v1646 = vrot.slane %v1235, 1
      %v1647 = vsel %vm1458, %v1644, %v1646
      %v1648 = vrot.slane %v1236, 1
      %v1649 = vsel %vm1458, %v1646, %v1648
      %v1650 = vrot.slane %v1237, 1
      %v1651 = vsel %vm1458, %v1648, %v1650
      %v1652 = vrot.slane %v1238, 1
      %v1653 = vsel %vm1458, %v1650, %v1652
      %v1654 = vrot.slane %v1239, 1
      %v1655 = vsel %vm1458, %v1652, %v1654
      %v1656 = vrot.slane %v1240, 1
      %v1657 = vsel %vm1458, %v1654, %v1656
      %v1658 = vrot.slane %v1241, 1
      %v1659 = vsel %vm1458, %v1656, %v1658
      %v1660 = vrot.slane %v1242, 1
      %v1661 = vsel %vm1458, %v1658, %v1660
      %1662 = vrot.lane.b32.xlu0 %v1631, 15
      %v1663 = vpop.permute.xlu0 %1662
      %1664 = vrot.lane.b32.xlu0 %v1633, 15
      %v1665 = vpop.permute.xlu0 %1664
      %1666 = vrot.lane.b32.xlu0 %v1635, 15
      %v1667 = vpop.permute.xlu0 %1666
      %1668 = vrot.lane.b32.xlu0 %v1637, 15
      %v1669 = vpop.permute.xlu0 %1668
      %1670 = vrot.lane.b32.xlu0 %v1639, 15
      %v1671 = vpop.permute.xlu0 %1670
      %1672 = vrot.lane.b32.xlu0 %v1641, 15
      %v1673 = vpop.permute.xlu0 %1672
      %1674 = vrot.lane.b32.xlu0 %v1643, 15
      %v1675 = vpop.permute.xlu0 %1674
      %1676 = vrot.lane.b32.xlu0 %v1645, 15
      %v1677 = vpop.permute.xlu0 %1676
      %1678 = vrot.lane.b32.xlu0 %v1647, 15
      %v1679 = vpop.permute.xlu0 %1678
      %1680 = vrot.lane.b32.xlu0 %v1649, 15
      %v1681 = vpop.permute.xlu0 %1680
      %1682 = vrot.lane.b32.xlu0 %v1651, 15
      %v1683 = vpop.permute.xlu0 %1682
      %1684 = vrot.lane.b32.xlu0 %v1653, 15
      %v1685 = vpop.permute.xlu0 %1684
      %1686 = vrot.lane.b32.xlu0 %v1655, 15
      %v1687 = vpop.permute.xlu0 %1686
      %1688 = vrot.lane.b32.xlu0 %v1657, 15
      %v1689 = vpop.permute.xlu0 %1688
      %1690 = vrot.lane.b32.xlu0 %v1659, 15
      %v1691 = vpop.permute.xlu0 %1690
      %1692 = vrot.lane.b32.xlu0 %v1661, 15
      %v1693 = vpop.permute.xlu0 %1692
      %1710 = vrot.lane.b32.xlu0 %v1243, 18
      %v1711 = vpop.permute.xlu0 %1710
      %1712 = vrot.lane.b32.xlu0 %v1244, 18
      %v1713 = vpop.permute.xlu0 %1712
      %1714 = vrot.lane.b32.xlu0 %v1245, 18
      %v1715 = vpop.permute.xlu0 %1714
      %1716 = vrot.lane.b32.xlu0 %v1246, 18
      %v1717 = vpop.permute.xlu0 %1716
      %1718 = vrot.lane.b32.xlu0 %v1247, 18
      %v1719 = vpop.permute.xlu0 %1718
      %1720 = vrot.lane.b32.xlu0 %v1248, 18
      %v1721 = vpop.permute.xlu0 %1720
      %1722 = vrot.lane.b32.xlu0 %v1249, 18
      %v1723 = vpop.permute.xlu0 %1722
      %1724 = vrot.lane.b32.xlu0 %v1250, 18
      %v1725 = vpop.permute.xlu0 %1724
      %1726 = vrot.lane.b32.xlu0 %v1251, 18
      %v1727 = vpop.permute.xlu0 %1726
      %1728 = vrot.lane.b32.xlu0 %v1252, 18
      %v1729 = vpop.permute.xlu0 %1728
      %1730 = vrot.lane.b32.xlu0 %v1253, 18
      %v1731 = vpop.permute.xlu0 %1730
      %1732 = vrot.lane.b32.xlu0 %v1254, 18
      %v1733 = vpop.permute.xlu0 %1732
      %1734 = vrot.lane.b32.xlu0 %v1255, 18
      %v1735 = vpop.permute.xlu0 %1734
      %1736 = vrot.lane.b32.xlu0 %v1256, 18
      %v1737 = vpop.permute.xlu0 %1736
      %1738 = vrot.lane.b32.xlu0 %v1257, 18
      %v1739 = vpop.permute.xlu0 %1738
      %1740 = vrot.lane.b32.xlu0 %v1258, 18
      %v1741 = vpop.permute.xlu0 %1740
      %v1742 = vshrl.u32 %v471, 16
      %v1744 = vor.u32 %v1742, %v1578
      %v1745 = vsel %vm1276, %v1744, %v1282
      %1746 = vrot.lane.b32.xlu0 %v1304, 21
      %v1747 = vpop.permute.xlu0 %1746
      %1748 = vrot.lane.b32.xlu0 %v1312, 21
      %v1749 = vpop.permute.xlu0 %1748
      %1750 = vrot.lane.b32.xlu0 %v1320, 21
      %v1751 = vpop.permute.xlu0 %1750
      %1752 = vrot.lane.b32.xlu0 %v1328, 21
      %v1753 = vpop.permute.xlu0 %1752
      %1754 = vrot.lane.b32.xlu0 %v1336, 21
      %v1755 = vpop.permute.xlu0 %1754
      %1756 = vrot.lane.b32.xlu0 %v1344, 21
      %v1757 = vpop.permute.xlu0 %1756
      %1758 = vrot.lane.b32.xlu0 %v1352, 21
      %v1759 = vpop.permute.xlu0 %1758
      %1760 = vrot.lane.b32.xlu0 %v1360, 21
      %v1761 = vpop.permute.xlu0 %1760
      %1762 = vrot.lane.b32.xlu0 %v1368, 21
      %v1763 = vpop.permute.xlu0 %1762
      %1764 = vrot.lane.b32.xlu0 %v1376, 21
      %v1765 = vpop.permute.xlu0 %1764
      %1766 = vrot.lane.b32.xlu0 %v1384, 21
      %v1767 = vpop.permute.xlu0 %1766
      %1768 = vrot.lane.b32.xlu0 %v1392, 21
      %v1769 = vpop.permute.xlu0 %1768
      %1770 = vrot.lane.b32.xlu0 %v1400, 21
      %v1771 = vpop.permute.xlu0 %1770
      %1772 = vrot.lane.b32.xlu0 %v1408, 21
      %v1773 = vpop.permute.xlu0 %1772
      %1774 = vrot.lane.b32.xlu0 %v1579, 21
      %v1775 = vpop.permute.xlu0 %1774
      %1776 = vrot.lane.b32.xlu0 %v1745, 21
      %v1777 = vpop.permute.xlu0 %1776
      %v1795 = vrot.slane %v1259, 1
      %v1796 = vrot.slane %v1260, 1
      %v1797 = vsel %vm1458, %v1795, %v1796
      %v1798 = vrot.slane %v1261, 1
      %v1799 = vsel %vm1458, %v1796, %v1798
      %v1800 = vrot.slane %v1262, 1
      %v1801 = vsel %vm1458, %v1798, %v1800
      %v1802 = vrot.slane %v1263, 1
      %v1803 = vsel %vm1458, %v1800, %v1802
      %v1804 = vrot.slane %v1264, 1
      %v1805 = vsel %vm1458, %v1802, %v1804
      %v1806 = vrot.slane %v1265, 1
      %v1807 = vsel %vm1458, %v1804, %v1806
      %v1808 = vrot.slane %v1266, 1
      %v1809 = vsel %vm1458, %v1806, %v1808
      %v1810 = vrot.slane %v1267, 1
      %v1811 = vsel %vm1458, %v1808, %v1810
      %v1812 = vrot.slane %v1268, 1
      %v1813 = vsel %vm1458, %v1810, %v1812
      %v1814 = vrot.slane %v1269, 1
      %v1815 = vsel %vm1458, %v1812, %v1814
      %v1816 = vrot.slane %v1270, 1
      %v1817 = vsel %vm1458, %v1814, %v1816
      %v1818 = vrot.slane %v1271, 1
      %v1819 = vsel %vm1458, %v1816, %v1818
      %v1820 = vrot.slane %v1272, 1
      %v1821 = vsel %vm1458, %v1818, %v1820
      %v1822 = vrot.slane %v1273, 1
      %v1823 = vsel %vm1458, %v1820, %v1822
      %v1824 = vrot.slane %v1274, 1
      %v1825 = vsel %vm1458, %v1822, %v1824
      %v1826 = vrot.slane %v1275, 1
      %v1827 = vsel %vm1458, %v1824, %v1826
      %1828 = vrot.lane.b32.xlu0 %v1797, 24
      %v1829 = vpop.permute.xlu0 %1828
      %1830 = vrot.lane.b32.xlu0 %v1799, 24
      %v1831 = vpop.permute.xlu0 %1830
      %1832 = vrot.lane.b32.xlu0 %v1801, 24
      %v1833 = vpop.permute.xlu0 %1832
      %1834 = vrot.lane.b32.xlu0 %v1803, 24
      %v1835 = vpop.permute.xlu0 %1834
      %1836 = vrot.lane.b32.xlu0 %v1805, 24
      %v1837 = vpop.permute.xlu0 %1836
      %1838 = vrot.lane.b32.xlu0 %v1807, 24
      %v1839 = vpop.permute.xlu0 %1838
      %1840 = vrot.lane.b32.xlu0 %v1809, 24
      %v1841 = vpop.permute.xlu0 %1840
      %1842 = vrot.lane.b32.xlu0 %v1811, 24
      %v1843 = vpop.permute.xlu0 %1842
      %1844 = vrot.lane.b32.xlu0 %v1813, 24
      %v1845 = vpop.permute.xlu0 %1844
      %1846 = vrot.lane.b32.xlu0 %v1815, 24
      %v1847 = vpop.permute.xlu0 %1846
      %1848 = vrot.lane.b32.xlu0 %v1817, 24
      %v1849 = vpop.permute.xlu0 %1848
      %1850 = vrot.lane.b32.xlu0 %v1819, 24
      %v1851 = vpop.permute.xlu0 %1850
      %1852 = vrot.lane.b32.xlu0 %v1821, 24
      %v1853 = vpop.permute.xlu0 %1852
      %1854 = vrot.lane.b32.xlu0 %v1823, 24
      %v1855 = vpop.permute.xlu0 %1854
      %1856 = vrot.lane.b32.xlu0 %v1825, 24
      %v1857 = vpop.permute.xlu0 %1856
      %1858 = vrot.lane.b32.xlu0 %v1827, 24
      %v1859 = vpop.permute.xlu0 %1858
      %vm1860 = vcmask 23552
      %v1863 = vsel %vm1860, %v1113, %v1410
      %v1866 = vsel %vm1860, %v1114, %v1412
      %v1869 = vsel %vm1860, %v1115, %v1414
      %v1872 = vsel %vm1860, %v1116, %v1416
      %v1875 = vsel %vm1860, %v1117, %v1418
      %v1878 = vsel %vm1860, %v1118, %v1420
      %v1881 = vsel %vm1860, %v1119, %v1422
      %v1884 = vsel %vm1860, %v1120, %v1424
      %v1887 = vsel %vm1860, %v1121, %v1426
      %v1890 = vsel %vm1860, %v1122, %v1428
      %v1893 = vsel %vm1860, %v1123, %v1430
      %v1896 = vsel %vm1860, %v1124, %v1432
      %v1899 = vsel %vm1860, %v1125, %v1434
      %v1902 = vsel %vm1860, %v1126, %v1436
      %v1905 = vsel %vm1860, %v1127, %v1438
      %v1908 = vsel %vm1860, %v1128, %v1440
      %vm1909 = vcmask 48128
      %v1911 = vsel %vm1909, %v1863, %v1493
      %v1913 = vsel %vm1909, %v1866, %v1495
      %v1915 = vsel %vm1909, %v1869, %v1497
      %v1917 = vsel %vm1909, %v1872, %v1499
      %v1919 = vsel %vm1909, %v1875, %v1501
      %v1921 = vsel %vm1909, %v1878, %v1503
      %v1923 = vsel %vm1909, %v1881, %v1505
      %v1925 = vsel %vm1909, %v1884, %v1507
      %v1927 = vsel %vm1909, %v1887, %v1509
      %v1929 = vsel %vm1909, %v1890, %v1511
      %v1931 = vsel %vm1909, %v1893, %v1513
      %v1933 = vsel %vm1909, %v1896, %v1515
      %v1935 = vsel %vm1909, %v1899, %v1517
      %v1937 = vsel %vm1909, %v1902, %v1519
      %v1939 = vsel %vm1909, %v1905, %v1521
      %v1941 = vsel %vm1909, %v1908, %v1523
      %vm1942 = vcmask 72704
      %v1944 = vsel %vm1942, %v1911, %v1541
      %v1946 = vsel %vm1942, %v1913, %v1543
      %v1948 = vsel %vm1942, %v1915, %v1545
      %v1950 = vsel %vm1942, %v1917, %v1547
      %v1952 = vsel %vm1942, %v1919, %v1549
      %v1954 = vsel %vm1942, %v1921, %v1551
      %v1956 = vsel %vm1942, %v1923, %v1553
      %v1958 = vsel %vm1942, %v1925, %v1555
      %v1960 = vsel %vm1942, %v1927, %v1557
      %v1962 = vsel %vm1942, %v1929, %v1559
      %v1964 = vsel %vm1942, %v1931, %v1561
      %v1966 = vsel %vm1942, %v1933, %v1563
      %v1968 = vsel %vm1942, %v1935, %v1565
      %v1970 = vsel %vm1942, %v1937, %v1567
      %v1972 = vsel %vm1942, %v1939, %v1569
      %v1974 = vsel %vm1942, %v1941, %v1571
      %vm1975 = vcmask 97280
      %v1977 = vsel %vm1975, %v1944, %v1581
      %v1979 = vsel %vm1975, %v1946, %v1583
      %v1981 = vsel %vm1975, %v1948, %v1585
      %v1983 = vsel %vm1975, %v1950, %v1587
      %v1985 = vsel %vm1975, %v1952, %v1589
      %v1987 = vsel %vm1975, %v1954, %v1591
      %v1989 = vsel %vm1975, %v1956, %v1593
      %v1991 = vsel %vm1975, %v1958, %v1595
      %v1993 = vsel %vm1975, %v1960, %v1597
      %v1995 = vsel %vm1975, %v1962, %v1599
      %v1997 = vsel %vm1975, %v1964, %v1601
      %v1999 = vsel %vm1975, %v1966, %v1603
      %v2001 = vsel %vm1975, %v1968, %v1605
      %v2003 = vsel %vm1975, %v1970, %v1607
      %v2005 = vsel %vm1975, %v1972, %v1609
      %v2007 = vsel %vm1975, %v1974, %v1611
      %vm2008 = vcmask 121856
      %v2010 = vsel %vm2008, %v1977, %v1663
      %v2012 = vsel %vm2008, %v1979, %v1665
      %v2014 = vsel %vm2008, %v1981, %v1667
      %v2016 = vsel %vm2008, %v1983, %v1669
      %v2018 = vsel %vm2008, %v1985, %v1671
      %v2020 = vsel %vm2008, %v1987, %v1673
      %v2022 = vsel %vm2008, %v1989, %v1675
      %v2024 = vsel %vm2008, %v1991, %v1677
      %v2026 = vsel %vm2008, %v1993, %v1679
      %v2028 = vsel %vm2008, %v1995, %v1681
      %v2030 = vsel %vm2008, %v1997, %v1683
      %v2032 = vsel %vm2008, %v1999, %v1685
      %v2034 = vsel %vm2008, %v2001, %v1687
      %v2036 = vsel %vm2008, %v2003, %v1689
      %v2038 = vsel %vm2008, %v2005, %v1691
      %v2040 = vsel %vm2008, %v2007, %v1693
      %vm2041 = vcmask 146432
      %v2043 = vsel %vm2041, %v2010, %v1711
      %v2045 = vsel %vm2041, %v2012, %v1713
      %v2047 = vsel %vm2041, %v2014, %v1715
      %v2049 = vsel %vm2041, %v2016, %v1717
      %v2051 = vsel %vm2041, %v2018, %v1719
      %v2053 = vsel %vm2041, %v2020, %v1721
      %v2055 = vsel %vm2041, %v2022, %v1723
      %v2057 = vsel %vm2041, %v2024, %v1725
      %v2059 = vsel %vm2041, %v2026, %v1727
      %v2061 = vsel %vm2041, %v2028, %v1729
      %v2063 = vsel %vm2041, %v2030, %v1731
      %v2065 = vsel %vm2041, %v2032, %v1733
      %v2067 = vsel %vm2041, %v2034, %v1735
      %v2069 = vsel %vm2041, %v2036, %v1737
      %v2071 = vsel %vm2041, %v2038, %v1739
      %v2073 = vsel %vm2041, %v2040, %v1741
      %vm2074 = vcmask 171008
      %v2076 = vsel %vm2074, %v2043, %v1747
      %v2078 = vsel %vm2074, %v2045, %v1749
      %v2080 = vsel %vm2074, %v2047, %v1751
      %v2082 = vsel %vm2074, %v2049, %v1753
      %v2084 = vsel %vm2074, %v2051, %v1755
      %v2086 = vsel %vm2074, %v2053, %v1757
      %v2088 = vsel %vm2074, %v2055, %v1759
      %v2090 = vsel %vm2074, %v2057, %v1761
      %v2092 = vsel %vm2074, %v2059, %v1763
      %v2094 = vsel %vm2074, %v2061, %v1765
      %v2096 = vsel %vm2074, %v2063, %v1767
      %v2098 = vsel %vm2074, %v2065, %v1769
      %v2100 = vsel %vm2074, %v2067, %v1771
      %v2102 = vsel %vm2074, %v2069, %v1773
      %v2104 = vsel %vm2074, %v2071, %v1775
      %v2106 = vsel %vm2074, %v2073, %v1777
      %vm2107 = vcmask 195584
      %v2109 = vsel %vm2107, %v2076, %v1829
      %v2111 = vsel %vm2107, %v2078, %v1831
      %v2113 = vsel %vm2107, %v2080, %v1833
      %v2115 = vsel %vm2107, %v2082, %v1835
      %v2117 = vsel %vm2107, %v2084, %v1837
      %v2119 = vsel %vm2107, %v2086, %v1839
      %v2121 = vsel %vm2107, %v2088, %v1841
      %v2123 = vsel %vm2107, %v2090, %v1843
      %v2125 = vsel %vm2107, %v2092, %v1845
      %v2127 = vsel %vm2107, %v2094, %v1847
      %v2129 = vsel %vm2107, %v2096, %v1849
      %v2131 = vsel %vm2107, %v2098, %v1851
      %v2133 = vsel %vm2107, %v2100, %v1853
      %v2135 = vsel %vm2107, %v2102, %v1855
      %v2137 = vsel %vm2107, %v2104, %v1857
      %v2139 = vsel %vm2107, %v2106, %v1859
      %v2140 = vld [vmem:[%s1] sm:$0xf]
      %v2141 = vld [vmem:[%s1 + $0x4] sm:$0xf]
      %v2142 = vld [vmem:[%s1 + $0x8] sm:$0xf]
      %v2143 = vld [vmem:[%s1 + $0xc] sm:$0x3]
      %v2144 = vld [vmem:[%s2] sm:$0x1]
      %v2146 = vlaneseq
      %v2147 = vshrl.u32 %v2146, 7
      %v2148 = vsub.s32 0, %v2147
      %v2149 = vrot.slane %v2144, %v2148
      %v2155 = vunpack.c.l.b16 %v2140
      %v2156 = vunpack.c.l.b16 %v2141
      %v2157 = vunpack.c.l.b16 %v2142
      %v2158 = vunpack.c.l.b16 %v2143
      %v2159 = vpack.c.b16 %v2156, %v2155
      %v2160 = vpack.c.b16 %v2158, %v2157
      %vm2162 = vcmask 220160
      %v2163 = vsel %vm2162, %v2109, 0
      %v2165 = vsel %vm2162, %v2111, 0
      %v2167 = vsel %vm2162, %v2113, 0
      %v2169 = vsel %vm2162, %v2115, 0
      %v2171 = vsel %vm2162, %v2117, 0
      %v2173 = vsel %vm2162, %v2119, 0
      %v2175 = vsel %vm2162, %v2121, 0
      %v2177 = vsel %vm2162, %v2123, 0
      %v2179 = vsel %vm2162, %v2125, 0
      %v2181 = vsel %vm2162, %v2127, 0
      %v2183 = vsel %vm2162, %v2129, 0
      %v2185 = vsel %vm2162, %v2131, 0
      %v2187 = vsel %vm2162, %v2133, 0
      %v2189 = vsel %vm2162, %v2135, 0
      %v2191 = vsel %vm2162, %v2137, 0
      %v2193 = vsel %vm2162, %v2139, 0
      %vm2195 = vcmask 1044480
      %vm2196 = vcmask 1045504
      %v2197 = vsel %vm2195, 4294967295, 65535
      %v2198 = vsel %vm2196, %v2197, 0
      %v2200 = vand.u32 %v2160, %v2198
      %2202 = vmatprep.subr.bf16.mxu0 0
      %2203 = vmatpush1.bf16.msra.mxu0 0
      %2204 = vmatprep.subr.bf16.mxu0 0
      %2205 = vmatpush1.bf16.msra.mxu0 0
      %2206 = vmatprep.subr.bf16.mxu0 0
      %2207 = vmatpush1.bf16.msra.mxu0 0
      %2208 = vmatprep.subr.bf16.mxu0 0
      %2209 = vmatpush1.bf16.msra.mxu0 0
      %2210 = vmatprep.subr.bf16.mxu0 0
      %2211 = vmatpush1.bf16.msra.mxu0 0
      %2212 = vmatprep.subr.bf16.mxu0 0
      %2213 = vmatpush1.bf16.msra.mxu0 0
      %2214 = vmatprep.subr.bf16.mxu0 0
      %2215 = vmatpush1.bf16.msra.mxu0 %v2200
      %2216 = vmatprep.subr.bf16.mxu0 0
      %2217 = vmatpush1.bf16.msra.mxu0 %v2159
      %2218 = vmatprep.subr.bf16.mxu0 0
      %2219 = vmatpush2.bf16.msra.mxu0 0
      %2220 = vmatprep.subr.bf16.mxu0 0
      %2221 = vmatpush2.bf16.msra.mxu0 0
      %2222 = vmatprep.subr.bf16.mxu0 0
      %2223 = vmatpush2.bf16.msra.mxu0 0
      %2224 = vmatprep.subr.bf16.mxu0 0
      %2225 = vmatpush2.bf16.msra.mxu0 0
      %2226 = vmatprep.subr.bf16.mxu0 0
      %2227 = vmatpush2.bf16.msra.mxu0 0
      %2228 = vmatprep.subr.bf16.mxu0 0
      %2229 = vmatpush2.bf16.msra.mxu0 0
      %2230 = vmatprep.subr.bf16.mxu0 0
      %2231 = vmatpush2.bf16.msra.mxu0 0
      %2232 = vmatprep.subr.bf16.mxu0 0
      %2233 = vmatpush2.bf16.msra.mxu0 0
      %2234 = vmatprep.mubr.bf16.mxu0 0
      %2235 = vmatmul.mubr.bf16.gmra.mxu0 %v2163
      %v2236 = vpop.f32.mrf.mxu0
      %v2237 = vadd.f32 %v2149, %v2236
      %v2238 = vpop.f32.mrf.mxu0
      %v2239 = vpop.f32.mrf.mxu0
      %v2240 = vadd.f32 %v2149, %v2239
      %v2241 = vpop.f32.mrf.mxu0
      %2242 = vmatprep.mubr.bf16.mxu0 0
      %2243 = vmatmul.mubr.bf16.gmra.mxu0 %v2165
      %v2244 = vpop.f32.mrf.mxu0
      %v2245 = vpop.f32.mrf.mxu0
      %v2246 = vpop.f32.mrf.mxu0
      %v2247 = vpop.f32.mrf.mxu0
      %2248 = vmatprep.mubr.bf16.mxu0 0
      %2249 = vmatmul.mubr.bf16.gmra.mxu0 %v2167
      %v2250 = vpop.f32.mrf.mxu0
      %v2251 = vadd.f32 %v2149, %v2250
      %v2252 = vpop.f32.mrf.mxu0
      %v2253 = vpop.f32.mrf.mxu0
      %v2254 = vadd.f32 %v2149, %v2253
      %v2255 = vpop.f32.mrf.mxu0
      %2256 = vmatprep.mubr.bf16.mxu0 0
      %2257 = vmatmul.mubr.bf16.gmra.mxu0 %v2169
      %v2258 = vpop.f32.mrf.mxu0
      %v2259 = vpop.f32.mrf.mxu0
      %v2260 = vpop.f32.mrf.mxu0
      %v2261 = vpop.f32.mrf.mxu0
      %2262 = vmatprep.mubr.bf16.mxu0 0
      %2263 = vmatmul.mubr.bf16.gmra.mxu0 %v2171
      %v2264 = vpop.f32.mrf.mxu0
      %v2265 = vadd.f32 %v2149, %v2264
      %v2266 = vpop.f32.mrf.mxu0
      %v2267 = vpop.f32.mrf.mxu0
      %v2268 = vadd.f32 %v2149, %v2267
      %v2269 = vpop.f32.mrf.mxu0
      %2270 = vmatprep.mubr.bf16.mxu0 0
      %2271 = vmatmul.mubr.bf16.gmra.mxu0 %v2173
      %v2272 = vpop.f32.mrf.mxu0
      %v2273 = vpop.f32.mrf.mxu0
      %v2274 = vpop.f32.mrf.mxu0
      %v2275 = vpop.f32.mrf.mxu0
      %2276 = vmatprep.mubr.bf16.mxu0 0
      %2277 = vmatmul.mubr.bf16.gmra.mxu0 %v2175
      %v2278 = vpop.f32.mrf.mxu0
      %v2279 = vadd.f32 %v2149, %v2278
      %v2280 = vpop.f32.mrf.mxu0
      %v2281 = vpop.f32.mrf.mxu0
      %v2282 = vadd.f32 %v2149, %v2281
      %v2283 = vpop.f32.mrf.mxu0
      %2284 = vmatprep.mubr.bf16.mxu0 0
      %2285 = vmatmul.mubr.bf16.gmra.mxu0 %v2177
      %v2286 = vpop.f32.mrf.mxu0
      %v2287 = vpop.f32.mrf.mxu0
      %v2288 = vpop.f32.mrf.mxu0
      %v2289 = vpop.f32.mrf.mxu0
      %2290 = vmatprep.mubr.bf16.mxu0 0
      %2291 = vmatmul.mubr.bf16.gmra.mxu0 %v2179
      %v2292 = vpop.f32.mrf.mxu0
      %v2293 = vadd.f32 %v2149, %v2292
      %v2294 = vpop.f32.mrf.mxu0
      %v2295 = vpop.f32.mrf.mxu0
      %v2296 = vadd.f32 %v2149, %v2295
      %v2297 = vpop.f32.mrf.mxu0
      %2298 = vmatprep.mubr.bf16.mxu0 0
      %2299 = vmatmul.mubr.bf16.gmra.mxu0 %v2181
      %v2300 = vpop.f32.mrf.mxu0
      %v2301 = vpop.f32.mrf.mxu0
      %v2302 = vpop.f32.mrf.mxu0
      %v2303 = vpop.f32.mrf.mxu0
      %2304 = vmatprep.mubr.bf16.mxu0 0
      %2305 = vmatmul.mubr.bf16.gmra.mxu0 %v2183
      %v2306 = vpop.f32.mrf.mxu0
      %v2307 = vadd.f32 %v2149, %v2306
      %v2308 = vpop.f32.mrf.mxu0
      %v2309 = vpop.f32.mrf.mxu0
      %v2310 = vadd.f32 %v2149, %v2309
      %v2311 = vpop.f32.mrf.mxu0
      %2312 = vmatprep.mubr.bf16.mxu0 0
      %2313 = vmatmul.mubr.bf16.gmra.mxu0 %v2185
      %v2314 = vpop.f32.mrf.mxu0
      %v2315 = vpop.f32.mrf.mxu0
      %v2316 = vpop.f32.mrf.mxu0
      %v2317 = vpop.f32.mrf.mxu0
      %2318 = vmatprep.mubr.bf16.mxu0 0
      %2319 = vmatmul.mubr.bf16.gmra.mxu0 %v2187
      %v2320 = vpop.f32.mrf.mxu0
      %v2321 = vadd.f32 %v2149, %v2320
      %v2322 = vpop.f32.mrf.mxu0
      %v2323 = vpop.f32.mrf.mxu0
      %v2324 = vadd.f32 %v2149, %v2323
      %v2325 = vpop.f32.mrf.mxu0
      %2326 = vmatprep.mubr.bf16.mxu0 0
      %2327 = vmatmul.mubr.bf16.gmra.mxu0 %v2189
      %v2328 = vpop.f32.mrf.mxu0
      %v2329 = vpop.f32.mrf.mxu0
      %v2330 = vpop.f32.mrf.mxu0
      %v2331 = vpop.f32.mrf.mxu0
      %2332 = vmatprep.mubr.bf16.mxu0 0
      %2333 = vmatmul.mubr.bf16.gmra.mxu0 %v2191
      %v2334 = vpop.f32.mrf.mxu0
      %v2335 = vadd.f32 %v2149, %v2334
      %v2336 = vpop.f32.mrf.mxu0
      %v2337 = vpop.f32.mrf.mxu0
      %v2338 = vadd.f32 %v2149, %v2337
      %v2339 = vpop.f32.mrf.mxu0
      %2340 = vmatprep.mubr.bf16.mxu0 0
      %2341 = vmatmul.mubr.bf16.gmra.mxu0 %v2193
      %v2342 = vpop.f32.mrf.mxu0
      %v2343 = vpop.f32.mrf.mxu0
      %v2344 = vpop.f32.mrf.mxu0
      %v2345 = vpop.f32.mrf.mxu0
      %2346 = vdwg.mxu0
      %v2347 = vmax.f32 %v2237, 0.0
      %v2348 = vmax.f32 %v2240, 0.0
      %v2349 = vmax.f32 %v2251, 0.0
      %v2350 = vmax.f32 %v2254, 0.0
      %v2351 = vmax.f32 %v2265, 0.0
      %v2352 = vmax.f32 %v2268, 0.0
      %v2353 = vmax.f32 %v2279, 0.0
      %v2354 = vmax.f32 %v2282, 0.0
      %v2355 = vmax.f32 %v2293, 0.0
      %v2356 = vmax.f32 %v2296, 0.0
      %v2357 = vmax.f32 %v2307, 0.0
      %v2358 = vmax.f32 %v2310, 0.0
      %v2359 = vmax.f32 %v2321, 0.0
      %v2360 = vmax.f32 %v2324, 0.0
      %v2361 = vmax.f32 %v2335, 0.0
      %v2362 = vmax.f32 %v2338, 0.0
      %v2363 = vpack.c.bf16 %v2348, %v2347
      %v2364 = vpack.c.bf16 %v2350, %v2349
      %v2365 = vpack.c.bf16 %v2352, %v2351
      %v2366 = vpack.c.bf16 %v2354, %v2353
      %v2367 = vpack.c.bf16 %v2356, %v2355
      %v2368 = vpack.c.bf16 %v2358, %v2357
      %v2369 = vpack.c.bf16 %v2360, %v2359
      %v2370 = vpack.c.bf16 %v2362, %v2361
      %v2379 = vunpack.c.l.b16 %v2363
      %v2380 = vunpack.c.h.b16 %v2363
      %v2381 = vunpack.c.l.b16 %v2364
      %v2382 = vunpack.c.h.b16 %v2364
      %v2383 = vunpack.c.l.b16 %v2365
      %v2384 = vunpack.c.h.b16 %v2365
      %v2385 = vunpack.c.l.b16 %v2366
      %v2386 = vunpack.c.h.b16 %v2366
      %v2387 = vunpack.c.l.b16 %v2367
      %v2388 = vunpack.c.h.b16 %v2367
      %v2389 = vunpack.c.l.b16 %v2368
      %v2390 = vunpack.c.h.b16 %v2368
      %v2391 = vunpack.c.l.b16 %v2369
      %v2392 = vunpack.c.h.b16 %v2369
      %v2393 = vunpack.c.l.b16 %v2370
      %v2394 = vunpack.c.h.b16 %v2370
      %v2395 = vpack.c.b16 %v2379, %v2379
      %v2396 = vpack.c.b16 %v2380, %v2380
      %v2397 = vpack.c.b16 %v2381, %v2381
      %v2398 = vpack.c.b16 %v2382, %v2382
      %v2399 = vpack.c.b16 %v2383, %v2383
      %v2400 = vpack.c.b16 %v2384, %v2384
      %v2401 = vpack.c.b16 %v2385, %v2385
      %v2402 = vpack.c.b16 %v2386, %v2386
      %v2403 = vpack.c.b16 %v2387, %v2387
      %v2404 = vpack.c.b16 %v2388, %v2388
      %v2405 = vpack.c.b16 %v2389, %v2389
      %v2406 = vpack.c.b16 %v2390, %v2390
      %v2407 = vpack.c.b16 %v2391, %v2391
      %v2408 = vpack.c.b16 %v2392, %v2392
      %v2409 = vpack.c.b16 %v2393, %v2393
      %v2410 = vpack.c.b16 %v2394, %v2394
      %vm2427 = vcmask 125952
      %2428 = vst.msk [vmem:[%s208] sm:$0xf] %vm2427, %v2395
      %2429 = vst.msk [vmem:[%s208 + $0x4] sm:$0xf] %vm2427, %v2396
      %2430 = vst.msk [vmem:[%s208 + $0x8] sm:$0xf] %vm2427, %v2397
      %2431 = vst.msk [vmem:[%s208 + $0xc] sm:$0xf] %vm2427, %v2398
      %2432 = vst.msk [vmem:[%s208 + $0x10] sm:$0xf] %vm2427, %v2399
      %2433 = vst.msk [vmem:[%s208 + $0x14] sm:$0xf] %vm2427, %v2400
      %2434 = vst.msk [vmem:[%s208 + $0x18] sm:$0xf] %vm2427, %v2401
      %2435 = vst.msk [vmem:[%s208 + $0x1c] sm:$0xf] %vm2427, %v2402
      %2436 = vst.msk [vmem:[%s208 + $0x20] sm:$0xf] %vm2427, %v2403
      %2437 = vst.msk [vmem:[%s208 + $0x24] sm:$0xf] %vm2427, %v2404
      %2438 = vst.msk [vmem:[%s208 + $0x28] sm:$0xf] %vm2427, %v2405
      %2439 = vst.msk [vmem:[%s208 + $0x2c] sm:$0xf] %vm2427, %v2406
      %2440 = vst.msk [vmem:[%s208 + $0x30] sm:$0xf] %vm2427, %v2407
      %2441 = vst.msk [vmem:[%s208 + $0x34] sm:$0xf] %vm2427, %v2408
      %2442 = vst.msk [vmem:[%s208 + $0x38] sm:$0xf] %vm2427, %v2409
      %2443 = vst.msk [vmem:[%s208 + $0x3c] sm:$0xf] %vm2427, %v2410
      %s2444 = smul.u32 16, %s19
      %p2445 = scmp.lt.s32.totalorder %s18, 1
      %s2446 = scalar_select %p2445, %s18, 1
      %p2447 = scmp.lt.s32.totalorder %s2444, 15
      %s2448 = scalar_select %p2447, %s2444, 15
      %s2449 = smul.addr %s2446, 16
      %s2450 = sadd.s32 %s2448, %s2449
      %s2451 = smul.addr %s2450, 4
      %s2452 = scalar_lea.vmem %s3, %s2451
      // Predicated region
      $region33: #{colorize_net_forward.81} parent=31 // pred_check
        %p2453 = pneg %p116
      $region34: #{colorize_net_forward.81} parent=31 // pred_check_branch
        %2455 = sbr.rel (%p2453) target = $region36
      $region35: #{colorize_net_forward.81} parent=31 // pred_region
        %s2456 = smul.u32 16, %s19
      $region36: #{colorize_net_forward.81} parent=31 // pred_fallthru
        _
    $region32: #{colorize_net_forward.81} parent=5 // pred_fallthru
      _
    %p2457 = scmp.le.s32.totalorder 2, %s9
    // Predicated region
    $region37: #{colorize_net_forward.81} parent=5 // pred_check
      %p2458 = pneg %p2457
    $region38: #{colorize_net_forward.81} parent=5 // pred_check_branch
      %2460 = sbr.rel (%p2458) target = $region40
    $region39: #{colorize_net_forward.81} parent=5 // pred_region
      %s2461 = ssub.s32 %s9, 2
      // Predicated region
      $region41: #{colorize_net_forward.81} parent=39 // pred_check
        %p2462 = pneg %p122
      $region42: #{colorize_net_forward.81} parent=39 // pred_check_branch
        %2464 = sbr.rel (%p2462) target = $region44
      $region43: #{colorize_net_forward.81} parent=39 // pred_region
        %s2465 = smul.u32 16, %s21
        %p2466 = scmp.lt.s32.totalorder %s20, 1
        %s2467 = scalar_select %p2466, %s20, 1
        %p2468 = scmp.lt.s32.totalorder %s2465, 15
        %s2469 = scalar_select %p2468, %s2465, 15
        %s2470 = smul.addr %s2467, 16
        %s2471 = sadd.s32 %s2469, %s2470
        %s2472 = smul.addr %s2471, 4
        %s2473 = scalar_lea.vmem %s3, %s2472
      $region44: #{colorize_net_forward.81} parent=39 // pred_fallthru
        _
    $region40: #{colorize_net_forward.81} parent=5 // pred_fallthru
      _
  $region6: #{colorize_net_forward.81} parent=0 // loop_footer
    %s13 = sadd.s32 1, %s9
  $region7: #{colorize_net_forward.81} parent=0 // loop_footer_branch
    %8 = sbr.rel target = $region3
  $region8: #{colorize_net_forward.81} parent=0 // loop_exit
    _

// kernel: colorize_net_forward.90
$region0: #{colorize_net_forward.90}
  #allocation0 [shape = 'u32[]', space=smem, size = 0x4, offset = 0x4, fixed_abs, tag = 'smem constant byte address 0x4 - core index']
  #allocation1 [shape = 'u32[144,128]{1,0:T(1,128)}', space=vmem, size = 0x12000, scoped, tag = 'internal scratch']
  %s0 = inlined_call_operand.vmem [shape: bf16[2,16,64], index: 0, kind: input, shape index: {}]
  %s1 = inlined_call_operand.vmem [shape: bf16[576,16], index: 1, kind: input, shape index: {}]
  %s2 = inlined_call_operand.vmem [shape: f32[1,16], index: 2, kind: input, shape index: {}]
  %s3 = inlined_call_operand.vmem [shape: bf16[2,16,16], index: 3, kind: output, shape index: {}]
  %s4 = sld [smem:[#allocation0]]
  $region45: #{colorize_net_forward.90} parent=0
    _
  %s6 = ssub.s32 1, %s4
  %s7 = scalar_select 0, %s6, %s4
  loop: start=0, step=1, limit=4
  $region2: #{colorize_net_forward.90} parent=0 // loop_pre_header
    _
  $region3: #{colorize_net_forward.90} parent=0 // loop_header
    %s9 = sphi 0, %s13
    %p10 = scmp.ge.s32.totalorder %s9, 4
    %s16 = sphi 0, %s28
    %s17 = sphi 0, %s24
    %s18 = sphi 0, %s16
    %s19 = sphi 0, %s17
    %s20 = sphi 0, %s18
    %s21 = sphi 0, %s19
    %s33 = sphi 0, %s35
    %s36 = sphi 0, %s33
    %s37 = sphi 0, %s36
    %s53 = sphi 0, %s37
    %s57 = sphi 0, %s57
    %s59 = sphi 0, %s57
    %s60 = sphi 0, %s59
    %s74 = sphi 0, %s60
    %s78 = sphi 0, %s78
    %s80 = sphi 0, %s78
    %s81 = sphi 0, %s80
    %s95 = sphi 0, %s81
    %s103 = sphi 0, %s105
    %s106 = sphi 0, %s103
    %s107 = sphi 0, %s106
    %s123 = sphi 0, %s107
  $region4: #{colorize_net_forward.90} parent=0 // loop_header_branch
    %12 = sbr.rel (%p10) target = $region8
  $region5: #{colorize_net_forward.90} parent=0 // loop_body
    %s14 = ssub.s32 %s9, 1
    %s15 = ssub.s32 %s9, 2
    %s22 = sadd.s32 1, %s17
    %p23 = scmp.ge.s32.totalorder %s22, 1
    %s24 = scalar_select %p23, 0, %s22
    %s25 = sadd.s32 1, %s16
    %s26 = scalar_select %p23, %s25, %s16
    %p27 = scmp.ge.s32.totalorder %s26, 2
    %s28 = scalar_select %p27, 0, %s26
    %s29 = ssub.s32 %s16, %s28
    %s30 = ssub.s32 %s17, %s24
    %s31 = sor.u32 %s29, %s30
    %p32 = scmp.eq.s32.totalorder %s31, 0
    %s34 = sadd.s32 %s33, 1
    %s35 = scalar_select %p32, %s33, %s34
    %p38 = pneg %p32
    %p39 = scmp.eq.s32.totalorder %s9, 1
    %p40 = por %p38, %p39
    %p41 = scmp.ne.s32.totalorder %s33, %s36
    %p42 = scmp.eq.s32.totalorder %s9, 0
    %p43 = por %p41, %p42
    %p44 = scmp.ne.s32.totalorder %s33, %s36
    %p45 = scmp.eq.s32.totalorder %s14, 1
    %p46 = por %p44, %p45
    %p47 = scmp.ne.s32.totalorder %s36, %s37
    %p48 = scmp.eq.s32.totalorder %s14, 0
    %p49 = por %p47, %p48
    %p50 = scmp.ne.s32.totalorder %s36, %s37
    %p51 = scmp.eq.s32.totalorder %s15, 1
    %p52 = por %p50, %p51
    %p54 = scmp.ne.s32.totalorder %s37, %s53
    %p55 = scmp.eq.s32.totalorder %s15, 0
    %p56 = por %p54, %p55
    %s58 = sadd.s32 %s57, 1
    %p61 = scmp.eq.s32.totalorder %s9, 1
    %p62 = scmp.ne.s32.totalorder %s57, %s59
    %p63 = scmp.eq.s32.totalorder %s9, 0
    %p64 = por %p62, %p63
    %p65 = scmp.ne.s32.totalorder %s57, %s59
    %p66 = scmp.eq.s32.totalorder %s14, 1
    %p67 = por %p65, %p66
    %p68 = scmp.ne.s32.totalorder %s59, %s60
    %p69 = scmp.eq.s32.totalorder %s14, 0
    %p70 = por %p68, %p69
    %p71 = scmp.ne.s32.totalorder %s59, %s60
    %p72 = scmp.eq.s32.totalorder %s15, 1
    %p73 = por %p71, %p72
    %p75 = scmp.ne.s32.totalorder %s60, %s74
    %p76 = scmp.eq.s32.totalorder %s15, 0
    %p77 = por %p75, %p76
    %s79 = sadd.s32 %s78, 1
    %p82 = scmp.eq.s32.totalorder %s9, 1
    %p83 = scmp.ne.s32.totalorder %s78, %s80
    %p84 = scmp.eq.s32.totalorder %s9, 0
    %p85 = por %p83, %p84
    %p86 = scmp.ne.s32.totalorder %s78, %s80
    %p87 = scmp.eq.s32.totalorder %s14, 1
    %p88 = por %p86, %p87
    %p89 = scmp.ne.s32.totalorder %s80, %s81
    %p90 = scmp.eq.s32.totalorder %s14, 0
    %p91 = por %p89, %p90
    %p92 = scmp.ne.s32.totalorder %s80, %s81
    %p93 = scmp.eq.s32.totalorder %s15, 1
    %p94 = por %p92, %p93
    %p96 = scmp.ne.s32.totalorder %s81, %s95
    %p97 = scmp.eq.s32.totalorder %s15, 0
    %p98 = por %p96, %p97
    %s99 = ssub.s32 %s16, %s28
    %s100 = ssub.s32 %s17, %s24
    %s101 = sor.u32 %s99, %s100
    %p102 = scmp.eq.s32.totalorder %s101, 0
    %s104 = sadd.s32 %s103, 1
    %s105 = scalar_select %p102, %s103, %s104
    %p108 = pneg %p102
    %p109 = scmp.eq.s32.totalorder %s9, 1
    %p110 = por %p108, %p109
    %p111 = scmp.ne.s32.totalorder %s103, %s106
    %p112 = scmp.eq.s32.totalorder %s9, 0
    %p113 = por %p111, %p112
    %p114 = scmp.ne.s32.totalorder %s103, %s106
    %p115 = scmp.eq.s32.totalorder %s14, 1
    %p116 = por %p114, %p115
    %p117 = scmp.ne.s32.totalorder %s106, %s107
    %p118 = scmp.eq.s32.totalorder %s14, 0
    %p119 = por %p117, %p118
    %p120 = scmp.ne.s32.totalorder %s106, %s107
    %p121 = scmp.eq.s32.totalorder %s15, 1
    %p122 = por %p120, %p121
    %p124 = scmp.ne.s32.totalorder %s107, %s123
    %p125 = scmp.eq.s32.totalorder %s15, 0
    %p126 = por %p124, %p125
    %p127 = scmp.le.s32.totalorder 1, %s9
    %p128 = scmp.lt.s32.totalorder %s9, 3
    %p129 = pnand %p127, %p128
    %p130 = pneg %p129
    // Predicated region
    $region9: #{colorize_net_forward.90} parent=5 // pred_check
      _
    $region10: #{colorize_net_forward.90} parent=5 // pred_check_branch
      %132 = sbr.rel (%p129) target = $region12
    $region11: #{colorize_net_forward.90} parent=5 // pred_region
      %s133 = ssub.s32 %s9, 1
      // Predicated region
      $region13: #{colorize_net_forward.90} parent=11 // pred_check
        %p134 = pneg %p70
      $region14: #{colorize_net_forward.90} parent=11 // pred_check_branch
        %136 = sbr.rel (%p134) target = $region16
      $region15: #{colorize_net_forward.90} parent=11 // pred_region
        _
      $region16: #{colorize_net_forward.90} parent=11 // pred_fallthru
        _
      // Predicated region
      $region17: #{colorize_net_forward.90} parent=11 // pred_check
        %p137 = pneg %p91
      $region18: #{colorize_net_forward.90} parent=11 // pred_check_branch
        %139 = sbr.rel (%p137) target = $region20
      $region19: #{colorize_net_forward.90} parent=11 // pred_region
        _
      $region20: #{colorize_net_forward.90} parent=11 // pred_fallthru
        _
    $region12: #{colorize_net_forward.90} parent=5 // pred_fallthru
      _
    %p140 = scmp.lt.s32.totalorder %s9, 2
    // Predicated region
    $region21: #{colorize_net_forward.90} parent=5 // pred_check
      %p141 = pneg %p140
    $region22: #{colorize_net_forward.90} parent=5 // pred_check_branch
      %143 = sbr.rel (%p141) target = $region24
    $region23: #{colorize_net_forward.90} parent=5 // pred_region
      // Predicated region
      $region25: #{colorize_net_forward.90} parent=23 // pred_check
        %p144 = pneg %p43
      $region26: #{colorize_net_forward.90} parent=23 // pred_check_branch
        %146 = sbr.rel (%p144) target = $region28
      $region27: #{colorize_net_forward.90} parent=23 // pred_region
        %s147 = smul.u32 2, %s17
        %p148 = scmp.lt.s32.totalorder %s16, 1
        %s149 = scalar_select %p148, %s16, 1
        %p150 = scmp.lt.s32.totalorder %s147, 1
        %s151 = scalar_select %p150, %s147, 1
        %s152 = smul.addr %s149, 2
        %s153 = sadd.s32 %s151, %s152
        %s154 = smul.addr %s153, 4
        %s155 = scalar_lea.vmem %s0, %s154
        %s156 = smul.u32 2, %s17
      $region28: #{colorize_net_forward.90} parent=23 // pred_fallthru
        _
    $region24: #{colorize_net_forward.90} parent=5 // pred_fallthru
      _
    %p157 = scmp.le.s32.totalorder 1, %s9
    %p158 = scmp.lt.s32.totalorder %s9, 3
    %p159 = pnand %p157, %p158
    %p160 = pneg %p159
    // Predicated region
    $region29: #{colorize_net_forward.90} parent=5 // pred_check
      _
    $region30: #{colorize_net_forward.90} parent=5 // pred_check_branch
      %162 = sbr.rel (%p159) target = $region32
    $region31: #{colorize_net_forward.90} parent=5 // pred_region
      %s163 = ssub.s32 %s9, 1
      %s164 = smul.u32 2, %s19
      %p165 = scmp.lt.s32.totalorder %s18, 1
      %s166 = scalar_select %p165, %s18, 1
      %p167 = scmp.lt.s32.totalorder %s164, 1
      %s168 = scalar_select %p167, %s164, 1
      %s169 = smul.addr %s166, 2
      %s170 = sadd.s32 %s168, %s169
      %s171 = smul.addr %s170, 4
      %s172 = scalar_lea.vmem %s0, %s171
      %p173 = pneg %p49
      %p174 = pneg %p46
      %p175 = pneg %p70
      %p176 = pneg %p67
      %p177 = pneg %p91
      %p178 = pneg %p88
      %p179 = pneg %p119
      %p180 = pneg %p116
      %s181 = smul.u32 2, %s19
      %p182 = scmp.lt.s32.totalorder %s18, 1
      %s183 = scalar_select %p182, %s18, 1
      %p184 = scmp.lt.s32.totalorder %s181, 1
      %s185 = scalar_select %p184, %s181, 1
      %s186 = smul.addr %s183, 2
      %s187 = sadd.s32 %s185, %s186
      %s188 = smul.addr %s187, 4
      %s189 = scalar_lea.vmem %s3, %s188
      %s190 = smul.u32 2, %s19
      %p191 = scmp.lt.s32.totalorder %s18, 1
      %s192 = scalar_select %p191, %s18, 1
      %p193 = scmp.lt.s32.totalorder %s190, 1
      %s194 = scalar_select %p193, %s190, 1
      %s195 = smul.addr %s192, 2
      %s196 = sadd.s32 %s194, %s195
      %s197 = smul.addr %s196, 4
      %s198 = scalar_lea.vmem %s0, %s197
      %s199 = smul.u32 2, %s19
      %s200 = smul.u32 2, %s19
      %p201 = scmp.lt.s32.totalorder %s18, 1
      %s202 = scalar_select %p201, %s18, 1
      %p203 = scmp.lt.s32.totalorder %s200, 1
      %s204 = scalar_select %p203, %s200, 1
      %s205 = smul.addr %s202, 2
      %s206 = sadd.s32 %s204, %s205
      %s207 = smul.addr %s206, 4
      %s208 = scalar_lea.vmem %s3, %s207
      %s209 = smul.u32 2, %s19
      %v211 = vld [vmem:[%s198] sm:$0xf]
      %v212 = vld [vmem:[%s198 + $0x4] sm:$0xf]
      %v215 = vunpack.c.l.b16 %v211
      %v216 = vunpack.c.l.b16 %v212
      %v217 = vpack.c.b16 %v216, %v215
      %v219 = vshrl.u32 %v217, 16
      %v221 = vrot.slane %v219, 5
      %v222 = vshll.u32 %v217, 16
      %v224 = vrot.slane %v222, 6
      %v225 = vor.u32 %v221, %v224
      %vm227 = vcmask 1042432
      %vm228 = vsmask.f32 2304
      %vm229 = vmand %vm227, %vm228
      %v230 = vsel %vm229, 0, %v225
      %v231 = vsel %vm229, %v225, 0
      %vm232 = vcmask 1044480
      %vm233 = vsmask.f32 4352
      %vm234 = vmand %vm232, %vm233
      %v235 = vsel %vm234, %v231, 0
      %v236 = vlaneseq
      %v237 = vshrl.u32 %v236, 7
      %v238 = vadd.s32 %v237, 8
      %vm239 = vcmp.lt.s32.totalorder %v237, 0
      %v240 = vsub.s32 0, %v237
      %v241 = vsel %vm239, %v240, %v237
      %v242 = vshrl.u32 %v241, 2
      %v243 = vand.u32 %v241, 3
      %v244 = vsub.s32 0, %v243
      %v245 = vsel %vm239, %v244, %v243
      %vm246 = vcmp.lt.s32.totalorder %v238, 0
      %v247 = vsub.s32 0, %v238
      %v248 = vsel %vm246, %v247, %v238
      %v249 = vshrl.u32 %v248, 2
      %v250 = vand.u32 %v248, 3
      %v251 = vsub.s32 0, %v250
      %v252 = vsel %vm246, %v251, %v250
      %vm253 = vcmp.ne.s32.totalorder %v245, 0
      %vm254 = vcmp.ne.s32.totalorder %v252, 0
      %vm255 = vcmp.lt.s32.totalorder %v245, 0
      %vm256 = vcmp.lt.s32.totalorder %v252, 0
      %vm257 = vmand %vm255, %vm253
      %vm258 = vmand %vm256, %vm254
      %v259 = vadd.s32 %v245, 4
      %v260 = vadd.s32 %v252, 4
      %v261 = vsel %vm257, %v259, %v245
      %v262 = vsel %vm258, %v260, %v252
      %vm263 = vcmp.ne.s32.totalorder %v261, 0
      %vm264 = vcmp.ne.s32.totalorder %v262, 0
      %v265 = vsel %vm263, 1, 0
      %v266 = vsel %vm264, 1, 0
      %v267 = vcvt.s32.f32 %v265
      %v268 = vcvt.s32.f32 %v266
      %v269 = vpack.c.bf16 %v268, %v267
      %vm270 = vcmp.ne.s32.totalorder %v261, 3
      %vm271 = vcmp.ne.s32.totalorder %v262, 3
      %v272 = vsel %vm270, 1, 0
      %v273 = vsel %vm271, 1, 0
      %v274 = vcvt.s32.f32 %v272
      %v275 = vcvt.s32.f32 %v273
      %v276 = vpack.c.bf16 %v275, %v274
      %v277 = vmul.bf16 %v230, %v269
      %v279 = vrot.slane %v276, 7
      %v281 = vmul.bf16 %v230, %v279
      %v282 = vmul.bf16 %v235, %v279
      %v284 = vrot.slane %v269, 6
      %v286 = vmul.bf16 %v230, %v284
      %v287 = vmul.bf16 %v235, %v284
      %v288 = vrot.slane %v276, 5
      %v290 = vmul.bf16 %v230, %v288
      %v291 = vmul.bf16 %v235, %v288
      %v292 = vrot.slane %v269, 4
      %v294 = vmul.bf16 %v230, %v292
      %v295 = vmul.bf16 %v235, %v292
      %v296 = vrot.slane %v276, 3
      %v298 = vmul.bf16 %v230, %v296
      %v299 = vmul.bf16 %v235, %v296
      %vm300 = vsmask.f32 7424
      %v302 = vshrl.u32 %v230, 16
      %v304 = vshll.u32 %v230, 16
      %v306 = vrot.slane %v304, 1
      %v307 = vor.u32 %v302, %v306
      %v309 = vshll.u32 %v235, 16
      %v311 = vrot.slane %v309, 1
      %v312 = vsel %vm300, %v307, %v311
      %313 = vrot.lane.b32.xlu0 %v312, 64
      %v314 = vpop.permute.xlu0 %313
      %vm317 = vcmask 1046528
      %v318 = vrot.slane %v281, 1
      %v319 = vrot.slane %v282, 1
      %v320 = vsel %vm317, %v318, %v319
      %vm323 = vcmask 1045504
      %v324 = vrot.slane %v286, 2
      %v325 = vrot.slane %v287, 2
      %v326 = vsel %vm323, %v324, %v325
      %327 = vrot.lane.b32.xlu0 %v326, 64
      %v328 = vpop.permute.xlu0 %327
      %vm329 = vsmask.f32 5376
      %v330 = vrot.slane %v302, 2
      %v331 = vrot.slane %v304, 3
      %v332 = vor.u32 %v330, %v331
      %v333 = vshrl.u32 %v235, 16
      %v335 = vrot.slane %v333, 2
      %v336 = vrot.slane %v309, 3
      %v337 = vor.u32 %v335, %v336
      %v338 = vsel %vm329, %v332, %v337
      %v341 = vrot.slane %v290, 3
      %v342 = vrot.slane %v291, 3
      %v343 = vsel %vm232, %v341, %v342
      %344 = vrot.lane.b32.xlu0 %v343, 64
      %v345 = vpop.permute.xlu0 %344
      %vm348 = vcmask 1043456
      %v349 = vrot.slane %v294, 4
      %v350 = vrot.slane %v295, 4
      %v351 = vsel %vm348, %v349, %v350
      %vm352 = vsmask.f32 3328
      %v353 = vrot.slane %v302, 4
      %v354 = vrot.slane %v304, 5
      %v355 = vor.u32 %v353, %v354
      %v356 = vrot.slane %v333, 4
      %v357 = vrot.slane %v309, 5
      %v358 = vor.u32 %v356, %v357
      %v359 = vsel %vm352, %v355, %v358
      %360 = vrot.lane.b32.xlu0 %v359, 64
      %v361 = vpop.permute.xlu0 %360
      %v364 = vrot.slane %v298, 5
      %v365 = vrot.slane %v299, 5
      %v366 = vsel %vm227, %v364, %v365
      %vm367 = vcmask 523264
      %v370 = vsel %vm367, %v277, %v314
      %v374 = vsel %vm367, %v320, %v328
      %v378 = vsel %vm367, %v338, %v345
      %v382 = vsel %vm367, %v351, %v361
      %v384 = vld [vmem:[%s1] sm:$0xf]
      %v385 = vld [vmem:[%s1 + $0x4] sm:$0xf]
      %v386 = vld [vmem:[%s1 + $0x8] sm:$0xf]
      %v387 = vld [vmem:[%s1 + $0xc] sm:$0xf]
      %v388 = vld [vmem:[%s1 + $0x10] sm:$0xf]
      %v389 = vld [vmem:[%s1 + $0x14] sm:$0xf]
      %v390 = vld [vmem:[%s1 + $0x18] sm:$0xf]
      %v391 = vld [vmem:[%s1 + $0x1c] sm:$0xf]
      %v392 = vld [vmem:[%s1 + $0x20] sm:$0xf]
      %v393 = vld [vmem:[%s1 + $0x24] sm:$0xf]
      %v394 = vld [vmem:[%s1 + $0x28] sm:$0xf]
      %v395 = vld [vmem:[%s1 + $0x2c] sm:$0xf]
      %v396 = vld [vmem:[%s1 + $0x30] sm:$0xf]
      %v397 = vld [vmem:[%s1 + $0x34] sm:$0xf]
      %v398 = vld [vmem:[%s1 + $0x38] sm:$0xf]
      %v399 = vld [vmem:[%s1 + $0x3c] sm:$0xf]
      %v400 = vld [vmem:[%s1 + $0x40] sm:$0xf]
      %v401 = vld [vmem:[%s1 + $0x44] sm:$0xf]
      %v402 = vld [vmem:[%s1 + $0x48] sm:$0xf]
      %v403 = vld [vmem:[%s1 + $0x4c] sm:$0xf]
      %v404 = vld [vmem:[%s1 + $0x50] sm:$0xf]
      %v405 = vld [vmem:[%s1 + $0x54] sm:$0xf]
      %v406 = vld [vmem:[%s1 + $0x58] sm:$0xf]
      %v407 = vld [vmem:[%s1 + $0x5c] sm:$0xf]
      %v408 = vld [vmem:[%s1 + $0x60] sm:$0xf]
      %v409 = vld [vmem:[%s1 + $0x64] sm:$0xf]
      %v410 = vld [vmem:[%s1 + $0x68] sm:$0xf]
      %v411 = vld [vmem:[%s1 + $0x6c] sm:$0xf]
      %v412 = vld [vmem:[%s1 + $0x70] sm:$0xf]
      %v413 = vld [vmem:[%s1 + $0x74] sm:$0xf]
      %v414 = vld [vmem:[%s1 + $0x78] sm:$0xf]
      %v415 = vld [vmem:[%s1 + $0x7c] sm:$0xf]
      %v416 = vld [vmem:[%s1 + $0x80] sm:$0xf]
      %v417 = vld [vmem:[%s1 + $0x84] sm:$0xf]
      %v418 = vld [vmem:[%s1 + $0x88] sm:$0xf]
      %v419 = vld [vmem:[%s1 + $0x8c] sm:$0xf]
      %v420 = vld [vmem:[%s1 + $0x90] sm:$0xf]
      %v421 = vld [vmem:[%s1 + $0x94] sm:$0xf]
      %v422 = vld [vmem:[%s1 + $0x98] sm:$0xf]
      %v423 = vld [vmem:[%s1 + $0x9c] sm:$0xf]
      %v424 = vld [vmem:[%s1 + $0xa0] sm:$0xf]
      %v425 = vld [vmem:[%s1 + $0xa4] sm:$0xf]
      %v426 = vld [vmem:[%s1 + $0xa8] sm:$0xf]
      %v427 = vld [vmem:[%s1 + $0xac] sm:$0xf]
      %v428 = vld [vmem:[%s1 + $0xb0] sm:$0xf]
      %v429 = vld [vmem:[%s1 + $0xb4] sm:$0xf]
      %v430 = vld [vmem:[%s1 + $0xb8] sm:$0xf]
      %v431 = vld [vmem:[%s1 + $0xbc] sm:$0xf]
      %v432 = vld [vmem:[%s1 + $0xc0] sm:$0xf]
      %v433 = vld [vmem:[%s1 + $0xc4] sm:$0xf]
      %v434 = vld [vmem:[%s1 + $0xc8] sm:$0xf]
      %v435 = vld [vmem:[%s1 + $0xcc] sm:$0xf]
      %v436 = vld [vmem:[%s1 + $0xd0] sm:$0xf]
      %v437 = vld [vmem:[%s1 + $0xd4] sm:$0xf]
      %v438 = vld [vmem:[%s1 + $0xd8] sm:$0xf]
      %v439 = vld [vmem:[%s1 + $0xdc] sm:$0xf]
      %v440 = vld [vmem:[%s1 + $0xe0] sm:$0xf]
      %v441 = vld [vmem:[%s1 + $0xe4] sm:$0xf]
      %v442 = vld [vmem:[%s1 + $0xe8] sm:$0xf]
      %v443 = vld [vmem:[%s1 + $0xec] sm:$0xf]
      %v444 = vld [vmem:[%s1 + $0xf0] sm:$0xf]
      %v445 = vld [vmem:[%s1 + $0xf4] sm:$0xf]
      %v446 = vld [vmem:[%s1 + $0xf8] sm:$0xf]
      %v447 = vld [vmem:[%s1 + $0xfc] sm:$0xf]
      %v448 = vld [vmem:[%s1 + $0x100] sm:$0xf]
      %v449 = vld [vmem:[%s1 + $0x104] sm:$0xf]
      %v450 = vld [vmem:[%s1 + $0x108] sm:$0xf]
      %v451 = vld [vmem:[%s1 + $0x10c] sm:$0xf]
      %v452 = vld [vmem:[%s1 + $0x110] sm:$0xf]
      %v453 = vld [vmem:[%s1 + $0x114] sm:$0xf]
      %v454 = vld [vmem:[%s1 + $0x118] sm:$0xf]
      %v455 = vld [vmem:[%s1 + $0x11c] sm:$0xf]
      %v456 = vld [vmem:[%s2] sm:$0x1]
      %v458 = vlaneseq
      %v459 = vshrl.u32 %v458, 7
      %v460 = vsub.s32 0, %v459
      %v461 = vrot.slane %v456, %v460
      %v535 = vunpack.c.l.b16 %v384
      %v536 = vunpack.c.l.b16 %v385
      %v537 = vunpack.c.l.b16 %v386
      %v538 = vunpack.c.l.b16 %v387
      %v539 = vunpack.c.l.b16 %v388
      %v540 = vunpack.c.l.b16 %v389
      %v541 = vunpack.c.l.b16 %v390
      %v542 = vunpack.c.l.b16 %v391
      %v543 = vunpack.c.l.b16 %v392
      %v544 = vunpack.c.l.b16 %v393
      %v545 = vunpack.c.l.b16 %v394
      %v546 = vunpack.c.l.b16 %v395
      %v547 = vunpack.c.l.b16 %v396
      %v548 = vunpack.c.l.b16 %v397
      %v549 = vunpack.c.l.b16 %v398
      %v550 = vunpack.c.l.b16 %v399
      %v551 = vunpack.c.l.b16 %v400
      %v552 = vunpack.c.l.b16 %v401
      %v553 = vunpack.c.l.b16 %v402
      %v554 = vunpack.c.l.b16 %v403
      %v555 = vunpack.c.l.b16 %v404
      %v556 = vunpack.c.l.b16 %v405
      %v557 = vunpack.c.l.b16 %v406
      %v558 = vunpack.c.l.b16 %v407
      %v559 = vunpack.c.l.b16 %v408
      %v560 = vunpack.c.l.b16 %v409
      %v561 = vunpack.c.l.b16 %v410
      %v562 = vunpack.c.l.b16 %v411
      %v563 = vunpack.c.l.b16 %v412
      %v564 = vunpack.c.l.b16 %v413
      %v565 = vunpack.c.l.b16 %v414
      %v566 = vunpack.c.l.b16 %v415
      %v567 = vunpack.c.l.b16 %v416
      %v568 = vunpack.c.l.b16 %v417
      %v569 = vunpack.c.l.b16 %v418
      %v570 = vunpack.c.l.b16 %v419
      %v571 = vunpack.c.l.b16 %v420
      %v572 = vunpack.c.l.b16 %v421
      %v573 = vunpack.c.l.b16 %v422
      %v574 = vunpack.c.l.b16 %v423
      %v575 = vunpack.c.l.b16 %v424
      %v576 = vunpack.c.l.b16 %v425
      %v577 = vunpack.c.l.b16 %v426
      %v578 = vunpack.c.l.b16 %v427
      %v579 = vunpack.c.l.b16 %v428
      %v580 = vunpack.c.l.b16 %v429
      %v581 = vunpack.c.l.b16 %v430
      %v582 = vunpack.c.l.b16 %v431
      %v583 = vunpack.c.l.b16 %v432
      %v584 = vunpack.c.l.b16 %v433
      %v585 = vunpack.c.l.b16 %v434
      %v586 = vunpack.c.l.b16 %v435
      %v587 = vunpack.c.l.b16 %v436
      %v588 = vunpack.c.l.b16 %v437
      %v589 = vunpack.c.l.b16 %v438
      %v590 = vunpack.c.l.b16 %v439
      %v591 = vunpack.c.l.b16 %v440
      %v592 = vunpack.c.l.b16 %v441
      %v593 = vunpack.c.l.b16 %v442
      %v594 = vunpack.c.l.b16 %v443
      %v595 = vunpack.c.l.b16 %v444
      %v596 = vunpack.c.l.b16 %v445
      %v597 = vunpack.c.l.b16 %v446
      %v598 = vunpack.c.l.b16 %v447
      %v599 = vunpack.c.l.b16 %v448
      %v600 = vunpack.c.l.b16 %v449
      %v601 = vunpack.c.l.b16 %v450
      %v602 = vunpack.c.l.b16 %v451
      %v603 = vunpack.c.l.b16 %v452
      %v604 = vunpack.c.l.b16 %v453
      %v605 = vunpack.c.l.b16 %v454
      %v606 = vunpack.c.l.b16 %v455
      %v607 = vpack.c.b16 %v536, %v535
      %v608 = vpack.c.b16 %v538, %v537
      %v609 = vpack.c.b16 %v540, %v539
      %v610 = vpack.c.b16 %v542, %v541
      %v611 = vpack.c.b16 %v544, %v543
      %v612 = vpack.c.b16 %v546, %v545
      %v613 = vpack.c.b16 %v548, %v547
      %v614 = vpack.c.b16 %v550, %v549
      %v615 = vpack.c.b16 %v552, %v551
      %v616 = vpack.c.b16 %v554, %v553
      %v617 = vpack.c.b16 %v556, %v555
      %v618 = vpack.c.b16 %v558, %v557
      %v619 = vpack.c.b16 %v560, %v559
      %v620 = vpack.c.b16 %v562, %v561
      %v621 = vpack.c.b16 %v564, %v563
      %v622 = vpack.c.b16 %v566, %v565
      %v623 = vpack.c.b16 %v568, %v567
      %v624 = vpack.c.b16 %v570, %v569
      %v625 = vpack.c.b16 %v572, %v571
      %v626 = vpack.c.b16 %v574, %v573
      %v627 = vpack.c.b16 %v576, %v575
      %v628 = vpack.c.b16 %v578, %v577
      %v629 = vpack.c.b16 %v580, %v579
      %v630 = vpack.c.b16 %v582, %v581
      %v631 = vpack.c.b16 %v584, %v583
      %v632 = vpack.c.b16 %v586, %v585
      %v633 = vpack.c.b16 %v588, %v587
      %v634 = vpack.c.b16 %v590, %v589
      %v635 = vpack.c.b16 %v592, %v591
      %v636 = vpack.c.b16 %v594, %v593
      %v637 = vpack.c.b16 %v596, %v595
      %v638 = vpack.c.b16 %v598, %v597
      %v639 = vpack.c.b16 %v600, %v599
      %v640 = vpack.c.b16 %v602, %v601
      %v641 = vpack.c.b16 %v604, %v603
      %v642 = vpack.c.b16 %v606, %v605
      %v680 = vsel %vm367, %v366, 0
      %682 = vmatprep.subr.bf16.mxu0 0
      %683 = vmatpush1.bf16.msra.mxu0 %v614
      %684 = vmatprep.subr.bf16.mxu0 0
      %685 = vmatpush1.bf16.msra.mxu0 %v613
      %686 = vmatprep.subr.bf16.mxu0 0
      %687 = vmatpush1.bf16.msra.mxu0 %v612
      %688 = vmatprep.subr.bf16.mxu0 0
      %689 = vmatpush1.bf16.msra.mxu0 %v611
      %690 = vmatprep.subr.bf16.mxu0 0
      %691 = vmatpush1.bf16.msra.mxu0 %v610
      %692 = vmatprep.subr.bf16.mxu0 0
      %693 = vmatpush1.bf16.msra.mxu0 %v609
      %694 = vmatprep.subr.bf16.mxu0 0
      %695 = vmatpush1.bf16.msra.mxu0 %v608
      %696 = vmatprep.subr.bf16.mxu0 0
      %697 = vmatpush1.bf16.msra.mxu0 %v607
      %698 = vmatprep.subr.bf16.mxu0 0
      %699 = vmatpush2.bf16.msra.mxu0 %v622
      %700 = vmatprep.subr.bf16.mxu0 0
      %701 = vmatpush2.bf16.msra.mxu0 %v621
      %702 = vmatprep.subr.bf16.mxu0 0
      %703 = vmatpush2.bf16.msra.mxu0 %v620
      %704 = vmatprep.subr.bf16.mxu0 0
      %705 = vmatpush2.bf16.msra.mxu0 %v619
      %706 = vmatprep.subr.bf16.mxu0 0
      %707 = vmatpush2.bf16.msra.mxu0 %v618
      %708 = vmatprep.subr.bf16.mxu0 0
      %709 = vmatpush2.bf16.msra.mxu0 %v617
      %710 = vmatprep.subr.bf16.mxu0 0
      %711 = vmatpush2.bf16.msra.mxu0 %v616
      %712 = vmatprep.subr.bf16.mxu0 0
      %713 = vmatpush2.bf16.msra.mxu0 %v615
      %714 = vmatprep.mubr.bf16.mxu0 %v374
      %715 = vmatmul.mubr.bf16.gmra.mxu0 %v370
      %v716 = vpop.f32.mrf.mxu0
      %v717 = vadd.f32 %v461, %v716
      %v718 = vpop.f32.mrf.mxu0
      %v719 = vpop.f32.mrf.mxu0
      %v720 = vadd.f32 %v461, %v719
      %v721 = vpop.f32.mrf.mxu0
      %722 = vdwg.mxu0
      %723 = vmatprep.subr.bf16.mxu0 0
      %724 = vmatpush1.bf16.msra.mxu0 %v630
      %725 = vmatprep.subr.bf16.mxu0 0
      %726 = vmatpush1.bf16.msra.mxu0 %v629
      %727 = vmatprep.subr.bf16.mxu0 0
      %728 = vmatpush1.bf16.msra.mxu0 %v628
      %729 = vmatprep.subr.bf16.mxu0 0
      %730 = vmatpush1.bf16.msra.mxu0 %v627
      %731 = vmatprep.subr.bf16.mxu0 0
      %732 = vmatpush1.bf16.msra.mxu0 %v626
      %733 = vmatprep.subr.bf16.mxu0 0
      %734 = vmatpush1.bf16.msra.mxu0 %v625
      %735 = vmatprep.subr.bf16.mxu0 0
      %736 = vmatpush1.bf16.msra.mxu0 %v624
      %737 = vmatprep.subr.bf16.mxu0 0
      %738 = vmatpush1.bf16.msra.mxu0 %v623
      %739 = vmatprep.subr.bf16.mxu0 0
      %740 = vmatpush2.bf16.msra.mxu0 %v638
      %741 = vmatprep.subr.bf16.mxu0 0
      %742 = vmatpush2.bf16.msra.mxu0 %v637
      %743 = vmatprep.subr.bf16.mxu0 0
      %744 = vmatpush2.bf16.msra.mxu0 %v636
      %745 = vmatprep.subr.bf16.mxu0 0
      %746 = vmatpush2.bf16.msra.mxu0 %v635
      %747 = vmatprep.subr.bf16.mxu0 0
      %748 = vmatpush2.bf16.msra.mxu0 %v634
      %749 = vmatprep.subr.bf16.mxu0 0
      %750 = vmatpush2.bf16.msra.mxu0 %v633
      %751 = vmatprep.subr.bf16.mxu0 0
      %752 = vmatpush2.bf16.msra.mxu0 %v632
      %753 = vmatprep.subr.bf16.mxu0 0
      %754 = vmatpush2.bf16.msra.mxu0 %v631
      %755 = vmatprep.mubr.bf16.mxu0 %v382
      %756 = vmatmul.mubr.bf16.gmra.mxu0 %v378
      %v757 = vpop.f32.mrf.mxu0
      %v758 = vadd.f32 %v717, %v757
      %v759 = vpop.f32.mrf.mxu0
      %v760 = vpop.f32.mrf.mxu0
      %v761 = vadd.f32 %v720, %v760
      %v762 = vpop.f32.mrf.mxu0
      %763 = vdwg.mxu0
      %764 = vmatprep.subr.bf16.mxu0 0
      %765 = vmatpush1.bf16.msra.mxu0 0
      %766 = vmatprep.subr.bf16.mxu0 0
      %767 = vmatpush1.bf16.msra.mxu0 0
      %768 = vmatprep.subr.bf16.mxu0 0
      %769 = vmatpush1.bf16.msra.mxu0 0
      %770 = vmatprep.subr.bf16.mxu0 0
      %771 = vmatpush1.bf16.msra.mxu0 0
      %772 = vmatprep.subr.bf16.mxu0 0
      %773 = vmatpush1.bf16.msra.mxu0 %v642
      %774 = vmatprep.subr.bf16.mxu0 0
      %775 = vmatpush1.bf16.msra.mxu0 %v641
      %776 = vmatprep.subr.bf16.mxu0 0
      %777 = vmatpush1.bf16.msra.mxu0 %v640
      %778 = vmatprep.subr.bf16.mxu0 0
      %779 = vmatpush1.bf16.msra.mxu0 %v639
      %780 = vmatprep.subr.bf16.mxu0 0
      %781 = vmatpush2.bf16.msra.mxu0 0
      %782 = vmatprep.subr.bf16.mxu0 0
      %783 = vmatpush2.bf16.msra.mxu0 0
      %784 = vmatprep.subr.bf16.mxu0 0
      %785 = vmatpush2.bf16.msra.mxu0 0
      %786 = vmatprep.subr.bf16.mxu0 0
      %787 = vmatpush2.bf16.msra.mxu0 0
      %788 = vmatprep.subr.bf16.mxu0 0
      %789 = vmatpush2.bf16.msra.mxu0 0
      %790 = vmatprep.subr.bf16.mxu0 0
      %791 = vmatpush2.bf16.msra.mxu0 0
      %792 = vmatprep.subr.bf16.mxu0 0
      %793 = vmatpush2.bf16.msra.mxu0 0
      %794 = vmatprep.subr.bf16.mxu0 0
      %795 = vmatpush2.bf16.msra.mxu0 0
      %796 = vmatprep.mubr.bf16.mxu0 0
      %797 = vmatmul.mubr.bf16.gmra.mxu0 %v680
      %v798 = vpop.f32.mrf.mxu0
      %v799 = vadd.f32 %v758, %v798
      %v800 = vpop.f32.mrf.mxu0
      %v801 = vpop.f32.mrf.mxu0
      %v802 = vadd.f32 %v761, %v801
      %v803 = vpop.f32.mrf.mxu0
      %804 = vdwg.mxu0
      %v805 = vpack.c.bf16 %v802, %v799
      %v807 = vunpack.c.l.b16 %v805
      %v808 = vunpack.c.h.b16 %v805
      %v809 = vpack.c.b16 %v807, %v807
      %v810 = vpack.c.b16 %v808, %v808
      %vm813 = vcmask 125952
      %814 = vst.msk [vmem:[%s208] sm:$0xf] %vm813, %v809
      %815 = vst.msk [vmem:[%s208 + $0x4] sm:$0xf] %vm813, %v810
      %s816 = smul.u32 2, %s19
      %p817 = scmp.lt.s32.totalorder %s18, 1
      %s818 = scalar_select %p817, %s18, 1
      %p819 = scmp.lt.s32.totalorder %s816, 1
      %s820 = scalar_select %p819, %s816, 1
      %s821 = smul.addr %s818, 2
      %s822 = sadd.s32 %s820, %s821
      %s823 = smul.addr %s822, 4
      %s824 = scalar_lea.vmem %s3, %s823
      // Predicated region
      $region33: #{colorize_net_forward.90} parent=31 // pred_check
        %p825 = pneg %p116
      $region34: #{colorize_net_forward.90} parent=31 // pred_check_branch
        %827 = sbr.rel (%p825) target = $region36
      $region35: #{colorize_net_forward.90} parent=31 // pred_region
        %s828 = smul.u32 2, %s19
      $region36: #{colorize_net_forward.90} parent=31 // pred_fallthru
        _
    $region32: #{colorize_net_forward.90} parent=5 // pred_fallthru
      _
    %p829 = scmp.le.s32.totalorder 2, %s9
    // Predicated region
    $region37: #{colorize_net_forward.90} parent=5 // pred_check
      %p830 = pneg %p829
    $region38: #{colorize_net_forward.90} parent=5 // pred_check_branch
      %832 = sbr.rel (%p830) target = $region40
    $region39: #{colorize_net_forward.90} parent=5 // pred_region
      %s833 = ssub.s32 %s9, 2
      // Predicated region
      $region41: #{colorize_net_forward.90} parent=39 // pred_check
        %p834 = pneg %p122
      $region42: #{colorize_net_forward.90} parent=39 // pred_check_branch
        %836 = sbr.rel (%p834) target = $region44
      $region43: #{colorize_net_forward.90} parent=39 // pred_region
        %s837 = smul.u32 2, %s21
        %p838 = scmp.lt.s32.totalorder %s20, 1
        %s839 = scalar_select %p838, %s20, 1
        %p840 = scmp.lt.s32.totalorder %s837, 1
        %s841 = scalar_select %p840, %s837, 1
        %s842 = smul.addr %s839, 2
        %s843 = sadd.s32 %s841, %s842
        %s844 = smul.addr %s843, 4
        %s845 = scalar_lea.vmem %s3, %s844
      $region44: #{colorize_net_forward.90} parent=39 // pred_fallthru
        _
    $region40: #{colorize_net_forward.90} parent=5 // pred_fallthru
      _
  $region6: #{colorize_net_forward.90} parent=0 // loop_footer
    %s13 = sadd.s32 1, %s9
  $region7: #{colorize_net_forward.90} parent=0 // loop_footer_branch
    %8 = sbr.rel target = $region3
  $region8: #{colorize_net_forward.90} parent=0 // loop_exit
    _

// kernel: colorize_net_forward.86
$region0: #{colorize_net_forward.86}
  #allocation0 [shape = 'u32[]', space=smem, size = 0x4, offset = 0x4, fixed_abs, tag = 'smem constant byte address 0x4 - core index']
  #allocation1 [shape = 'u32[144,128]{1,0:T(1,128)}', space=vmem, size = 0x12000, scoped, tag = 'internal scratch']
  %s0 = inlined_call_operand.vmem [shape: bf16[2,16,64], index: 0, kind: input, shape index: {}]
  %s1 = inlined_call_operand.vmem [shape: bf16[576,64], index: 1, kind: input, shape index: {}]
  %s2 = inlined_call_operand.vmem [shape: f32[1,64], index: 2, kind: input, shape index: {}]
  %s3 = inlined_call_operand.vmem [shape: bf16[2,16,64], index: 3, kind: output, shape index: {}]
  %s4 = sld [smem:[#allocation0]]
  $region45: #{colorize_net_forward.86} parent=0
    _
  %s6 = ssub.s32 1, %s4
  %s7 = scalar_select 0, %s6, %s4
  loop: start=0, step=1, limit=4
  $region2: #{colorize_net_forward.86} parent=0 // loop_pre_header
    _
  $region3: #{colorize_net_forward.86} parent=0 // loop_header
    %s9 = sphi 0, %s13
    %p10 = scmp.ge.s32.totalorder %s9, 4
    %s16 = sphi 0, %s28
    %s17 = sphi 0, %s24
    %s18 = sphi 0, %s16
    %s19 = sphi 0, %s17
    %s20 = sphi 0, %s18
    %s21 = sphi 0, %s19
    %s33 = sphi 0, %s35
    %s36 = sphi 0, %s33
    %s37 = sphi 0, %s36
    %s53 = sphi 0, %s37
    %s57 = sphi 0, %s57
    %s59 = sphi 0, %s57
    %s60 = sphi 0, %s59
    %s74 = sphi 0, %s60
    %s78 = sphi 0, %s78
    %s80 = sphi 0, %s78
    %s81 = sphi 0, %s80
    %s95 = sphi 0, %s81
    %s103 = sphi 0, %s105
    %s106 = sphi 0, %s103
    %s107 = sphi 0, %s106
    %s123 = sphi 0, %s107
  $region4: #{colorize_net_forward.86} parent=0 // loop_header_branch
    %12 = sbr.rel (%p10) target = $region8
  $region5: #{colorize_net_forward.86} parent=0 // loop_body
    %s14 = ssub.s32 %s9, 1
    %s15 = ssub.s32 %s9, 2
    %s22 = sadd.s32 1, %s17
    %p23 = scmp.ge.s32.totalorder %s22, 1
    %s24 = scalar_select %p23, 0, %s22
    %s25 = sadd.s32 1, %s16
    %s26 = scalar_select %p23, %s25, %s16
    %p27 = scmp.ge.s32.totalorder %s26, 2
    %s28 = scalar_select %p27, 0, %s26
    %s29 = ssub.s32 %s16, %s28
    %s30 = ssub.s32 %s17, %s24
    %s31 = sor.u32 %s29, %s30
    %p32 = scmp.eq.s32.totalorder %s31, 0
    %s34 = sadd.s32 %s33, 1
    %s35 = scalar_select %p32, %s33, %s34
    %p38 = pneg %p32
    %p39 = scmp.eq.s32.totalorder %s9, 1
    %p40 = por %p38, %p39
    %p41 = scmp.ne.s32.totalorder %s33, %s36
    %p42 = scmp.eq.s32.totalorder %s9, 0
    %p43 = por %p41, %p42
    %p44 = scmp.ne.s32.totalorder %s33, %s36
    %p45 = scmp.eq.s32.totalorder %s14, 1
    %p46 = por %p44, %p45
    %p47 = scmp.ne.s32.totalorder %s36, %s37
    %p48 = scmp.eq.s32.totalorder %s14, 0
    %p49 = por %p47, %p48
    %p50 = scmp.ne.s32.totalorder %s36, %s37
    %p51 = scmp.eq.s32.totalorder %s15, 1
    %p52 = por %p50, %p51
    %p54 = scmp.ne.s32.totalorder %s37, %s53
    %p55 = scmp.eq.s32.totalorder %s15, 0
    %p56 = por %p54, %p55
    %s58 = sadd.s32 %s57, 1
    %p61 = scmp.eq.s32.totalorder %s9, 1
    %p62 = scmp.ne.s32.totalorder %s57, %s59
    %p63 = scmp.eq.s32.totalorder %s9, 0
    %p64 = por %p62, %p63
    %p65 = scmp.ne.s32.totalorder %s57, %s59
    %p66 = scmp.eq.s32.totalorder %s14, 1
    %p67 = por %p65, %p66
    %p68 = scmp.ne.s32.totalorder %s59, %s60
    %p69 = scmp.eq.s32.totalorder %s14, 0
    %p70 = por %p68, %p69
    %p71 = scmp.ne.s32.totalorder %s59, %s60
    %p72 = scmp.eq.s32.totalorder %s15, 1
    %p73 = por %p71, %p72
    %p75 = scmp.ne.s32.totalorder %s60, %s74
    %p76 = scmp.eq.s32.totalorder %s15, 0
    %p77 = por %p75, %p76
    %s79 = sadd.s32 %s78, 1
    %p82 = scmp.eq.s32.totalorder %s9, 1
    %p83 = scmp.ne.s32.totalorder %s78, %s80
    %p84 = scmp.eq.s32.totalorder %s9, 0
    %p85 = por %p83, %p84
    %p86 = scmp.ne.s32.totalorder %s78, %s80
    %p87 = scmp.eq.s32.totalorder %s14, 1
    %p88 = por %p86, %p87
    %p89 = scmp.ne.s32.totalorder %s80, %s81
    %p90 = scmp.eq.s32.totalorder %s14, 0
    %p91 = por %p89, %p90
    %p92 = scmp.ne.s32.totalorder %s80, %s81
    %p93 = scmp.eq.s32.totalorder %s15, 1
    %p94 = por %p92, %p93
    %p96 = scmp.ne.s32.totalorder %s81, %s95
    %p97 = scmp.eq.s32.totalorder %s15, 0
    %p98 = por %p96, %p97
    %s99 = ssub.s32 %s16, %s28
    %s100 = ssub.s32 %s17, %s24
    %s101 = sor.u32 %s99, %s100
    %p102 = scmp.eq.s32.totalorder %s101, 0
    %s104 = sadd.s32 %s103, 1
    %s105 = scalar_select %p102, %s103, %s104
    %p108 = pneg %p102
    %p109 = scmp.eq.s32.totalorder %s9, 1
    %p110 = por %p108, %p109
    %p111 = scmp.ne.s32.totalorder %s103, %s106
    %p112 = scmp.eq.s32.totalorder %s9, 0
    %p113 = por %p111, %p112
    %p114 = scmp.ne.s32.totalorder %s103, %s106
    %p115 = scmp.eq.s32.totalorder %s14, 1
    %p116 = por %p114, %p115
    %p117 = scmp.ne.s32.totalorder %s106, %s107
    %p118 = scmp.eq.s32.totalorder %s14, 0
    %p119 = por %p117, %p118
    %p120 = scmp.ne.s32.totalorder %s106, %s107
    %p121 = scmp.eq.s32.totalorder %s15, 1
    %p122 = por %p120, %p121
    %p124 = scmp.ne.s32.totalorder %s107, %s123
    %p125 = scmp.eq.s32.totalorder %s15, 0
    %p126 = por %p124, %p125
    %p127 = scmp.le.s32.totalorder 1, %s9
    %p128 = scmp.lt.s32.totalorder %s9, 3
    %p129 = pnand %p127, %p128
    %p130 = pneg %p129
    // Predicated region
    $region9: #{colorize_net_forward.86} parent=5 // pred_check
      _
    $region10: #{colorize_net_forward.86} parent=5 // pred_check_branch
      %132 = sbr.rel (%p129) target = $region12
    $region11: #{colorize_net_forward.86} parent=5 // pred_region
      %s133 = ssub.s32 %s9, 1
      // Predicated region
      $region13: #{colorize_net_forward.86} parent=11 // pred_check
        %p134 = pneg %p70
      $region14: #{colorize_net_forward.86} parent=11 // pred_check_branch
        %136 = sbr.rel (%p134) target = $region16
      $region15: #{colorize_net_forward.86} parent=11 // pred_region
        _
      $region16: #{colorize_net_forward.86} parent=11 // pred_fallthru
        _
      // Predicated region
      $region17: #{colorize_net_forward.86} parent=11 // pred_check
        %p137 = pneg %p91
      $region18: #{colorize_net_forward.86} parent=11 // pred_check_branch
        %139 = sbr.rel (%p137) target = $region20
      $region19: #{colorize_net_forward.86} parent=11 // pred_region
        _
      $region20: #{colorize_net_forward.86} parent=11 // pred_fallthru
        _
    $region12: #{colorize_net_forward.86} parent=5 // pred_fallthru
      _
    %p140 = scmp.lt.s32.totalorder %s9, 2
    // Predicated region
    $region21: #{colorize_net_forward.86} parent=5 // pred_check
      %p141 = pneg %p140
    $region22: #{colorize_net_forward.86} parent=5 // pred_check_branch
      %143 = sbr.rel (%p141) target = $region24
    $region23: #{colorize_net_forward.86} parent=5 // pred_region
      // Predicated region
      $region25: #{colorize_net_forward.86} parent=23 // pred_check
        %p144 = pneg %p43
      $region26: #{colorize_net_forward.86} parent=23 // pred_check_branch
        %146 = sbr.rel (%p144) target = $region28
      $region27: #{colorize_net_forward.86} parent=23 // pred_region
        %s147 = smul.u32 2, %s17
        %p148 = scmp.lt.s32.totalorder %s16, 1
        %s149 = scalar_select %p148, %s16, 1
        %p150 = scmp.lt.s32.totalorder %s147, 1
        %s151 = scalar_select %p150, %s147, 1
        %s152 = smul.addr %s149, 2
        %s153 = sadd.s32 %s151, %s152
        %s154 = smul.addr %s153, 4
        %s155 = scalar_lea.vmem %s0, %s154
        %s156 = smul.u32 2, %s17
      $region28: #{colorize_net_forward.86} parent=23 // pred_fallthru
        _
    $region24: #{colorize_net_forward.86} parent=5 // pred_fallthru
      _
    %p157 = scmp.le.s32.totalorder 1, %s9
    %p158 = scmp.lt.s32.totalorder %s9, 3
    %p159 = pnand %p157, %p158
    %p160 = pneg %p159
    // Predicated region
    $region29: #{colorize_net_forward.86} parent=5 // pred_check
      _
    $region30: #{colorize_net_forward.86} parent=5 // pred_check_branch
      %162 = sbr.rel (%p159) target = $region32
    $region31: #{colorize_net_forward.86} parent=5 // pred_region
      %s163 = ssub.s32 %s9, 1
      %s164 = smul.u32 2, %s19
      %p165 = scmp.lt.s32.totalorder %s18, 1
      %s166 = scalar_select %p165, %s18, 1
      %p167 = scmp.lt.s32.totalorder %s164, 1
      %s168 = scalar_select %p167, %s164, 1
      %s169 = smul.addr %s166, 2
      %s170 = sadd.s32 %s168, %s169
      %s171 = smul.addr %s170, 4
      %s172 = scalar_lea.vmem %s0, %s171
      %p173 = pneg %p49
      %p174 = pneg %p46
      %p175 = pneg %p70
      %p176 = pneg %p67
      %p177 = pneg %p91
      %p178 = pneg %p88
      %p179 = pneg %p119
      %p180 = pneg %p116
      %s181 = smul.u32 2, %s19
      %p182 = scmp.lt.s32.totalorder %s18, 1
      %s183 = scalar_select %p182, %s18, 1
      %p184 = scmp.lt.s32.totalorder %s181, 1
      %s185 = scalar_select %p184, %s181, 1
      %s186 = smul.addr %s183, 2
      %s187 = sadd.s32 %s185, %s186
      %s188 = smul.addr %s187, 4
      %s189 = scalar_lea.vmem %s3, %s188
      %s190 = smul.u32 2, %s19
      %p191 = scmp.lt.s32.totalorder %s18, 1
      %s192 = scalar_select %p191, %s18, 1
      %p193 = scmp.lt.s32.totalorder %s190, 1
      %s194 = scalar_select %p193, %s190, 1
      %s195 = smul.addr %s192, 2
      %s196 = sadd.s32 %s194, %s195
      %s197 = smul.addr %s196, 4
      %s198 = scalar_lea.vmem %s0, %s197
      %s199 = smul.u32 2, %s19
      %s200 = smul.u32 2, %s19
      %p201 = scmp.lt.s32.totalorder %s18, 1
      %s202 = scalar_select %p201, %s18, 1
      %p203 = scmp.lt.s32.totalorder %s200, 1
      %s204 = scalar_select %p203, %s200, 1
      %s205 = smul.addr %s202, 2
      %s206 = sadd.s32 %s204, %s205
      %s207 = smul.addr %s206, 4
      %s208 = scalar_lea.vmem %s3, %s207
      %s209 = smul.u32 2, %s19
      %v211 = vld [vmem:[%s198] sm:$0xf]
      %v212 = vld [vmem:[%s198 + $0x4] sm:$0xf]
      %v215 = vunpack.c.l.b16 %v211
      %v216 = vunpack.c.l.b16 %v212
      %v217 = vpack.c.b16 %v216, %v215
      %v219 = vshrl.u32 %v217, 16
      %v221 = vrot.slane %v219, 5
      %v222 = vshll.u32 %v217, 16
      %v224 = vrot.slane %v222, 6
      %v225 = vor.u32 %v221, %v224
      %vm227 = vcmask 1042432
      %vm228 = vsmask.f32 2304
      %vm229 = vmand %vm227, %vm228
      %v230 = vsel %vm229, 0, %v225
      %v231 = vsel %vm229, %v225, 0
      %vm232 = vcmask 1044480
      %vm233 = vsmask.f32 4352
      %vm234 = vmand %vm232, %vm233
      %v235 = vsel %vm234, %v231, 0
      %v236 = vlaneseq
      %v237 = vshrl.u32 %v236, 7
      %v238 = vadd.s32 %v237, 8
      %vm239 = vcmp.lt.s32.totalorder %v237, 0
      %v240 = vsub.s32 0, %v237
      %v241 = vsel %vm239, %v240, %v237
      %v242 = vshrl.u32 %v241, 2
      %v243 = vand.u32 %v241, 3
      %v244 = vsub.s32 0, %v243
      %v245 = vsel %vm239, %v244, %v243
      %vm246 = vcmp.lt.s32.totalorder %v238, 0
      %v247 = vsub.s32 0, %v238
      %v248 = vsel %vm246, %v247, %v238
      %v249 = vshrl.u32 %v248, 2
      %v250 = vand.u32 %v248, 3
      %v251 = vsub.s32 0, %v250
      %v252 = vsel %vm246, %v251, %v250
      %vm253 = vcmp.ne.s32.totalorder %v245, 0
      %vm254 = vcmp.ne.s32.totalorder %v252, 0
      %vm255 = vcmp.lt.s32.totalorder %v245, 0
      %vm256 = vcmp.lt.s32.totalorder %v252, 0
      %vm257 = vmand %vm255, %vm253
      %vm258 = vmand %vm256, %vm254
      %v259 = vadd.s32 %v245, 4
      %v260 = vadd.s32 %v252, 4
      %v261 = vsel %vm257, %v259, %v245
      %v262 = vsel %vm258, %v260, %v252
      %vm263 = vcmp.ne.s32.totalorder %v261, 0
      %vm264 = vcmp.ne.s32.totalorder %v262, 0
      %v265 = vsel %vm263, 1, 0
      %v266 = vsel %vm264, 1, 0
      %v267 = vcvt.s32.f32 %v265
      %v268 = vcvt.s32.f32 %v266
      %v269 = vpack.c.bf16 %v268, %v267
      %vm270 = vcmp.ne.s32.totalorder %v261, 3
      %vm271 = vcmp.ne.s32.totalorder %v262, 3
      %v272 = vsel %vm270, 1, 0
      %v273 = vsel %vm271, 1, 0
      %v274 = vcvt.s32.f32 %v272
      %v275 = vcvt.s32.f32 %v273
      %v276 = vpack.c.bf16 %v275, %v274
      %v277 = vmul.bf16 %v230, %v269
      %v279 = vrot.slane %v276, 7
      %v281 = vmul.bf16 %v230, %v279
      %v282 = vmul.bf16 %v235, %v279
      %v284 = vrot.slane %v269, 6
      %v286 = vmul.bf16 %v230, %v284
      %v287 = vmul.bf16 %v235, %v284
      %v288 = vrot.slane %v276, 5
      %v290 = vmul.bf16 %v230, %v288
      %v291 = vmul.bf16 %v235, %v288
      %v292 = vrot.slane %v269, 4
      %v294 = vmul.bf16 %v230, %v292
      %v295 = vmul.bf16 %v235, %v292
      %v296 = vrot.slane %v276, 3
      %v298 = vmul.bf16 %v230, %v296
      %v299 = vmul.bf16 %v235, %v296
      %vm300 = vsmask.f32 7424
      %v302 = vshrl.u32 %v230, 16
      %v304 = vshll.u32 %v230, 16
      %v306 = vrot.slane %v304, 1
      %v307 = vor.u32 %v302, %v306
      %v309 = vshll.u32 %v235, 16
      %v311 = vrot.slane %v309, 1
      %v312 = vsel %vm300, %v307, %v311
      %313 = vrot.lane.b32.xlu0 %v312, 64
      %v314 = vpop.permute.xlu0 %313
      %vm317 = vcmask 1046528
      %v318 = vrot.slane %v281, 1
      %v319 = vrot.slane %v282, 1
      %v320 = vsel %vm317, %v318, %v319
      %vm323 = vcmask 1045504
      %v324 = vrot.slane %v286, 2
      %v325 = vrot.slane %v287, 2
      %v326 = vsel %vm323, %v324, %v325
      %327 = vrot.lane.b32.xlu0 %v326, 64
      %v328 = vpop.permute.xlu0 %327
      %vm329 = vsmask.f32 5376
      %v330 = vrot.slane %v302, 2
      %v331 = vrot.slane %v304, 3
      %v332 = vor.u32 %v330, %v331
      %v333 = vshrl.u32 %v235, 16
      %v335 = vrot.slane %v333, 2
      %v336 = vrot.slane %v309, 3
      %v337 = vor.u32 %v335, %v336
      %v338 = vsel %vm329, %v332, %v337
      %v341 = vrot.slane %v290, 3
      %v342 = vrot.slane %v291, 3
      %v343 = vsel %vm232, %v341, %v342
      %344 = vrot.lane.b32.xlu0 %v343, 64
      %v345 = vpop.permute.xlu0 %344
      %vm348 = vcmask 1043456
      %v349 = vrot.slane %v294, 4
      %v350 = vrot.slane %v295, 4
      %v351 = vsel %vm348, %v349, %v350
      %vm352 = vsmask.f32 3328
      %v353 = vrot.slane %v302, 4
      %v354 = vrot.slane %v304, 5
      %v355 = vor.u32 %v353, %v354
      %v356 = vrot.slane %v333, 4
      %v357 = vrot.slane %v309, 5
      %v358 = vor.u32 %v356, %v357
      %v359 = vsel %vm352, %v355, %v358
      %360 = vrot.lane.b32.xlu0 %v359, 64
      %v361 = vpop.permute.xlu0 %360
      %v364 = vrot.slane %v298, 5
      %v365 = vrot.slane %v299, 5
      %v366 = vsel %vm227, %v364, %v365
      %vm367 = vcmask 523264
      %v370 = vsel %vm367, %v277, %v314
      %v374 = vsel %vm367, %v320, %v328
      %v378 = vsel %vm367, %v338, %v345
      %v382 = vsel %vm367, %v351, %v361
      %v384 = vld [vmem:[%s1] sm:$0xf]
      %v385 = vld [vmem:[%s1 + $0x4] sm:$0xf]
      %v386 = vld [vmem:[%s1 + $0x8] sm:$0xf]
      %v387 = vld [vmem:[%s1 + $0xc] sm:$0xf]
      %v388 = vld [vmem:[%s1 + $0x10] sm:$0xf]
      %v389 = vld [vmem:[%s1 + $0x14] sm:$0xf]
      %v390 = vld [vmem:[%s1 + $0x18] sm:$0xf]
      %v391 = vld [vmem:[%s1 + $0x1c] sm:$0xf]
      %v392 = vld [vmem:[%s1 + $0x20] sm:$0xf]
      %v393 = vld [vmem:[%s1 + $0x24] sm:$0xf]
      %v394 = vld [vmem:[%s1 + $0x28] sm:$0xf]
      %v395 = vld [vmem:[%s1 + $0x2c] sm:$0xf]
      %v396 = vld [vmem:[%s1 + $0x30] sm:$0xf]
      %v397 = vld [vmem:[%s1 + $0x34] sm:$0xf]
      %v398 = vld [vmem:[%s1 + $0x38] sm:$0xf]
      %v399 = vld [vmem:[%s1 + $0x3c] sm:$0xf]
      %v400 = vld [vmem:[%s1 + $0x40] sm:$0xf]
      %v401 = vld [vmem:[%s1 + $0x44] sm:$0xf]
      %v402 = vld [vmem:[%s1 + $0x48] sm:$0xf]
      %v403 = vld [vmem:[%s1 + $0x4c] sm:$0xf]
      %v404 = vld [vmem:[%s1 + $0x50] sm:$0xf]
      %v405 = vld [vmem:[%s1 + $0x54] sm:$0xf]
      %v406 = vld [vmem:[%s1 + $0x58] sm:$0xf]
      %v407 = vld [vmem:[%s1 + $0x5c] sm:$0xf]
      %v408 = vld [vmem:[%s1 + $0x60] sm:$0xf]
      %v409 = vld [vmem:[%s1 + $0x64] sm:$0xf]
      %v410 = vld [vmem:[%s1 + $0x68] sm:$0xf]
      %v411 = vld [vmem:[%s1 + $0x6c] sm:$0xf]
      %v412 = vld [vmem:[%s1 + $0x70] sm:$0xf]
      %v413 = vld [vmem:[%s1 + $0x74] sm:$0xf]
      %v414 = vld [vmem:[%s1 + $0x78] sm:$0xf]
      %v415 = vld [vmem:[%s1 + $0x7c] sm:$0xf]
      %v416 = vld [vmem:[%s1 + $0x80] sm:$0xf]
      %v417 = vld [vmem:[%s1 + $0x84] sm:$0xf]
      %v418 = vld [vmem:[%s1 + $0x88] sm:$0xf]
      %v419 = vld [vmem:[%s1 + $0x8c] sm:$0xf]
      %v420 = vld [vmem:[%s1 + $0x90] sm:$0xf]
      %v421 = vld [vmem:[%s1 + $0x94] sm:$0xf]
      %v422 = vld [vmem:[%s1 + $0x98] sm:$0xf]
      %v423 = vld [vmem:[%s1 + $0x9c] sm:$0xf]
      %v424 = vld [vmem:[%s1 + $0xa0] sm:$0xf]
      %v425 = vld [vmem:[%s1 + $0xa4] sm:$0xf]
      %v426 = vld [vmem:[%s1 + $0xa8] sm:$0xf]
      %v427 = vld [vmem:[%s1 + $0xac] sm:$0xf]
      %v428 = vld [vmem:[%s1 + $0xb0] sm:$0xf]
      %v429 = vld [vmem:[%s1 + $0xb4] sm:$0xf]
      %v430 = vld [vmem:[%s1 + $0xb8] sm:$0xf]
      %v431 = vld [vmem:[%s1 + $0xbc] sm:$0xf]
      %v432 = vld [vmem:[%s1 + $0xc0] sm:$0xf]
      %v433 = vld [vmem:[%s1 + $0xc4] sm:$0xf]
      %v434 = vld [vmem:[%s1 + $0xc8] sm:$0xf]
      %v435 = vld [vmem:[%s1 + $0xcc] sm:$0xf]
      %v436 = vld [vmem:[%s1 + $0xd0] sm:$0xf]
      %v437 = vld [vmem:[%s1 + $0xd4] sm:$0xf]
      %v438 = vld [vmem:[%s1 + $0xd8] sm:$0xf]
      %v439 = vld [vmem:[%s1 + $0xdc] sm:$0xf]
      %v440 = vld [vmem:[%s1 + $0xe0] sm:$0xf]
      %v441 = vld [vmem:[%s1 + $0xe4] sm:$0xf]
      %v442 = vld [vmem:[%s1 + $0xe8] sm:$0xf]
      %v443 = vld [vmem:[%s1 + $0xec] sm:$0xf]
      %v444 = vld [vmem:[%s1 + $0xf0] sm:$0xf]
      %v445 = vld [vmem:[%s1 + $0xf4] sm:$0xf]
      %v446 = vld [vmem:[%s1 + $0xf8] sm:$0xf]
      %v447 = vld [vmem:[%s1 + $0xfc] sm:$0xf]
      %v448 = vld [vmem:[%s1 + $0x100] sm:$0xf]
      %v449 = vld [vmem:[%s1 + $0x104] sm:$0xf]
      %v450 = vld [vmem:[%s1 + $0x108] sm:$0xf]
      %v451 = vld [vmem:[%s1 + $0x10c] sm:$0xf]
      %v452 = vld [vmem:[%s1 + $0x110] sm:$0xf]
      %v453 = vld [vmem:[%s1 + $0x114] sm:$0xf]
      %v454 = vld [vmem:[%s1 + $0x118] sm:$0xf]
      %v455 = vld [vmem:[%s1 + $0x11c] sm:$0xf]
      %v456 = vld [vmem:[%s2] sm:$0x1]
      %v458 = vlaneseq
      %v459 = vshrl.u32 %v458, 7
      %v460 = vsub.s32 0, %v459
      %v461 = vrot.slane %v456, %v460
      %v535 = vunpack.c.l.b16 %v384
      %v536 = vunpack.c.l.b16 %v385
      %v537 = vunpack.c.l.b16 %v386
      %v538 = vunpack.c.l.b16 %v387
      %v539 = vunpack.c.l.b16 %v388
      %v540 = vunpack.c.l.b16 %v389
      %v541 = vunpack.c.l.b16 %v390
      %v542 = vunpack.c.l.b16 %v391
      %v543 = vunpack.c.l.b16 %v392
      %v544 = vunpack.c.l.b16 %v393
      %v545 = vunpack.c.l.b16 %v394
      %v546 = vunpack.c.l.b16 %v395
      %v547 = vunpack.c.l.b16 %v396
      %v548 = vunpack.c.l.b16 %v397
      %v549 = vunpack.c.l.b16 %v398
      %v550 = vunpack.c.l.b16 %v399
      %v551 = vunpack.c.l.b16 %v400
      %v552 = vunpack.c.l.b16 %v401
      %v553 = vunpack.c.l.b16 %v402
      %v554 = vunpack.c.l.b16 %v403
      %v555 = vunpack.c.l.b16 %v404
      %v556 = vunpack.c.l.b16 %v405
      %v557 = vunpack.c.l.b16 %v406
      %v558 = vunpack.c.l.b16 %v407
      %v559 = vunpack.c.l.b16 %v408
      %v560 = vunpack.c.l.b16 %v409
      %v561 = vunpack.c.l.b16 %v410
      %v562 = vunpack.c.l.b16 %v411
      %v563 = vunpack.c.l.b16 %v412
      %v564 = vunpack.c.l.b16 %v413
      %v565 = vunpack.c.l.b16 %v414
      %v566 = vunpack.c.l.b16 %v415
      %v567 = vunpack.c.l.b16 %v416
      %v568 = vunpack.c.l.b16 %v417
      %v569 = vunpack.c.l.b16 %v418
      %v570 = vunpack.c.l.b16 %v419
      %v571 = vunpack.c.l.b16 %v420
      %v572 = vunpack.c.l.b16 %v421
      %v573 = vunpack.c.l.b16 %v422
      %v574 = vunpack.c.l.b16 %v423
      %v575 = vunpack.c.l.b16 %v424
      %v576 = vunpack.c.l.b16 %v425
      %v577 = vunpack.c.l.b16 %v426
      %v578 = vunpack.c.l.b16 %v427
      %v579 = vunpack.c.l.b16 %v428
      %v580 = vunpack.c.l.b16 %v429
      %v581 = vunpack.c.l.b16 %v430
      %v582 = vunpack.c.l.b16 %v431
      %v583 = vunpack.c.l.b16 %v432
      %v584 = vunpack.c.l.b16 %v433
      %v585 = vunpack.c.l.b16 %v434
      %v586 = vunpack.c.l.b16 %v435
      %v587 = vunpack.c.l.b16 %v436
      %v588 = vunpack.c.l.b16 %v437
      %v589 = vunpack.c.l.b16 %v438
      %v590 = vunpack.c.l.b16 %v439
      %v591 = vunpack.c.l.b16 %v440
      %v592 = vunpack.c.l.b16 %v441
      %v593 = vunpack.c.l.b16 %v442
      %v594 = vunpack.c.l.b16 %v443
      %v595 = vunpack.c.l.b16 %v444
      %v596 = vunpack.c.l.b16 %v445
      %v597 = vunpack.c.l.b16 %v446
      %v598 = vunpack.c.l.b16 %v447
      %v599 = vunpack.c.l.b16 %v448
      %v600 = vunpack.c.l.b16 %v449
      %v601 = vunpack.c.l.b16 %v450
      %v602 = vunpack.c.l.b16 %v451
      %v603 = vunpack.c.l.b16 %v452
      %v604 = vunpack.c.l.b16 %v453
      %v605 = vunpack.c.l.b16 %v454
      %v606 = vunpack.c.l.b16 %v455
      %v607 = vpack.c.b16 %v536, %v535
      %v608 = vpack.c.b16 %v538, %v537
      %v609 = vpack.c.b16 %v540, %v539
      %v610 = vpack.c.b16 %v542, %v541
      %v611 = vpack.c.b16 %v544, %v543
      %v612 = vpack.c.b16 %v546, %v545
      %v613 = vpack.c.b16 %v548, %v547
      %v614 = vpack.c.b16 %v550, %v549
      %v615 = vpack.c.b16 %v552, %v551
      %v616 = vpack.c.b16 %v554, %v553
      %v617 = vpack.c.b16 %v556, %v555
      %v618 = vpack.c.b16 %v558, %v557
      %v619 = vpack.c.b16 %v560, %v559
      %v620 = vpack.c.b16 %v562, %v561
      %v621 = vpack.c.b16 %v564, %v563
      %v622 = vpack.c.b16 %v566, %v565
      %v623 = vpack.c.b16 %v568, %v567
      %v624 = vpack.c.b16 %v570, %v569
      %v625 = vpack.c.b16 %v572, %v571
      %v626 = vpack.c.b16 %v574, %v573
      %v627 = vpack.c.b16 %v576, %v575
      %v628 = vpack.c.b16 %v578, %v577
      %v629 = vpack.c.b16 %v580, %v579
      %v630 = vpack.c.b16 %v582, %v581
      %v631 = vpack.c.b16 %v584, %v583
      %v632 = vpack.c.b16 %v586, %v585
      %v633 = vpack.c.b16 %v588, %v587
      %v634 = vpack.c.b16 %v590, %v589
      %v635 = vpack.c.b16 %v592, %v591
      %v636 = vpack.c.b16 %v594, %v593
      %v637 = vpack.c.b16 %v596, %v595
      %v638 = vpack.c.b16 %v598, %v597
      %v639 = vpack.c.b16 %v600, %v599
      %v640 = vpack.c.b16 %v602, %v601
      %v641 = vpack.c.b16 %v604, %v603
      %v642 = vpack.c.b16 %v606, %v605
      %v680 = vsel %vm367, %v366, 0
      %682 = vmatprep.subr.bf16.mxu0 0
      %683 = vmatpush1.bf16.msra.mxu0 %v614
      %684 = vmatprep.subr.bf16.mxu0 0
      %685 = vmatpush1.bf16.msra.mxu0 %v613
      %686 = vmatprep.subr.bf16.mxu0 0
      %687 = vmatpush1.bf16.msra.mxu0 %v612
      %688 = vmatprep.subr.bf16.mxu0 0
      %689 = vmatpush1.bf16.msra.mxu0 %v611
      %690 = vmatprep.subr.bf16.mxu0 0
      %691 = vmatpush1.bf16.msra.mxu0 %v610
      %692 = vmatprep.subr.bf16.mxu0 0
      %693 = vmatpush1.bf16.msra.mxu0 %v609
      %694 = vmatprep.subr.bf16.mxu0 0
      %695 = vmatpush1.bf16.msra.mxu0 %v608
      %696 = vmatprep.subr.bf16.mxu0 0
      %697 = vmatpush1.bf16.msra.mxu0 %v607
      %698 = vmatprep.subr.bf16.mxu0 0
      %699 = vmatpush2.bf16.msra.mxu0 %v622
      %700 = vmatprep.subr.bf16.mxu0 0
      %701 = vmatpush2.bf16.msra.mxu0 %v621
      %702 = vmatprep.subr.bf16.mxu0 0
      %703 = vmatpush2.bf16.msra.mxu0 %v620
      %704 = vmatprep.subr.bf16.mxu0 0
      %705 = vmatpush2.bf16.msra.mxu0 %v619
      %706 = vmatprep.subr.bf16.mxu0 0
      %707 = vmatpush2.bf16.msra.mxu0 %v618
      %708 = vmatprep.subr.bf16.mxu0 0
      %709 = vmatpush2.bf16.msra.mxu0 %v617
      %710 = vmatprep.subr.bf16.mxu0 0
      %711 = vmatpush2.bf16.msra.mxu0 %v616
      %712 = vmatprep.subr.bf16.mxu0 0
      %713 = vmatpush2.bf16.msra.mxu0 %v615
      %714 = vmatprep.mubr.bf16.mxu0 %v374
      %715 = vmatmul.mubr.bf16.gmra.mxu0 %v370
      %v716 = vpop.f32.mrf.mxu0
      %v717 = vadd.f32 %v461, %v716
      %v718 = vpop.f32.mrf.mxu0
      %v719 = vpop.f32.mrf.mxu0
      %v720 = vadd.f32 %v461, %v719
      %v721 = vpop.f32.mrf.mxu0
      %722 = vdwg.mxu0
      %723 = vmatprep.subr.bf16.mxu0 0
      %724 = vmatpush1.bf16.msra.mxu0 %v630
      %725 = vmatprep.subr.bf16.mxu0 0
      %726 = vmatpush1.bf16.msra.mxu0 %v629
      %727 = vmatprep.subr.bf16.mxu0 0
      %728 = vmatpush1.bf16.msra.mxu0 %v628
      %729 = vmatprep.subr.bf16.mxu0 0
      %730 = vmatpush1.bf16.msra.mxu0 %v627
      %731 = vmatprep.subr.bf16.mxu0 0
      %732 = vmatpush1.bf16.msra.mxu0 %v626
      %733 = vmatprep.subr.bf16.mxu0 0
      %734 = vmatpush1.bf16.msra.mxu0 %v625
      %735 = vmatprep.subr.bf16.mxu0 0
      %736 = vmatpush1.bf16.msra.mxu0 %v624
      %737 = vmatprep.subr.bf16.mxu0 0
      %738 = vmatpush1.bf16.msra.mxu0 %v623
      %739 = vmatprep.subr.bf16.mxu0 0
      %740 = vmatpush2.bf16.msra.mxu0 %v638
      %741 = vmatprep.subr.bf16.mxu0 0
      %742 = vmatpush2.bf16.msra.mxu0 %v637
      %743 = vmatprep.subr.bf16.mxu0 0
      %744 = vmatpush2.bf16.msra.mxu0 %v636
      %745 = vmatprep.subr.bf16.mxu0 0
      %746 = vmatpush2.bf16.msra.mxu0 %v635
      %747 = vmatprep.subr.bf16.mxu0 0
      %748 = vmatpush2.bf16.msra.mxu0 %v634
      %749 = vmatprep.subr.bf16.mxu0 0
      %750 = vmatpush2.bf16.msra.mxu0 %v633
      %751 = vmatprep.subr.bf16.mxu0 0
      %752 = vmatpush2.bf16.msra.mxu0 %v632
      %753 = vmatprep.subr.bf16.mxu0 0
      %754 = vmatpush2.bf16.msra.mxu0 %v631
      %755 = vmatprep.mubr.bf16.mxu0 %v382
      %756 = vmatmul.mubr.bf16.gmra.mxu0 %v378
      %v757 = vpop.f32.mrf.mxu0
      %v758 = vadd.f32 %v717, %v757
      %v759 = vpop.f32.mrf.mxu0
      %v760 = vpop.f32.mrf.mxu0
      %v761 = vadd.f32 %v720, %v760
      %v762 = vpop.f32.mrf.mxu0
      %763 = vdwg.mxu0
      %764 = vmatprep.subr.bf16.mxu0 0
      %765 = vmatpush1.bf16.msra.mxu0 0
      %766 = vmatprep.subr.bf16.mxu0 0
      %767 = vmatpush1.bf16.msra.mxu0 0
      %768 = vmatprep.subr.bf16.mxu0 0
      %769 = vmatpush1.bf16.msra.mxu0 0
      %770 = vmatprep.subr.bf16.mxu0 0
      %771 = vmatpush1.bf16.msra.mxu0 0
      %772 = vmatprep.subr.bf16.mxu0 0
      %773 = vmatpush1.bf16.msra.mxu0 %v642
      %774 = vmatprep.subr.bf16.mxu0 0
      %775 = vmatpush1.bf16.msra.mxu0 %v641
      %776 = vmatprep.subr.bf16.mxu0 0
      %777 = vmatpush1.bf16.msra.mxu0 %v640
      %778 = vmatprep.subr.bf16.mxu0 0
      %779 = vmatpush1.bf16.msra.mxu0 %v639
      %780 = vmatprep.subr.bf16.mxu0 0
      %781 = vmatpush2.bf16.msra.mxu0 0
      %782 = vmatprep.subr.bf16.mxu0 0
      %783 = vmatpush2.bf16.msra.mxu0 0
      %784 = vmatprep.subr.bf16.mxu0 0
      %785 = vmatpush2.bf16.msra.mxu0 0
      %786 = vmatprep.subr.bf16.mxu0 0
      %787 = vmatpush2.bf16.msra.mxu0 0
      %788 = vmatprep.subr.bf16.mxu0 0
      %789 = vmatpush2.bf16.msra.mxu0 0
      %790 = vmatprep.subr.bf16.mxu0 0
      %791 = vmatpush2.bf16.msra.mxu0 0
      %792 = vmatprep.subr.bf16.mxu0 0
      %793 = vmatpush2.bf16.msra.mxu0 0
      %794 = vmatprep.subr.bf16.mxu0 0
      %795 = vmatpush2.bf16.msra.mxu0 0
      %796 = vmatprep.mubr.bf16.mxu0 0
      %797 = vmatmul.mubr.bf16.gmra.mxu0 %v680
      %v798 = vpop.f32.mrf.mxu0
      %v799 = vadd.f32 %v758, %v798
      %v800 = vpop.f32.mrf.mxu0
      %v801 = vpop.f32.mrf.mxu0
      %v802 = vadd.f32 %v761, %v801
      %v803 = vpop.f32.mrf.mxu0
      %804 = vdwg.mxu0
      %v805 = vpack.c.bf16 %v802, %v799
      %v807 = vunpack.c.l.b16 %v805
      %v808 = vunpack.c.h.b16 %v805
      %v809 = vpack.c.b16 %v807, %v807
      %v810 = vpack.c.b16 %v808, %v808
      %vm813 = vcmask 519168
      %814 = vst.msk [vmem:[%s208] sm:$0xf] %vm813, %v809
      %815 = vst.msk [vmem:[%s208 + $0x4] sm:$0xf] %vm813, %v810
      %s816 = smul.u32 2, %s19
      %p817 = scmp.lt.s32.totalorder %s18, 1
      %s818 = scalar_select %p817, %s18, 1
      %p819 = scmp.lt.s32.totalorder %s816, 1
      %s820 = scalar_select %p819, %s816, 1
      %s821 = smul.addr %s818, 2
      %s822 = sadd.s32 %s820, %s821
      %s823 = smul.addr %s822, 4
      %s824 = scalar_lea.vmem %s3, %s823
      // Predicated region
      $region33: #{colorize_net_forward.86} parent=31 // pred_check
        %p825 = pneg %p116
      $region34: #{colorize_net_forward.86} parent=31 // pred_check_branch
        %827 = sbr.rel (%p825) target = $region36
      $region35: #{colorize_net_forward.86} parent=31 // pred_region
        %s828 = smul.u32 2, %s19
      $region36: #{colorize_net_forward.86} parent=31 // pred_fallthru
        _
    $region32: #{colorize_net_forward.86} parent=5 // pred_fallthru
      _
    %p829 = scmp.le.s32.totalorder 2, %s9
    // Predicated region
    $region37: #{colorize_net_forward.86} parent=5 // pred_check
      %p830 = pneg %p829
    $region38: #{colorize_net_forward.86} parent=5 // pred_check_branch
      %832 = sbr.rel (%p830) target = $region40
    $region39: #{colorize_net_forward.86} parent=5 // pred_region
      %s833 = ssub.s32 %s9, 2
      // Predicated region
      $region41: #{colorize_net_forward.86} parent=39 // pred_check
        %p834 = pneg %p122
      $region42: #{colorize_net_forward.86} parent=39 // pred_check_branch
        %836 = sbr.rel (%p834) target = $region44
      $region43: #{colorize_net_forward.86} parent=39 // pred_region
        %s837 = smul.u32 2, %s21
        %p838 = scmp.lt.s32.totalorder %s20, 1
        %s839 = scalar_select %p838, %s20, 1
        %p840 = scmp.lt.s32.totalorder %s837, 1
        %s841 = scalar_select %p840, %s837, 1
        %s842 = smul.addr %s839, 2
        %s843 = sadd.s32 %s841, %s842
        %s844 = smul.addr %s843, 4
        %s845 = scalar_lea.vmem %s3, %s844
      $region44: #{colorize_net_forward.86} parent=39 // pred_fallthru
        _
    $region40: #{colorize_net_forward.86} parent=5 // pred_fallthru
      _
  $region6: #{colorize_net_forward.86} parent=0 // loop_footer
    %s13 = sadd.s32 1, %s9
  $region7: #{colorize_net_forward.86} parent=0 // loop_footer_branch
    %8 = sbr.rel target = $region3
  $region8: #{colorize_net_forward.86} parent=0 // loop_exit
    _

// kernel: colorize_net_forward.92
$region0: #{colorize_net_forward.92}
  #allocation0 [shape = 'u32[]', space=smem, size = 0x4, offset = 0x4, fixed_abs, tag = 'smem constant byte address 0x4 - core index']
  #allocation1 [shape = 'u32[144,128]{1,0:T(1,128)}', space=vmem, size = 0x12000, scoped, tag = 'internal scratch']
  %s0 = inlined_call_operand.vmem [shape: bf16[2,16,64], index: 0, kind: input, shape index: {}]
  %s1 = inlined_call_operand.vmem [shape: f32[2,1,64], index: 1, kind: input, shape index: {}]
  %s2 = inlined_call_operand.vmem [shape: bf16[64,64], index: 2, kind: input, shape index: {}]
  %s3 = inlined_call_operand.vmem [shape: f32[1,64], index: 3, kind: input, shape index: {}]
  %s4 = inlined_call_operand.vmem [shape: bf16[2,16,64], index: 4, kind: input, shape index: {}]
  %s5 = inlined_call_operand.vmem [shape: bf16[2,16,64], index: 5, kind: output, shape index: {}]
  %s6 = sld [smem:[#allocation0]]
  $region53: #{colorize_net_forward.92} parent=0
    _
  %s8 = ssub.s32 1, %s6
  %s9 = scalar_select 0, %s8, %s6
  loop: start=0, step=1, limit=4
  $region2: #{colorize_net_forward.92} parent=0 // loop_pre_header
    _
  $region3: #{colorize_net_forward.92} parent=0 // loop_header
    %s11 = sphi 0, %s15
    %p12 = scmp.ge.s32.totalorder %s11, 4
    %s18 = sphi 0, %s30
    %s19 = sphi 0, %s26
    %s20 = sphi 0, %s18
    %s21 = sphi 0, %s19
    %s22 = sphi 0, %s20
    %s23 = sphi 0, %s21
    %s35 = sphi 0, %s37
    %s38 = sphi 0, %s35
    %s39 = sphi 0, %s38
    %s55 = sphi 0, %s39
    %s61 = sphi 0, %s63
    %s64 = sphi 0, %s61
    %s65 = sphi 0, %s64
    %s81 = sphi 0, %s65
    %s85 = sphi 0, %s85
    %s87 = sphi 0, %s85
    %s88 = sphi 0, %s87
    %s102 = sphi 0, %s88
    %s106 = sphi 0, %s106
    %s108 = sphi 0, %s106
    %s109 = sphi 0, %s108
    %s123 = sphi 0, %s109
    %s131 = sphi 0, %s133
    %s134 = sphi 0, %s131
    %s135 = sphi 0, %s134
    %s151 = sphi 0, %s135
    %s159 = sphi 0, %s161
    %s162 = sphi 0, %s159
    %s163 = sphi 0, %s162
    %s179 = sphi 0, %s163
  $region4: #{colorize_net_forward.92} parent=0 // loop_header_branch
    %14 = sbr.rel (%p12) target = $region8
  $region5: #{colorize_net_forward.92} parent=0 // loop_body
    %s16 = ssub.s32 %s11, 1
    %s17 = ssub.s32 %s11, 2
    %s24 = sadd.s32 1, %s19
    %p25 = scmp.ge.s32.totalorder %s24, 1
    %s26 = scalar_select %p25, 0, %s24
    %s27 = sadd.s32 1, %s18
    %s28 = scalar_select %p25, %s27, %s18
    %p29 = scmp.ge.s32.totalorder %s28, 2
    %s30 = scalar_select %p29, 0, %s28
    %s31 = ssub.s32 %s18, %s30
    %s32 = ssub.s32 %s19, %s26
    %s33 = sor.u32 %s31, %s32
    %p34 = scmp.eq.s32.totalorder %s33, 0
    %s36 = sadd.s32 %s35, 1
    %s37 = scalar_select %p34, %s35, %s36
    %p40 = pneg %p34
    %p41 = scmp.eq.s32.totalorder %s11, 1
    %p42 = por %p40, %p41
    %p43 = scmp.ne.s32.totalorder %s35, %s38
    %p44 = scmp.eq.s32.totalorder %s11, 0
    %p45 = por %p43, %p44
    %p46 = scmp.ne.s32.totalorder %s35, %s38
    %p47 = scmp.eq.s32.totalorder %s16, 1
    %p48 = por %p46, %p47
    %p49 = scmp.ne.s32.totalorder %s38, %s39
    %p50 = scmp.eq.s32.totalorder %s16, 0
    %p51 = por %p49, %p50
    %p52 = scmp.ne.s32.totalorder %s38, %s39
    %p53 = scmp.eq.s32.totalorder %s17, 1
    %p54 = por %p52, %p53
    %p56 = scmp.ne.s32.totalorder %s39, %s55
    %p57 = scmp.eq.s32.totalorder %s17, 0
    %p58 = por %p56, %p57
    %s59 = ssub.s32 %s18, %s30
    %p60 = scmp.eq.s32.totalorder %s59, 0
    %s62 = sadd.s32 %s61, 1
    %s63 = scalar_select %p60, %s61, %s62
    %p66 = pneg %p60
    %p67 = scmp.eq.s32.totalorder %s11, 1
    %p68 = por %p66, %p67
    %p69 = scmp.ne.s32.totalorder %s61, %s64
    %p70 = scmp.eq.s32.totalorder %s11, 0
    %p71 = por %p69, %p70
    %p72 = scmp.ne.s32.totalorder %s61, %s64
    %p73 = scmp.eq.s32.totalorder %s16, 1
    %p74 = por %p72, %p73
    %p75 = scmp.ne.s32.totalorder %s64, %s65
    %p76 = scmp.eq.s32.totalorder %s16, 0
    %p77 = por %p75, %p76
    %p78 = scmp.ne.s32.totalorder %s64, %s65
    %p79 = scmp.eq.s32.totalorder %s17, 1
    %p80 = por %p78, %p79
    %p82 = scmp.ne.s32.totalorder %s65, %s81
    %p83 = scmp.eq.s32.totalorder %s17, 0
    %p84 = por %p82, %p83
    %s86 = sadd.s32 %s85, 1
    %p89 = scmp.eq.s32.totalorder %s11, 1
    %p90 = scmp.ne.s32.totalorder %s85, %s87
    %p91 = scmp.eq.s32.totalorder %s11, 0
    %p92 = por %p90, %p91
    %p93 = scmp.ne.s32.totalorder %s85, %s87
    %p94 = scmp.eq.s32.totalorder %s16, 1
    %p95 = por %p93, %p94
    %p96 = scmp.ne.s32.totalorder %s87, %s88
    %p97 = scmp.eq.s32.totalorder %s16, 0
    %p98 = por %p96, %p97
    %p99 = scmp.ne.s32.totalorder %s87, %s88
    %p100 = scmp.eq.s32.totalorder %s17, 1
    %p101 = por %p99, %p100
    %p103 = scmp.ne.s32.totalorder %s88, %s102
    %p104 = scmp.eq.s32.totalorder %s17, 0
    %p105 = por %p103, %p104
    %s107 = sadd.s32 %s106, 1
    %p110 = scmp.eq.s32.totalorder %s11, 1
    %p111 = scmp.ne.s32.totalorder %s106, %s108
    %p112 = scmp.eq.s32.totalorder %s11, 0
    %p113 = por %p111, %p112
    %p114 = scmp.ne.s32.totalorder %s106, %s108
    %p115 = scmp.eq.s32.totalorder %s16, 1
    %p116 = por %p114, %p115
    %p117 = scmp.ne.s32.totalorder %s108, %s109
    %p118 = scmp.eq.s32.totalorder %s16, 0
    %p119 = por %p117, %p118
    %p120 = scmp.ne.s32.totalorder %s108, %s109
    %p121 = scmp.eq.s32.totalorder %s17, 1
    %p122 = por %p120, %p121
    %p124 = scmp.ne.s32.totalorder %s109, %s123
    %p125 = scmp.eq.s32.totalorder %s17, 0
    %p126 = por %p124, %p125
    %s127 = ssub.s32 %s18, %s30
    %s128 = ssub.s32 %s19, %s26
    %s129 = sor.u32 %s127, %s128
    %p130 = scmp.eq.s32.totalorder %s129, 0
    %s132 = sadd.s32 %s131, 1
    %s133 = scalar_select %p130, %s131, %s132
    %p136 = pneg %p130
    %p137 = scmp.eq.s32.totalorder %s11, 1
    %p138 = por %p136, %p137
    %p139 = scmp.ne.s32.totalorder %s131, %s134
    %p140 = scmp.eq.s32.totalorder %s11, 0
    %p141 = por %p139, %p140
    %p142 = scmp.ne.s32.totalorder %s131, %s134
    %p143 = scmp.eq.s32.totalorder %s16, 1
    %p144 = por %p142, %p143
    %p145 = scmp.ne.s32.totalorder %s134, %s135
    %p146 = scmp.eq.s32.totalorder %s16, 0
    %p147 = por %p145, %p146
    %p148 = scmp.ne.s32.totalorder %s134, %s135
    %p149 = scmp.eq.s32.totalorder %s17, 1
    %p150 = por %p148, %p149
    %p152 = scmp.ne.s32.totalorder %s135, %s151
    %p153 = scmp.eq.s32.totalorder %s17, 0
    %p154 = por %p152, %p153
    %s155 = ssub.s32 %s18, %s30
    %s156 = ssub.s32 %s19, %s26
    %s157 = sor.u32 %s155, %s156
    %p158 = scmp.eq.s32.totalorder %s157, 0
    %s160 = sadd.s32 %s159, 1
    %s161 = scalar_select %p158, %s159, %s160
    %p164 = pneg %p158
    %p165 = scmp.eq.s32.totalorder %s11, 1
    %p166 = por %p164, %p165
    %p167 = scmp.ne.s32.totalorder %s159, %s162
    %p168 = scmp.eq.s32.totalorder %s11, 0
    %p169 = por %p167, %p168
    %p170 = scmp.ne.s32.totalorder %s159, %s162
    %p171 = scmp.eq.s32.totalorder %s16, 1
    %p172 = por %p170, %p171
    %p173 = scmp.ne.s32.totalorder %s162, %s163
    %p174 = scmp.eq.s32.totalorder %s16, 0
    %p175 = por %p173, %p174
    %p176 = scmp.ne.s32.totalorder %s162, %s163
    %p177 = scmp.eq.s32.totalorder %s17, 1
    %p178 = por %p176, %p177
    %p180 = scmp.ne.s32.totalorder %s163, %s179
    %p181 = scmp.eq.s32.totalorder %s17, 0
    %p182 = por %p180, %p181
    %p183 = scmp.le.s32.totalorder 1, %s11
    %p184 = scmp.lt.s32.totalorder %s11, 3
    %p185 = pnand %p183, %p184
    %p186 = pneg %p185
    // Predicated region
    $region9: #{colorize_net_forward.92} parent=5 // pred_check
      _
    $region10: #{colorize_net_forward.92} parent=5 // pred_check_branch
      %188 = sbr.rel (%p185) target = $region12
    $region11: #{colorize_net_forward.92} parent=5 // pred_region
      %s189 = ssub.s32 %s11, 1
      // Predicated region
      $region13: #{colorize_net_forward.92} parent=11 // pred_check
        %p190 = pneg %p98
      $region14: #{colorize_net_forward.92} parent=11 // pred_check_branch
        %192 = sbr.rel (%p190) target = $region16
      $region15: #{colorize_net_forward.92} parent=11 // pred_region
        _
      $region16: #{colorize_net_forward.92} parent=11 // pred_fallthru
        _
      // Predicated region
      $region17: #{colorize_net_forward.92} parent=11 // pred_check
        %p193 = pneg %p119
      $region18: #{colorize_net_forward.92} parent=11 // pred_check_branch
        %195 = sbr.rel (%p193) target = $region20
      $region19: #{colorize_net_forward.92} parent=11 // pred_region
        _
      $region20: #{colorize_net_forward.92} parent=11 // pred_fallthru
        _
    $region12: #{colorize_net_forward.92} parent=5 // pred_fallthru
      _
    %p196 = scmp.lt.s32.totalorder %s11, 2
    // Predicated region
    $region21: #{colorize_net_forward.92} parent=5 // pred_check
      %p197 = pneg %p196
    $region22: #{colorize_net_forward.92} parent=5 // pred_check_branch
      %199 = sbr.rel (%p197) target = $region24
    $region23: #{colorize_net_forward.92} parent=5 // pred_region
      // Predicated region
      $region25: #{colorize_net_forward.92} parent=23 // pred_check
        %p200 = pneg %p45
      $region26: #{colorize_net_forward.92} parent=23 // pred_check_branch
        %202 = sbr.rel (%p200) target = $region28
      $region27: #{colorize_net_forward.92} parent=23 // pred_region
        %s203 = smul.u32 2, %s19
        %p204 = scmp.lt.s32.totalorder %s18, 1
        %s205 = scalar_select %p204, %s18, 1
        %p206 = scmp.lt.s32.totalorder %s203, 1
        %s207 = scalar_select %p206, %s203, 1
        %s208 = smul.addr %s205, 2
        %s209 = sadd.s32 %s207, %s208
        %s210 = smul.addr %s209, 4
        %s211 = scalar_lea.vmem %s0, %s210
        %s212 = smul.u32 2, %s19
      $region28: #{colorize_net_forward.92} parent=23 // pred_fallthru
        _
      // Predicated region
      $region29: #{colorize_net_forward.92} parent=23 // pred_check
        %p213 = pneg %p71
      $region30: #{colorize_net_forward.92} parent=23 // pred_check_branch
        %215 = sbr.rel (%p213) target = $region32
      $region31: #{colorize_net_forward.92} parent=23 // pred_region
        %p216 = scmp.lt.s32.totalorder %s18, 1
        %s217 = scalar_select %p216, %s18, 1
        %s218 = scalar_lea.vmem %s1, %s217
      $region32: #{colorize_net_forward.92} parent=23 // pred_fallthru
        _
      // Predicated region
      $region33: #{colorize_net_forward.92} parent=23 // pred_check
        %p219 = pneg %p141
      $region34: #{colorize_net_forward.92} parent=23 // pred_check_branch
        %221 = sbr.rel (%p219) target = $region36
      $region35: #{colorize_net_forward.92} parent=23 // pred_region
        %s222 = smul.u32 2, %s19
        %p223 = scmp.lt.s32.totalorder %s18, 1
        %s224 = scalar_select %p223, %s18, 1
        %p225 = scmp.lt.s32.totalorder %s222, 1
        %s226 = scalar_select %p225, %s222, 1
        %s227 = smul.addr %s224, 2
        %s228 = sadd.s32 %s226, %s227
        %s229 = smul.addr %s228, 4
        %s230 = scalar_lea.vmem %s4, %s229
        %s231 = smul.u32 2, %s19
      $region36: #{colorize_net_forward.92} parent=23 // pred_fallthru
        _
    $region24: #{colorize_net_forward.92} parent=5 // pred_fallthru
      _
    %p232 = scmp.le.s32.totalorder 1, %s11
    %p233 = scmp.lt.s32.totalorder %s11, 3
    %p234 = pnand %p232, %p233
    %p235 = pneg %p234
    // Predicated region
    $region37: #{colorize_net_forward.92} parent=5 // pred_check
      _
    $region38: #{colorize_net_forward.92} parent=5 // pred_check_branch
      %237 = sbr.rel (%p234) target = $region40
    $region39: #{colorize_net_forward.92} parent=5 // pred_region
      %s238 = ssub.s32 %s11, 1
      %s239 = smul.u32 2, %s21
      %p240 = scmp.lt.s32.totalorder %s20, 1
      %s241 = scalar_select %p240, %s20, 1
      %p242 = scmp.lt.s32.totalorder %s239, 1
      %s243 = scalar_select %p242, %s239, 1
      %s244 = smul.addr %s241, 2
      %s245 = sadd.s32 %s243, %s244
      %s246 = smul.addr %s245, 4
      %s247 = scalar_lea.vmem %s0, %s246
      %p248 = pneg %p51
      %p249 = pneg %p48
      %p250 = scmp.lt.s32.totalorder %s20, 1
      %s251 = scalar_select %p250, %s20, 1
      %s252 = scalar_lea.vmem %s1, %s251
      %p253 = pneg %p77
      %p254 = pneg %p74
      %p255 = pneg %p98
      %p256 = pneg %p95
      %p257 = pneg %p119
      %p258 = pneg %p116
      %s259 = smul.u32 2, %s21
      %p260 = scmp.lt.s32.totalorder %s20, 1
      %s261 = scalar_select %p260, %s20, 1
      %p262 = scmp.lt.s32.totalorder %s259, 1
      %s263 = scalar_select %p262, %s259, 1
      %s264 = smul.addr %s261, 2
      %s265 = sadd.s32 %s263, %s264
      %s266 = smul.addr %s265, 4
      %s267 = scalar_lea.vmem %s4, %s266
      %p268 = pneg %p147
      %p269 = pneg %p144
      %p270 = pneg %p175
      %p271 = pneg %p172
      %s272 = smul.u32 2, %s21
      %p273 = scmp.lt.s32.totalorder %s20, 1
      %s274 = scalar_select %p273, %s20, 1
      %p275 = scmp.lt.s32.totalorder %s272, 1
      %s276 = scalar_select %p275, %s272, 1
      %s277 = smul.addr %s274, 2
      %s278 = sadd.s32 %s276, %s277
      %s279 = smul.addr %s278, 4
      %s280 = scalar_lea.vmem %s5, %s279
      %s281 = smul.u32 2, %s21
      %p282 = scmp.lt.s32.totalorder %s20, 1
      %s283 = scalar_select %p282, %s20, 1
      %p284 = scmp.lt.s32.totalorder %s281, 1
      %s285 = scalar_select %p284, %s281, 1
      %s286 = smul.addr %s283, 2
      %s287 = sadd.s32 %s285, %s286
      %s288 = smul.addr %s287, 4
      %s289 = scalar_lea.vmem %s0, %s288
      %s290 = smul.u32 2, %s21
      %p291 = scmp.lt.s32.totalorder %s20, 1
      %s292 = scalar_select %p291, %s20, 1
      %s293 = scalar_lea.vmem %s1, %s292
      %s294 = smul.u32 2, %s21
      %p295 = scmp.lt.s32.totalorder %s20, 1
      %s296 = scalar_select %p295, %s20, 1
      %p297 = scmp.lt.s32.totalorder %s294, 1
      %s298 = scalar_select %p297, %s294, 1
      %s299 = smul.addr %s296, 2
      %s300 = sadd.s32 %s298, %s299
      %s301 = smul.addr %s300, 4
      %s302 = scalar_lea.vmem %s4, %s301
      %s303 = smul.u32 2, %s21
      %s304 = smul.u32 2, %s21
      %p305 = scmp.lt.s32.totalorder %s20, 1
      %s306 = scalar_select %p305, %s20, 1
      %p307 = scmp.lt.s32.totalorder %s304, 1
      %s308 = scalar_select %p307, %s304, 1
      %s309 = smul.addr %s306, 2
      %s310 = sadd.s32 %s308, %s309
      %s311 = smul.addr %s310, 4
      %s312 = scalar_lea.vmem %s5, %s311
      %s313 = smul.u32 2, %s21
      %v315 = vld [vmem:[%s289] sm:$0xf]
      %v316 = vld [vmem:[%s289 + $0x4] sm:$0xf]
      %v317 = vunpack.c.l.bf16 %v315
      %v318 = vunpack.c.l.bf16 %v316
      %v319 = vld [vmem:[%s293] sm:$0x1]
      %v321 = vlaneseq
      %v322 = vshrl.u32 %v321, 7
      %v323 = vsub.s32 0, %v322
      %v324 = vrot.slane %v319, %v323
      %v326 = vmul.f32 %v317, %v324
      %v327 = vmul.f32 %v318, %v324
      %v328 = vpack.c.bf16 %v327, %v326
      %v329 = vld [vmem:[%s2] sm:$0xf]
      %v330 = vld [vmem:[%s2 + $0x4] sm:$0xf]
      %v331 = vld [vmem:[%s2 + $0x8] sm:$0xf]
      %v332 = vld [vmem:[%s2 + $0xc] sm:$0xf]
      %v333 = vld [vmem:[%s2 + $0x10] sm:$0xf]
      %v334 = vld [vmem:[%s2 + $0x14] sm:$0xf]
      %v335 = vld [vmem:[%s2 + $0x18] sm:$0xf]
      %v336 = vld [vmem:[%s2 + $0x1c] sm:$0xf]
      %v337 = vld [vmem:[%s3] sm:$0x1]
      %v339 = vlaneseq
      %v340 = vshrl.u32 %v339, 7
      %v341 = vsub.s32 0, %v340
      %v342 = vrot.slane %v337, %v341
      %v352 = vunpack.c.l.b16 %v329
      %v353 = vunpack.c.l.b16 %v330
      %v354 = vunpack.c.l.b16 %v331
      %v355 = vunpack.c.l.b16 %v332
      %v356 = vunpack.c.l.b16 %v333
      %v357 = vunpack.c.l.b16 %v334
      %v358 = vunpack.c.l.b16 %v335
      %v359 = vunpack.c.l.b16 %v336
      %v360 = vpack.c.b16 %v353, %v352
      %v361 = vpack.c.b16 %v355, %v354
      %v362 = vpack.c.b16 %v357, %v356
      %v363 = vpack.c.b16 %v359, %v358
      %vm368 = vcmask 523264
      %v370 = vsel %vm368, %v328, 0
      %372 = vmatprep.subr.bf16.mxu0 0
      %373 = vmatpush1.bf16.msra.mxu0 0
      %374 = vmatprep.subr.bf16.mxu0 0
      %375 = vmatpush1.bf16.msra.mxu0 0
      %376 = vmatprep.subr.bf16.mxu0 0
      %377 = vmatpush1.bf16.msra.mxu0 0
      %378 = vmatprep.subr.bf16.mxu0 0
      %379 = vmatpush1.bf16.msra.mxu0 0
      %380 = vmatprep.subr.bf16.mxu0 0
      %381 = vmatpush1.bf16.msra.mxu0 %v363
      %382 = vmatprep.subr.bf16.mxu0 0
      %383 = vmatpush1.bf16.msra.mxu0 %v362
      %384 = vmatprep.subr.bf16.mxu0 0
      %385 = vmatpush1.bf16.msra.mxu0 %v361
      %386 = vmatprep.subr.bf16.mxu0 0
      %387 = vmatpush1.bf16.msra.mxu0 %v360
      %388 = vmatprep.subr.bf16.mxu0 0
      %389 = vmatpush2.bf16.msra.mxu0 0
      %390 = vmatprep.subr.bf16.mxu0 0
      %391 = vmatpush2.bf16.msra.mxu0 0
      %392 = vmatprep.subr.bf16.mxu0 0
      %393 = vmatpush2.bf16.msra.mxu0 0
      %394 = vmatprep.subr.bf16.mxu0 0
      %395 = vmatpush2.bf16.msra.mxu0 0
      %396 = vmatprep.subr.bf16.mxu0 0
      %397 = vmatpush2.bf16.msra.mxu0 0
      %398 = vmatprep.subr.bf16.mxu0 0
      %399 = vmatpush2.bf16.msra.mxu0 0
      %400 = vmatprep.subr.bf16.mxu0 0
      %401 = vmatpush2.bf16.msra.mxu0 0
      %402 = vmatprep.subr.bf16.mxu0 0
      %403 = vmatpush2.bf16.msra.mxu0 0
      %404 = vmatprep.mubr.bf16.mxu0 0
      %405 = vmatmul.mubr.bf16.gmra.mxu0 %v370
      %v406 = vpop.f32.mrf.mxu0
      %v407 = vadd.f32 %v342, %v406
      %v408 = vpop.f32.mrf.mxu0
      %v409 = vpop.f32.mrf.mxu0
      %v410 = vadd.f32 %v342, %v409
      %v411 = vpop.f32.mrf.mxu0
      %412 = vdwg.mxu0
      %v413 = vld [vmem:[%s302] sm:$0xf]
      %v414 = vld [vmem:[%s302 + $0x4] sm:$0xf]
      %v415 = vunpack.c.l.bf16 %v413
      %v416 = vunpack.c.l.bf16 %v414
      %v417 = vadd.f32 %v407, %v415
      %v418 = vadd.f32 %v410, %v416
      %v419 = vpack.c.bf16 %v418, %v417
      %v421 = vunpack.c.l.b16 %v419
      %v422 = vunpack.c.h.b16 %v419
      %v423 = vpack.c.b16 %v421, %v421
      %v424 = vpack.c.b16 %v422, %v422
      %vm427 = vcmask 519168
      %428 = vst.msk [vmem:[%s312] sm:$0xf] %vm427, %v423
      %429 = vst.msk [vmem:[%s312 + $0x4] sm:$0xf] %vm427, %v424
      %s430 = smul.u32 2, %s21
      %p431 = scmp.lt.s32.totalorder %s20, 1
      %s432 = scalar_select %p431, %s20, 1
      %p433 = scmp.lt.s32.totalorder %s430, 1
      %s434 = scalar_select %p433, %s430, 1
      %s435 = smul.addr %s432, 2
      %s436 = sadd.s32 %s434, %s435
      %s437 = smul.addr %s436, 4
      %s438 = scalar_lea.vmem %s5, %s437
      // Predicated region
      $region41: #{colorize_net_forward.92} parent=39 // pred_check
        %p439 = pneg %p172
      $region42: #{colorize_net_forward.92} parent=39 // pred_check_branch
        %441 = sbr.rel (%p439) target = $region44
      $region43: #{colorize_net_forward.92} parent=39 // pred_region
        %s442 = smul.u32 2, %s21
      $region44: #{colorize_net_forward.92} parent=39 // pred_fallthru
        _
    $region40: #{colorize_net_forward.92} parent=5 // pred_fallthru
      _
    %p443 = scmp.le.s32.totalorder 2, %s11
    // Predicated region
    $region45: #{colorize_net_forward.92} parent=5 // pred_check
      %p444 = pneg %p443
    $region46: #{colorize_net_forward.92} parent=5 // pred_check_branch
      %446 = sbr.rel (%p444) target = $region48
    $region47: #{colorize_net_forward.92} parent=5 // pred_region
      %s447 = ssub.s32 %s11, 2
      // Predicated region
      $region49: #{colorize_net_forward.92} parent=47 // pred_check
        %p448 = pneg %p178
      $region50: #{colorize_net_forward.92} parent=47 // pred_check_branch
        %450 = sbr.rel (%p448) target = $region52
      $region51: #{colorize_net_forward.92} parent=47 // pred_region
        %s451 = smul.u32 2, %s23
        %p452 = scmp.lt.s32.totalorder %s22, 1
        %s453 = scalar_select %p452, %s22, 1
        %p454 = scmp.lt.s32.totalorder %s451, 1
        %s455 = scalar_select %p454, %s451, 1
        %s456 = smul.addr %s453, 2
        %s457 = sadd.s32 %s455, %s456
        %s458 = smul.addr %s457, 4
        %s459 = scalar_lea.vmem %s5, %s458
      $region52: #{colorize_net_forward.92} parent=47 // pred_fallthru
        _
    $region48: #{colorize_net_forward.92} parent=5 // pred_fallthru
      _
  $region6: #{colorize_net_forward.92} parent=0 // loop_footer
    %s15 = sadd.s32 1, %s11
  $region7: #{colorize_net_forward.92} parent=0 // loop_footer_branch
    %10 = sbr.rel target = $region3
  $region8: #{colorize_net_forward.92} parent=0 // loop_exit
    _

// kernel: colorize_net_forward.91
$region0: #{colorize_net_forward.91}
  #allocation0 [shape = 'u32[]', space=smem, size = 0x4, offset = 0x4, fixed_abs, tag = 'smem constant byte address 0x4 - core index']
  #allocation1 [shape = 'u32[144,128]{1,0:T(1,128)}', space=vmem, size = 0x12000, scoped, tag = 'internal scratch']
  #allocation2 [shape = 'f32[1,64]{1,0:T(1,128)}', space=vmem, size = 0x200, scoped, tag = 'scratch operand']
  #allocation3 [shape = 'f32[1,64]{1,0:T(1,128)}', space=vmem, size = 0x200, scoped, tag = 'scratch operand']
  %s0 = inlined_call_operand.vmem [shape: bf16[2,16,64], index: 0, kind: input, shape index: {}]
  %s1 = inlined_call_operand.vmem [shape: bf16[64,4], index: 1, kind: input, shape index: {}]
  %s2 = inlined_call_operand.vmem [shape: f32[1,4], index: 2, kind: input, shape index: {}]
  %s3 = inlined_call_operand.vmem [shape: bf16[4,64], index: 3, kind: input, shape index: {}]
  %s4 = inlined_call_operand.vmem [shape: f32[1,64], index: 4, kind: input, shape index: {}]
  %s5 = inlined_call_operand.vmem [shape: f32[2,1,64], index: 5, kind: output, shape index: {}]
  %s6 = sld [smem:[#allocation0]]
  $region61: #{colorize_net_forward.91} parent=0
    _
  %s8 = ssub.s32 1, %s6
  %s9 = scalar_select 0, %s8, %s6
  loop: start=0, step=1, limit=4
  $region2: #{colorize_net_forward.91} parent=0 // loop_pre_header
    _
  $region3: #{colorize_net_forward.91} parent=0 // loop_header
    %s11 = sphi 0, %s15
    %p12 = scmp.ge.s32.totalorder %s11, 4
    %s18 = sphi 0, %s30
    %s19 = sphi 0, %s26
    %s20 = sphi 0, %s18
    %s21 = sphi 0, %s19
    %s22 = sphi 0, %s20
    %s23 = sphi 0, %s21
    %s35 = sphi 0, %s37
    %s38 = sphi 0, %s35
    %s39 = sphi 0, %s38
    %s55 = sphi 0, %s39
    %s59 = sphi 0, %s59
    %s61 = sphi 0, %s59
    %s62 = sphi 0, %s61
    %s76 = sphi 0, %s62
    %s80 = sphi 0, %s80
    %s82 = sphi 0, %s80
    %s83 = sphi 0, %s82
    %s97 = sphi 0, %s83
    %s101 = sphi 0, %s101
    %s103 = sphi 0, %s101
    %s104 = sphi 0, %s103
    %s118 = sphi 0, %s104
    %s122 = sphi 0, %s122
    %s124 = sphi 0, %s122
    %s125 = sphi 0, %s124
    %s139 = sphi 0, %s125
    %s145 = sphi 0, %s147
    %s148 = sphi 0, %s145
    %s149 = sphi 0, %s148
    %s165 = sphi 0, %s149
  $region4: #{colorize_net_forward.91} parent=0 // loop_header_branch
    %14 = sbr.rel (%p12) target = $region8
  $region5: #{colorize_net_forward.91} parent=0 // loop_body
    %s16 = ssub.s32 %s11, 1
    %s17 = ssub.s32 %s11, 2
    %s24 = sadd.s32 1, %s19
    %p25 = scmp.ge.s32.totalorder %s24, 1
    %s26 = scalar_select %p25, 0, %s24
    %s27 = sadd.s32 1, %s18
    %s28 = scalar_select %p25, %s27, %s18
    %p29 = scmp.ge.s32.totalorder %s28, 2
    %s30 = scalar_select %p29, 0, %s28
    %s31 = ssub.s32 %s18, %s30
    %s32 = ssub.s32 %s19, %s26
    %s33 = sor.u32 %s31, %s32
    %p34 = scmp.eq.s32.totalorder %s33, 0
    %s36 = sadd.s32 %s35, 1
    %s37 = scalar_select %p34, %s35, %s36
    %p40 = pneg %p34
    %p41 = scmp.eq.s32.totalorder %s11, 1
    %p42 = por %p40, %p41
    %p43 = scmp.ne.s32.totalorder %s35, %s38
    %p44 = scmp.eq.s32.totalorder %s11, 0
    %p45 = por %p43, %p44
    %p46 = scmp.ne.s32.totalorder %s35, %s38
    %p47 = scmp.eq.s32.totalorder %s16, 1
    %p48 = por %p46, %p47
    %p49 = scmp.ne.s32.totalorder %s38, %s39
    %p50 = scmp.eq.s32.totalorder %s16, 0
    %p51 = por %p49, %p50
    %p52 = scmp.ne.s32.totalorder %s38, %s39
    %p53 = scmp.eq.s32.totalorder %s17, 1
    %p54 = por %p52, %p53
    %p56 = scmp.ne.s32.totalorder %s39, %s55
    %p57 = scmp.eq.s32.totalorder %s17, 0
    %p58 = por %p56, %p57
    %s60 = sadd.s32 %s59, 1
    %p63 = scmp.eq.s32.totalorder %s11, 1
    %p64 = scmp.ne.s32.totalorder %s59, %s61
    %p65 = scmp.eq.s32.totalorder %s11, 0
    %p66 = por %p64, %p65
    %p67 = scmp.ne.s32.totalorder %s59, %s61
    %p68 = scmp.eq.s32.totalorder %s16, 1
    %p69 = por %p67, %p68
    %p70 = scmp.ne.s32.totalorder %s61, %s62
    %p71 = scmp.eq.s32.totalorder %s16, 0
    %p72 = por %p70, %p71
    %p73 = scmp.ne.s32.totalorder %s61, %s62
    %p74 = scmp.eq.s32.totalorder %s17, 1
    %p75 = por %p73, %p74
    %p77 = scmp.ne.s32.totalorder %s62, %s76
    %p78 = scmp.eq.s32.totalorder %s17, 0
    %p79 = por %p77, %p78
    %s81 = sadd.s32 %s80, 1
    %p84 = scmp.eq.s32.totalorder %s11, 1
    %p85 = scmp.ne.s32.totalorder %s80, %s82
    %p86 = scmp.eq.s32.totalorder %s11, 0
    %p87 = por %p85, %p86
    %p88 = scmp.ne.s32.totalorder %s80, %s82
    %p89 = scmp.eq.s32.totalorder %s16, 1
    %p90 = por %p88, %p89
    %p91 = scmp.ne.s32.totalorder %s82, %s83
    %p92 = scmp.eq.s32.totalorder %s16, 0
    %p93 = por %p91, %p92
    %p94 = scmp.ne.s32.totalorder %s82, %s83
    %p95 = scmp.eq.s32.totalorder %s17, 1
    %p96 = por %p94, %p95
    %p98 = scmp.ne.s32.totalorder %s83, %s97
    %p99 = scmp.eq.s32.totalorder %s17, 0
    %p100 = por %p98, %p99
    %s102 = sadd.s32 %s101, 1
    %p105 = scmp.eq.s32.totalorder %s11, 1
    %p106 = scmp.ne.s32.totalorder %s101, %s103
    %p107 = scmp.eq.s32.totalorder %s11, 0
    %p108 = por %p106, %p107
    %p109 = scmp.ne.s32.totalorder %s101, %s103
    %p110 = scmp.eq.s32.totalorder %s16, 1
    %p111 = por %p109, %p110
    %p112 = scmp.ne.s32.totalorder %s103, %s104
    %p113 = scmp.eq.s32.totalorder %s16, 0
    %p114 = por %p112, %p113
    %p115 = scmp.ne.s32.totalorder %s103, %s104
    %p116 = scmp.eq.s32.totalorder %s17, 1
    %p117 = por %p115, %p116
    %p119 = scmp.ne.s32.totalorder %s104, %s118
    %p120 = scmp.eq.s32.totalorder %s17, 0
    %p121 = por %p119, %p120
    %s123 = sadd.s32 %s122, 1
    %p126 = scmp.eq.s32.totalorder %s11, 1
    %p127 = scmp.ne.s32.totalorder %s122, %s124
    %p128 = scmp.eq.s32.totalorder %s11, 0
    %p129 = por %p127, %p128
    %p130 = scmp.ne.s32.totalorder %s122, %s124
    %p131 = scmp.eq.s32.totalorder %s16, 1
    %p132 = por %p130, %p131
    %p133 = scmp.ne.s32.totalorder %s124, %s125
    %p134 = scmp.eq.s32.totalorder %s16, 0
    %p135 = por %p133, %p134
    %p136 = scmp.ne.s32.totalorder %s124, %s125
    %p137 = scmp.eq.s32.totalorder %s17, 1
    %p138 = por %p136, %p137
    %p140 = scmp.ne.s32.totalorder %s125, %s139
    %p141 = scmp.eq.s32.totalorder %s17, 0
    %p142 = por %p140, %p141
    %s143 = ssub.s32 %s18, %s30
    %p144 = scmp.eq.s32.totalorder %s143, 0
    %s146 = sadd.s32 %s145, 1
    %s147 = scalar_select %p144, %s145, %s146
    %p150 = pneg %p144
    %p151 = scmp.eq.s32.totalorder %s11, 1
    %p152 = por %p150, %p151
    %p153 = scmp.ne.s32.totalorder %s145, %s148
    %p154 = scmp.eq.s32.totalorder %s11, 0
    %p155 = por %p153, %p154
    %p156 = scmp.ne.s32.totalorder %s145, %s148
    %p157 = scmp.eq.s32.totalorder %s16, 1
    %p158 = por %p156, %p157
    %p159 = scmp.ne.s32.totalorder %s148, %s149
    %p160 = scmp.eq.s32.totalorder %s16, 0
    %p161 = por %p159, %p160
    %p162 = scmp.ne.s32.totalorder %s148, %s149
    %p163 = scmp.eq.s32.totalorder %s17, 1
    %p164 = por %p162, %p163
    %p166 = scmp.ne.s32.totalorder %s149, %s165
    %p167 = scmp.eq.s32.totalorder %s17, 0
    %p168 = por %p166, %p167
    %p169 = scmp.le.s32.totalorder 1, %s11
    %p170 = scmp.lt.s32.totalorder %s11, 3
    %p171 = pnand %p169, %p170
    %p172 = pneg %p171
    // Predicated region
    $region9: #{colorize_net_forward.91} parent=5 // pred_check
      _
    $region10: #{colorize_net_forward.91} parent=5 // pred_check_branch
      %174 = sbr.rel (%p171) target = $region12
    $region11: #{colorize_net_forward.91} parent=5 // pred_region
      %s175 = ssub.s32 %s11, 1
      // Predicated region
      $region13: #{colorize_net_forward.91} parent=11 // pred_check
        %p176 = pneg %p72
      $region14: #{colorize_net_forward.91} parent=11 // pred_check_branch
        %178 = sbr.rel (%p176) target = $region16
      $region15: #{colorize_net_forward.91} parent=11 // pred_region
        _
      $region16: #{colorize_net_forward.91} parent=11 // pred_fallthru
        _
      // Predicated region
      $region17: #{colorize_net_forward.91} parent=11 // pred_check
        %p179 = pneg %p93
      $region18: #{colorize_net_forward.91} parent=11 // pred_check_branch
        %181 = sbr.rel (%p179) target = $region20
      $region19: #{colorize_net_forward.91} parent=11 // pred_region
        _
      $region20: #{colorize_net_forward.91} parent=11 // pred_fallthru
        _
      // Predicated region
      $region21: #{colorize_net_forward.91} parent=11 // pred_check
        %p182 = pneg %p114
      $region22: #{colorize_net_forward.91} parent=11 // pred_check_branch
        %184 = sbr.rel (%p182) target = $region24
      $region23: #{colorize_net_forward.91} parent=11 // pred_region
        _
      $region24: #{colorize_net_forward.91} parent=11 // pred_fallthru
        _
      // Predicated region
      $region25: #{colorize_net_forward.91} parent=11 // pred_check
        %p185 = pneg %p135
      $region26: #{colorize_net_forward.91} parent=11 // pred_check_branch
        %187 = sbr.rel (%p185) target = $region28
      $region27: #{colorize_net_forward.91} parent=11 // pred_region
        _
      $region28: #{colorize_net_forward.91} parent=11 // pred_fallthru
        _
    $region12: #{colorize_net_forward.91} parent=5 // pred_fallthru
      _
    %p188 = scmp.lt.s32.totalorder %s11, 2
    // Predicated region
    $region29: #{colorize_net_forward.91} parent=5 // pred_check
      %p189 = pneg %p188
    $region30: #{colorize_net_forward.91} parent=5 // pred_check_branch
      %191 = sbr.rel (%p189) target = $region32
    $region31: #{colorize_net_forward.91} parent=5 // pred_region
      // Predicated region
      $region33: #{colorize_net_forward.91} parent=31 // pred_check
        %p192 = pneg %p45
      $region34: #{colorize_net_forward.91} parent=31 // pred_check_branch
        %194 = sbr.rel (%p192) target = $region36
      $region35: #{colorize_net_forward.91} parent=31 // pred_region
        %s195 = smul.u32 2, %s19
        %p196 = scmp.lt.s32.totalorder %s18, 1
        %s197 = scalar_select %p196, %s18, 1
        %p198 = scmp.lt.s32.totalorder %s195, 1
        %s199 = scalar_select %p198, %s195, 1
        %s200 = smul.addr %s197, 2
        %s201 = sadd.s32 %s199, %s200
        %s202 = smul.addr %s201, 4
        %s203 = scalar_lea.vmem %s0, %s202
        %s204 = smul.u32 2, %s19
      $region36: #{colorize_net_forward.91} parent=31 // pred_fallthru
        _
    $region32: #{colorize_net_forward.91} parent=5 // pred_fallthru
      _
    %p205 = scmp.le.s32.totalorder 1, %s11
    %p206 = scmp.lt.s32.totalorder %s11, 3
    %p207 = pnand %p205, %p206
    %p208 = pneg %p207
    // Predicated region
    $region37: #{colorize_net_forward.91} parent=5 // pred_check
      _
    $region38: #{colorize_net_forward.91} parent=5 // pred_check_branch
      %210 = sbr.rel (%p207) target = $region40
    $region39: #{colorize_net_forward.91} parent=5 // pred_region
      %s211 = ssub.s32 %s11, 1
      %s212 = smul.u32 2, %s21
      %p213 = scmp.lt.s32.totalorder %s20, 1
      %s214 = scalar_select %p213, %s20, 1
      %p215 = scmp.lt.s32.totalorder %s212, 1
      %s216 = scalar_select %p215, %s212, 1
      %s217 = smul.addr %s214, 2
      %s218 = sadd.s32 %s216, %s217
      %s219 = smul.addr %s218, 4
      %s220 = scalar_lea.vmem %s0, %s219
      %p221 = pneg %p51
      %p222 = pneg %p48
      %p223 = pneg %p72
      %p224 = pneg %p69
      %p225 = pneg %p93
      %p226 = pneg %p90
      %p227 = pneg %p114
      %p228 = pneg %p111
      %p229 = pneg %p135
      %p230 = pneg %p132
      %p231 = pneg %p161
      %p232 = pneg %p158
      %p233 = scmp.lt.s32.totalorder %s20, 1
      %s234 = scalar_select %p233, %s20, 1
      %s235 = scalar_lea.vmem %s5, %s234
      %s236 = smul.u32 2, %s21
      %p237 = scmp.lt.s32.totalorder %s20, 1
      %s238 = scalar_select %p237, %s20, 1
      %p239 = scmp.lt.s32.totalorder %s236, 1
      %s240 = scalar_select %p239, %s236, 1
      %s241 = smul.addr %s238, 2
      %s242 = sadd.s32 %s240, %s241
      %s243 = smul.addr %s242, 4
      %s244 = scalar_lea.vmem %s0, %s243
      %s245 = smul.u32 2, %s21
      %p246 = scmp.lt.s32.totalorder %s20, 1
      %s247 = scalar_select %p246, %s20, 1
      %s248 = scalar_lea.vmem %s5, %s247
      %p250 = scmp.eq.s32.totalorder %s21, 0
      // Predicated region
      $region41: #{colorize_net_forward.91} parent=39 // pred_check
        %p251 = pneg %p250
      $region42: #{colorize_net_forward.91} parent=39 // pred_check_branch
        %253 = sbr.rel (%p251) target = $region44
      $region43: #{colorize_net_forward.91} parent=39 // pred_region
        %vm254 = vcmask 516096
        %255 = vst.msk [vmem:[#allocation2] sm:$0x1] %vm254, 0.0
        %256 = vst.msk [vmem:[#allocation3] sm:$0x1] %vm254, 0.0
      $region44: #{colorize_net_forward.91} parent=39 // pred_fallthru
        _
      %v257 = vld [vmem:[%s244] sm:$0xf]
      %v258 = vld [vmem:[%s244 + $0x4] sm:$0xf]
      %v259 = vunpack.c.l.bf16 %v257
      %v260 = vunpack.c.l.bf16 %v258
      %v261 = vld [vmem:[#allocation2] sm:$0x1]
      %vm262 = vcmask 523264
      %v263 = vsel %vm262, %v259, 0.0
      %v264 = vsel %vm262, %v260, 0.0
      %v265 = vadd.f32 %v263, %v264
      %v266 = vrot.slane %v265, 4
      %v267 = vadd.f32 %v265, %v266
      %v268 = vrot.slane %v267, 2
      %v269 = vadd.f32 %v267, %v268
      %v270 = vrot.slane %v269, 1
      %v271 = vadd.f32 %v269, %v270
      %v272 = vadd.f32 %v261, %v271
      %vm273 = vcmask 516096
      %274 = vst.msk [vmem:[#allocation2] sm:$0x1] %vm273, %v272
      %v275 = vld [vmem:[#allocation3] sm:$0x1]
      %v276 = vmul.f32 %v259, %v259
      %v277 = vmul.f32 %v260, %v260
      %v278 = vsel %vm262, %v276, 0.0
      %v279 = vsel %vm262, %v277, 0.0
      %v280 = vadd.f32 %v278, %v279
      %v281 = vrot.slane %v280, 4
      %v282 = vadd.f32 %v280, %v281
      %v283 = vrot.slane %v282, 2
      %v284 = vadd.f32 %v282, %v283
      %v285 = vrot.slane %v284, 1
      %v286 = vadd.f32 %v284, %v285
      %v287 = vadd.f32 %v275, %v286
      %288 = vst.msk [vmem:[#allocation3] sm:$0x1] %vm273, %v287
      // Predicated region
      $region45: #{colorize_net_forward.91} parent=39 // pred_check
        %p289 = pneg %p250
      $region46: #{colorize_net_forward.91} parent=39 // pred_check_branch
        %291 = sbr.rel (%p289) target = $region48
      $region47: #{colorize_net_forward.91} parent=39 // pred_region
        %v292 = vld [vmem:[#allocation2] sm:$0x1]
        %v293 = vmul.f32 %v292, 0.0625
        %v294 = vld [vmem:[#allocation3] sm:$0x1]
        %v295 = vmul.f32 %v294, 0.0625
        %v296 = vmul.f32 %v293, %v293
        %v297 = vsub.f32 %v295, %v296
        %v298 = vmax.f32 %v297, 0.0
        %v299 = vrsqrt.pop %v298
        %v300 = vmul.f32 %v298, %v299
        %vm301 = vcmp.eq.f32.partialorder %v298, inf
        %v302 = vsel %vm301, %v298, %v300
        %vm303 = vcmp.eq.f32.partialorder %v298, 0.0
        %v304 = vand.u32 %v298, 2147483648
        %v305 = vsel %vm303, %v304, %v302
        %v306 = vadd.f32 %v305, %v293
        %v307 = vpack.c.bf16 %v306, %v306
        %v308 = vld [vmem:[%s1] sm:$0xf]
        %v309 = vld [vmem:[%s1 + $0x4] sm:$0xf]
        %v310 = vld [vmem:[%s1 + $0x8] sm:$0xf]
        %v311 = vld [vmem:[%s1 + $0xc] sm:$0xf]
        %v312 = vld [vmem:[%s1 + $0x10] sm:$0xf]
        %v313 = vld [vmem:[%s1 + $0x14] sm:$0xf]
        %v314 = vld [vmem:[%s1 + $0x18] sm:$0xf]
        %v315 = vld [vmem:[%s1 + $0x1c] sm:$0xf]
        %v316 = vld [vmem:[%s2] sm:$0x1]
        %v325 = vunpack.c.l.b16 %v308
        %v326 = vunpack.c.l.b16 %v309
        %v327 = vunpack.c.l.b16 %v310
        %v328 = vunpack.c.l.b16 %v311
        %v329 = vunpack.c.l.b16 %v312
        %v330 = vunpack.c.l.b16 %v313
        %v331 = vunpack.c.l.b16 %v314
        %v332 = vunpack.c.l.b16 %v315
        %v333 = vpack.c.b16 %v326, %v325
        %v334 = vpack.c.b16 %v328, %v327
        %v335 = vpack.c.b16 %v330, %v329
        %v336 = vpack.c.b16 %v332, %v331
        %v342 = vsel %vm262, %v307, 0
        %344 = vmatprep.subr.bf16.mxu0 0
        %345 = vmatpush1.bf16.msra.mxu0 0
        %346 = vmatprep.subr.bf16.mxu0 0
        %347 = vmatpush1.bf16.msra.mxu0 0
        %348 = vmatprep.subr.bf16.mxu0 0
        %349 = vmatpush1.bf16.msra.mxu0 0
        %350 = vmatprep.subr.bf16.mxu0 0
        %351 = vmatpush1.bf16.msra.mxu0 0
        %352 = vmatprep.subr.bf16.mxu0 0
        %353 = vmatpush1.bf16.msra.mxu0 %v336
        %354 = vmatprep.subr.bf16.mxu0 0
        %355 = vmatpush1.bf16.msra.mxu0 %v335
        %356 = vmatprep.subr.bf16.mxu0 0
        %357 = vmatpush1.bf16.msra.mxu0 %v334
        %358 = vmatprep.subr.bf16.mxu0 0
        %359 = vmatpush1.bf16.msra.mxu0 %v333
        %360 = vmatprep.subr.bf16.mxu0 0
        %361 = vmatpush2.bf16.msra.mxu0 0
        %362 = vmatprep.subr.bf16.mxu0 0
        %363 = vmatpush2.bf16.msra.mxu0 0
        %364 = vmatprep.subr.bf16.mxu0 0
        %365 = vmatpush2.bf16.msra.mxu0 0
        %366 = vmatprep.subr.bf16.mxu0 0
        %367 = vmatpush2.bf16.msra.mxu0 0
        %368 = vmatprep.subr.bf16.mxu0 0
        %369 = vmatpush2.bf16.msra.mxu0 0
        %370 = vmatprep.subr.bf16.mxu0 0
        %371 = vmatpush2.bf16.msra.mxu0 0
        %372 = vmatprep.subr.bf16.mxu0 0
        %373 = vmatpush2.bf16.msra.mxu0 0
        %374 = vmatprep.subr.bf16.mxu0 0
        %375 = vmatpush2.bf16.msra.mxu0 0
        %376 = vmatprep.mubr.bf16.mxu0 0
        %377 = vmatmul.mubr.bf16.gmra.mxu0 %v342
        %v378 = vpop.f32.mrf.mxu0
        %v379 = vadd.f32 %v316, %v378
        %v380 = vpop.f32.mrf.mxu0
        %v381 = vpop.f32.mrf.mxu0
        %v382 = vpop.f32.mrf.mxu0
        %383 = vdwg.mxu0
        %v384 = vmax.f32 %v379, 0.0
        %v385 = vpack.c.bf16 %v384, %v384
        %v386 = vld [vmem:[%s3] sm:$0x3]
        %v387 = vld [vmem:[%s4] sm:$0x1]
        %vm388 = vcmask 31744
        %v390 = vsel %vm388, %v385, 0
        %vm392 = vcmask 1041408
        %v394 = vsel %vm392, %v386, 0
        %396 = vmatprep.subr.bf16.mxu0 0
        %397 = vmatpush1.bf16.msra.mxu0 0
        %398 = vmatprep.subr.bf16.mxu0 0
        %399 = vmatpush1.bf16.msra.mxu0 0
        %400 = vmatprep.subr.bf16.mxu0 0
        %401 = vmatpush1.bf16.msra.mxu0 0
        %402 = vmatprep.subr.bf16.mxu0 0
        %403 = vmatpush1.bf16.msra.mxu0 0
        %404 = vmatprep.subr.bf16.mxu0 0
        %405 = vmatpush1.bf16.msra.mxu0 0
        %406 = vmatprep.subr.bf16.mxu0 0
        %407 = vmatpush1.bf16.msra.mxu0 0
        %408 = vmatprep.subr.bf16.mxu0 0
        %409 = vmatpush1.bf16.msra.mxu0 0
        %410 = vmatprep.subr.bf16.mxu0 0
        %411 = vmatpush1.bf16.msra.mxu0 %v394
        %412 = vmatprep.subr.bf16.mxu0 0
        %413 = vmatpush2.bf16.msra.mxu0 0
        %414 = vmatprep.subr.bf16.mxu0 0
        %415 = vmatpush2.bf16.msra.mxu0 0
        %416 = vmatprep.subr.bf16.mxu0 0
        %417 = vmatpush2.bf16.msra.mxu0 0
        %418 = vmatprep.subr.bf16.mxu0 0
        %419 = vmatpush2.bf16.msra.mxu0 0
        %420 = vmatprep.subr.bf16.mxu0 0
        %421 = vmatpush2.bf16.msra.mxu0 0
        %422 = vmatprep.subr.bf16.mxu0 0
        %423 = vmatpush2.bf16.msra.mxu0 0
        %424 = vmatprep.subr.bf16.mxu0 0
        %425 = vmatpush2.bf16.msra.mxu0 0
        %426 = vmatprep.subr.bf16.mxu0 0
        %427 = vmatpush2.bf16.msra.mxu0 0
        %428 = vmatprep.mubr.bf16.mxu0 0
        %429 = vmatmul.mubr.bf16.gmra.mxu0 %v390
        %v430 = vpop.f32.mrf.mxu0
        %v431 = vadd.f32 %v387, %v430
        %v432 = vpop.f32.mrf.mxu0
        %v433 = vpop.f32.mrf.mxu0
        %v434 = vpop.f32.mrf.mxu0
        %435 = vdwg.mxu0
        %v436 = vxor.u32 %v431, 2147483648
        %v437 = vmul.f32 %v436, 1.442695
        %v438 = vpow.pop %v437
        %v439 = vadd.f32 %v438, 1.0
        %v440 = vrcp.pop %v439
        %v441 = vmul.f32 1.0, %v440
        %442 = vst.msk [vmem:[%s248] sm:$0x1] %vm273, %v441
      $region48: #{colorize_net_forward.91} parent=39 // pred_fallthru
        _
      %p443 = scmp.lt.s32.totalorder %s20, 1
      %s444 = scalar_select %p443, %s20, 1
      %s445 = scalar_lea.vmem %s5, %s444
      // Predicated region
      $region49: #{colorize_net_forward.91} parent=39 // pred_check
        %p446 = pneg %p158
      $region50: #{colorize_net_forward.91} parent=39 // pred_check_branch
        %448 = sbr.rel (%p446) target = $region52
      $region51: #{colorize_net_forward.91} parent=39 // pred_region
        _
      $region52: #{colorize_net_forward.91} parent=39 // pred_fallthru
        _
    $region40: #{colorize_net_forward.91} parent=5 // pred_fallthru
      _
    %p449 = scmp.le.s32.totalorder 2, %s11
    // Predicated region
    $region53: #{colorize_net_forward.91} parent=5 // pred_check
      %p450 = pneg %p449
    $region54: #{colorize_net_forward.91} parent=5 // pred_check_branch
      %452 = sbr.rel (%p450) target = $region56
    $region55: #{colorize_net_forward.91} parent=5 // pred_region
      %s453 = ssub.s32 %s11, 2
      // Predicated region
      $region57: #{colorize_net_forward.91} parent=55 // pred_check
        %p454 = pneg %p164
      $region58: #{colorize_net_forward.91} parent=55 // pred_check_branch
        %456 = sbr.rel (%p454) target = $region60
      $region59: #{colorize_net_forward.91} parent=55 // pred_region
        %p457 = scmp.lt.s32.totalorder %s22, 1
        %s458 = scalar_select %p457, %s22, 1
        %s459 = scalar_lea.vmem %s5, %s458
      $region60: #{colorize_net_forward.91} parent=55 // pred_fallthru
        _
    $region56: #{colorize_net_forward.91} parent=5 // pred_fallthru
      _
  $region6: #{colorize_net_forward.91} parent=0 // loop_footer
    %s15 = sadd.s32 1, %s11
  $region7: #{colorize_net_forward.91} parent=0 // loop_footer_branch
    %10 = sbr.rel target = $region3
  $region8: #{colorize_net_forward.91} parent=0 // loop_exit
    _

// kernel: colorize_net_forward.159
$region0: #{colorize_net_forward.159}
  #allocation0 [shape = 'u32[]', space=smem, size = 0x4, offset = 0x4, fixed_abs, tag = 'smem constant byte address 0x4 - core index']
  #allocation1 [shape = 'u32[144,128]{1,0:T(1,128)}', space=vmem, size = 0x12000, scoped, tag = 'internal scratch']
  %s0 = inlined_call_operand.vmem [shape: bf16[2,16,64], index: 0, kind: input, shape index: {}]
  %s1 = inlined_call_operand.vmem [shape: bf16[2,16,64], index: 1, kind: input, shape index: {}]
  %s2 = inlined_call_operand.vmem [shape: bf16[2,16,64], index: 2, kind: input, shape index: {}]
  %s3 = inlined_call_operand.vmem [shape: bf16[2,16,64], index: 3, kind: input, shape index: {}]
  %s4 = inlined_call_operand.vmem [shape: bf16[2,16,64], index: 4, kind: input, shape index: {}]
  %s5 = inlined_call_operand.vmem [shape: bf16[2,16,64], index: 5, kind: input, shape index: {}]
  %s6 = inlined_call_operand.vmem [shape: bf16[2,16,64], index: 6, kind: input, shape index: {}]
  %s7 = inlined_call_operand.vmem [shape: bf16[2,16,64], index: 7, kind: input, shape index: {}]
  %s8 = inlined_call_operand.vmem [shape: bf16[2,16,64], index: 8, kind: input, shape index: {}]
  %s9 = inlined_call_operand.vmem [shape: bf16[2,16,64], index: 9, kind: input, shape index: {}]
  %s10 = inlined_call_operand.vmem [shape: bf16[2,16,64], index: 10, kind: input, shape index: {}]
  %s11 = inlined_call_operand.vmem [shape: bf16[2,16,64], index: 11, kind: input, shape index: {}]
  %s12 = inlined_call_operand.vmem [shape: bf16[768,64], index: 12, kind: input, shape index: {}]
  %s13 = inlined_call_operand.vmem [shape: f32[1,64], index: 13, kind: input, shape index: {}]
  %s14 = inlined_call_operand.vmem [shape: bf16[2,16,64], index: 14, kind: output, shape index: {}]
  %s15 = sld [smem:[#allocation0]]
  $region89: #{colorize_net_forward.159} parent=0
    _
  %s17 = ssub.s32 1, %s15
  %s18 = scalar_select 0, %s17, %s15
  loop: start=0, step=1, limit=4
  $region2: #{colorize_net_forward.159} parent=0 // loop_pre_header
    _
  $region3: #{colorize_net_forward.159} parent=0 // loop_header
    %s20 = sphi 0, %s24
    %p21 = scmp.ge.s32.totalorder %s20, 4
    %s27 = sphi 0, %s39
    %s28 = sphi 0, %s35
    %s29 = sphi 0, %s27
    %s30 = sphi 0, %s28
    %s31 = sphi 0, %s29
    %s32 = sphi 0, %s30
    %s44 = sphi 0, %s46
    %s47 = sphi 0, %s44
    %s48 = sphi 0, %s47
    %s64 = sphi 0, %s48
    %s72 = sphi 0, %s74
    %s75 = sphi 0, %s72
    %s76 = sphi 0, %s75
    %s92 = sphi 0, %s76
    %s100 = sphi 0, %s102
    %s103 = sphi 0, %s100
    %s104 = sphi 0, %s103
    %s120 = sphi 0, %s104
    %s128 = sphi 0, %s130
    %s131 = sphi 0, %s128
    %s132 = sphi 0, %s131
    %s148 = sphi 0, %s132
    %s156 = sphi 0, %s158
    %s159 = sphi 0, %s156
    %s160 = sphi 0, %s159
    %s176 = sphi 0, %s160
    %s184 = sphi 0, %s186
    %s187 = sphi 0, %s184
    %s188 = sphi 0, %s187
    %s204 = sphi 0, %s188
    %s212 = sphi 0, %s214
    %s215 = sphi 0, %s212
    %s216 = sphi 0, %s215
    %s232 = sphi 0, %s216
    %s240 = sphi 0, %s242
    %s243 = sphi 0, %s240
    %s244 = sphi 0, %s243
    %s260 = sphi 0, %s244
    %s268 = sphi 0, %s270
    %s271 = sphi 0, %s268
    %s272 = sphi 0, %s271
    %s288 = sphi 0, %s272
    %s296 = sphi 0, %s298
    %s299 = sphi 0, %s296
    %s300 = sphi 0, %s299
    %s316 = sphi 0, %s300
    %s324 = sphi 0, %s326
    %s327 = sphi 0, %s324
    %s328 = sphi 0, %s327
    %s344 = sphi 0, %s328
    %s352 = sphi 0, %s354
    %s355 = sphi 0, %s352
    %s356 = sphi 0, %s355
    %s372 = sphi 0, %s356
    %s376 = sphi 0, %s376
    %s378 = sphi 0, %s376
    %s379 = sphi 0, %s378
    %s393 = sphi 0, %s379
    %s397 = sphi 0, %s397
    %s399 = sphi 0, %s397
    %s400 = sphi 0, %s399
    %s414 = sphi 0, %s400
    %s422 = sphi 0, %s424
    %s425 = sphi 0, %s422
    %s426 = sphi 0, %s425
    %s442 = sphi 0, %s426
  $region4: #{colorize_net_forward.159} parent=0 // loop_header_branch
    %23 = sbr.rel (%p21) target = $region8
  $region5: #{colorize_net_forward.159} parent=0 // loop_body
    %s25 = ssub.s32 %s20, 1
    %s26 = ssub.s32 %s20, 2
    %s33 = sadd.s32 1, %s28
    %p34 = scmp.ge.s32.totalorder %s33, 1
    %s35 = scalar_select %p34, 0, %s33
    %s36 = sadd.s32 1, %s27
    %s37 = scalar_select %p34, %s36, %s27
    %p38 = scmp.ge.s32.totalorder %s37, 2
    %s39 = scalar_select %p38, 0, %s37
    %s40 = ssub.s32 %s27, %s39
    %s41 = ssub.s32 %s28, %s35
    %s42 = sor.u32 %s40, %s41
    %p43 = scmp.eq.s32.totalorder %s42, 0
    %s45 = sadd.s32 %s44, 1
    %s46 = scalar_select %p43, %s44, %s45
    %p49 = pneg %p43
    %p50 = scmp.eq.s32.totalorder %s20, 1
    %p51 = por %p49, %p50
    %p52 = scmp.ne.s32.totalorder %s44, %s47
    %p53 = scmp.eq.s32.totalorder %s20, 0
    %p54 = por %p52, %p53
    %p55 = scmp.ne.s32.totalorder %s44, %s47
    %p56 = scmp.eq.s32.totalorder %s25, 1
    %p57 = por %p55, %p56
    %p58 = scmp.ne.s32.totalorder %s47, %s48
    %p59 = scmp.eq.s32.totalorder %s25, 0
    %p60 = por %p58, %p59
    %p61 = scmp.ne.s32.totalorder %s47, %s48
    %p62 = scmp.eq.s32.totalorder %s26, 1
    %p63 = por %p61, %p62
    %p65 = scmp.ne.s32.totalorder %s48, %s64
    %p66 = scmp.eq.s32.totalorder %s26, 0
    %p67 = por %p65, %p66
    %s68 = ssub.s32 %s27, %s39
    %s69 = ssub.s32 %s28, %s35
    %s70 = sor.u32 %s68, %s69
    %p71 = scmp.eq.s32.totalorder %s70, 0
    %s73 = sadd.s32 %s72, 1
    %s74 = scalar_select %p71, %s72, %s73
    %p77 = pneg %p71
    %p78 = scmp.eq.s32.totalorder %s20, 1
    %p79 = por %p77, %p78
    %p80 = scmp.ne.s32.totalorder %s72, %s75
    %p81 = scmp.eq.s32.totalorder %s20, 0
    %p82 = por %p80, %p81
    %p83 = scmp.ne.s32.totalorder %s72, %s75
    %p84 = scmp.eq.s32.totalorder %s25, 1
    %p85 = por %p83, %p84
    %p86 = scmp.ne.s32.totalorder %s75, %s76
    %p87 = scmp.eq.s32.totalorder %s25, 0
    %p88 = por %p86, %p87
    %p89 = scmp.ne.s32.totalorder %s75, %s76
    %p90 = scmp.eq.s32.totalorder %s26, 1
    %p91 = por %p89, %p90
    %p93 = scmp.ne.s32.totalorder %s76, %s92
    %p94 = scmp.eq.s32.totalorder %s26, 0
    %p95 = por %p93, %p94
    %s96 = ssub.s32 %s27, %s39
    %s97 = ssub.s32 %s28, %s35
    %s98 = sor.u32 %s96, %s97
    %p99 = scmp.eq.s32.totalorder %s98, 0
    %s101 = sadd.s32 %s100, 1
    %s102 = scalar_select %p99, %s100, %s101
    %p105 = pneg %p99
    %p106 = scmp.eq.s32.totalorder %s20, 1
    %p107 = por %p105, %p106
    %p108 = scmp.ne.s32.totalorder %s100, %s103
    %p109 = scmp.eq.s32.totalorder %s20, 0
    %p110 = por %p108, %p109
    %p111 = scmp.ne.s32.totalorder %s100, %s103
    %p112 = scmp.eq.s32.totalorder %s25, 1
    %p113 = por %p111, %p112
    %p114 = scmp.ne.s32.totalorder %s103, %s104
    %p115 = scmp.eq.s32.totalorder %s25, 0
    %p116 = por %p114, %p115
    %p117 = scmp.ne.s32.totalorder %s103, %s104
    %p118 = scmp.eq.s32.totalorder %s26, 1
    %p119 = por %p117, %p118
    %p121 = scmp.ne.s32.totalorder %s104, %s120
    %p122 = scmp.eq.s32.totalorder %s26, 0
    %p123 = por %p121, %p122
    %s124 = ssub.s32 %s27, %s39
    %s125 = ssub.s32 %s28, %s35
    %s126 = sor.u32 %s124, %s125
    %p127 = scmp.eq.s32.totalorder %s126, 0
    %s129 = sadd.s32 %s128, 1
    %s130 = scalar_select %p127, %s128, %s129
    %p133 = pneg %p127
    %p134 = scmp.eq.s32.totalorder %s20, 1
    %p135 = por %p133, %p134
    %p136 = scmp.ne.s32.totalorder %s128, %s131
    %p137 = scmp.eq.s32.totalorder %s20, 0
    %p138 = por %p136, %p137
    %p139 = scmp.ne.s32.totalorder %s128, %s131
    %p140 = scmp.eq.s32.totalorder %s25, 1
    %p141 = por %p139, %p140
    %p142 = scmp.ne.s32.totalorder %s131, %s132
    %p143 = scmp.eq.s32.totalorder %s25, 0
    %p144 = por %p142, %p143
    %p145 = scmp.ne.s32.totalorder %s131, %s132
    %p146 = scmp.eq.s32.totalorder %s26, 1
    %p147 = por %p145, %p146
    %p149 = scmp.ne.s32.totalorder %s132, %s148
    %p150 = scmp.eq.s32.totalorder %s26, 0
    %p151 = por %p149, %p150
    %s152 = ssub.s32 %s27, %s39
    %s153 = ssub.s32 %s28, %s35
    %s154 = sor.u32 %s152, %s153
    %p155 = scmp.eq.s32.totalorder %s154, 0
    %s157 = sadd.s32 %s156, 1
    %s158 = scalar_select %p155, %s156, %s157
    %p161 = pneg %p155
    %p162 = scmp.eq.s32.totalorder %s20, 1
    %p163 = por %p161, %p162
    %p164 = scmp.ne.s32.totalorder %s156, %s159
    %p165 = scmp.eq.s32.totalorder %s20, 0
    %p166 = por %p164, %p165
    %p167 = scmp.ne.s32.totalorder %s156, %s159
    %p168 = scmp.eq.s32.totalorder %s25, 1
    %p169 = por %p167, %p168
    %p170 = scmp.ne.s32.totalorder %s159, %s160
    %p171 = scmp.eq.s32.totalorder %s25, 0
    %p172 = por %p170, %p171
    %p173 = scmp.ne.s32.totalorder %s159, %s160
    %p174 = scmp.eq.s32.totalorder %s26, 1
    %p175 = por %p173, %p174
    %p177 = scmp.ne.s32.totalorder %s160, %s176
    %p178 = scmp.eq.s32.totalorder %s26, 0
    %p179 = por %p177, %p178
    %s180 = ssub.s32 %s27, %s39
    %s181 = ssub.s32 %s28, %s35
    %s182 = sor.u32 %s180, %s181
    %p183 = scmp.eq.s32.totalorder %s182, 0
    %s185 = sadd.s32 %s184, 1
    %s186 = scalar_select %p183, %s184, %s185
    %p189 = pneg %p183
    %p190 = scmp.eq.s32.totalorder %s20, 1
    %p191 = por %p189, %p190
    %p192 = scmp.ne.s32.totalorder %s184, %s187
    %p193 = scmp.eq.s32.totalorder %s20, 0
    %p194 = por %p192, %p193
    %p195 = scmp.ne.s32.totalorder %s184, %s187
    %p196 = scmp.eq.s32.totalorder %s25, 1
    %p197 = por %p195, %p196
    %p198 = scmp.ne.s32.totalorder %s187, %s188
    %p199 = scmp.eq.s32.totalorder %s25, 0
    %p200 = por %p198, %p199
    %p201 = scmp.ne.s32.totalorder %s187, %s188
    %p202 = scmp.eq.s32.totalorder %s26, 1
    %p203 = por %p201, %p202
    %p205 = scmp.ne.s32.totalorder %s188, %s204
    %p206 = scmp.eq.s32.totalorder %s26, 0
    %p207 = por %p205, %p206
    %s208 = ssub.s32 %s27, %s39
    %s209 = ssub.s32 %s28, %s35
    %s210 = sor.u32 %s208, %s209
    %p211 = scmp.eq.s32.totalorder %s210, 0
    %s213 = sadd.s32 %s212, 1
    %s214 = scalar_select %p211, %s212, %s213
    %p217 = pneg %p211
    %p218 = scmp.eq.s32.totalorder %s20, 1
    %p219 = por %p217, %p218
    %p220 = scmp.ne.s32.totalorder %s212, %s215
    %p221 = scmp.eq.s32.totalorder %s20, 0
    %p222 = por %p220, %p221
    %p223 = scmp.ne.s32.totalorder %s212, %s215
    %p224 = scmp.eq.s32.totalorder %s25, 1
    %p225 = por %p223, %p224
    %p226 = scmp.ne.s32.totalorder %s215, %s216
    %p227 = scmp.eq.s32.totalorder %s25, 0
    %p228 = por %p226, %p227
    %p229 = scmp.ne.s32.totalorder %s215, %s216
    %p230 = scmp.eq.s32.totalorder %s26, 1
    %p231 = por %p229, %p230
    %p233 = scmp.ne.s32.totalorder %s216, %s232
    %p234 = scmp.eq.s32.totalorder %s26, 0
    %p235 = por %p233, %p234
    %s236 = ssub.s32 %s27, %s39
    %s237 = ssub.s32 %s28, %s35
    %s238 = sor.u32 %s236, %s237
    %p239 = scmp.eq.s32.totalorder %s238, 0
    %s241 = sadd.s32 %s240, 1
    %s242 = scalar_select %p239, %s240, %s241
    %p245 = pneg %p239
    %p246 = scmp.eq.s32.totalorder %s20, 1
    %p247 = por %p245, %p246
    %p248 = scmp.ne.s32.totalorder %s240, %s243
    %p249 = scmp.eq.s32.totalorder %s20, 0
    %p250 = por %p248, %p249
    %p251 = scmp.ne.s32.totalorder %s240, %s243
    %p252 = scmp.eq.s32.totalorder %s25, 1
    %p253 = por %p251, %p252
    %p254 = scmp.ne.s32.totalorder %s243, %s244
    %p255 = scmp.eq.s32.totalorder %s25, 0
    %p256 = por %p254, %p255
    %p257 = scmp.ne.s32.totalorder %s243, %s244
    %p258 = scmp.eq.s32.totalorder %s26, 1
    %p259 = por %p257, %p258
    %p261 = scmp.ne.s32.totalorder %s244, %s260
    %p262 = scmp.eq.s32.totalorder %s26, 0
    %p263 = por %p261, %p262
    %s264 = ssub.s32 %s27, %s39
    %s265 = ssub.s32 %s28, %s35
    %s266 = sor.u32 %s264, %s265
    %p267 = scmp.eq.s32.totalorder %s266, 0
    %s269 = sadd.s32 %s268, 1
    %s270 = scalar_select %p267, %s268, %s269
    %p273 = pneg %p267
    %p274 = scmp.eq.s32.totalorder %s20, 1
    %p275 = por %p273, %p274
    %p276 = scmp.ne.s32.totalorder %s268, %s271
    %p277 = scmp.eq.s32.totalorder %s20, 0
    %p278 = por %p276, %p277
    %p279 = scmp.ne.s32.totalorder %s268, %s271
    %p280 = scmp.eq.s32.totalorder %s25, 1
    %p281 = por %p279, %p280
    %p282 = scmp.ne.s32.totalorder %s271, %s272
    %p283 = scmp.eq.s32.totalorder %s25, 0
    %p284 = por %p282, %p283
    %p285 = scmp.ne.s32.totalorder %s271, %s272
    %p286 = scmp.eq.s32.totalorder %s26, 1
    %p287 = por %p285, %p286
    %p289 = scmp.ne.s32.totalorder %s272, %s288
    %p290 = scmp.eq.s32.totalorder %s26, 0
    %p291 = por %p289, %p290
    %s292 = ssub.s32 %s27, %s39
    %s293 = ssub.s32 %s28, %s35
    %s294 = sor.u32 %s292, %s293
    %p295 = scmp.eq.s32.totalorder %s294, 0
    %s297 = sadd.s32 %s296, 1
    %s298 = scalar_select %p295, %s296, %s297
    %p301 = pneg %p295
    %p302 = scmp.eq.s32.totalorder %s20, 1
    %p303 = por %p301, %p302
    %p304 = scmp.ne.s32.totalorder %s296, %s299
    %p305 = scmp.eq.s32.totalorder %s20, 0
    %p306 = por %p304, %p305
    %p307 = scmp.ne.s32.totalorder %s296, %s299
    %p308 = scmp.eq.s32.totalorder %s25, 1
    %p309 = por %p307, %p308
    %p310 = scmp.ne.s32.totalorder %s299, %s300
    %p311 = scmp.eq.s32.totalorder %s25, 0
    %p312 = por %p310, %p311
    %p313 = scmp.ne.s32.totalorder %s299, %s300
    %p314 = scmp.eq.s32.totalorder %s26, 1
    %p315 = por %p313, %p314
    %p317 = scmp.ne.s32.totalorder %s300, %s316
    %p318 = scmp.eq.s32.totalorder %s26, 0
    %p319 = por %p317, %p318
    %s320 = ssub.s32 %s27, %s39
    %s321 = ssub.s32 %s28, %s35
    %s322 = sor.u32 %s320, %s321
    %p323 = scmp.eq.s32.totalorder %s322, 0
    %s325 = sadd.s32 %s324, 1
    %s326 = scalar_select %p323, %s324, %s325
    %p329 = pneg %p323
    %p330 = scmp.eq.s32.totalorder %s20, 1
    %p331 = por %p329, %p330
    %p332 = scmp.ne.s32.totalorder %s324, %s327
    %p333 = scmp.eq.s32.totalorder %s20, 0
    %p334 = por %p332, %p333
    %p335 = scmp.ne.s32.totalorder %s324, %s327
    %p336 = scmp.eq.s32.totalorder %s25, 1
    %p337 = por %p335, %p336
    %p338 = scmp.ne.s32.totalorder %s327, %s328
    %p339 = scmp.eq.s32.totalorder %s25, 0
    %p340 = por %p338, %p339
    %p341 = scmp.ne.s32.totalorder %s327, %s328
    %p342 = scmp.eq.s32.totalorder %s26, 1
    %p343 = por %p341, %p342
    %p345 = scmp.ne.s32.totalorder %s328, %s344
    %p346 = scmp.eq.s32.totalorder %s26, 0
    %p347 = por %p345, %p346
    %s348 = ssub.s32 %s27, %s39
    %s349 = ssub.s32 %s28, %s35
    %s350 = sor.u32 %s348, %s349
    %p351 = scmp.eq.s32.totalorder %s350, 0
    %s353 = sadd.s32 %s352, 1
    %s354 = scalar_select %p351, %s352, %s353
    %p357 = pneg %p351
    %p358 = scmp.eq.s32.totalorder %s20, 1
    %p359 = por %p357, %p358
    %p360 = scmp.ne.s32.totalorder %s352, %s355
    %p361 = scmp.eq.s32.totalorder %s20, 0
    %p362 = por %p360, %p361
    %p363 = scmp.ne.s32.totalorder %s352, %s355
    %p364 = scmp.eq.s32.totalorder %s25, 1
    %p365 = por %p363, %p364
    %p366 = scmp.ne.s32.totalorder %s355, %s356
    %p367 = scmp.eq.s32.totalorder %s25, 0
    %p368 = por %p366, %p367
    %p369 = scmp.ne.s32.totalorder %s355, %s356
    %p370 = scmp.eq.s32.totalorder %s26, 1
    %p371 = por %p369, %p370
    %p373 = scmp.ne.s32.totalorder %s356, %s372
    %p374 = scmp.eq.s32.totalorder %s26, 0
    %p375 = por %p373, %p374
    %s377 = sadd.s32 %s376, 1
    %p380 = scmp.eq.s32.totalorder %s20, 1
    %p381 = scmp.ne.s32.totalorder %s376, %s378
    %p382 = scmp.eq.s32.totalorder %s20, 0
    %p383 = por %p381, %p382
    %p384 = scmp.ne.s32.totalorder %s376, %s378
    %p385 = scmp.eq.s32.totalorder %s25, 1
    %p386 = por %p384, %p385
    %p387 = scmp.ne.s32.totalorder %s378, %s379
    %p388 = scmp.eq.s32.totalorder %s25, 0
    %p389 = por %p387, %p388
    %p390 = scmp.ne.s32.totalorder %s378, %s379
    %p391 = scmp.eq.s32.totalorder %s26, 1
    %p392 = por %p390, %p391
    %p394 = scmp.ne.s32.totalorder %s379, %s393
    %p395 = scmp.eq.s32.totalorder %s26, 0
    %p396 = por %p394, %p395
    %s398 = sadd.s32 %s397, 1
    %p401 = scmp.eq.s32.totalorder %s20, 1
    %p402 = scmp.ne.s32.totalorder %s397, %s399
    %p403 = scmp.eq.s32.totalorder %s20, 0
    %p404 = por %p402, %p403
    %p405 = scmp.ne.s32.totalorder %s397, %s399
    %p406 = scmp.eq.s32.totalorder %s25, 1
    %p407 = por %p405, %p406
    %p408 = scmp.ne.s32.totalorder %s399, %s400
    %p409 = scmp.eq.s32.totalorder %s25, 0
    %p410 = por %p408, %p409
    %p411 = scmp.ne.s32.totalorder %s399, %s400
    %p412 = scmp.eq.s32.totalorder %s26, 1
    %p413 = por %p411, %p412
    %p415 = scmp.ne.s32.totalorder %s400, %s414
    %p416 = scmp.eq.s32.totalorder %s26, 0
    %p417 = por %p415, %p416
    %s418 = ssub.s32 %s27, %s39
    %s419 = ssub.s32 %s28, %s35
    %s420 = sor.u32 %s418, %s419
    %p421 = scmp.eq.s32.totalorder %s420, 0
    %s423 = sadd.s32 %s422, 1
    %s424 = scalar_select %p421, %s422, %s423
    %p427 = pneg %p421
    %p428 = scmp.eq.s32.totalorder %s20, 1
    %p429 = por %p427, %p428
    %p430 = scmp.ne.s32.totalorder %s422, %s425
    %p431 = scmp.eq.s32.totalorder %s20, 0
    %p432 = por %p430, %p431
    %p433 = scmp.ne.s32.totalorder %s422, %s425
    %p434 = scmp.eq.s32.totalorder %s25, 1
    %p435 = por %p433, %p434
    %p436 = scmp.ne.s32.totalorder %s425, %s426
    %p437 = scmp.eq.s32.totalorder %s25, 0
    %p438 = por %p436, %p437
    %p439 = scmp.ne.s32.totalorder %s425, %s426
    %p440 = scmp.eq.s32.totalorder %s26, 1
    %p441 = por %p439, %p440
    %p443 = scmp.ne.s32.totalorder %s426, %s442
    %p444 = scmp.eq.s32.totalorder %s26, 0
    %p445 = por %p443, %p444
    %p446 = scmp.le.s32.totalorder 1, %s20
    %p447 = scmp.lt.s32.totalorder %s20, 3
    %p448 = pnand %p446, %p447
    %p449 = pneg %p448
    // Predicated region
    $region9: #{colorize_net_forward.159} parent=5 // pred_check
      _
    $region10: #{colorize_net_forward.159} parent=5 // pred_check_branch
      %451 = sbr.rel (%p448) target = $region12
    $region11: #{colorize_net_forward.159} parent=5 // pred_region
      %s452 = ssub.s32 %s20, 1
      // Predicated region
      $region13: #{colorize_net_forward.159} parent=11 // pred_check
        %p453 = pneg %p389
      $region14: #{colorize_net_forward.159} parent=11 // pred_check_branch
        %455 = sbr.rel (%p453) target = $region16
      $region15: #{colorize_net_forward.159} parent=11 // pred_region
        _
      $region16: #{colorize_net_forward.159} parent=11 // pred_fallthru
        _
      // Predicated region
      $region17: #{colorize_net_forward.159} parent=11 // pred_check
        %p456 = pneg %p410
      $region18: #{colorize_net_forward.159} parent=11 // pred_check_branch
        %458 = sbr.rel (%p456) target = $region20
      $region19: #{colorize_net_forward.159} parent=11 // pred_region
        _
      $region20: #{colorize_net_forward.159} parent=11 // pred_fallthru
        _
    $region12: #{colorize_net_forward.159} parent=5 // pred_fallthru
      _
    %p459 = scmp.lt.s32.totalorder %s20, 2
    // Predicated region
    $region21: #{colorize_net_forward.159} parent=5 // pred_check
      %p460 = pneg %p459
    $region22: #{colorize_net_forward.159} parent=5 // pred_check_branch
      %462 = sbr.rel (%p460) target = $region24
    $region23: #{colorize_net_forward.159} parent=5 // pred_region
      // Predicated region
      $region25: #{colorize_net_forward.159} parent=23 // pred_check
        %p463 = pneg %p54
      $region26: #{colorize_net_forward.159} parent=23 // pred_check_branch
        %465 = sbr.rel (%p463) target = $region28
      $region27: #{colorize_net_forward.159} parent=23 // pred_region
        %s466 = smul.u32 2, %s28
        %p467 = scmp.lt.s32.totalorder %s27, 1
        %s468 = scalar_select %p467, %s27, 1
        %p469 = scmp.lt.s32.totalorder %s466, 1
        %s470 = scalar_select %p469, %s466, 1
        %s471 = smul.addr %s468, 2
        %s472 = sadd.s32 %s470, %s471
        %s473 = smul.addr %s472, 4
        %s474 = scalar_lea.vmem %s0, %s473
        %s475 = smul.u32 2, %s28
      $region28: #{colorize_net_forward.159} parent=23 // pred_fallthru
        _
      // Predicated region
      $region29: #{colorize_net_forward.159} parent=23 // pred_check
        %p476 = pneg %p82
      $region30: #{colorize_net_forward.159} parent=23 // pred_check_branch
        %478 = sbr.rel (%p476) target = $region32
      $region31: #{colorize_net_forward.159} parent=23 // pred_region
        %s479 = smul.u32 2, %s28
        %p480 = scmp.lt.s32.totalorder %s27, 1
        %s481 = scalar_select %p480, %s27, 1
        %p482 = scmp.lt.s32.totalorder %s479, 1
        %s483 = scalar_select %p482, %s479, 1
        %s484 = smul.addr %s481, 2
        %s485 = sadd.s32 %s483, %s484
        %s486 = smul.addr %s485, 4
        %s487 = scalar_lea.vmem %s1, %s486
        %s488 = smul.u32 2, %s28
      $region32: #{colorize_net_forward.159} parent=23 // pred_fallthru
        _
      // Predicated region
      $region33: #{colorize_net_forward.159} parent=23 // pred_check
        %p489 = pneg %p110
      $region34: #{colorize_net_forward.159} parent=23 // pred_check_branch
        %491 = sbr.rel (%p489) target = $region36
      $region35: #{colorize_net_forward.159} parent=23 // pred_region
        %s492 = smul.u32 2, %s28
        %p493 = scmp.lt.s32.totalorder %s27, 1
        %s494 = scalar_select %p493, %s27, 1
        %p495 = scmp.lt.s32.totalorder %s492, 1
        %s496 = scalar_select %p495, %s492, 1
        %s497 = smul.addr %s494, 2
        %s498 = sadd.s32 %s496, %s497
        %s499 = smul.addr %s498, 4
        %s500 = scalar_lea.vmem %s2, %s499
        %s501 = smul.u32 2, %s28
      $region36: #{colorize_net_forward.159} parent=23 // pred_fallthru
        _
      // Predicated region
      $region37: #{colorize_net_forward.159} parent=23 // pred_check
        %p502 = pneg %p138
      $region38: #{colorize_net_forward.159} parent=23 // pred_check_branch
        %504 = sbr.rel (%p502) target = $region40
      $region39: #{colorize_net_forward.159} parent=23 // pred_region
        %s505 = smul.u32 2, %s28
        %p506 = scmp.lt.s32.totalorder %s27, 1
        %s507 = scalar_select %p506, %s27, 1
        %p508 = scmp.lt.s32.totalorder %s505, 1
        %s509 = scalar_select %p508, %s505, 1
        %s510 = smul.addr %s507, 2
        %s511 = sadd.s32 %s509, %s510
        %s512 = smul.addr %s511, 4
        %s513 = scalar_lea.vmem %s3, %s512
        %s514 = smul.u32 2, %s28
      $region40: #{colorize_net_forward.159} parent=23 // pred_fallthru
        _
      // Predicated region
      $region41: #{colorize_net_forward.159} parent=23 // pred_check
        %p515 = pneg %p166
      $region42: #{colorize_net_forward.159} parent=23 // pred_check_branch
        %517 = sbr.rel (%p515) target = $region44
      $region43: #{colorize_net_forward.159} parent=23 // pred_region
        %s518 = smul.u32 2, %s28
        %p519 = scmp.lt.s32.totalorder %s27, 1
        %s520 = scalar_select %p519, %s27, 1
        %p521 = scmp.lt.s32.totalorder %s518, 1
        %s522 = scalar_select %p521, %s518, 1
        %s523 = smul.addr %s520, 2
        %s524 = sadd.s32 %s522, %s523
        %s525 = smul.addr %s524, 4
        %s526 = scalar_lea.vmem %s4, %s525
        %s527 = smul.u32 2, %s28
      $region44: #{colorize_net_forward.159} parent=23 // pred_fallthru
        _
      // Predicated region
      $region45: #{colorize_net_forward.159} parent=23 // pred_check
        %p528 = pneg %p194
      $region46: #{colorize_net_forward.159} parent=23 // pred_check_branch
        %530 = sbr.rel (%p528) target = $region48
      $region47: #{colorize_net_forward.159} parent=23 // pred_region
        %s531 = smul.u32 2, %s28
        %p532 = scmp.lt.s32.totalorder %s27, 1
        %s533 = scalar_select %p532, %s27, 1
        %p534 = scmp.lt.s32.totalorder %s531, 1
        %s535 = scalar_select %p534, %s531, 1
        %s536 = smul.addr %s533, 2
        %s537 = sadd.s32 %s535, %s536
        %s538 = smul.addr %s537, 4
        %s539 = scalar_lea.vmem %s5, %s538
        %s540 = smul.u32 2, %s28
      $region48: #{colorize_net_forward.159} parent=23 // pred_fallthru
        _
      // Predicated region
      $region49: #{colorize_net_forward.159} parent=23 // pred_check
        %p541 = pneg %p222
      $region50: #{colorize_net_forward.159} parent=23 // pred_check_branch
        %543 = sbr.rel (%p541) target = $region52
      $region51: #{colorize_net_forward.159} parent=23 // pred_region
        %s544 = smul.u32 2, %s28
        %p545 = scmp.lt.s32.totalorder %s27, 1
        %s546 = scalar_select %p545, %s27, 1
        %p547 = scmp.lt.s32.totalorder %s544, 1
        %s548 = scalar_select %p547, %s544, 1
        %s549 = smul.addr %s546, 2
        %s550 = sadd.s32 %s548, %s549
        %s551 = smul.addr %s550, 4
        %s552 = scalar_lea.vmem %s6, %s551
        %s553 = smul.u32 2, %s28
      $region52: #{colorize_net_forward.159} parent=23 // pred_fallthru
        _
      // Predicated region
      $region53: #{colorize_net_forward.159} parent=23 // pred_check
        %p554 = pneg %p250
      $region54: #{colorize_net_forward.159} parent=23 // pred_check_branch
        %556 = sbr.rel (%p554) target = $region56
      $region55: #{colorize_net_forward.159} parent=23 // pred_region
        %s557 = smul.u32 2, %s28
        %p558 = scmp.lt.s32.totalorder %s27, 1
        %s559 = scalar_select %p558, %s27, 1
        %p560 = scmp.lt.s32.totalorder %s557, 1
        %s561 = scalar_select %p560, %s557, 1
        %s562 = smul.addr %s559, 2
        %s563 = sadd.s32 %s561, %s562
        %s564 = smul.addr %s563, 4
        %s565 = scalar_lea.vmem %s7, %s564
        %s566 = smul.u32 2, %s28
      $region56: #{colorize_net_forward.159} parent=23 // pred_fallthru
        _
      // Predicated region
      $region57: #{colorize_net_forward.159} parent=23 // pred_check
        %p567 = pneg %p278
      $region58: #{colorize_net_forward.159} parent=23 // pred_check_branch
        %569 = sbr.rel (%p567) target = $region60
      $region59: #{colorize_net_forward.159} parent=23 // pred_region
        %s570 = smul.u32 2, %s28
        %p571 = scmp.lt.s32.totalorder %s27, 1
        %s572 = scalar_select %p571, %s27, 1
        %p573 = scmp.lt.s32.totalorder %s570, 1
        %s574 = scalar_select %p573, %s570, 1
        %s575 = smul.addr %s572, 2
        %s576 = sadd.s32 %s574, %s575
        %s577 = smul.addr %s576, 4
        %s578 = scalar_lea.vmem %s8, %s577
        %s579 = smul.u32 2, %s28
      $region60: #{colorize_net_forward.159} parent=23 // pred_fallthru
        _
      // Predicated region
      $region61: #{colorize_net_forward.159} parent=23 // pred_check
        %p580 = pneg %p306
      $region62: #{colorize_net_forward.159} parent=23 // pred_check_branch
        %582 = sbr.rel (%p580) target = $region64
      $region63: #{colorize_net_forward.159} parent=23 // pred_region
        %s583 = smul.u32 2, %s28
        %p584 = scmp.lt.s32.totalorder %s27, 1
        %s585 = scalar_select %p584, %s27, 1
        %p586 = scmp.lt.s32.totalorder %s583, 1
        %s587 = scalar_select %p586, %s583, 1
        %s588 = smul.addr %s585, 2
        %s589 = sadd.s32 %s587, %s588
        %s590 = smul.addr %s589, 4
        %s591 = scalar_lea.vmem %s9, %s590
        %s592 = smul.u32 2, %s28
      $region64: #{colorize_net_forward.159} parent=23 // pred_fallthru
        _
      // Predicated region
      $region65: #{colorize_net_forward.159} parent=23 // pred_check
        %p593 = pneg %p334
      $region66: #{colorize_net_forward.159} parent=23 // pred_check_branch
        %595 = sbr.rel (%p593) target = $region68
      $region67: #{colorize_net_forward.159} parent=23 // pred_region
        %s596 = smul.u32 2, %s28
        %p597 = scmp.lt.s32.totalorder %s27, 1
        %s598 = scalar_select %p597, %s27, 1
        %p599 = scmp.lt.s32.totalorder %s596, 1
        %s600 = scalar_select %p599, %s596, 1
        %s601 = smul.addr %s598, 2
        %s602 = sadd.s32 %s600, %s601
        %s603 = smul.addr %s602, 4
        %s604 = scalar_lea.vmem %s10, %s603
        %s605 = smul.u32 2, %s28
      $region68: #{colorize_net_forward.159} parent=23 // pred_fallthru
        _
      // Predicated region
      $region69: #{colorize_net_forward.159} parent=23 // pred_check
        %p606 = pneg %p362
      $region70: #{colorize_net_forward.159} parent=23 // pred_check_branch
        %608 = sbr.rel (%p606) target = $region72
      $region71: #{colorize_net_forward.159} parent=23 // pred_region
        %s609 = smul.u32 2, %s28
        %p610 = scmp.lt.s32.totalorder %s27, 1
        %s611 = scalar_select %p610, %s27, 1
        %p612 = scmp.lt.s32.totalorder %s609, 1
        %s613 = scalar_select %p612, %s609, 1
        %s614 = smul.addr %s611, 2
        %s615 = sadd.s32 %s613, %s614
        %s616 = smul.addr %s615, 4
        %s617 = scalar_lea.vmem %s11, %s616
        %s618 = smul.u32 2, %s28
      $region72: #{colorize_net_forward.159} parent=23 // pred_fallthru
        _
    $region24: #{colorize_net_forward.159} parent=5 // pred_fallthru
      _
    %p619 = scmp.le.s32.totalorder 1, %s20
    %p620 = scmp.lt.s32.totalorder %s20, 3
    %p621 = pnand %p619, %p620
    %p622 = pneg %p621
    // Predicated region
    $region73: #{colorize_net_forward.159} parent=5 // pred_check
      _
    $region74: #{colorize_net_forward.159} parent=5 // pred_check_branch
      %624 = sbr.rel (%p621) target = $region76
    $region75: #{colorize_net_forward.159} parent=5 // pred_region
      %s625 = ssub.s32 %s20, 1
      %s626 = smul.u32 2, %s30
      %p627 = scmp.lt.s32.totalorder %s29, 1
      %s628 = scalar_select %p627, %s29, 1
      %p629 = scmp.lt.s32.totalorder %s626, 1
      %s630 = scalar_select %p629, %s626, 1
      %s631 = smul.addr %s628, 2
      %s632 = sadd.s32 %s630, %s631
      %s633 = smul.addr %s632, 4
      %s634 = scalar_lea.vmem %s0, %s633
      %p635 = pneg %p60
      %p636 = pneg %p57
      %s637 = smul.u32 2, %s30
      %p638 = scmp.lt.s32.totalorder %s29, 1
      %s639 = scalar_select %p638, %s29, 1
      %p640 = scmp.lt.s32.totalorder %s637, 1
      %s641 = scalar_select %p640, %s637, 1
      %s642 = smul.addr %s639, 2
      %s643 = sadd.s32 %s641, %s642
      %s644 = smul.addr %s643, 4
      %s645 = scalar_lea.vmem %s1, %s644
      %p646 = pneg %p88
      %p647 = pneg %p85
      %s648 = smul.u32 2, %s30
      %p649 = scmp.lt.s32.totalorder %s29, 1
      %s650 = scalar_select %p649, %s29, 1
      %p651 = scmp.lt.s32.totalorder %s648, 1
      %s652 = scalar_select %p651, %s648, 1
      %s653 = smul.addr %s650, 2
      %s654 = sadd.s32 %s652, %s653
      %s655 = smul.addr %s654, 4
      %s656 = scalar_lea.vmem %s2, %s655
      %p657 = pneg %p116
      %p658 = pneg %p113
      %s659 = smul.u32 2, %s30
      %p660 = scmp.lt.s32.totalorder %s29, 1
      %s661 = scalar_select %p660, %s29, 1
      %p662 = scmp.lt.s32.totalorder %s659, 1
      %s663 = scalar_select %p662, %s659, 1
      %s664 = smul.addr %s661, 2
      %s665 = sadd.s32 %s663, %s664
      %s666 = smul.addr %s665, 4
      %s667 = scalar_lea.vmem %s3, %s666
      %p668 = pneg %p144
      %p669 = pneg %p141
      %s670 = smul.u32 2, %s30
      %p671 = scmp.lt.s32.totalorder %s29, 1
      %s672 = scalar_select %p671, %s29, 1
      %p673 = scmp.lt.s32.totalorder %s670, 1
      %s674 = scalar_select %p673, %s670, 1
      %s675 = smul.addr %s672, 2
      %s676 = sadd.s32 %s674, %s675
      %s677 = smul.addr %s676, 4
      %s678 = scalar_lea.vmem %s4, %s677
      %p679 = pneg %p172
      %p680 = pneg %p169
      %s681 = smul.u32 2, %s30
      %p682 = scmp.lt.s32.totalorder %s29, 1
      %s683 = scalar_select %p682, %s29, 1
      %p684 = scmp.lt.s32.totalorder %s681, 1
      %s685 = scalar_select %p684, %s681, 1
      %s686 = smul.addr %s683, 2
      %s687 = sadd.s32 %s685, %s686
      %s688 = smul.addr %s687, 4
      %s689 = scalar_lea.vmem %s5, %s688
      %p690 = pneg %p200
      %p691 = pneg %p197
      %s692 = smul.u32 2, %s30
      %p693 = scmp.lt.s32.totalorder %s29, 1
      %s694 = scalar_select %p693, %s29, 1
      %p695 = scmp.lt.s32.totalorder %s692, 1
      %s696 = scalar_select %p695, %s692, 1
      %s697 = smul.addr %s694, 2
      %s698 = sadd.s32 %s696, %s697
      %s699 = smul.addr %s698, 4
      %s700 = scalar_lea.vmem %s6, %s699
      %p701 = pneg %p228
      %p702 = pneg %p225
      %s703 = smul.u32 2, %s30
      %p704 = scmp.lt.s32.totalorder %s29, 1
      %s705 = scalar_select %p704, %s29, 1
      %p706 = scmp.lt.s32.totalorder %s703, 1
      %s707 = scalar_select %p706, %s703, 1
      %s708 = smul.addr %s705, 2
      %s709 = sadd.s32 %s707, %s708
      %s710 = smul.addr %s709, 4
      %s711 = scalar_lea.vmem %s7, %s710
      %p712 = pneg %p256
      %p713 = pneg %p253
      %s714 = smul.u32 2, %s30
      %p715 = scmp.lt.s32.totalorder %s29, 1
      %s716 = scalar_select %p715, %s29, 1
      %p717 = scmp.lt.s32.totalorder %s714, 1
      %s718 = scalar_select %p717, %s714, 1
      %s719 = smul.addr %s716, 2
      %s720 = sadd.s32 %s718, %s719
      %s721 = smul.addr %s720, 4
      %s722 = scalar_lea.vmem %s8, %s721
      %p723 = pneg %p284
      %p724 = pneg %p281
      %s725 = smul.u32 2, %s30
      %p726 = scmp.lt.s32.totalorder %s29, 1
      %s727 = scalar_select %p726, %s29, 1
      %p728 = scmp.lt.s32.totalorder %s725, 1
      %s729 = scalar_select %p728, %s725, 1
      %s730 = smul.addr %s727, 2
      %s731 = sadd.s32 %s729, %s730
      %s732 = smul.addr %s731, 4
      %s733 = scalar_lea.vmem %s9, %s732
      %p734 = pneg %p312
      %p735 = pneg %p309
      %s736 = smul.u32 2, %s30
      %p737 = scmp.lt.s32.totalorder %s29, 1
      %s738 = scalar_select %p737, %s29, 1
      %p739 = scmp.lt.s32.totalorder %s736, 1
      %s740 = scalar_select %p739, %s736, 1
      %s741 = smul.addr %s738, 2
      %s742 = sadd.s32 %s740, %s741
      %s743 = smul.addr %s742, 4
      %s744 = scalar_lea.vmem %s10, %s743
      %p745 = pneg %p340
      %p746 = pneg %p337
      %s747 = smul.u32 2, %s30
      %p748 = scmp.lt.s32.totalorder %s29, 1
      %s749 = scalar_select %p748, %s29, 1
      %p750 = scmp.lt.s32.totalorder %s747, 1
      %s751 = scalar_select %p750, %s747, 1
      %s752 = smul.addr %s749, 2
      %s753 = sadd.s32 %s751, %s752
      %s754 = smul.addr %s753, 4
      %s755 = scalar_lea.vmem %s11, %s754
      %p756 = pneg %p368
      %p757 = pneg %p365
      %p758 = pneg %p389
      %p759 = pneg %p386
      %p760 = pneg %p410
      %p761 = pneg %p407
      %p762 = pneg %p438
      %p763 = pneg %p435
      %s764 = smul.u32 2, %s30
      %p765 = scmp.lt.s32.totalorder %s29, 1
      %s766 = scalar_select %p765, %s29, 1
      %p767 = scmp.lt.s32.totalorder %s764, 1
      %s768 = scalar_select %p767, %s764, 1
      %s769 = smul.addr %s766, 2
      %s770 = sadd.s32 %s768, %s769
      %s771 = smul.addr %s770, 4
      %s772 = scalar_lea.vmem %s14, %s771
      %s773 = smul.u32 2, %s30
      %p774 = scmp.lt.s32.totalorder %s29, 1
      %s775 = scalar_select %p774, %s29, 1
      %p776 = scmp.lt.s32.totalorder %s773, 1
      %s777 = scalar_select %p776, %s773, 1
      %s778 = smul.addr %s775, 2
      %s779 = sadd.s32 %s777, %s778
      %s780 = smul.addr %s779, 4
      %s781 = scalar_lea.vmem %s0, %s780
      %s782 = smul.u32 2, %s30
      %s783 = smul.u32 2, %s30
      %p784 = scmp.lt.s32.totalorder %s29, 1
      %s785 = scalar_select %p784, %s29, 1
      %p786 = scmp.lt.s32.totalorder %s783, 1
      %s787 = scalar_select %p786, %s783, 1
      %s788 = smul.addr %s785, 2
      %s789 = sadd.s32 %s787, %s788
      %s790 = smul.addr %s789, 4
      %s791 = scalar_lea.vmem %s1, %s790
      %s792 = smul.u32 2, %s30
      %s793 = smul.u32 2, %s30
      %p794 = scmp.lt.s32.totalorder %s29, 1
      %s795 = scalar_select %p794, %s29, 1
      %p796 = scmp.lt.s32.totalorder %s793, 1
      %s797 = scalar_select %p796, %s793, 1
      %s798 = smul.addr %s795, 2
      %s799 = sadd.s32 %s797, %s798
      %s800 = smul.addr %s799, 4
      %s801 = scalar_lea.vmem %s2, %s800
      %s802 = smul.u32 2, %s30
      %s803 = smul.u32 2, %s30
      %p804 = scmp.lt.s32.totalorder %s29, 1
      %s805 = scalar_select %p804, %s29, 1
      %p806 = scmp.lt.s32.totalorder %s803, 1
      %s807 = scalar_select %p806, %s803, 1
      %s808 = smul.addr %s805, 2
      %s809 = sadd.s32 %s807, %s808
      %s810 = smul.addr %s809, 4
      %s811 = scalar_lea.vmem %s3, %s810
      %s812 = smul.u32 2, %s30
      %s813 = smul.u32 2, %s30
      %p814 = scmp.lt.s32.totalorder %s29, 1
      %s815 = scalar_select %p814, %s29, 1
      %p816 = scmp.lt.s32.totalorder %s813, 1
      %s817 = scalar_select %p816, %s813, 1
      %s818 = smul.addr %s815, 2
      %s819 = sadd.s32 %s817, %s818
      %s820 = smul.addr %s819, 4
      %s821 = scalar_lea.vmem %s4, %s820
      %s822 = smul.u32 2, %s30
      %s823 = smul.u32 2, %s30
      %p824 = scmp.lt.s32.totalorder %s29, 1
      %s825 = scalar_select %p824, %s29, 1
      %p826 = scmp.lt.s32.totalorder %s823, 1
      %s827 = scalar_select %p826, %s823, 1
      %s828 = smul.addr %s825, 2
      %s829 = sadd.s32 %s827, %s828
      %s830 = smul.addr %s829, 4
      %s831 = scalar_lea.vmem %s5, %s830
      %s832 = smul.u32 2, %s30
      %s833 = smul.u32 2, %s30
      %p834 = scmp.lt.s32.totalorder %s29, 1
      %s835 = scalar_select %p834, %s29, 1
      %p836 = scmp.lt.s32.totalorder %s833, 1
      %s837 = scalar_select %p836, %s833, 1
      %s838 = smul.addr %s835, 2
      %s839 = sadd.s32 %s837, %s838
      %s840 = smul.addr %s839, 4
      %s841 = scalar_lea.vmem %s6, %s840
      %s842 = smul.u32 2, %s30
      %s843 = smul.u32 2, %s30
      %p844 = scmp.lt.s32.totalorder %s29, 1
      %s845 = scalar_select %p844, %s29, 1
      %p846 = scmp.lt.s32.totalorder %s843, 1
      %s847 = scalar_select %p846, %s843, 1
      %s848 = smul.addr %s845, 2
      %s849 = sadd.s32 %s847, %s848
      %s850 = smul.addr %s849, 4
      %s851 = scalar_lea.vmem %s7, %s850
      %s852 = smul.u32 2, %s30
      %s853 = smul.u32 2, %s30
      %p854 = scmp.lt.s32.totalorder %s29, 1
      %s855 = scalar_select %p854, %s29, 1
      %p856 = scmp.lt.s32.totalorder %s853, 1
      %s857 = scalar_select %p856, %s853, 1
      %s858 = smul.addr %s855, 2
      %s859 = sadd.s32 %s857, %s858
      %s860 = smul.addr %s859, 4
      %s861 = scalar_lea.vmem %s8, %s860
      %s862 = smul.u32 2, %s30
      %s863 = smul.u32 2, %s30
      %p864 = scmp.lt.s32.totalorder %s29, 1
      %s865 = scalar_select %p864, %s29, 1
      %p866 = scmp.lt.s32.totalorder %s863, 1
      %s867 = scalar_select %p866, %s863, 1
      %s868 = smul.addr %s865, 2
      %s869 = sadd.s32 %s867, %s868
      %s870 = smul.addr %s869, 4
      %s871 = scalar_lea.vmem %s9, %s870
      %s872 = smul.u32 2, %s30
      %s873 = smul.u32 2, %s30
      %p874 = scmp.lt.s32.totalorder %s29, 1
      %s875 = scalar_select %p874, %s29, 1
      %p876 = scmp.lt.s32.totalorder %s873, 1
      %s877 = scalar_select %p876, %s873, 1
      %s878 = smul.addr %s875, 2
      %s879 = sadd.s32 %s877, %s878
      %s880 = smul.addr %s879, 4
      %s881 = scalar_lea.vmem %s10, %s880
      %s882 = smul.u32 2, %s30
      %s883 = smul.u32 2, %s30
      %p884 = scmp.lt.s32.totalorder %s29, 1
      %s885 = scalar_select %p884, %s29, 1
      %p886 = scmp.lt.s32.totalorder %s883, 1
      %s887 = scalar_select %p886, %s883, 1
      %s888 = smul.addr %s885, 2
      %s889 = sadd.s32 %s887, %s888
      %s890 = smul.addr %s889, 4
      %s891 = scalar_lea.vmem %s11, %s890
      %s892 = smul.u32 2, %s30
      %s893 = smul.u32 2, %s30
      %p894 = scmp.lt.s32.totalorder %s29, 1
      %s895 = scalar_select %p894, %s29, 1
      %p896 = scmp.lt.s32.totalorder %s893, 1
      %s897 = scalar_select %p896, %s893, 1
      %s898 = smul.addr %s895, 2
      %s899 = sadd.s32 %s897, %s898
      %s900 = smul.addr %s899, 4
      %s901 = scalar_lea.vmem %s14, %s900
      %s902 = smul.u32 2, %s30
      %v904 = vld [vmem:[%s781] sm:$0xf]
      %v905 = vld [vmem:[%s781 + $0x4] sm:$0xf]
      %v906 = vld [vmem:[%s791] sm:$0xf]
      %v907 = vld [vmem:[%s791 + $0x4] sm:$0xf]
      %v908 = vld [vmem:[%s801] sm:$0xf]
      %v909 = vld [vmem:[%s801 + $0x4] sm:$0xf]
      %v910 = vld [vmem:[%s811] sm:$0xf]
      %v911 = vld [vmem:[%s811 + $0x4] sm:$0xf]
      %v912 = vld [vmem:[%s821] sm:$0xf]
      %v913 = vld [vmem:[%s821 + $0x4] sm:$0xf]
      %v914 = vld [vmem:[%s831] sm:$0xf]
      %v915 = vld [vmem:[%s831 + $0x4] sm:$0xf]
      %v916 = vld [vmem:[%s841] sm:$0xf]
      %v917 = vld [vmem:[%s841 + $0x4] sm:$0xf]
      %v918 = vld [vmem:[%s851] sm:$0xf]
      %v919 = vld [vmem:[%s851 + $0x4] sm:$0xf]
      %v920 = vld [vmem:[%s861] sm:$0xf]
      %v921 = vld [vmem:[%s861 + $0x4] sm:$0xf]
      %v922 = vld [vmem:[%s871] sm:$0xf]
      %v923 = vld [vmem:[%s871 + $0x4] sm:$0xf]
      %v924 = vld [vmem:[%s881] sm:$0xf]
      %v925 = vld [vmem:[%s881 + $0x4] sm:$0xf]
      %v926 = vld [vmem:[%s891] sm:$0xf]
      %v927 = vld [vmem:[%s891 + $0x4] sm:$0xf]
      %v930 = vunpack.c.l.b16 %v904
      %v931 = vunpack.c.l.b16 %v905
      %v932 = vpack.c.b16 %v931, %v930
      %v935 = vunpack.c.l.b16 %v906
      %v936 = vunpack.c.l.b16 %v907
      %v937 = vpack.c.b16 %v936, %v935
      %938 = vrot.lane.b32.xlu0 %v937, 64
      %v939 = vpop.permute.xlu0 %938
      %v942 = vunpack.c.l.b16 %v908
      %v943 = vunpack.c.l.b16 %v909
      %v944 = vpack.c.b16 %v943, %v942
      %v947 = vunpack.c.l.b16 %v910
      %v948 = vunpack.c.l.b16 %v911
      %v949 = vpack.c.b16 %v948, %v947
      %950 = vrot.lane.b32.xlu0 %v949, 64
      %v951 = vpop.permute.xlu0 %950
      %v954 = vunpack.c.l.b16 %v912
      %v955 = vunpack.c.l.b16 %v913
      %v956 = vpack.c.b16 %v955, %v954
      %v959 = vunpack.c.l.b16 %v914
      %v960 = vunpack.c.l.b16 %v915
      %v961 = vpack.c.b16 %v960, %v959
      %962 = vrot.lane.b32.xlu0 %v961, 64
      %v963 = vpop.permute.xlu0 %962
      %v966 = vunpack.c.l.b16 %v916
      %v967 = vunpack.c.l.b16 %v917
      %v968 = vpack.c.b16 %v967, %v966
      %v971 = vunpack.c.l.b16 %v918
      %v972 = vunpack.c.l.b16 %v919
      %v973 = vpack.c.b16 %v972, %v971
      %974 = vrot.lane.b32.xlu0 %v973, 64
      %v975 = vpop.permute.xlu0 %974
      %v978 = vunpack.c.l.b16 %v920
      %v979 = vunpack.c.l.b16 %v921
      %v980 = vpack.c.b16 %v979, %v978
      %v983 = vunpack.c.l.b16 %v922
      %v984 = vunpack.c.l.b16 %v923
      %v985 = vpack.c.b16 %v984, %v983
      %986 = vrot.lane.b32.xlu0 %v985, 64
      %v987 = vpop.permute.xlu0 %986
      %v990 = vunpack.c.l.b16 %v924
      %v991 = vunpack.c.l.b16 %v925
      %v992 = vpack.c.b16 %v991, %v990
      %v995 = vunpack.c.l.b16 %v926
      %v996 = vunpack.c.l.b16 %v927
      %v997 = vpack.c.b16 %v996, %v995
      %998 = vrot.lane.b32.xlu0 %v997, 64
      %v999 = vpop.permute.xlu0 %998
      %vm1000 = vcmask 523264
      %v1003 = vsel %vm1000, %v932, %v939
      %v1007 = vsel %vm1000, %v944, %v951
      %v1011 = vsel %vm1000, %v956, %v963
      %v1015 = vsel %vm1000, %v968, %v975
      %v1019 = vsel %vm1000, %v980, %v987
      %v1023 = vsel %vm1000, %v992, %v999
      %v1025 = vld [vmem:[%s12] sm:$0xf]
      %v1026 = vld [vmem:[%s12 + $0x4] sm:$0xf]
      %v1027 = vld [vmem:[%s12 + $0x8] sm:$0xf]
      %v1028 = vld [vmem:[%s12 + $0xc] sm:$0xf]
      %v1029 = vld [vmem:[%s12 + $0x10] sm:$0xf]
      %v1030 = vld [vmem:[%s12 + $0x14] sm:$0xf]
      %v1031 = vld [vmem:[%s12 + $0x18] sm:$0xf]
      %v1032 = vld [vmem:[%s12 + $0x1c] sm:$0xf]
      %v1033 = vld [vmem:[%s12 + $0x20] sm:$0xf]
      %v1034 = vld [vmem:[%s12 + $0x24] sm:$0xf]
      %v1035 = vld [vmem:[%s12 + $0x28] sm:$0xf]
      %v1036 = vld [vmem:[%s12 + $0x2c] sm:$0xf]
      %v1037 = vld [vmem:[%s12 + $0x30] sm:$0xf]
      %v1038 = vld [vmem:[%s12 + $0x34] sm:$0xf]
      %v1039 = vld [vmem:[%s12 + $0x38] sm:$0xf]
      %v1040 = vld [vmem:[%s12 + $0x3c] sm:$0xf]
      %v1041 = vld [vmem:[%s12 + $0x40] sm:$0xf]
      %v1042 = vld [vmem:[%s12 + $0x44] sm:$0xf]
      %v1043 = vld [vmem:[%s12 + $0x48] sm:$0xf]
      %v1044 = vld [vmem:[%s12 + $0x4c] sm:$0xf]
      %v1045 = vld [vmem:[%s12 + $0x50] sm:$0xf]
      %v1046 = vld [vmem:[%s12 + $0x54] sm:$0xf]
      %v1047 = vld [vmem:[%s12 + $0x58] sm:$0xf]
      %v1048 = vld [vmem:[%s12 + $0x5c] sm:$0xf]
      %v1049 = vld [vmem:[%s12 + $0x60] sm:$0xf]
      %v1050 = vld [vmem:[%s12 + $0x64] sm:$0xf]
      %v1051 = vld [vmem:[%s12 + $0x68] sm:$0xf]
      %v1052 = vld [vmem:[%s12 + $0x6c] sm:$0xf]
      %v1053 = vld [vmem:[%s12 + $0x70] sm:$0xf]
      %v1054 = vld [vmem:[%s12 + $0x74] sm:$0xf]
      %v1055 = vld [vmem:[%s12 + $0x78] sm:$0xf]
      %v1056 = vld [vmem:[%s12 + $0x7c] sm:$0xf]
      %v1057 = vld [vmem:[%s12 + $0x80] sm:$0xf]
      %v1058 = vld [vmem:[%s12 + $0x84] sm:$0xf]
      %v1059 = vld [vmem:[%s12 + $0x88] sm:$0xf]
      %v1060 = vld [vmem:[%s12 + $0x8c] sm:$0xf]
      %v1061 = vld [vmem:[%s12 + $0x90] sm:$0xf]
      %v1062 = vld [vmem:[%s12 + $0x94] sm:$0xf]
      %v1063 = vld [vmem:[%s12 + $0x98] sm:$0xf]
      %v1064 = vld [vmem:[%s12 + $0x9c] sm:$0xf]
      %v1065 = vld [vmem:[%s12 + $0xa0] sm:$0xf]
      %v1066 = vld [vmem:[%s12 + $0xa4] sm:$0xf]
      %v1067 = vld [vmem:[%s12 + $0xa8] sm:$0xf]
      %v1068 = vld [vmem:[%s12 + $0xac] sm:$0xf]
      %v1069 = vld [vmem:[%s12 + $0xb0] sm:$0xf]
      %v1070 = vld [vmem:[%s12 + $0xb4] sm:$0xf]
      %v1071 = vld [vmem:[%s12 + $0xb8] sm:$0xf]
      %v1072 = vld [vmem:[%s12 + $0xbc] sm:$0xf]
      %v1073 = vld [vmem:[%s12 + $0xc0] sm:$0xf]
      %v1074 = vld [vmem:[%s12 + $0xc4] sm:$0xf]
      %v1075 = vld [vmem:[%s12 + $0xc8] sm:$0xf]
      %v1076 = vld [vmem:[%s12 + $0xcc] sm:$0xf]
      %v1077 = vld [vmem:[%s12 + $0xd0] sm:$0xf]
      %v1078 = vld [vmem:[%s12 + $0xd4] sm:$0xf]
      %v1079 = vld [vmem:[%s12 + $0xd8] sm:$0xf]
      %v1080 = vld [vmem:[%s12 + $0xdc] sm:$0xf]
      %v1081 = vld [vmem:[%s12 + $0xe0] sm:$0xf]
      %v1082 = vld [vmem:[%s12 + $0xe4] sm:$0xf]
      %v1083 = vld [vmem:[%s12 + $0xe8] sm:$0xf]
      %v1084 = vld [vmem:[%s12 + $0xec] sm:$0xf]
      %v1085 = vld [vmem:[%s12 + $0xf0] sm:$0xf]
      %v1086 = vld [vmem:[%s12 + $0xf4] sm:$0xf]
      %v1087 = vld [vmem:[%s12 + $0xf8] sm:$0xf]
      %v1088 = vld [vmem:[%s12 + $0xfc] sm:$0xf]
      %v1089 = vld [vmem:[%s12 + $0x100] sm:$0xf]
      %v1090 = vld [vmem:[%s12 + $0x104] sm:$0xf]
      %v1091 = vld [vmem:[%s12 + $0x108] sm:$0xf]
      %v1092 = vld [vmem:[%s12 + $0x10c] sm:$0xf]
      %v1093 = vld [vmem:[%s12 + $0x110] sm:$0xf]
      %v1094 = vld [vmem:[%s12 + $0x114] sm:$0xf]
      %v1095 = vld [vmem:[%s12 + $0x118] sm:$0xf]
      %v1096 = vld [vmem:[%s12 + $0x11c] sm:$0xf]
      %v1097 = vld [vmem:[%s12 + $0x120] sm:$0xf]
      %v1098 = vld [vmem:[%s12 + $0x124] sm:$0xf]
      %v1099 = vld [vmem:[%s12 + $0x128] sm:$0xf]
      %v1100 = vld [vmem:[%s12 + $0x12c] sm:$0xf]
      %v1101 = vld [vmem:[%s12 + $0x130] sm:$0xf]
      %v1102 = vld [vmem:[%s12 + $0x134] sm:$0xf]
      %v1103 = vld [vmem:[%s12 + $0x138] sm:$0xf]
      %v1104 = vld [vmem:[%s12 + $0x13c] sm:$0xf]
      %v1105 = vld [vmem:[%s12 + $0x140] sm:$0xf]
      %v1106 = vld [vmem:[%s12 + $0x144] sm:$0xf]
      %v1107 = vld [vmem:[%s12 + $0x148] sm:$0xf]
      %v1108 = vld [vmem:[%s12 + $0x14c] sm:$0xf]
      %v1109 = vld [vmem:[%s12 + $0x150] sm:$0xf]
      %v1110 = vld [vmem:[%s12 + $0x154] sm:$0xf]
      %v1111 = vld [vmem:[%s12 + $0x158] sm:$0xf]
      %v1112 = vld [vmem:[%s12 + $0x15c] sm:$0xf]
      %v1113 = vld [vmem:[%s12 + $0x160] sm:$0xf]
      %v1114 = vld [vmem:[%s12 + $0x164] sm:$0xf]
      %v1115 = vld [vmem:[%s12 + $0x168] sm:$0xf]
      %v1116 = vld [vmem:[%s12 + $0x16c] sm:$0xf]
      %v1117 = vld [vmem:[%s12 + $0x170] sm:$0xf]
      %v1118 = vld [vmem:[%s12 + $0x174] sm:$0xf]
      %v1119 = vld [vmem:[%s12 + $0x178] sm:$0xf]
      %v1120 = vld [vmem:[%s12 + $0x17c] sm:$0xf]
      %v1121 = vld [vmem:[%s13] sm:$0x1]
      %v1123 = vlaneseq
      %v1124 = vshrl.u32 %v1123, 7
      %v1125 = vsub.s32 0, %v1124
      %v1126 = vrot.slane %v1121, %v1125
      %v1224 = vunpack.c.l.b16 %v1025
      %v1225 = vunpack.c.l.b16 %v1026
      %v1226 = vunpack.c.l.b16 %v1027
      %v1227 = vunpack.c.l.b16 %v1028
      %v1228 = vunpack.c.l.b16 %v1029
      %v1229 = vunpack.c.l.b16 %v1030
      %v1230 = vunpack.c.l.b16 %v1031
      %v1231 = vunpack.c.l.b16 %v1032
      %v1232 = vunpack.c.l.b16 %v1033
      %v1233 = vunpack.c.l.b16 %v1034
      %v1234 = vunpack.c.l.b16 %v1035
      %v1235 = vunpack.c.l.b16 %v1036
      %v1236 = vunpack.c.l.b16 %v1037
      %v1237 = vunpack.c.l.b16 %v1038
      %v1238 = vunpack.c.l.b16 %v1039
      %v1239 = vunpack.c.l.b16 %v1040
      %v1240 = vunpack.c.l.b16 %v1041
      %v1241 = vunpack.c.l.b16 %v1042
      %v1242 = vunpack.c.l.b16 %v1043
      %v1243 = vunpack.c.l.b16 %v1044
      %v1244 = vunpack.c.l.b16 %v1045
      %v1245 = vunpack.c.l.b16 %v1046
      %v1246 = vunpack.c.l.b16 %v1047
      %v1247 = vunpack.c.l.b16 %v1048
      %v1248 = vunpack.c.l.b16 %v1049
      %v1249 = vunpack.c.l.b16 %v1050
      %v1250 = vunpack.c.l.b16 %v1051
      %v1251 = vunpack.c.l.b16 %v1052
      %v1252 = vunpack.c.l.b16 %v1053
      %v1253 = vunpack.c.l.b16 %v1054
      %v1254 = vunpack.c.l.b16 %v1055
      %v1255 = vunpack.c.l.b16 %v1056
      %v1256 = vunpack.c.l.b16 %v1057
      %v1257 = vunpack.c.l.b16 %v1058
      %v1258 = vunpack.c.l.b16 %v1059
      %v1259 = vunpack.c.l.b16 %v1060
      %v1260 = vunpack.c.l.b16 %v1061
      %v1261 = vunpack.c.l.b16 %v1062
      %v1262 = vunpack.c.l.b16 %v1063
      %v1263 = vunpack.c.l.b16 %v1064
      %v1264 = vunpack.c.l.b16 %v1065
      %v1265 = vunpack.c.l.b16 %v1066
      %v1266 = vunpack.c.l.b16 %v1067
      %v1267 = vunpack.c.l.b16 %v1068
      %v1268 = vunpack.c.l.b16 %v1069
      %v1269 = vunpack.c.l.b16 %v1070
      %v1270 = vunpack.c.l.b16 %v1071
      %v1271 = vunpack.c.l.b16 %v1072
      %v1272 = vunpack.c.l.b16 %v1073
      %v1273 = vunpack.c.l.b16 %v1074
      %v1274 = vunpack.c.l.b16 %v1075
      %v1275 = vunpack.c.l.b16 %v1076
      %v1276 = vunpack.c.l.b16 %v1077
      %v1277 = vunpack.c.l.b16 %v1078
      %v1278 = vunpack.c.l.b16 %v1079
      %v1279 = vunpack.c.l.b16 %v1080
      %v1280 = vunpack.c.l.b16 %v1081
      %v1281 = vunpack.c.l.b16 %v1082
      %v1282 = vunpack.c.l.b16 %v1083
      %v1283 = vunpack.c.l.b16 %v1084
      %v1284 = vunpack.c.l.b16 %v1085
      %v1285 = vunpack.c.l.b16 %v1086
      %v1286 = vunpack.c.l.b16 %v1087
      %v1287 = vunpack.c.l.b16 %v1088
      %v1288 = vunpack.c.l.b16 %v1089
      %v1289 = vunpack.c.l.b16 %v1090
      %v1290 = vunpack.c.l.b16 %v1091
      %v1291 = vunpack.c.l.b16 %v1092
      %v1292 = vunpack.c.l.b16 %v1093
      %v1293 = vunpack.c.l.b16 %v1094
      %v1294 = vunpack.c.l.b16 %v1095
      %v1295 = vunpack.c.l.b16 %v1096
      %v1296 = vunpack.c.l.b16 %v1097
      %v1297 = vunpack.c.l.b16 %v1098
      %v1298 = vunpack.c.l.b16 %v1099
      %v1299 = vunpack.c.l.b16 %v1100
      %v1300 = vunpack.c.l.b16 %v1101
      %v1301 = vunpack.c.l.b16 %v1102
      %v1302 = vunpack.c.l.b16 %v1103
      %v1303 = vunpack.c.l.b16 %v1104
      %v1304 = vunpack.c.l.b16 %v1105
      %v1305 = vunpack.c.l.b16 %v1106
      %v1306 = vunpack.c.l.b16 %v1107
      %v1307 = vunpack.c.l.b16 %v1108
      %v1308 = vunpack.c.l.b16 %v1109
      %v1309 = vunpack.c.l.b16 %v1110
      %v1310 = vunpack.c.l.b16 %v1111
      %v1311 = vunpack.c.l.b16 %v1112
      %v1312 = vunpack.c.l.b16 %v1113
      %v1313 = vunpack.c.l.b16 %v1114
      %v1314 = vunpack.c.l.b16 %v1115
      %v1315 = vunpack.c.l.b16 %v1116
      %v1316 = vunpack.c.l.b16 %v1117
      %v1317 = vunpack.c.l.b16 %v1118
      %v1318 = vunpack.c.l.b16 %v1119
      %v1319 = vunpack.c.l.b16 %v1120
      %v1320 = vpack.c.b16 %v1225, %v1224
      %v1321 = vpack.c.b16 %v1227, %v1226
      %v1322 = vpack.c.b16 %v1229, %v1228
      %v1323 = vpack.c.b16 %v1231, %v1230
      %v1324 = vpack.c.b16 %v1233, %v1232
      %v1325 = vpack.c.b16 %v1235, %v1234
      %v1326 = vpack.c.b16 %v1237, %v1236
      %v1327 = vpack.c.b16 %v1239, %v1238
      %v1328 = vpack.c.b16 %v1241, %v1240
      %v1329 = vpack.c.b16 %v1243, %v1242
      %v1330 = vpack.c.b16 %v1245, %v1244
      %v1331 = vpack.c.b16 %v1247, %v1246
      %v1332 = vpack.c.b16 %v1249, %v1248
      %v1333 = vpack.c.b16 %v1251, %v1250
      %v1334 = vpack.c.b16 %v1253, %v1252
      %v1335 = vpack.c.b16 %v1255, %v1254
      %v1336 = vpack.c.b16 %v1257, %v1256
      %v1337 = vpack.c.b16 %v1259, %v1258
      %v1338 = vpack.c.b16 %v1261, %v1260
      %v1339 = vpack.c.b16 %v1263, %v1262
      %v1340 = vpack.c.b16 %v1265, %v1264
      %v1341 = vpack.c.b16 %v1267, %v1266
      %v1342 = vpack.c.b16 %v1269, %v1268
      %v1343 = vpack.c.b16 %v1271, %v1270
      %v1344 = vpack.c.b16 %v1273, %v1272
      %v1345 = vpack.c.b16 %v1275, %v1274
      %v1346 = vpack.c.b16 %v1277, %v1276
      %v1347 = vpack.c.b16 %v1279, %v1278
      %v1348 = vpack.c.b16 %v1281, %v1280
      %v1349 = vpack.c.b16 %v1283, %v1282
      %v1350 = vpack.c.b16 %v1285, %v1284
      %v1351 = vpack.c.b16 %v1287, %v1286
      %v1352 = vpack.c.b16 %v1289, %v1288
      %v1353 = vpack.c.b16 %v1291, %v1290
      %v1354 = vpack.c.b16 %v1293, %v1292
      %v1355 = vpack.c.b16 %v1295, %v1294
      %v1356 = vpack.c.b16 %v1297, %v1296
      %v1357 = vpack.c.b16 %v1299, %v1298
      %v1358 = vpack.c.b16 %v1301, %v1300
      %v1359 = vpack.c.b16 %v1303, %v1302
      %v1360 = vpack.c.b16 %v1305, %v1304
      %v1361 = vpack.c.b16 %v1307, %v1306
      %v1362 = vpack.c.b16 %v1309, %v1308
      %v1363 = vpack.c.b16 %v1311, %v1310
      %v1364 = vpack.c.b16 %v1313, %v1312
      %v1365 = vpack.c.b16 %v1315, %v1314
      %v1366 = vpack.c.b16 %v1317, %v1316
      %v1367 = vpack.c.b16 %v1319, %v1318
      %1416 = vmatprep.subr.bf16.mxu0 0
      %1417 = vmatpush1.bf16.msra.mxu0 %v1327
      %1418 = vmatprep.subr.bf16.mxu0 0
      %1419 = vmatpush1.bf16.msra.mxu0 %v1326
      %1420 = vmatprep.subr.bf16.mxu0 0
      %1421 = vmatpush1.bf16.msra.mxu0 %v1325
      %1422 = vmatprep.subr.bf16.mxu0 0
      %1423 = vmatpush1.bf16.msra.mxu0 %v1324
      %1424 = vmatprep.subr.bf16.mxu0 0
      %1425 = vmatpush1.bf16.msra.mxu0 %v1323
      %1426 = vmatprep.subr.bf16.mxu0 0
      %1427 = vmatpush1.bf16.msra.mxu0 %v1322
      %1428 = vmatprep.subr.bf16.mxu0 0
      %1429 = vmatpush1.bf16.msra.mxu0 %v1321
      %1430 = vmatprep.subr.bf16.mxu0 0
      %1431 = vmatpush1.bf16.msra.mxu0 %v1320
      %1432 = vmatprep.subr.bf16.mxu0 0
      %1433 = vmatpush2.bf16.msra.mxu0 %v1335
      %1434 = vmatprep.subr.bf16.mxu0 0
      %1435 = vmatpush2.bf16.msra.mxu0 %v1334
      %1436 = vmatprep.subr.bf16.mxu0 0
      %1437 = vmatpush2.bf16.msra.mxu0 %v1333
      %1438 = vmatprep.subr.bf16.mxu0 0
      %1439 = vmatpush2.bf16.msra.mxu0 %v1332
      %1440 = vmatprep.subr.bf16.mxu0 0
      %1441 = vmatpush2.bf16.msra.mxu0 %v1331
      %1442 = vmatprep.subr.bf16.mxu0 0
      %1443 = vmatpush2.bf16.msra.mxu0 %v1330
      %1444 = vmatprep.subr.bf16.mxu0 0
      %1445 = vmatpush2.bf16.msra.mxu0 %v1329
      %1446 = vmatprep.subr.bf16.mxu0 0
      %1447 = vmatpush2.bf16.msra.mxu0 %v1328
      %1448 = vmatprep.mubr.bf16.mxu0 %v1007
      %1449 = vmatmul.mubr.bf16.gmra.mxu0 %v1003
      %v1450 = vpop.f32.mrf.mxu0
      %v1451 = vadd.f32 %v1126, %v1450
      %v1452 = vpop.f32.mrf.mxu0
      %v1453 = vpop.f32.mrf.mxu0
      %v1454 = vadd.f32 %v1126, %v1453
      %v1455 = vpop.f32.mrf.mxu0
      %1456 = vdwg.mxu0
      %1457 = vmatprep.subr.bf16.mxu0 0
      %1458 = vmatpush1.bf16.msra.mxu0 %v1343
      %1459 = vmatprep.subr.bf16.mxu0 0
      %1460 = vmatpush1.bf16.msra.mxu0 %v1342
      %1461 = vmatprep.subr.bf16.mxu0 0
      %1462 = vmatpush1.bf16.msra.mxu0 %v1341
      %1463 = vmatprep.subr.bf16.mxu0 0
      %1464 = vmatpush1.bf16.msra.mxu0 %v1340
      %1465 = vmatprep.subr.bf16.mxu0 0
      %1466 = vmatpush1.bf16.msra.mxu0 %v1339
      %1467 = vmatprep.subr.bf16.mxu0 0
      %1468 = vmatpush1.bf16.msra.mxu0 %v1338
      %1469 = vmatprep.subr.bf16.mxu0 0
      %1470 = vmatpush1.bf16.msra.mxu0 %v1337
      %1471 = vmatprep.subr.bf16.mxu0 0
      %1472 = vmatpush1.bf16.msra.mxu0 %v1336
      %1473 = vmatprep.subr.bf16.mxu0 0
      %1474 = vmatpush2.bf16.msra.mxu0 %v1351
      %1475 = vmatprep.subr.bf16.mxu0 0
      %1476 = vmatpush2.bf16.msra.mxu0 %v1350
      %1477 = vmatprep.subr.bf16.mxu0 0
      %1478 = vmatpush2.bf16.msra.mxu0 %v1349
      %1479 = vmatprep.subr.bf16.mxu0 0
      %1480 = vmatpush2.bf16.msra.mxu0 %v1348
      %1481 = vmatprep.subr.bf16.mxu0 0
      %1482 = vmatpush2.bf16.msra.mxu0 %v1347
      %1483 = vmatprep.subr.bf16.mxu0 0
      %1484 = vmatpush2.bf16.msra.mxu0 %v1346
      %1485 = vmatprep.subr.bf16.mxu0 0
      %1486 = vmatpush2.bf16.msra.mxu0 %v1345
      %1487 = vmatprep.subr.bf16.mxu0 0
      %1488 = vmatpush2.bf16.msra.mxu0 %v1344
      %1489 = vmatprep.mubr.bf16.mxu0 %v1015
      %1490 = vmatmul.mubr.bf16.gmra.mxu0 %v1011
      %v1491 = vpop.f32.mrf.mxu0
      %v1492 = vadd.f32 %v1451, %v1491
      %v1493 = vpop.f32.mrf.mxu0
      %v1494 = vpop.f32.mrf.mxu0
      %v1495 = vadd.f32 %v1454, %v1494
      %v1496 = vpop.f32.mrf.mxu0
      %1497 = vdwg.mxu0
      %1498 = vmatprep.subr.bf16.mxu0 0
      %1499 = vmatpush1.bf16.msra.mxu0 %v1359
      %1500 = vmatprep.subr.bf16.mxu0 0
      %1501 = vmatpush1.bf16.msra.mxu0 %v1358
      %1502 = vmatprep.subr.bf16.mxu0 0
      %1503 = vmatpush1.bf16.msra.mxu0 %v1357
      %1504 = vmatprep.subr.bf16.mxu0 0
      %1505 = vmatpush1.bf16.msra.mxu0 %v1356
      %1506 = vmatprep.subr.bf16.mxu0 0
      %1507 = vmatpush1.bf16.msra.mxu0 %v1355
      %1508 = vmatprep.subr.bf16.mxu0 0
      %1509 = vmatpush1.bf16.msra.mxu0 %v1354
      %1510 = vmatprep.subr.bf16.mxu0 0
      %1511 = vmatpush1.bf16.msra.mxu0 %v1353
      %1512 = vmatprep.subr.bf16.mxu0 0
      %1513 = vmatpush1.bf16.msra.mxu0 %v1352
      %1514 = vmatprep.subr.bf16.mxu0 0
      %1515 = vmatpush2.bf16.msra.mxu0 %v1367
      %1516 = vmatprep.subr.bf16.mxu0 0
      %1517 = vmatpush2.bf16.msra.mxu0 %v1366
      %1518 = vmatprep.subr.bf16.mxu0 0
      %1519 = vmatpush2.bf16.msra.mxu0 %v1365
      %1520 = vmatprep.subr.bf16.mxu0 0
      %1521 = vmatpush2.bf16.msra.mxu0 %v1364
      %1522 = vmatprep.subr.bf16.mxu0 0
      %1523 = vmatpush2.bf16.msra.mxu0 %v1363
      %1524 = vmatprep.subr.bf16.mxu0 0
      %1525 = vmatpush2.bf16.msra.mxu0 %v1362
      %1526 = vmatprep.subr.bf16.mxu0 0
      %1527 = vmatpush2.bf16.msra.mxu0 %v1361
      %1528 = vmatprep.subr.bf16.mxu0 0
      %1529 = vmatpush2.bf16.msra.mxu0 %v1360
      %1530 = vmatprep.mubr.bf16.mxu0 %v1023
      %1531 = vmatmul.mubr.bf16.gmra.mxu0 %v1019
      %v1532 = vpop.f32.mrf.mxu0
      %v1533 = vadd.f32 %v1492, %v1532
      %v1534 = vpop.f32.mrf.mxu0
      %v1535 = vpop.f32.mrf.mxu0
      %v1536 = vadd.f32 %v1495, %v1535
      %v1537 = vpop.f32.mrf.mxu0
      %1538 = vdwg.mxu0
      %v1539 = vmax.f32 %v1533, 0.0
      %v1540 = vmax.f32 %v1536, 0.0
      %v1541 = vpack.c.bf16 %v1540, %v1539
      %v1543 = vunpack.c.l.b16 %v1541
      %v1544 = vunpack.c.h.b16 %v1541
      %v1545 = vpack.c.b16 %v1543, %v1543
      %v1546 = vpack.c.b16 %v1544, %v1544
      %vm1549 = vcmask 519168
      %1550 = vst.msk [vmem:[%s901] sm:$0xf] %vm1549, %v1545
      %1551 = vst.msk [vmem:[%s901 + $0x4] sm:$0xf] %vm1549, %v1546
      %s1552 = smul.u32 2, %s30
      %p1553 = scmp.lt.s32.totalorder %s29, 1
      %s1554 = scalar_select %p1553, %s29, 1
      %p1555 = scmp.lt.s32.totalorder %s1552, 1
      %s1556 = scalar_select %p1555, %s1552, 1
      %s1557 = smul.addr %s1554, 2
      %s1558 = sadd.s32 %s1556, %s1557
      %s1559 = smul.addr %s1558, 4
      %s1560 = scalar_lea.vmem %s14, %s1559
      // Predicated region
      $region77: #{colorize_net_forward.159} parent=75 // pred_check
        %p1561 = pneg %p435
      $region78: #{colorize_net_forward.159} parent=75 // pred_check_branch
        %1563 = sbr.rel (%p1561) target = $region80
      $region79: #{colorize_net_forward.159} parent=75 // pred_region
        %s1564 = smul.u32 2, %s30
      $region80: #{colorize_net_forward.159} parent=75 // pred_fallthru
        _
    $region76: #{colorize_net_forward.159} parent=5 // pred_fallthru
      _
    %p1565 = scmp.le.s32.totalorder 2, %s20
    // Predicated region
    $region81: #{colorize_net_forward.159} parent=5 // pred_check
      %p1566 = pneg %p1565
    $region82: #{colorize_net_forward.159} parent=5 // pred_check_branch
      %1568 = sbr.rel (%p1566) target = $region84
    $region83: #{colorize_net_forward.159} parent=5 // pred_region
      %s1569 = ssub.s32 %s20, 2
      // Predicated region
      $region85: #{colorize_net_forward.159} parent=83 // pred_check
        %p1570 = pneg %p441
      $region86: #{colorize_net_forward.159} parent=83 // pred_check_branch
        %1572 = sbr.rel (%p1570) target = $region88
      $region87: #{colorize_net_forward.159} parent=83 // pred_region
        %s1573 = smul.u32 2, %s32
        %p1574 = scmp.lt.s32.totalorder %s31, 1
        %s1575 = scalar_select %p1574, %s31, 1
        %p1576 = scmp.lt.s32.totalorder %s1573, 1
        %s1577 = scalar_select %p1576, %s1573, 1
        %s1578 = smul.addr %s1575, 2
        %s1579 = sadd.s32 %s1577, %s1578
        %s1580 = smul.addr %s1579, 4
        %s1581 = scalar_lea.vmem %s14, %s1580
      $region88: #{colorize_net_forward.159} parent=83 // pred_fallthru
        _
    $region84: #{colorize_net_forward.159} parent=5 // pred_fallthru
      _
  $region6: #{colorize_net_forward.159} parent=0 // loop_footer
    %s24 = sadd.s32 1, %s20
  $region7: #{colorize_net_forward.159} parent=0 // loop_footer_branch
    %19 = sbr.rel target = $region3
  $region8: #{colorize_net_forward.159} parent=0 // loop_exit
    _

// kernel: colorize_net_forward.161
$region0: #{colorize_net_forward.161}
  #allocation0 [shape = 'u32[]', space=smem, size = 0x4, offset = 0x4, fixed_abs, tag = 'smem constant byte address 0x4 - core index']
  #allocation1 [shape = 'u32[144,128]{1,0:T(1,128)}', space=vmem, size = 0x12000, scoped, tag = 'internal scratch']
  %s0 = inlined_call_operand.vmem [shape: bf16[2,16,64], index: 0, kind: input, shape index: {}]
  %s1 = inlined_call_operand.vmem [shape: bf16[576,48], index: 1, kind: input, shape index: {}]
  %s2 = inlined_call_operand.vmem [shape: f32[1,48], index: 2, kind: input, shape index: {}]
  %s3 = inlined_call_operand.vmem [shape: bf16[2,16,48], index: 3, kind: output, shape index: {}]
  %s4 = sld [smem:[#allocation0]]
  $region45: #{colorize_net_forward.161} parent=0
    _
  %s6 = ssub.s32 1, %s4
  %s7 = scalar_select 0, %s6, %s4
  loop: start=0, step=1, limit=4
  $region2: #{colorize_net_forward.161} parent=0 // loop_pre_header
    _
  $region3: #{colorize_net_forward.161} parent=0 // loop_header
    %s9 = sphi 0, %s13
    %p10 = scmp.ge.s32.totalorder %s9, 4
    %s16 = sphi 0, %s28
    %s17 = sphi 0, %s24
    %s18 = sphi 0, %s16
    %s19 = sphi 0, %s17
    %s20 = sphi 0, %s18
    %s21 = sphi 0, %s19
    %s33 = sphi 0, %s35
    %s36 = sphi 0, %s33
    %s37 = sphi 0, %s36
    %s53 = sphi 0, %s37
    %s57 = sphi 0, %s57
    %s59 = sphi 0, %s57
    %s60 = sphi 0, %s59
    %s74 = sphi 0, %s60
    %s78 = sphi 0, %s78
    %s80 = sphi 0, %s78
    %s81 = sphi 0, %s80
    %s95 = sphi 0, %s81
    %s103 = sphi 0, %s105
    %s106 = sphi 0, %s103
    %s107 = sphi 0, %s106
    %s123 = sphi 0, %s107
  $region4: #{colorize_net_forward.161} parent=0 // loop_header_branch
    %12 = sbr.rel (%p10) target = $region8
  $region5: #{colorize_net_forward.161} parent=0 // loop_body
    %s14 = ssub.s32 %s9, 1
    %s15 = ssub.s32 %s9, 2
    %s22 = sadd.s32 1, %s17
    %p23 = scmp.ge.s32.totalorder %s22, 1
    %s24 = scalar_select %p23, 0, %s22
    %s25 = sadd.s32 1, %s16
    %s26 = scalar_select %p23, %s25, %s16
    %p27 = scmp.ge.s32.totalorder %s26, 2
    %s28 = scalar_select %p27, 0, %s26
    %s29 = ssub.s32 %s16, %s28
    %s30 = ssub.s32 %s17, %s24
    %s31 = sor.u32 %s29, %s30
    %p32 = scmp.eq.s32.totalorder %s31, 0
    %s34 = sadd.s32 %s33, 1
    %s35 = scalar_select %p32, %s33, %s34
    %p38 = pneg %p32
    %p39 = scmp.eq.s32.totalorder %s9, 1
    %p40 = por %p38, %p39
    %p41 = scmp.ne.s32.totalorder %s33, %s36
    %p42 = scmp.eq.s32.totalorder %s9, 0
    %p43 = por %p41, %p42
    %p44 = scmp.ne.s32.totalorder %s33, %s36
    %p45 = scmp.eq.s32.totalorder %s14, 1
    %p46 = por %p44, %p45
    %p47 = scmp.ne.s32.totalorder %s36, %s37
    %p48 = scmp.eq.s32.totalorder %s14, 0
    %p49 = por %p47, %p48
    %p50 = scmp.ne.s32.totalorder %s36, %s37
    %p51 = scmp.eq.s32.totalorder %s15, 1
    %p52 = por %p50, %p51
    %p54 = scmp.ne.s32.totalorder %s37, %s53
    %p55 = scmp.eq.s32.totalorder %s15, 0
    %p56 = por %p54, %p55
    %s58 = sadd.s32 %s57, 1
    %p61 = scmp.eq.s32.totalorder %s9, 1
    %p62 = scmp.ne.s32.totalorder %s57, %s59
    %p63 = scmp.eq.s32.totalorder %s9, 0
    %p64 = por %p62, %p63
    %p65 = scmp.ne.s32.totalorder %s57, %s59
    %p66 = scmp.eq.s32.totalorder %s14, 1
    %p67 = por %p65, %p66
    %p68 = scmp.ne.s32.totalorder %s59, %s60
    %p69 = scmp.eq.s32.totalorder %s14, 0
    %p70 = por %p68, %p69
    %p71 = scmp.ne.s32.totalorder %s59, %s60
    %p72 = scmp.eq.s32.totalorder %s15, 1
    %p73 = por %p71, %p72
    %p75 = scmp.ne.s32.totalorder %s60, %s74
    %p76 = scmp.eq.s32.totalorder %s15, 0
    %p77 = por %p75, %p76
    %s79 = sadd.s32 %s78, 1
    %p82 = scmp.eq.s32.totalorder %s9, 1
    %p83 = scmp.ne.s32.totalorder %s78, %s80
    %p84 = scmp.eq.s32.totalorder %s9, 0
    %p85 = por %p83, %p84
    %p86 = scmp.ne.s32.totalorder %s78, %s80
    %p87 = scmp.eq.s32.totalorder %s14, 1
    %p88 = por %p86, %p87
    %p89 = scmp.ne.s32.totalorder %s80, %s81
    %p90 = scmp.eq.s32.totalorder %s14, 0
    %p91 = por %p89, %p90
    %p92 = scmp.ne.s32.totalorder %s80, %s81
    %p93 = scmp.eq.s32.totalorder %s15, 1
    %p94 = por %p92, %p93
    %p96 = scmp.ne.s32.totalorder %s81, %s95
    %p97 = scmp.eq.s32.totalorder %s15, 0
    %p98 = por %p96, %p97
    %s99 = ssub.s32 %s16, %s28
    %s100 = ssub.s32 %s17, %s24
    %s101 = sor.u32 %s99, %s100
    %p102 = scmp.eq.s32.totalorder %s101, 0
    %s104 = sadd.s32 %s103, 1
    %s105 = scalar_select %p102, %s103, %s104
    %p108 = pneg %p102
    %p109 = scmp.eq.s32.totalorder %s9, 1
    %p110 = por %p108, %p109
    %p111 = scmp.ne.s32.totalorder %s103, %s106
    %p112 = scmp.eq.s32.totalorder %s9, 0
    %p113 = por %p111, %p112
    %p114 = scmp.ne.s32.totalorder %s103, %s106
    %p115 = scmp.eq.s32.totalorder %s14, 1
    %p116 = por %p114, %p115
    %p117 = scmp.ne.s32.totalorder %s106, %s107
    %p118 = scmp.eq.s32.totalorder %s14, 0
    %p119 = por %p117, %p118
    %p120 = scmp.ne.s32.totalorder %s106, %s107
    %p121 = scmp.eq.s32.totalorder %s15, 1
    %p122 = por %p120, %p121
    %p124 = scmp.ne.s32.totalorder %s107, %s123
    %p125 = scmp.eq.s32.totalorder %s15, 0
    %p126 = por %p124, %p125
    %p127 = scmp.le.s32.totalorder 1, %s9
    %p128 = scmp.lt.s32.totalorder %s9, 3
    %p129 = pnand %p127, %p128
    %p130 = pneg %p129
    // Predicated region
    $region9: #{colorize_net_forward.161} parent=5 // pred_check
      _
    $region10: #{colorize_net_forward.161} parent=5 // pred_check_branch
      %132 = sbr.rel (%p129) target = $region12
    $region11: #{colorize_net_forward.161} parent=5 // pred_region
      %s133 = ssub.s32 %s9, 1
      // Predicated region
      $region13: #{colorize_net_forward.161} parent=11 // pred_check
        %p134 = pneg %p70
      $region14: #{colorize_net_forward.161} parent=11 // pred_check_branch
        %136 = sbr.rel (%p134) target = $region16
      $region15: #{colorize_net_forward.161} parent=11 // pred_region
        _
      $region16: #{colorize_net_forward.161} parent=11 // pred_fallthru
        _
      // Predicated region
      $region17: #{colorize_net_forward.161} parent=11 // pred_check
        %p137 = pneg %p91
      $region18: #{colorize_net_forward.161} parent=11 // pred_check_branch
        %139 = sbr.rel (%p137) target = $region20
      $region19: #{colorize_net_forward.161} parent=11 // pred_region
        _
      $region20: #{colorize_net_forward.161} parent=11 // pred_fallthru
        _
    $region12: #{colorize_net_forward.161} parent=5 // pred_fallthru
      _
    %p140 = scmp.lt.s32.totalorder %s9, 2
    // Predicated region
    $region21: #{colorize_net_forward.161} parent=5 // pred_check
      %p141 = pneg %p140
    $region22: #{colorize_net_forward.161} parent=5 // pred_check_branch
      %143 = sbr.rel (%p141) target = $region24
    $region23: #{colorize_net_forward.161} parent=5 // pred_region
      // Predicated region
      $region25: #{colorize_net_forward.161} parent=23 // pred_check
        %p144 = pneg %p43
      $region26: #{colorize_net_forward.161} parent=23 // pred_check_branch
        %146 = sbr.rel (%p144) target = $region28
      $region27: #{colorize_net_forward.161} parent=23 // pred_region
        %s147 = smul.u32 2, %s17
        %p148 = scmp.lt.s32.totalorder %s16, 1
        %s149 = scalar_select %p148, %s16, 1
        %p150 = scmp.lt.s32.totalorder %s147, 1
        %s151 = scalar_select %p150, %s147, 1
        %s152 = smul.addr %s149, 2
        %s153 = sadd.s32 %s151, %s152
        %s154 = smul.addr %s153, 4
        %s155 = scalar_lea.vmem %s0, %s154
        %s156 = smul.u32 2, %s17
      $region28: #{colorize_net_forward.161} parent=23 // pred_fallthru
        _
    $region24: #{colorize_net_forward.161} parent=5 // pred_fallthru
      _
    %p157 = scmp.le.s32.totalorder 1, %s9
    %p158 = scmp.lt.s32.totalorder %s9, 3
    %p159 = pnand %p157, %p158
    %p160 = pneg %p159
    // Predicated region
    $region29: #{colorize_net_forward.161} parent=5 // pred_check
      _
    $region30: #{colorize_net_forward.161} parent=5 // pred_check_branch
      %162 = sbr.rel (%p159) target = $region32
    $region31: #{colorize_net_forward.161} parent=5 // pred_region
      %s163 = ssub.s32 %s9, 1
      %s164 = smul.u32 2, %s19
      %p165 = scmp.lt.s32.totalorder %s18, 1
      %s166 = scalar_select %p165, %s18, 1
      %p167 = scmp.lt.s32.totalorder %s164, 1
      %s168 = scalar_select %p167, %s164, 1
      %s169 = smul.addr %s166, 2
      %s170 = sadd.s32 %s168, %s169
      %s171 = smul.addr %s170, 4
      %s172 = scalar_lea.vmem %s0, %s171
      %p173 = pneg %p49
      %p174 = pneg %p46
      %p175 = pneg %p70
      %p176 = pneg %p67
      %p177 = pneg %p91
      %p178 = pneg %p88
      %p179 = pneg %p119
      %p180 = pneg %p116
      %s181 = smul.u32 2, %s19
      %p182 = scmp.lt.s32.totalorder %s18, 1
      %s183 = scalar_select %p182, %s18, 1
      %p184 = scmp.lt.s32.totalorder %s181, 1
      %s185 = scalar_select %p184, %s181, 1
      %s186 = smul.addr %s183, 2
      %s187 = sadd.s32 %s185, %s186
      %s188 = smul.addr %s187, 4
      %s189 = scalar_lea.vmem %s3, %s188
      %s190 = smul.u32 2, %s19
      %p191 = scmp.lt.s32.totalorder %s18, 1
      %s192 = scalar_select %p191, %s18, 1
      %p193 = scmp.lt.s32.totalorder %s190, 1
      %s194 = scalar_select %p193, %s190, 1
      %s195 = smul.addr %s192, 2
      %s196 = sadd.s32 %s194, %s195
      %s197 = smul.addr %s196, 4
      %s198 = scalar_lea.vmem %s0, %s197
      %s199 = smul.u32 2, %s19
      %s200 = smul.u32 2, %s19
      %p201 = scmp.lt.s32.totalorder %s18, 1
      %s202 = scalar_select %p201, %s18, 1
      %p203 = scmp.lt.s32.totalorder %s200, 1
      %s204 = scalar_select %p203, %s200, 1
      %s205 = smul.addr %s202, 2
      %s206 = sadd.s32 %s204, %s205
      %s207 = smul.addr %s206, 4
      %s208 = scalar_lea.vmem %s3, %s207
      %s209 = smul.u32 2, %s19
      %v211 = vld [vmem:[%s198] sm:$0xf]
      %v212 = vld [vmem:[%s198 + $0x4] sm:$0xf]
      %v215 = vunpack.c.l.b16 %v211
      %v216 = vunpack.c.l.b16 %v212
      %v217 = vpack.c.b16 %v216, %v215
      %v219 = vshrl.u32 %v217, 16
      %v221 = vrot.slane %v219, 5
      %v222 = vshll.u32 %v217, 16
      %v224 = vrot.slane %v222, 6
      %v225 = vor.u32 %v221, %v224
      %vm227 = vcmask 1042432
      %vm228 = vsmask.f32 2304
      %vm229 = vmand %vm227, %vm228
      %v230 = vsel %vm229, 0, %v225
      %v231 = vsel %vm229, %v225, 0
      %vm232 = vcmask 1044480
      %vm233 = vsmask.f32 4352
      %vm234 = vmand %vm232, %vm233
      %v235 = vsel %vm234, %v231, 0
      %v236 = vlaneseq
      %v237 = vshrl.u32 %v236, 7
      %v238 = vadd.s32 %v237, 8
      %vm239 = vcmp.lt.s32.totalorder %v237, 0
      %v240 = vsub.s32 0, %v237
      %v241 = vsel %vm239, %v240, %v237
      %v242 = vshrl.u32 %v241, 2
      %v243 = vand.u32 %v241, 3
      %v244 = vsub.s32 0, %v243
      %v245 = vsel %vm239, %v244, %v243
      %vm246 = vcmp.lt.s32.totalorder %v238, 0
      %v247 = vsub.s32 0, %v238
      %v248 = vsel %vm246, %v247, %v238
      %v249 = vshrl.u32 %v248, 2
      %v250 = vand.u32 %v248, 3
      %v251 = vsub.s32 0, %v250
      %v252 = vsel %vm246, %v251, %v250
      %vm253 = vcmp.ne.s32.totalorder %v245, 0
      %vm254 = vcmp.ne.s32.totalorder %v252, 0
      %vm255 = vcmp.lt.s32.totalorder %v245, 0
      %vm256 = vcmp.lt.s32.totalorder %v252, 0
      %vm257 = vmand %vm255, %vm253
      %vm258 = vmand %vm256, %vm254
      %v259 = vadd.s32 %v245, 4
      %v260 = vadd.s32 %v252, 4
      %v261 = vsel %vm257, %v259, %v245
      %v262 = vsel %vm258, %v260, %v252
      %vm263 = vcmp.ne.s32.totalorder %v261, 0
      %vm264 = vcmp.ne.s32.totalorder %v262, 0
      %v265 = vsel %vm263, 1, 0
      %v266 = vsel %vm264, 1, 0
      %v267 = vcvt.s32.f32 %v265
      %v268 = vcvt.s32.f32 %v266
      %v269 = vpack.c.bf16 %v268, %v267
      %vm270 = vcmp.ne.s32.totalorder %v261, 3
      %vm271 = vcmp.ne.s32.totalorder %v262, 3
      %v272 = vsel %vm270, 1, 0
      %v273 = vsel %vm271, 1, 0
      %v274 = vcvt.s32.f32 %v272
      %v275 = vcvt.s32.f32 %v273
      %v276 = vpack.c.bf16 %v275, %v274
      %v277 = vmul.bf16 %v230, %v269
      %v279 = vrot.slane %v276, 7
      %v281 = vmul.bf16 %v230, %v279
      %v282 = vmul.bf16 %v235, %v279
      %v284 = vrot.slane %v269, 6
      %v286 = vmul.bf16 %v230, %v284
      %v287 = vmul.bf16 %v235, %v284
      %v288 = vrot.slane %v276, 5
      %v290 = vmul.bf16 %v230, %v288
      %v291 = vmul.bf16 %v235, %v288
      %v292 = vrot.slane %v269, 4
      %v294 = vmul.bf16 %v230, %v292
      %v295 = vmul.bf16 %v235, %v292
      %v296 = vrot.slane %v276, 3
      %v298 = vmul.bf16 %v230, %v296
      %v299 = vmul.bf16 %v235, %v296
      %vm300 = vsmask.f32 7424
      %v302 = vshrl.u32 %v230, 16
      %v304 = vshll.u32 %v230, 16
      %v306 = vrot.slane %v304, 1
      %v307 = vor.u32 %v302, %v306
      %v309 = vshll.u32 %v235, 16
      %v311 = vrot.slane %v309, 1
      %v312 = vsel %vm300, %v307, %v311
      %313 = vrot.lane.b32.xlu0 %v312, 64
      %v314 = vpop.permute.xlu0 %313
      %vm317 = vcmask 1046528
      %v318 = vrot.slane %v281, 1
      %v319 = vrot.slane %v282, 1
      %v320 = vsel %vm317, %v318, %v319
      %vm323 = vcmask 1045504
      %v324 = vrot.slane %v286, 2
      %v325 = vrot.slane %v287, 2
      %v326 = vsel %vm323, %v324, %v325
      %327 = vrot.lane.b32.xlu0 %v326, 64
      %v328 = vpop.permute.xlu0 %327
      %vm329 = vsmask.f32 5376
      %v330 = vrot.slane %v302, 2
      %v331 = vrot.slane %v304, 3
      %v332 = vor.u32 %v330, %v331
      %v333 = vshrl.u32 %v235, 16
      %v335 = vrot.slane %v333, 2
      %v336 = vrot.slane %v309, 3
      %v337 = vor.u32 %v335, %v336
      %v338 = vsel %vm329, %v332, %v337
      %v341 = vrot.slane %v290, 3
      %v342 = vrot.slane %v291, 3
      %v343 = vsel %vm232, %v341, %v342
      %344 = vrot.lane.b32.xlu0 %v343, 64
      %v345 = vpop.permute.xlu0 %344
      %vm348 = vcmask 1043456
      %v349 = vrot.slane %v294, 4
      %v350 = vrot.slane %v295, 4
      %v351 = vsel %vm348, %v349, %v350
      %vm352 = vsmask.f32 3328
      %v353 = vrot.slane %v302, 4
      %v354 = vrot.slane %v304, 5
      %v355 = vor.u32 %v353, %v354
      %v356 = vrot.slane %v333, 4
      %v357 = vrot.slane %v309, 5
      %v358 = vor.u32 %v356, %v357
      %v359 = vsel %vm352, %v355, %v358
      %360 = vrot.lane.b32.xlu0 %v359, 64
      %v361 = vpop.permute.xlu0 %360
      %v364 = vrot.slane %v298, 5
      %v365 = vrot.slane %v299, 5
      %v366 = vsel %vm227, %v364, %v365
      %vm367 = vcmask 523264
      %v370 = vsel %vm367, %v277, %v314
      %v374 = vsel %vm367, %v320, %v328
      %v378 = vsel %vm367, %v338, %v345
      %v382 = vsel %vm367, %v351, %v361
      %v384 = vld [vmem:[%s1] sm:$0xf]
      %v385 = vld [vmem:[%s1 + $0x4] sm:$0xf]
      %v386 = vld [vmem:[%s1 + $0x8] sm:$0xf]
      %v387 = vld [vmem:[%s1 + $0xc] sm:$0xf]
      %v388 = vld [vmem:[%s1 + $0x10] sm:$0xf]
      %v389 = vld [vmem:[%s1 + $0x14] sm:$0xf]
      %v390 = vld [vmem:[%s1 + $0x18] sm:$0xf]
      %v391 = vld [vmem:[%s1 + $0x1c] sm:$0xf]
      %v392 = vld [vmem:[%s1 + $0x20] sm:$0xf]
      %v393 = vld [vmem:[%s1 + $0x24] sm:$0xf]
      %v394 = vld [vmem:[%s1 + $0x28] sm:$0xf]
      %v395 = vld [vmem:[%s1 + $0x2c] sm:$0xf]
      %v396 = vld [vmem:[%s1 + $0x30] sm:$0xf]
      %v397 = vld [vmem:[%s1 + $0x34] sm:$0xf]
      %v398 = vld [vmem:[%s1 + $0x38] sm:$0xf]
      %v399 = vld [vmem:[%s1 + $0x3c] sm:$0xf]
      %v400 = vld [vmem:[%s1 + $0x40] sm:$0xf]
      %v401 = vld [vmem:[%s1 + $0x44] sm:$0xf]
      %v402 = vld [vmem:[%s1 + $0x48] sm:$0xf]
      %v403 = vld [vmem:[%s1 + $0x4c] sm:$0xf]
      %v404 = vld [vmem:[%s1 + $0x50] sm:$0xf]
      %v405 = vld [vmem:[%s1 + $0x54] sm:$0xf]
      %v406 = vld [vmem:[%s1 + $0x58] sm:$0xf]
      %v407 = vld [vmem:[%s1 + $0x5c] sm:$0xf]
      %v408 = vld [vmem:[%s1 + $0x60] sm:$0xf]
      %v409 = vld [vmem:[%s1 + $0x64] sm:$0xf]
      %v410 = vld [vmem:[%s1 + $0x68] sm:$0xf]
      %v411 = vld [vmem:[%s1 + $0x6c] sm:$0xf]
      %v412 = vld [vmem:[%s1 + $0x70] sm:$0xf]
      %v413 = vld [vmem:[%s1 + $0x74] sm:$0xf]
      %v414 = vld [vmem:[%s1 + $0x78] sm:$0xf]
      %v415 = vld [vmem:[%s1 + $0x7c] sm:$0xf]
      %v416 = vld [vmem:[%s1 + $0x80] sm:$0xf]
      %v417 = vld [vmem:[%s1 + $0x84] sm:$0xf]
      %v418 = vld [vmem:[%s1 + $0x88] sm:$0xf]
      %v419 = vld [vmem:[%s1 + $0x8c] sm:$0xf]
      %v420 = vld [vmem:[%s1 + $0x90] sm:$0xf]
      %v421 = vld [vmem:[%s1 + $0x94] sm:$0xf]
      %v422 = vld [vmem:[%s1 + $0x98] sm:$0xf]
      %v423 = vld [vmem:[%s1 + $0x9c] sm:$0xf]
      %v424 = vld [vmem:[%s1 + $0xa0] sm:$0xf]
      %v425 = vld [vmem:[%s1 + $0xa4] sm:$0xf]
      %v426 = vld [vmem:[%s1 + $0xa8] sm:$0xf]
      %v427 = vld [vmem:[%s1 + $0xac] sm:$0xf]
      %v428 = vld [vmem:[%s1 + $0xb0] sm:$0xf]
      %v429 = vld [vmem:[%s1 + $0xb4] sm:$0xf]
      %v430 = vld [vmem:[%s1 + $0xb8] sm:$0xf]
      %v431 = vld [vmem:[%s1 + $0xbc] sm:$0xf]
      %v432 = vld [vmem:[%s1 + $0xc0] sm:$0xf]
      %v433 = vld [vmem:[%s1 + $0xc4] sm:$0xf]
      %v434 = vld [vmem:[%s1 + $0xc8] sm:$0xf]
      %v435 = vld [vmem:[%s1 + $0xcc] sm:$0xf]
      %v436 = vld [vmem:[%s1 + $0xd0] sm:$0xf]
      %v437 = vld [vmem:[%s1 + $0xd4] sm:$0xf]
      %v438 = vld [vmem:[%s1 + $0xd8] sm:$0xf]
      %v439 = vld [vmem:[%s1 + $0xdc] sm:$0xf]
      %v440 = vld [vmem:[%s1 + $0xe0] sm:$0xf]
      %v441 = vld [vmem:[%s1 + $0xe4] sm:$0xf]
      %v442 = vld [vmem:[%s1 + $0xe8] sm:$0xf]
      %v443 = vld [vmem:[%s1 + $0xec] sm:$0xf]
      %v444 = vld [vmem:[%s1 + $0xf0] sm:$0xf]
      %v445 = vld [vmem:[%s1 + $0xf4] sm:$0xf]
      %v446 = vld [vmem:[%s1 + $0xf8] sm:$0xf]
      %v447 = vld [vmem:[%s1 + $0xfc] sm:$0xf]
      %v448 = vld [vmem:[%s1 + $0x100] sm:$0xf]
      %v449 = vld [vmem:[%s1 + $0x104] sm:$0xf]
      %v450 = vld [vmem:[%s1 + $0x108] sm:$0xf]
      %v451 = vld [vmem:[%s1 + $0x10c] sm:$0xf]
      %v452 = vld [vmem:[%s1 + $0x110] sm:$0xf]
      %v453 = vld [vmem:[%s1 + $0x114] sm:$0xf]
      %v454 = vld [vmem:[%s1 + $0x118] sm:$0xf]
      %v455 = vld [vmem:[%s1 + $0x11c] sm:$0xf]
      %v456 = vld [vmem:[%s2] sm:$0x1]
      %v458 = vlaneseq
      %v459 = vshrl.u32 %v458, 7
      %v460 = vsub.s32 0, %v459
      %v461 = vrot.slane %v456, %v460
      %v535 = vunpack.c.l.b16 %v384
      %v536 = vunpack.c.l.b16 %v385
      %v537 = vunpack.c.l.b16 %v386
      %v538 = vunpack.c.l.b16 %v387
      %v539 = vunpack.c.l.b16 %v388
      %v540 = vunpack.c.l.b16 %v389
      %v541 = vunpack.c.l.b16 %v390
      %v542 = vunpack.c.l.b16 %v391
      %v543 = vunpack.c.l.b16 %v392
      %v544 = vunpack.c.l.b16 %v393
      %v545 = vunpack.c.l.b16 %v394
      %v546 = vunpack.c.l.b16 %v395
      %v547 = vunpack.c.l.b16 %v396
      %v548 = vunpack.c.l.b16 %v397
      %v549 = vunpack.c.l.b16 %v398
      %v550 = vunpack.c.l.b16 %v399
      %v551 = vunpack.c.l.b16 %v400
      %v552 = vunpack.c.l.b16 %v401
      %v553 = vunpack.c.l.b16 %v402
      %v554 = vunpack.c.l.b16 %v403
      %v555 = vunpack.c.l.b16 %v404
      %v556 = vunpack.c.l.b16 %v405
      %v557 = vunpack.c.l.b16 %v406
      %v558 = vunpack.c.l.b16 %v407
      %v559 = vunpack.c.l.b16 %v408
      %v560 = vunpack.c.l.b16 %v409
      %v561 = vunpack.c.l.b16 %v410
      %v562 = vunpack.c.l.b16 %v411
      %v563 = vunpack.c.l.b16 %v412
      %v564 = vunpack.c.l.b16 %v413
      %v565 = vunpack.c.l.b16 %v414
      %v566 = vunpack.c.l.b16 %v415
      %v567 = vunpack.c.l.b16 %v416
      %v568 = vunpack.c.l.b16 %v417
      %v569 = vunpack.c.l.b16 %v418
      %v570 = vunpack.c.l.b16 %v419
      %v571 = vunpack.c.l.b16 %v420
      %v572 = vunpack.c.l.b16 %v421
      %v573 = vunpack.c.l.b16 %v422
      %v574 = vunpack.c.l.b16 %v423
      %v575 = vunpack.c.l.b16 %v424
      %v576 = vunpack.c.l.b16 %v425
      %v577 = vunpack.c.l.b16 %v426
      %v578 = vunpack.c.l.b16 %v427
      %v579 = vunpack.c.l.b16 %v428
      %v580 = vunpack.c.l.b16 %v429
      %v581 = vunpack.c.l.b16 %v430
      %v582 = vunpack.c.l.b16 %v431
      %v583 = vunpack.c.l.b16 %v432
      %v584 = vunpack.c.l.b16 %v433
      %v585 = vunpack.c.l.b16 %v434
      %v586 = vunpack.c.l.b16 %v435
      %v587 = vunpack.c.l.b16 %v436
      %v588 = vunpack.c.l.b16 %v437
      %v589 = vunpack.c.l.b16 %v438
      %v590 = vunpack.c.l.b16 %v439
      %v591 = vunpack.c.l.b16 %v440
      %v592 = vunpack.c.l.b16 %v441
      %v593 = vunpack.c.l.b16 %v442
      %v594 = vunpack.c.l.b16 %v443
      %v595 = vunpack.c.l.b16 %v444
      %v596 = vunpack.c.l.b16 %v445
      %v597 = vunpack.c.l.b16 %v446
      %v598 = vunpack.c.l.b16 %v447
      %v599 = vunpack.c.l.b16 %v448
      %v600 = vunpack.c.l.b16 %v449
      %v601 = vunpack.c.l.b16 %v450
      %v602 = vunpack.c.l.b16 %v451
      %v603 = vunpack.c.l.b16 %v452
      %v604 = vunpack.c.l.b16 %v453
      %v605 = vunpack.c.l.b16 %v454
      %v606 = vunpack.c.l.b16 %v455
      %v607 = vpack.c.b16 %v536, %v535
      %v608 = vpack.c.b16 %v538, %v537
      %v609 = vpack.c.b16 %v540, %v539
      %v610 = vpack.c.b16 %v542, %v541
      %v611 = vpack.c.b16 %v544, %v543
      %v612 = vpack.c.b16 %v546, %v545
      %v613 = vpack.c.b16 %v548, %v547
      %v614 = vpack.c.b16 %v550, %v549
      %v615 = vpack.c.b16 %v552, %v551
      %v616 = vpack.c.b16 %v554, %v553
      %v617 = vpack.c.b16 %v556, %v555
      %v618 = vpack.c.b16 %v558, %v557
      %v619 = vpack.c.b16 %v560, %v559
      %v620 = vpack.c.b16 %v562, %v561
      %v621 = vpack.c.b16 %v564, %v563
      %v622 = vpack.c.b16 %v566, %v565
      %v623 = vpack.c.b16 %v568, %v567
      %v624 = vpack.c.b16 %v570, %v569
      %v625 = vpack.c.b16 %v572, %v571
      %v626 = vpack.c.b16 %v574, %v573
      %v627 = vpack.c.b16 %v576, %v575
      %v628 = vpack.c.b16 %v578, %v577
      %v629 = vpack.c.b16 %v580, %v579
      %v630 = vpack.c.b16 %v582, %v581
      %v631 = vpack.c.b16 %v584, %v583
      %v632 = vpack.c.b16 %v586, %v585
      %v633 = vpack.c.b16 %v588, %v587
      %v634 = vpack.c.b16 %v590, %v589
      %v635 = vpack.c.b16 %v592, %v591
      %v636 = vpack.c.b16 %v594, %v593
      %v637 = vpack.c.b16 %v596, %v595
      %v638 = vpack.c.b16 %v598, %v597
      %v639 = vpack.c.b16 %v600, %v599
      %v640 = vpack.c.b16 %v602, %v601
      %v641 = vpack.c.b16 %v604, %v603
      %v642 = vpack.c.b16 %v606, %v605
      %v680 = vsel %vm367, %v366, 0
      %682 = vmatprep.subr.bf16.mxu0 0
      %683 = vmatpush1.bf16.msra.mxu0 %v614
      %684 = vmatprep.subr.bf16.mxu0 0
      %685 = vmatpush1.bf16.msra.mxu0 %v613
      %686 = vmatprep.subr.bf16.mxu0 0
      %687 = vmatpush1.bf16.msra.mxu0 %v612
      %688 = vmatprep.subr.bf16.mxu0 0
      %689 = vmatpush1.bf16.msra.mxu0 %v611
      %690 = vmatprep.subr.bf16.mxu0 0
      %691 = vmatpush1.bf16.msra.mxu0 %v610
      %692 = vmatprep.subr.bf16.mxu0 0
      %693 = vmatpush1.bf16.msra.mxu0 %v609
      %694 = vmatprep.subr.bf16.mxu0 0
      %695 = vmatpush1.bf16.msra.mxu0 %v608
      %696 = vmatprep.subr.bf16.mxu0 0
      %697 = vmatpush1.bf16.msra.mxu0 %v607
      %698 = vmatprep.subr.bf16.mxu0 0
      %699 = vmatpush2.bf16.msra.mxu0 %v622
      %700 = vmatprep.subr.bf16.mxu0 0
      %701 = vmatpush2.bf16.msra.mxu0 %v621
      %702 = vmatprep.subr.bf16.mxu0 0
      %703 = vmatpush2.bf16.msra.mxu0 %v620
      %704 = vmatprep.subr.bf16.mxu0 0
      %705 = vmatpush2.bf16.msra.mxu0 %v619
      %706 = vmatprep.subr.bf16.mxu0 0
      %707 = vmatpush2.bf16.msra.mxu0 %v618
      %708 = vmatprep.subr.bf16.mxu0 0
      %709 = vmatpush2.bf16.msra.mxu0 %v617
      %710 = vmatprep.subr.bf16.mxu0 0
      %711 = vmatpush2.bf16.msra.mxu0 %v616
      %712 = vmatprep.subr.bf16.mxu0 0
      %713 = vmatpush2.bf16.msra.mxu0 %v615
      %714 = vmatprep.mubr.bf16.mxu0 %v374
      %715 = vmatmul.mubr.bf16.gmra.mxu0 %v370
      %v716 = vpop.f32.mrf.mxu0
      %v717 = vadd.f32 %v461, %v716
      %v718 = vpop.f32.mrf.mxu0
      %v719 = vpop.f32.mrf.mxu0
      %v720 = vadd.f32 %v461, %v719
      %v721 = vpop.f32.mrf.mxu0
      %722 = vdwg.mxu0
      %723 = vmatprep.subr.bf16.mxu0 0
      %724 = vmatpush1.bf16.msra.mxu0 %v630
      %725 = vmatprep.subr.bf16.mxu0 0
      %726 = vmatpush1.bf16.msra.mxu0 %v629
      %727 = vmatprep.subr.bf16.mxu0 0
      %728 = vmatpush1.bf16.msra.mxu0 %v628
      %729 = vmatprep.subr.bf16.mxu0 0
      %730 = vmatpush1.bf16.msra.mxu0 %v627
      %731 = vmatprep.subr.bf16.mxu0 0
      %732 = vmatpush1.bf16.msra.mxu0 %v626
      %733 = vmatprep.subr.bf16.mxu0 0
      %734 = vmatpush1.bf16.msra.mxu0 %v625
      %735 = vmatprep.subr.bf16.mxu0 0
      %736 = vmatpush1.bf16.msra.mxu0 %v624
      %737 = vmatprep.subr.bf16.mxu0 0
      %738 = vmatpush1.bf16.msra.mxu0 %v623
      %739 = vmatprep.subr.bf16.mxu0 0
      %740 = vmatpush2.bf16.msra.mxu0 %v638
      %741 = vmatprep.subr.bf16.mxu0 0
      %742 = vmatpush2.bf16.msra.mxu0 %v637
      %743 = vmatprep.subr.bf16.mxu0 0
      %744 = vmatpush2.bf16.msra.mxu0 %v636
      %745 = vmatprep.subr.bf16.mxu0 0
      %746 = vmatpush2.bf16.msra.mxu0 %v635
      %747 = vmatprep.subr.bf16.mxu0 0
      %748 = vmatpush2.bf16.msra.mxu0 %v634
      %749 = vmatprep.subr.bf16.mxu0 0
      %750 = vmatpush2.bf16.msra.mxu0 %v633
      %751 = vmatprep.subr.bf16.mxu0 0
      %752 = vmatpush2.bf16.msra.mxu0 %v632
      %753 = vmatprep.subr.bf16.mxu0 0
      %754 = vmatpush2.bf16.msra.mxu0 %v631
      %755 = vmatprep.mubr.bf16.mxu0 %v382
      %756 = vmatmul.mubr.bf16.gmra.mxu0 %v378
      %v757 = vpop.f32.mrf.mxu0
      %v758 = vadd.f32 %v717, %v757
      %v759 = vpop.f32.mrf.mxu0
      %v760 = vpop.f32.mrf.mxu0
      %v761 = vadd.f32 %v720, %v760
      %v762 = vpop.f32.mrf.mxu0
      %763 = vdwg.mxu0
      %764 = vmatprep.subr.bf16.mxu0 0
      %765 = vmatpush1.bf16.msra.mxu0 0
      %766 = vmatprep.subr.bf16.mxu0 0
      %767 = vmatpush1.bf16.msra.mxu0 0
      %768 = vmatprep.subr.bf16.mxu0 0
      %769 = vmatpush1.bf16.msra.mxu0 0
      %770 = vmatprep.subr.bf16.mxu0 0
      %771 = vmatpush1.bf16.msra.mxu0 0
      %772 = vmatprep.subr.bf16.mxu0 0
      %773 = vmatpush1.bf16.msra.mxu0 %v642
      %774 = vmatprep.subr.bf16.mxu0 0
      %775 = vmatpush1.bf16.msra.mxu0 %v641
      %776 = vmatprep.subr.bf16.mxu0 0
      %777 = vmatpush1.bf16.msra.mxu0 %v640
      %778 = vmatprep.subr.bf16.mxu0 0
      %779 = vmatpush1.bf16.msra.mxu0 %v639
      %780 = vmatprep.subr.bf16.mxu0 0
      %781 = vmatpush2.bf16.msra.mxu0 0
      %782 = vmatprep.subr.bf16.mxu0 0
      %783 = vmatpush2.bf16.msra.mxu0 0
      %784 = vmatprep.subr.bf16.mxu0 0
      %785 = vmatpush2.bf16.msra.mxu0 0
      %786 = vmatprep.subr.bf16.mxu0 0
      %787 = vmatpush2.bf16.msra.mxu0 0
      %788 = vmatprep.subr.bf16.mxu0 0
      %789 = vmatpush2.bf16.msra.mxu0 0
      %790 = vmatprep.subr.bf16.mxu0 0
      %791 = vmatpush2.bf16.msra.mxu0 0
      %792 = vmatprep.subr.bf16.mxu0 0
      %793 = vmatpush2.bf16.msra.mxu0 0
      %794 = vmatprep.subr.bf16.mxu0 0
      %795 = vmatpush2.bf16.msra.mxu0 0
      %796 = vmatprep.mubr.bf16.mxu0 0
      %797 = vmatmul.mubr.bf16.gmra.mxu0 %v680
      %v798 = vpop.f32.mrf.mxu0
      %v799 = vadd.f32 %v758, %v798
      %v800 = vpop.f32.mrf.mxu0
      %v801 = vpop.f32.mrf.mxu0
      %v802 = vadd.f32 %v761, %v801
      %v803 = vpop.f32.mrf.mxu0
      %804 = vdwg.mxu0
      %v805 = vpack.c.bf16 %v802, %v799
      %v807 = vunpack.c.l.b16 %v805
      %v808 = vunpack.c.h.b16 %v805
      %v809 = vpack.c.b16 %v807, %v807
      %v810 = vpack.c.b16 %v808, %v808
      %vm813 = vcmask 388096
      %814 = vst.msk [vmem:[%s208] sm:$0xf] %vm813, %v809
      %815 = vst.msk [vmem:[%s208 + $0x4] sm:$0xf] %vm813, %v810
      %s816 = smul.u32 2, %s19
      %p817 = scmp.lt.s32.totalorder %s18, 1
      %s818 = scalar_select %p817, %s18, 1
      %p819 = scmp.lt.s32.totalorder %s816, 1
      %s820 = scalar_select %p819, %s816, 1
      %s821 = smul.addr %s818, 2
      %s822 = sadd.s32 %s820, %s821
      %s823 = smul.addr %s822, 4
      %s824 = scalar_lea.vmem %s3, %s823
      // Predicated region
      $region33: #{colorize_net_forward.161} parent=31 // pred_check
        %p825 = pneg %p116
      $region34: #{colorize_net_forward.161} parent=31 // pred_check_branch
        %827 = sbr.rel (%p825) target = $region36
      $region35: #{colorize_net_forward.161} parent=31 // pred_region
        %s828 = smul.u32 2, %s19
      $region36: #{colorize_net_forward.161} parent=31 // pred_fallthru
        _
    $region32: #{colorize_net_forward.161} parent=5 // pred_fallthru
      _
    %p829 = scmp.le.s32.totalorder 2, %s9
    // Predicated region
    $region37: #{colorize_net_forward.161} parent=5 // pred_check
      %p830 = pneg %p829
    $region38: #{colorize_net_forward.161} parent=5 // pred_check_branch
      %832 = sbr.rel (%p830) target = $region40
    $region39: #{colorize_net_forward.161} parent=5 // pred_region
      %s833 = ssub.s32 %s9, 2
      // Predicated region
      $region41: #{colorize_net_forward.161} parent=39 // pred_check
        %p834 = pneg %p122
      $region42: #{colorize_net_forward.161} parent=39 // pred_check_branch
        %836 = sbr.rel (%p834) target = $region44
      $region43: #{colorize_net_forward.161} parent=39 // pred_region
        %s837 = smul.u32 2, %s21
        %p838 = scmp.lt.s32.totalorder %s20, 1
        %s839 = scalar_select %p838, %s20, 1
        %p840 = scmp.lt.s32.totalorder %s837, 1
        %s841 = scalar_select %p840, %s837, 1
        %s842 = smul.addr %s839, 2
        %s843 = sadd.s32 %s841, %s842
        %s844 = smul.addr %s843, 4
        %s845 = scalar_lea.vmem %s3, %s844
      $region44: #{colorize_net_forward.161} parent=39 // pred_fallthru
        _
    $region40: #{colorize_net_forward.161} parent=5 // pred_fallthru
      _
  $region6: #{colorize_net_forward.161} parent=0 // loop_footer
    %s13 = sadd.s32 1, %s9
  $region7: #{colorize_net_forward.161} parent=0 // loop_footer_branch
    %8 = sbr.rel target = $region3
  $region8: #{colorize_net_forward.161} parent=0 // loop_exit
    _

</llo_original>
